<compile_context>
chip_gen: v5e
topology: v5e:2x2
jax: 0.10.0
libtpu: 0.0.40
codegen_flags: <defaults>
</compile_context>

<pallas_src>
import jax
import jax.numpy as jnp
import numpy as np
from jax.experimental import pallas as pl
from jax.experimental.pallas import tpu as pltpu


def _round_up(v, m):
    return ((v + m - 1) // m) * m


def build_plan(*, batch, num_channels, dim, planes, pool, fc_inputs, num_classes):
    """Static geometry: canvas sizes, pooled sizes, margins + safety asserts."""
    pad2 = 2 if dim == 28 else 1
    H1 = dim                                   # conv1 output side (3x3, pad 1, stride 1)
    specs = [
        (16, planes, pad2, "max", 2),          # conv2 (preceded by 2x2/2 maxpool)
        (planes, 16, 1, "max", 2),             # conv3 (preceded by 2x2/2 maxpool)
        (16, fc_inputs, 1, "avg", pool),       # conv4 (preceded by pool x pool /2 avgpool)
    ]
    convs = []
    H = H1                                     # conv output side of the previous conv
    for cin, cout, pad, kind, k in specs:
        Hpool = (H - k) // 2 + 1               # pooled side (stride 2, VALID / floor)
        Hp = Hpool + 2 * pad                   # zero-padded canvas side
        Hc = Hp - 2                            # conv output side
        m = _round_up(Hp + 1, 8)               # canvas head/tail margin for conv shifts
        assert m >= Hp + 1                     # shifted conv reads stay inside margins
        assert 2 * (Hpool - 1) + k <= H        # pool windows stay inside the conv output
        convs.append(dict(cin=cin, cout=cout, pad=pad, kind=kind, k=k,
                          Hpool=Hpool, Hp=Hp, Hc=Hc, Rimg=Hp * Hp, m=m))
        H = Hc
    S = convs[-1]["Hc"]                        # spatial side feeding the FC
    assert 1 <= S <= convs[-1]["Hp"] - 2       # FC anchors are interior canvas rows
    return dict(batch=batch, num_classes=num_classes, num_channels=num_channels,
                dim=dim, pool=pool, fc_inputs=fc_inputs, H1=H1, convs=convs,
                fc_side=S, fc_in=fc_inputs * S * S)


# ----------------------------------------------------------------------------
# Fused kernel
# ----------------------------------------------------------------------------
_CHUNK = 128   # conv row-chunk: keeps the 9-tap f32 accumulator vreg-resident


def _make_kernel(plan):
    H1 = plan["H1"]
    R1 = H1 * H1
    convs = plan["convs"]
    S = plan["fc_side"]

    def conv3x3_relu(canvas_ref, w_ref, relu_ref, Hp, Rimg, m):
        """3x3 conv over the per-image canvas: 9 shifted bf16 MXU matmuls,
        chunked over rows (f32 accumulator stays in vregs); ReLU stored as f32."""
        for c0 in range(0, Rimg, _CHUNK):
            csz = min(_CHUNK, Rimg - c0)
            acc = None
            for t in range(9):
                dy, dx = divmod(t, 3)
                d = (dy - 1) * Hp + (dx - 1)
                a = canvas_ref[pl.ds(m + c0 + d, csz), :]            # bf16
                p = jnp.dot(a, w_ref[t], preferred_element_type=jnp.float32)
                acc = p if acc is None else acc + p
            relu_ref[pl.ds(c0, csz), :] = jnp.maximum(acc, 0.0)

    def pool_decimate(src_ref, src_w, src_anchor, kind, k, Hpool,
                      dst_ref, dst_m, dst_hp, dst_pad):
        """kxk pool (stride 2) + decimation via strided reads of exactly the
        anchor rows needed; result written (bf16) into the next padded canvas."""
        inv = 1.0 / float(k * k)
        for yo in range(Hpool):
            acc = None
            for py in range(k):
                for px in range(k):
                    start = src_anchor + (2 * yo + py) * src_w + px
                    v = src_ref[pl.ds(start, Hpool, stride=2), :]    # f32
                    if acc is None:
                        acc = v
                    elif kind == "max":
                        acc = jnp.maximum(acc, v)
                    else:
                        acc = acc + v
            if kind == "avg":
                acc = acc * inv
            row = dst_m + (yo + dst_pad) * dst_hp + dst_pad
            dst_ref[pl.ds(row, Hpool), :] = acc.astype(jnp.bfloat16)

    def kernel(x_ref, w1, w2, w3, w4, wfc, fcb, out_ref,
               r1s, c2s, r2s, c3s, r3s, c4s, r4s):
        # ---- conv1 + ReLU: one K = 9*Cin matmul on the host-built im2col ----
        w1m = w1[...]
        for c0 in range(0, R1, _CHUNK):
            csz = min(_CHUNK, R1 - c0)
            a = x_ref[pl.ds(c0, csz), :]                             # bf16
            r1s[pl.ds(c0, csz), :] = jnp.maximum(
                jnp.dot(a, w1m, preferred_element_type=jnp.float32), 0.0)

        canvases = [c2s, c3s, c4s]
        relus = [r2s, r3s, r4s]
        weights = [w2, w3, w4]
        srcs = [r1s, r2s, r3s]
        src_ws = [H1, convs[0]["Hp"], convs[1]["Hp"]]
        src_anchors = [0, convs[0]["Hp"] + 1, convs[1]["Hp"] + 1]

        for l, cv in enumerate(convs):
            cref = canvases[l]
            # zero padding rows/cols + margins (decimation only writes the interior)
            cref[...] = jnp.zeros(cref.shape, jnp.bfloat16)
            pool_decimate(srcs[l], src_ws[l], src_anchors[l],
                          cv["kind"], cv["k"], cv["Hpool"],
                          cref, cv["m"], cv["Hp"], cv["pad"])
            conv3x3_relu(cref, weights[l], relus[l], cv["Hp"], cv["Rimg"], cv["m"])

        # ---- NCHW flatten + FC: read only the S*S valid anchor rows ----
        Hp4 = convs[-1]["Hp"]
        acc = None
        for p in range(S * S):
            yo, xo = divmod(p, S)
            a = r4s[pl.ds((yo + 1) * Hp4 + (xo + 1), 1), :].astype(jnp.bfloat16)
            t = jnp.dot(a, wfc[p], preferred_element_type=jnp.float32)
            acc = t if acc is None else acc + t
        out_ref[0] = acc + fcb[...]

    return kernel


# ----------------------------------------------------------------------------
# Wrapper / pallas_call plumbing
# ----------------------------------------------------------------------------
def _build_im2col(x_nchw, plan):
    """Host-side conv1 im2col: (N, C, H, H) -> (N*H*H, 9*C) bf16, tap-major."""
    N, H, C = plan["batch"], plan["H1"], plan["num_channels"]
    x = jnp.transpose(x_nchw, (0, 2, 3, 1)).astype(jnp.float32)      # NHWC
    xp = jnp.pad(x, ((0, 0), (1, 1), (1, 1), (0, 0)))
    taps = [xp[:, ky:ky + H, kx:kx + H, :] for ky in range(3) for kx in range(3)]
    col = jnp.stack(taps, axis=3)                                    # (N, H, H, 9, C)
    return col.reshape(N * H * H, 9 * C).astype(jnp.bfloat16)


def make_forward(plan):
    N = plan["batch"]
    K = plan["num_classes"]
    C0 = plan["num_channels"]
    H1 = plan["H1"]
    R1 = H1 * H1
    convs = plan["convs"]
    S = plan["fc_side"]
    kernel = _make_kernel(plan)

    in_specs = [
        pl.BlockSpec((R1, 9 * C0), lambda b: (b, 0)),                # per-image im2col
        pl.BlockSpec((9 * C0, 16), lambda b: (0, 0)),                # w1
    ]
    for cv in convs:
        in_specs.append(pl.BlockSpec((9, cv["cin"], cv["cout"]), lambda b: (0, 0, 0)))
    in_specs += [
        pl.BlockSpec((S * S, plan["fc_inputs"], K), lambda b: (0, 0, 0)),   # wfc
        pl.BlockSpec((1, K), lambda b: (0, 0)),                             # fc bias
    ]
    out_specs = pl.BlockSpec((1, 1, K), lambda b: (b, 0, 0))

    # scratch order matches kernel signature: r1s, c2s, r2s, c3s, r3s, c4s, r4s
    scratch = [pltpu.VMEM((R1, 16), jnp.float32)]
    for cv in convs:
        scratch.append(pltpu.VMEM((2 * cv["m"] + cv["Rimg"], cv["cin"]), jnp.bfloat16))
        scratch.append(pltpu.VMEM((cv["Rimg"], cv["cout"]), jnp.float32))

    flops = 2 * R1 * (9 * C0) * 16
    for cv in convs:
        flops += 2 * 9 * cv["Rimg"] * cv["cin"] * cv["cout"]
    flops += 2 * S * S * plan["fc_inputs"] * K
    flops *= N
    weight_bytes = 2 * (9 * C0 * 16 + S * S * plan["fc_inputs"] * K) + 4 * K
    weight_bytes += sum(2 * 9 * cv["cin"] * cv["cout"] for cv in convs)
    bytes_accessed = 2 * N * R1 * 9 * C0 + weight_bytes + 4 * N * K
    cost = pl.CostEstimate(flops=int(flops), transcendentals=0,
                           bytes_accessed=int(bytes_accessed))

    call = pl.pallas_call(
        kernel,
        out_shape=jax.ShapeDtypeStruct((N, 1, K), jnp.float32),
        grid=(N,),
        in_specs=in_specs,
        out_specs=out_specs,
        scratch_shapes=scratch,
        compiler_params=pltpu.CompilerParams(
            dimension_semantics=("parallel",),
            vmem_limit_bytes=32 * 1024 * 1024),
        cost_estimate=cost,
    )

    @jax.jit
    def forward(prepped, x_nchw):
        xc = _build_im2col(x_nchw, plan)
        out = call(xc, prepped["w1"], prepped["w2"], prepped["w3"], prepped["w4"],
                   prepped["wfc"], prepped["fcb"])
        return out[:, 0, :]

    return forward


def init_params(key, plan):
    convs = plan["convs"]
    keys = jax.random.split(key, 6)

    def kaiming(k, cin, cout):
        std = np.sqrt(2.0 / (cout * 9))          # fan_out, relu
        return std * jax.random.normal(k, (3, 3, cin, cout), jnp.float32)

    fc_in = plan["fc_in"]
    bound = 1.0 / np.sqrt(fc_in)
    return {
        "conv1_w": kaiming(keys[0], plan["num_channels"], 16),
        "conv2_w": kaiming(keys[1], convs[0]["cin"], convs[0]["cout"]),
        "conv3_w": kaiming(keys[2], convs[1]["cin"], convs[1]["cout"]),
        "conv4_w": kaiming(keys[3], convs[2]["cin"], convs[2]["cout"]),
        "fc_w": jax.random.uniform(keys[4], (plan["num_classes"], fc_in),
                                   jnp.float32, -bound, bound),
        "fc_b": jax.random.uniform(keys[5], (plan["num_classes"],),
                                   jnp.float32, -bound, bound),
    }


def prepare_params(params, plan):
    """One-time layout prep: tap-major conv weights (conv1 fully folded into K),
    NCHW flatten order folded into the FC weight, bf16 casts."""
    convs = plan["convs"]
    K = plan["num_classes"]
    C = plan["fc_inputs"]
    S = plan["fc_side"]
    prepped = {}
    w1 = jnp.asarray(params["conv1_w"])                      # (3,3,C0,16) HWIO
    prepped["w1"] = w1.reshape(9 * w1.shape[2], 16).astype(jnp.bfloat16)
    for i, cv in enumerate(convs):
        w = jnp.asarray(params[f"conv{i + 2}_w"])            # (3,3,Cin,Cout) HWIO
        prepped[f"w{i + 2}"] = w.reshape(9, cv["cin"], cv["cout"]).astype(jnp.bfloat16)
    fcw = jnp.asarray(params["fc_w"])                        # (K, C*S*S), NCHW order
    prepped["wfc"] = fcw.reshape(K, C, S * S).transpose(2, 1, 0).astype(jnp.bfloat16)
    prepped["fcb"] = jnp.asarray(params["fc_b"]).reshape(1, K).astype(jnp.float32)
    return prepped


# ----------------------------------------------------------------------------
# Pure-JAX references (correctness check only)
# ----------------------------------------------------------------------------
def reference_forward(params, x_nchw, plan, matmul_dtype=jnp.float32):
    """lax.conv reference; matmul_dtype=bfloat16 mirrors the kernel's
    mixed-precision matmuls (f32 accumulation) for a tight comparison."""
    convs = plan["convs"]
    x = jnp.transpose(x_nchw, (0, 2, 3, 1)).astype(jnp.float32)

    def conv_relu(x, w, pad):
        y = jax.lax.conv_general_dilated(
            x.astype(matmul_dtype), jnp.asarray(w).astype(matmul_dtype),
            window_strides=(1, 1), padding=[(pad, pad), (pad, pad)],
            dimension_numbers=("NHWC", "HWIO", "NHWC"),
            preferred_element_type=jnp.float32)
        return jnp.maximum(y, 0.0)

    def maxpool2(x):
        return jax.lax.reduce_window(x, -jnp.inf, jax.lax.max,
                                     (1, 2, 2, 1), (1, 2, 2, 1), "VALID")

    def avgpool(x, p):
        s = jax.lax.reduce_window(x, 0.0, jax.lax.add,
                                  (1, p, p, 1), (1, 2, 2, 1), "VALID")
        return s / float(p * p)

    x = conv_relu(x, params["conv1_w"], 1)
    x = maxpool2(x)
    x = conv_relu(x, params["conv2_w"], convs[0]["pad"])
    x = maxpool2(x)
    x = conv_relu(x, params["conv3_w"], convs[1]["pad"])
    x = avgpool(x, plan["pool"])
    x = conv_relu(x, params["conv4_w"], convs[2]["pad"])
    x = jnp.transpose(x, (0, 3, 1, 2)).reshape(x.shape[0], -1)       # NCHW flatten
    return jnp.dot(x.astype(matmul_dtype), params["fc_w"].T.astype(matmul_dtype),
                   preferred_element_type=jnp.float32) + params["fc_b"]


if __name__ == "__main__":
    batch, num_channels, dim = 2, 3, 28
    planes, pool, fc_inputs, num_classes = 80, 2, 12, 10
    plan = build_plan(batch=batch, num_channels=num_channels, dim=dim, planes=planes,
                      pool=pool, fc_inputs=fc_inputs, num_classes=num_classes)

    key = jax.random.PRNGKey(0)
    k_param, k_x = jax.random.split(key)
    params = init_params(k_param, plan)
    x = jax.random.normal(k_x, (batch, num_channels, dim, dim), jnp.float32)

    prepped = prepare_params(params, plan)
    forward = make_forward(plan)
    out = forward(prepped, x)
    out = jax.block_until_ready(out)
    assert out.shape == (batch, num_classes), out.shape

    # tight check vs. a bf16-matmul-matched reference, loose sanity check vs. full f32
    ref_bf16 = reference_forward(params, x, plan, matmul_dtype=jnp.bfloat16)
    np.testing.assert_allclose(np.asarray(out), np.asarray(ref_bf16), rtol=1e-2, atol=1e-2)
    ref_f32 = reference_forward(params, x, plan, matmul_dtype=jnp.float32)
    np.testing.assert_allclose(np.asarray(out), np.asarray(ref_f32), rtol=5e-2, atol=5e-2)
    print("KERNEL_OK")
</pallas_src>

<mosaic_0001>
module attributes {stable_mosaic.version = 11 : i64} {
  func.func @kernel(%arg0: i32, %arg1: memref<784x27xbf16, #tpu.memory_space<vmem>>, %arg2: memref<27x16xbf16, #tpu.memory_space<vmem>>, %arg3: memref<9x16x80xbf16, #tpu.memory_space<vmem>>, %arg4: memref<9x80x16xbf16, #tpu.memory_space<vmem>>, %arg5: memref<9x16x12xbf16, #tpu.memory_space<vmem>>, %arg6: memref<16x12x10xbf16, #tpu.memory_space<vmem>>, %arg7: memref<1x10xf32, #tpu.memory_space<vmem>>, %arg8: memref<1x1x10xf32, #tpu.memory_space<vmem>>, %arg9: memref<784x16xf32, #tpu.memory_space<vmem>>, %arg10: memref<372x16xbf16, #tpu.memory_space<vmem>>, %arg11: memref<324x80xf32, #tpu.memory_space<vmem>>, %arg12: memref<132x80xbf16, #tpu.memory_space<vmem>>, %arg13: memref<100x16xf32, #tpu.memory_space<vmem>>, %arg14: memref<52x16xbf16, #tpu.memory_space<vmem>>, %arg15: memref<36x12xf32, #tpu.memory_space<vmem>>) attributes {dimension_semantics = [#tpu.dimension_semantics<parallel>], iteration_bounds = array<i64: 2>, scalar_prefetch = 0 : i64, scratch_operands = 7 : i64, tpu.core_type = #tpu.core_type<tc>, window_params = [{transform_indices = @transform_0, window_bounds = array<i64: 784, 27>}, {pipeline_mode = #tpu.pipeline_mode<synchronous>, transform_indices = @transform_1, window_bounds = array<i64: 27, 16>}, {pipeline_mode = #tpu.pipeline_mode<synchronous>, transform_indices = @transform_2, window_bounds = array<i64: 9, 16, 80>}, {pipeline_mode = #tpu.pipeline_mode<synchronous>, transform_indices = @transform_3, window_bounds = array<i64: 9, 80, 16>}, {pipeline_mode = #tpu.pipeline_mode<synchronous>, transform_indices = @transform_4, window_bounds = array<i64: 9, 16, 12>}, {pipeline_mode = #tpu.pipeline_mode<synchronous>, transform_indices = @transform_5, window_bounds = array<i64: 16, 12, 10>}, {pipeline_mode = #tpu.pipeline_mode<synchronous>, transform_indices = @transform_6, window_bounds = array<i64: 1, 10>}, {transform_indices = @transform_7, window_bounds = array<i64: 1, 1, 10>}]} {
    %c0 = arith.constant 0 : index
    %c0_0 = arith.constant 0 : index
    %0 = vector.load %arg2[%c0, %c0_0] : memref<27x16xbf16, #tpu.memory_space<vmem>>, vector<27x16xbf16>
    %c0_1 = arith.constant 0 : index
    %c0_2 = arith.constant 0 : index
    %1 = vector.load %arg1[%c0_1, %c0_2] : memref<784x27xbf16, #tpu.memory_space<vmem>>, vector<128x27xbf16>
    %cst = arith.constant dense<0.000000e+00> : vector<128x16xf32>
    %2 = tpu.matmul %1, %0, %cst {dimension_numbers = #tpu.dot_dimension_numbers<[1], [0], [0], [1], [0, 0, 1, 1], [], []>} : vector<128x27xbf16>, vector<27x16xbf16>, vector<128x16xf32> -> vector<128x16xf32>
    %cst_3 = arith.constant 0.000000e+00 : f32
    %3 = vector.broadcast %cst_3 : f32 to vector<128x16xf32>
    %4 = arith.maximumf %2, %3 : vector<128x16xf32>
    %c0_4 = arith.constant 0 : index
    %c0_5 = arith.constant 0 : index
    %5 = vector.load %arg9[%c0_4, %c0_5] : memref<784x16xf32, #tpu.memory_space<vmem>>, vector<128x16xf32>
    tpu.vector_store %arg9[%c0_4, %c0_5], %4 {strides = array<i32>} : memref<784x16xf32, #tpu.memory_space<vmem>>, vector<128x16xf32>,
    %c128 = arith.constant 128 : index
    %c0_6 = arith.constant 0 : index
    %6 = vector.load %arg1[%c128, %c0_6] : memref<784x27xbf16, #tpu.memory_space<vmem>>, vector<128x27xbf16>
    %cst_7 = arith.constant dense<0.000000e+00> : vector<128x16xf32>
    %7 = tpu.matmul %6, %0, %cst_7 {dimension_numbers = #tpu.dot_dimension_numbers<[1], [0], [0], [1], [0, 0, 1, 1], [], []>} : vector<128x27xbf16>, vector<27x16xbf16>, vector<128x16xf32> -> vector<128x16xf32>
    %cst_8 = arith.constant 0.000000e+00 : f32
    %8 = vector.broadcast %cst_8 : f32 to vector<128x16xf32>
    %9 = arith.maximumf %7, %8 : vector<128x16xf32>
    %c128_9 = arith.constant 128 : index
    %c0_10 = arith.constant 0 : index
    %10 = vector.load %arg9[%c128_9, %c0_10] : memref<784x16xf32, #tpu.memory_space<vmem>>, vector<128x16xf32>
    tpu.vector_store %arg9[%c128_9, %c0_10], %9 {strides = array<i32>} : memref<784x16xf32, #tpu.memory_space<vmem>>, vector<128x16xf32>,
    %c256 = arith.constant 256 : index
    %c0_11 = arith.constant 0 : index
    %11 = vector.load %arg1[%c256, %c0_11] : memref<784x27xbf16, #tpu.memory_space<vmem>>, vector<128x27xbf16>
    %cst_12 = arith.constant dense<0.000000e+00> : vector<128x16xf32>
    %12 = tpu.matmul %11, %0, %cst_12 {dimension_numbers = #tpu.dot_dimension_numbers<[1], [0], [0], [1], [0, 0, 1, 1], [], []>} : vector<128x27xbf16>, vector<27x16xbf16>, vector<128x16xf32> -> vector<128x16xf32>
    %cst_13 = arith.constant 0.000000e+00 : f32
    %13 = vector.broadcast %cst_13 : f32 to vector<128x16xf32>
    %14 = arith.maximumf %12, %13 : vector<128x16xf32>
    %c256_14 = arith.constant 256 : index
    %c0_15 = arith.constant 0 : index
    %15 = vector.load %arg9[%c256_14, %c0_15] : memref<784x16xf32, #tpu.memory_space<vmem>>, vector<128x16xf32>
    tpu.vector_store %arg9[%c256_14, %c0_15], %14 {strides = array<i32>} : memref<784x16xf32, #tpu.memory_space<vmem>>, vector<128x16xf32>,
    %c384 = arith.constant 384 : index
    %c0_16 = arith.constant 0 : index
    %16 = vector.load %arg1[%c384, %c0_16] : memref<784x27xbf16, #tpu.memory_space<vmem>>, vector<128x27xbf16>
    %cst_17 = arith.constant dense<0.000000e+00> : vector<128x16xf32>
    %17 = tpu.matmul %16, %0, %cst_17 {dimension_numbers = #tpu.dot_dimension_numbers<[1], [0], [0], [1], [0, 0, 1, 1], [], []>} : vector<128x27xbf16>, vector<27x16xbf16>, vector<128x16xf32> -> vector<128x16xf32>
    %cst_18 = arith.constant 0.000000e+00 : f32
    %18 = vector.broadcast %cst_18 : f32 to vector<128x16xf32>
    %19 = arith.maximumf %17, %18 : vector<128x16xf32>
    %c384_19 = arith.constant 384 : index
    %c0_20 = arith.constant 0 : index
    %20 = vector.load %arg9[%c384_19, %c0_20] : memref<784x16xf32, #tpu.memory_space<vmem>>, vector<128x16xf32>
    tpu.vector_store %arg9[%c384_19, %c0_20], %19 {strides = array<i32>} : memref<784x16xf32, #tpu.memory_space<vmem>>, vector<128x16xf32>,
    %c512 = arith.constant 512 : index
    %c0_21 = arith.constant 0 : index
    %21 = vector.load %arg1[%c512, %c0_21] : memref<784x27xbf16, #tpu.memory_space<vmem>>, vector<128x27xbf16>
    %cst_22 = arith.constant dense<0.000000e+00> : vector<128x16xf32>
    %22 = tpu.matmul %21, %0, %cst_22 {dimension_numbers = #tpu.dot_dimension_numbers<[1], [0], [0], [1], [0, 0, 1, 1], [], []>} : vector<128x27xbf16>, vector<27x16xbf16>, vector<128x16xf32> -> vector<128x16xf32>
    %cst_23 = arith.constant 0.000000e+00 : f32
    %23 = vector.broadcast %cst_23 : f32 to vector<128x16xf32>
    %24 = arith.maximumf %22, %23 : vector<128x16xf32>
    %c512_24 = arith.constant 512 : index
    %c0_25 = arith.constant 0 : index
    %25 = vector.load %arg9[%c512_24, %c0_25] : memref<784x16xf32, #tpu.memory_space<vmem>>, vector<128x16xf32>
    tpu.vector_store %arg9[%c512_24, %c0_25], %24 {strides = array<i32>} : memref<784x16xf32, #tpu.memory_space<vmem>>, vector<128x16xf32>,
    %c640 = arith.constant 640 : index
    %c0_26 = arith.constant 0 : index
    %26 = vector.load %arg1[%c640, %c0_26] : memref<784x27xbf16, #tpu.memory_space<vmem>>, vector<128x27xbf16>
    %cst_27 = arith.constant dense<0.000000e+00> : vector<128x16xf32>
    %27 = tpu.matmul %26, %0, %cst_27 {dimension_numbers = #tpu.dot_dimension_numbers<[1], [0], [0], [1], [0, 0, 1, 1], [], []>} : vector<128x27xbf16>, vector<27x16xbf16>, vector<128x16xf32> -> vector<128x16xf32>
    %cst_28 = arith.constant 0.000000e+00 : f32
    %28 = vector.broadcast %cst_28 : f32 to vector<128x16xf32>
    %29 = arith.maximumf %27, %28 : vector<128x16xf32>
    %c640_29 = arith.constant 640 : index
    %c0_30 = arith.constant 0 : index
    %30 = vector.load %arg9[%c640_29, %c0_30] : memref<784x16xf32, #tpu.memory_space<vmem>>, vector<128x16xf32>
    tpu.vector_store %arg9[%c640_29, %c0_30], %29 {strides = array<i32>} : memref<784x16xf32, #tpu.memory_space<vmem>>, vector<128x16xf32>,
    %c768 = arith.constant 768 : index
    %c0_31 = arith.constant 0 : index
    %31 = vector.load %arg1[%c768, %c0_31] : memref<784x27xbf16, #tpu.memory_space<vmem>>, vector<16x27xbf16>
    %cst_32 = arith.constant dense<0.000000e+00> : vector<16x16xf32>
    %32 = tpu.matmul %31, %0, %cst_32 {dimension_numbers = #tpu.dot_dimension_numbers<[1], [0], [0], [1], [0, 0, 1, 1], [], []>} : vector<16x27xbf16>, vector<27x16xbf16>, vector<16x16xf32> -> vector<16x16xf32>
    %cst_33 = arith.constant 0.000000e+00 : f32
    %33 = vector.broadcast %cst_33 : f32 to vector<16x16xf32>
    %34 = arith.maximumf %32, %33 : vector<16x16xf32>
    %c768_34 = arith.constant 768 : index
    %c0_35 = arith.constant 0 : index
    %35 = vector.load %arg9[%c768_34, %c0_35] : memref<784x16xf32, #tpu.memory_space<vmem>>, vector<16x16xf32>
    tpu.vector_store %arg9[%c768_34, %c0_35], %34 {strides = array<i32>} : memref<784x16xf32, #tpu.memory_space<vmem>>, vector<16x16xf32>,
    %cst_36 = arith.constant 0.000000e+00 : bf16
    %36 = vector.broadcast %cst_36 : bf16 to vector<372x16xbf16>
    %c0_37 = arith.constant 0 : index
    %c0_38 = arith.constant 0 : index
    %37 = vector.load %arg10[%c0_37, %c0_38] : memref<372x16xbf16, #tpu.memory_space<vmem>>, vector<372x16xbf16>
    tpu.vector_store %arg10[%c0_37, %c0_38], %36 {strides = array<i32>} : memref<372x16xbf16, #tpu.memory_space<vmem>>, vector<372x16xbf16>,
    %c0_39 = arith.constant 0 : index
    %c0_40 = arith.constant 0 : index
    %38 = tpu.strided_load %arg9[%c0_39, %c0_40] {strides = array<i32: 2, 1>} : memref<784x16xf32, #tpu.memory_space<vmem>>, vector<14x16xf32>
    %c1 = arith.constant 1 : index
    %c0_41 = arith.constant 0 : index
    %39 = tpu.strided_load %arg9[%c1, %c0_41] {strides = array<i32: 2, 1>} : memref<784x16xf32, #tpu.memory_space<vmem>>, vector<14x16xf32>
    %40 = arith.maximumf %38, %39 : vector<14x16xf32>
    %c28 = arith.constant 28 : index
    %c0_42 = arith.constant 0 : index
    %41 = tpu.strided_load %arg9[%c28, %c0_42] {strides = array<i32: 2, 1>} : memref<784x16xf32, #tpu.memory_space<vmem>>, vector<14x16xf32>
    %42 = arith.maximumf %40, %41 : vector<14x16xf32>
    %c29 = arith.constant 29 : index
    %c0_43 = arith.constant 0 : index
    %43 = tpu.strided_load %arg9[%c29, %c0_43] {strides = array<i32: 2, 1>} : memref<784x16xf32, #tpu.memory_space<vmem>>, vector<14x16xf32>
    %44 = arith.maximumf %42, %43 : vector<14x16xf32>
    %45 = arith.truncf %44 : vector<14x16xf32> to vector<14x16xbf16>
    %c62 = arith.constant 62 : index
    %c0_44 = arith.constant 0 : index
    %46 = vector.load %arg10[%c62, %c0_44] : memref<372x16xbf16, #tpu.memory_space<vmem>>, vector<14x16xbf16>
    tpu.vector_store %arg10[%c62, %c0_44], %45 {strides = array<i32>} : memref<372x16xbf16, #tpu.memory_space<vmem>>, vector<14x16xbf16>,
    %c56 = arith.constant 56 : index
    %c0_45 = arith.constant 0 : index
    %47 = tpu.strided_load %arg9[%c56, %c0_45] {strides = array<i32: 2, 1>} : memref<784x16xf32, #tpu.memory_space<vmem>>, vector<14x16xf32>
    %c57 = arith.constant 57 : index
    %c0_46 = arith.constant 0 : index
    %48 = tpu.strided_load %arg9[%c57, %c0_46] {strides = array<i32: 2, 1>} : memref<784x16xf32, #tpu.memory_space<vmem>>, vector<14x16xf32>
    %49 = arith.maximumf %47, %48 : vector<14x16xf32>
    %c84 = arith.constant 84 : index
    %c0_47 = arith.constant 0 : index
    %50 = tpu.strided_load %arg9[%c84, %c0_47] {strides = array<i32: 2, 1>} : memref<784x16xf32, #tpu.memory_space<vmem>>, vector<14x16xf32>
    %51 = arith.maximumf %49, %50 : vector<14x16xf32>
    %c85 = arith.constant 85 : index
    %c0_48 = arith.constant 0 : index
    %52 = tpu.strided_load %arg9[%c85, %c0_48] {strides = array<i32: 2, 1>} : memref<784x16xf32, #tpu.memory_space<vmem>>, vector<14x16xf32>
    %53 = arith.maximumf %51, %52 : vector<14x16xf32>
    %54 = arith.truncf %53 : vector<14x16xf32> to vector<14x16xbf16>
    %c80 = arith.constant 80 : index
    %c0_49 = arith.constant 0 : index
    %55 = vector.load %arg10[%c80, %c0_49] : memref<372x16xbf16, #tpu.memory_space<vmem>>, vector<14x16xbf16>
    tpu.vector_store %arg10[%c80, %c0_49], %54 {strides = array<i32>} : memref<372x16xbf16, #tpu.memory_space<vmem>>, vector<14x16xbf16>,
    %c112 = arith.constant 112 : index
    %c0_50 = arith.constant 0 : index
    %56 = tpu.strided_load %arg9[%c112, %c0_50] {strides = array<i32: 2, 1>} : memref<784x16xf32, #tpu.memory_space<vmem>>, vector<14x16xf32>
    %c113 = arith.constant 113 : index
    %c0_51 = arith.constant 0 : index
    %57 = tpu.strided_load %arg9[%c113, %c0_51] {strides = array<i32: 2, 1>} : memref<784x16xf32, #tpu.memory_space<vmem>>, vector<14x16xf32>
    %58 = arith.maximumf %56, %57 : vector<14x16xf32>
    %c140 = arith.constant 140 : index
    %c0_52 = arith.constant 0 : index
    %59 = tpu.strided_load %arg9[%c140, %c0_52] {strides = array<i32: 2, 1>} : memref<784x16xf32, #tpu.memory_space<vmem>>, vector<14x16xf32>
    %60 = arith.maximumf %58, %59 : vector<14x16xf32>
    %c141 = arith.constant 141 : index
    %c0_53 = arith.constant 0 : index
    %61 = tpu.strided_load %arg9[%c141, %c0_53] {strides = array<i32: 2, 1>} : memref<784x16xf32, #tpu.memory_space<vmem>>, vector<14x16xf32>
    %62 = arith.maximumf %60, %61 : vector<14x16xf32>
    %63 = arith.truncf %62 : vector<14x16xf32> to vector<14x16xbf16>
    %c98 = arith.constant 98 : index
    %c0_54 = arith.constant 0 : index
    %64 = vector.load %arg10[%c98, %c0_54] : memref<372x16xbf16, #tpu.memory_space<vmem>>, vector<14x16xbf16>
    tpu.vector_store %arg10[%c98, %c0_54], %63 {strides = array<i32>} : memref<372x16xbf16, #tpu.memory_space<vmem>>, vector<14x16xbf16>,
    %c168 = arith.constant 168 : index
    %c0_55 = arith.constant 0 : index
    %65 = tpu.strided_load %arg9[%c168, %c0_55] {strides = array<i32: 2, 1>} : memref<784x16xf32, #tpu.memory_space<vmem>>, vector<14x16xf32>
    %c169 = arith.constant 169 : index
    %c0_56 = arith.constant 0 : index
    %66 = tpu.strided_load %arg9[%c169, %c0_56] {strides = array<i32: 2, 1>} : memref<784x16xf32, #tpu.memory_space<vmem>>, vector<14x16xf32>
    %67 = arith.maximumf %65, %66 : vector<14x16xf32>
    %c196 = arith.constant 196 : index
    %c0_57 = arith.constant 0 : index
    %68 = tpu.strided_load %arg9[%c196, %c0_57] {strides = array<i32: 2, 1>} : memref<784x16xf32, #tpu.memory_space<vmem>>, vector<14x16xf32>
    %69 = arith.maximumf %67, %68 : vector<14x16xf32>
    %c197 = arith.constant 197 : index
    %c0_58 = arith.constant 0 : index
    %70 = tpu.strided_load %arg9[%c197, %c0_58] {strides = array<i32: 2, 1>} : memref<784x16xf32, #tpu.memory_space<vmem>>, vector<14x16xf32>
    %71 = arith.maximumf %69, %70 : vector<14x16xf32>
    %72 = arith.truncf %71 : vector<14x16xf32> to vector<14x16xbf16>
    %c116 = arith.constant 116 : index
    %c0_59 = arith.constant 0 : index
    %73 = vector.load %arg10[%c116, %c0_59] : memref<372x16xbf16, #tpu.memory_space<vmem>>, vector<14x16xbf16>
    tpu.vector_store %arg10[%c116, %c0_59], %72 {strides = array<i32>} : memref<372x16xbf16, #tpu.memory_space<vmem>>, vector<14x16xbf16>,
    %c224 = arith.constant 224 : index
    %c0_60 = arith.constant 0 : index
    %74 = tpu.strided_load %arg9[%c224, %c0_60] {strides = array<i32: 2, 1>} : memref<784x16xf32, #tpu.memory_space<vmem>>, vector<14x16xf32>
    %c225 = arith.constant 225 : index
    %c0_61 = arith.constant 0 : index
    %75 = tpu.strided_load %arg9[%c225, %c0_61] {strides = array<i32: 2, 1>} : memref<784x16xf32, #tpu.memory_space<vmem>>, vector<14x16xf32>
    %76 = arith.maximumf %74, %75 : vector<14x16xf32>
    %c252 = arith.constant 252 : index
    %c0_62 = arith.constant 0 : index
    %77 = tpu.strided_load %arg9[%c252, %c0_62] {strides = array<i32: 2, 1>} : memref<784x16xf32, #tpu.memory_space<vmem>>, vector<14x16xf32>
    %78 = arith.maximumf %76, %77 : vector<14x16xf32>
    %c253 = arith.constant 253 : index
    %c0_63 = arith.constant 0 : index
    %79 = tpu.strided_load %arg9[%c253, %c0_63] {strides = array<i32: 2, 1>} : memref<784x16xf32, #tpu.memory_space<vmem>>, vector<14x16xf32>
    %80 = arith.maximumf %78, %79 : vector<14x16xf32>
    %81 = arith.truncf %80 : vector<14x16xf32> to vector<14x16xbf16>
    %c134 = arith.constant 134 : index
    %c0_64 = arith.constant 0 : index
    %82 = vector.load %arg10[%c134, %c0_64] : memref<372x16xbf16, #tpu.memory_space<vmem>>, vector<14x16xbf16>
    tpu.vector_store %arg10[%c134, %c0_64], %81 {strides = array<i32>} : memref<372x16xbf16, #tpu.memory_space<vmem>>, vector<14x16xbf16>,
    %c280 = arith.constant 280 : index
    %c0_65 = arith.constant 0 : index
    %83 = tpu.strided_load %arg9[%c280, %c0_65] {strides = array<i32: 2, 1>} : memref<784x16xf32, #tpu.memory_space<vmem>>, vector<14x16xf32>
    %c281 = arith.constant 281 : index
    %c0_66 = arith.constant 0 : index
    %84 = tpu.strided_load %arg9[%c281, %c0_66] {strides = array<i32: 2, 1>} : memref<784x16xf32, #tpu.memory_space<vmem>>, vector<14x16xf32>
    %85 = arith.maximumf %83, %84 : vector<14x16xf32>
    %c308 = arith.constant 308 : index
    %c0_67 = arith.constant 0 : index
    %86 = tpu.strided_load %arg9[%c308, %c0_67] {strides = array<i32: 2, 1>} : memref<784x16xf32, #tpu.memory_space<vmem>>, vector<14x16xf32>
    %87 = arith.maximumf %85, %86 : vector<14x16xf32>
    %c309 = arith.constant 309 : index
    %c0_68 = arith.constant 0 : index
    %88 = tpu.strided_load %arg9[%c309, %c0_68] {strides = array<i32: 2, 1>} : memref<784x16xf32, #tpu.memory_space<vmem>>, vector<14x16xf32>
    %89 = arith.maximumf %87, %88 : vector<14x16xf32>
    %90 = arith.truncf %89 : vector<14x16xf32> to vector<14x16xbf16>
    %c152 = arith.constant 152 : index
    %c0_69 = arith.constant 0 : index
    %91 = vector.load %arg10[%c152, %c0_69] : memref<372x16xbf16, #tpu.memory_space<vmem>>, vector<14x16xbf16>
    tpu.vector_store %arg10[%c152, %c0_69], %90 {strides = array<i32>} : memref<372x16xbf16, #tpu.memory_space<vmem>>, vector<14x16xbf16>,
    %c336 = arith.constant 336 : index
    %c0_70 = arith.constant 0 : index
    %92 = tpu.strided_load %arg9[%c336, %c0_70] {strides = array<i32: 2, 1>} : memref<784x16xf32, #tpu.memory_space<vmem>>, vector<14x16xf32>
    %c337 = arith.constant 337 : index
    %c0_71 = arith.constant 0 : index
    %93 = tpu.strided_load %arg9[%c337, %c0_71] {strides = array<i32: 2, 1>} : memref<784x16xf32, #tpu.memory_space<vmem>>, vector<14x16xf32>
    %94 = arith.maximumf %92, %93 : vector<14x16xf32>
    %c364 = arith.constant 364 : index
    %c0_72 = arith.constant 0 : index
    %95 = tpu.strided_load %arg9[%c364, %c0_72] {strides = array<i32: 2, 1>} : memref<784x16xf32, #tpu.memory_space<vmem>>, vector<14x16xf32>
    %96 = arith.maximumf %94, %95 : vector<14x16xf32>
    %c365 = arith.constant 365 : index
    %c0_73 = arith.constant 0 : index
    %97 = tpu.strided_load %arg9[%c365, %c0_73] {strides = array<i32: 2, 1>} : memref<784x16xf32, #tpu.memory_space<vmem>>, vector<14x16xf32>
    %98 = arith.maximumf %96, %97 : vector<14x16xf32>
    %99 = arith.truncf %98 : vector<14x16xf32> to vector<14x16xbf16>
    %c170 = arith.constant 170 : index
    %c0_74 = arith.constant 0 : index
    %100 = vector.load %arg10[%c170, %c0_74] : memref<372x16xbf16, #tpu.memory_space<vmem>>, vector<14x16xbf16>
    tpu.vector_store %arg10[%c170, %c0_74], %99 {strides = array<i32>} : memref<372x16xbf16, #tpu.memory_space<vmem>>, vector<14x16xbf16>,
    %c392 = arith.constant 392 : index
    %c0_75 = arith.constant 0 : index
    %101 = tpu.strided_load %arg9[%c392, %c0_75] {strides = array<i32: 2, 1>} : memref<784x16xf32, #tpu.memory_space<vmem>>, vector<14x16xf32>
    %c393 = arith.constant 393 : index
    %c0_76 = arith.constant 0 : index
    %102 = tpu.strided_load %arg9[%c393, %c0_76] {strides = array<i32: 2, 1>} : memref<784x16xf32, #tpu.memory_space<vmem>>, vector<14x16xf32>
    %103 = arith.maximumf %101, %102 : vector<14x16xf32>
    %c420 = arith.constant 420 : index
    %c0_77 = arith.constant 0 : index
    %104 = tpu.strided_load %arg9[%c420, %c0_77] {strides = array<i32: 2, 1>} : memref<784x16xf32, #tpu.memory_space<vmem>>, vector<14x16xf32>
    %105 = arith.maximumf %103, %104 : vector<14x16xf32>
    %c421 = arith.constant 421 : index
    %c0_78 = arith.constant 0 : index
    %106 = tpu.strided_load %arg9[%c421, %c0_78] {strides = array<i32: 2, 1>} : memref<784x16xf32, #tpu.memory_space<vmem>>, vector<14x16xf32>
    %107 = arith.maximumf %105, %106 : vector<14x16xf32>
    %108 = arith.truncf %107 : vector<14x16xf32> to vector<14x16xbf16>
    %c188 = arith.constant 188 : index
    %c0_79 = arith.constant 0 : index
    %109 = vector.load %arg10[%c188, %c0_79] : memref<372x16xbf16, #tpu.memory_space<vmem>>, vector<14x16xbf16>
    tpu.vector_store %arg10[%c188, %c0_79], %108 {strides = array<i32>} : memref<372x16xbf16, #tpu.memory_space<vmem>>, vector<14x16xbf16>,
    %c448 = arith.constant 448 : index
    %c0_80 = arith.constant 0 : index
    %110 = tpu.strided_load %arg9[%c448, %c0_80] {strides = array<i32: 2, 1>} : memref<784x16xf32, #tpu.memory_space<vmem>>, vector<14x16xf32>
    %c449 = arith.constant 449 : index
    %c0_81 = arith.constant 0 : index
    %111 = tpu.strided_load %arg9[%c449, %c0_81] {strides = array<i32: 2, 1>} : memref<784x16xf32, #tpu.memory_space<vmem>>, vector<14x16xf32>
    %112 = arith.maximumf %110, %111 : vector<14x16xf32>
    %c476 = arith.constant 476 : index
    %c0_82 = arith.constant 0 : index
    %113 = tpu.strided_load %arg9[%c476, %c0_82] {strides = array<i32: 2, 1>} : memref<784x16xf32, #tpu.memory_space<vmem>>, vector<14x16xf32>
    %114 = arith.maximumf %112, %113 : vector<14x16xf32>
    %c477 = arith.constant 477 : index
    %c0_83 = arith.constant 0 : index
    %115 = tpu.strided_load %arg9[%c477, %c0_83] {strides = array<i32: 2, 1>} : memref<784x16xf32, #tpu.memory_space<vmem>>, vector<14x16xf32>
    %116 = arith.maximumf %114, %115 : vector<14x16xf32>
    %117 = arith.truncf %116 : vector<14x16xf32> to vector<14x16xbf16>
    %c206 = arith.constant 206 : index
    %c0_84 = arith.constant 0 : index
    %118 = vector.load %arg10[%c206, %c0_84] : memref<372x16xbf16, #tpu.memory_space<vmem>>, vector<14x16xbf16>
    tpu.vector_store %arg10[%c206, %c0_84], %117 {strides = array<i32>} : memref<372x16xbf16, #tpu.memory_space<vmem>>, vector<14x16xbf16>,
    %c504 = arith.constant 504 : index
    %c0_85 = arith.constant 0 : index
    %119 = tpu.strided_load %arg9[%c504, %c0_85] {strides = array<i32: 2, 1>} : memref<784x16xf32, #tpu.memory_space<vmem>>, vector<14x16xf32>
    %c505 = arith.constant 505 : index
    %c0_86 = arith.constant 0 : index
    %120 = tpu.strided_load %arg9[%c505, %c0_86] {strides = array<i32: 2, 1>} : memref<784x16xf32, #tpu.memory_space<vmem>>, vector<14x16xf32>
    %121 = arith.maximumf %119, %120 : vector<14x16xf32>
    %c532 = arith.constant 532 : index
    %c0_87 = arith.constant 0 : index
    %122 = tpu.strided_load %arg9[%c532, %c0_87] {strides = array<i32: 2, 1>} : memref<784x16xf32, #tpu.memory_space<vmem>>, vector<14x16xf32>
    %123 = arith.maximumf %121, %122 : vector<14x16xf32>
    %c533 = arith.constant 533 : index
    %c0_88 = arith.constant 0 : index
    %124 = tpu.strided_load %arg9[%c533, %c0_88] {strides = array<i32: 2, 1>} : memref<784x16xf32, #tpu.memory_space<vmem>>, vector<14x16xf32>
    %125 = arith.maximumf %123, %124 : vector<14x16xf32>
    %126 = arith.truncf %125 : vector<14x16xf32> to vector<14x16xbf16>
    %c224_89 = arith.constant 224 : index
    %c0_90 = arith.constant 0 : index
    %127 = vector.load %arg10[%c224_89, %c0_90] : memref<372x16xbf16, #tpu.memory_space<vmem>>, vector<14x16xbf16>
    tpu.vector_store %arg10[%c224_89, %c0_90], %126 {strides = array<i32>} : memref<372x16xbf16, #tpu.memory_space<vmem>>, vector<14x16xbf16>,
    %c560 = arith.constant 560 : index
    %c0_91 = arith.constant 0 : index
    %128 = tpu.strided_load %arg9[%c560, %c0_91] {strides = array<i32: 2, 1>} : memref<784x16xf32, #tpu.memory_space<vmem>>, vector<14x16xf32>
    %c561 = arith.constant 561 : index
    %c0_92 = arith.constant 0 : index
    %129 = tpu.strided_load %arg9[%c561, %c0_92] {strides = array<i32: 2, 1>} : memref<784x16xf32, #tpu.memory_space<vmem>>, vector<14x16xf32>
    %130 = arith.maximumf %128, %129 : vector<14x16xf32>
    %c588 = arith.constant 588 : index
    %c0_93 = arith.constant 0 : index
    %131 = tpu.strided_load %arg9[%c588, %c0_93] {strides = array<i32: 2, 1>} : memref<784x16xf32, #tpu.memory_space<vmem>>, vector<14x16xf32>
    %132 = arith.maximumf %130, %131 : vector<14x16xf32>
    %c589 = arith.constant 589 : index
    %c0_94 = arith.constant 0 : index
    %133 = tpu.strided_load %arg9[%c589, %c0_94] {strides = array<i32: 2, 1>} : memref<784x16xf32, #tpu.memory_space<vmem>>, vector<14x16xf32>
    %134 = arith.maximumf %132, %133 : vector<14x16xf32>
    %135 = arith.truncf %134 : vector<14x16xf32> to vector<14x16xbf16>
    %c242 = arith.constant 242 : index
    %c0_95 = arith.constant 0 : index
    %136 = vector.load %arg10[%c242, %c0_95] : memref<372x16xbf16, #tpu.memory_space<vmem>>, vector<14x16xbf16>
    tpu.vector_store %arg10[%c242, %c0_95], %135 {strides = array<i32>} : memref<372x16xbf16, #tpu.memory_space<vmem>>, vector<14x16xbf16>,
    %c616 = arith.constant 616 : index
    %c0_96 = arith.constant 0 : index
    %137 = tpu.strided_load %arg9[%c616, %c0_96] {strides = array<i32: 2, 1>} : memref<784x16xf32, #tpu.memory_space<vmem>>, vector<14x16xf32>
    %c617 = arith.constant 617 : index
    %c0_97 = arith.constant 0 : index
    %138 = tpu.strided_load %arg9[%c617, %c0_97] {strides = array<i32: 2, 1>} : memref<784x16xf32, #tpu.memory_space<vmem>>, vector<14x16xf32>
    %139 = arith.maximumf %137, %138 : vector<14x16xf32>
    %c644 = arith.constant 644 : index
    %c0_98 = arith.constant 0 : index
    %140 = tpu.strided_load %arg9[%c644, %c0_98] {strides = array<i32: 2, 1>} : memref<784x16xf32, #tpu.memory_space<vmem>>, vector<14x16xf32>
    %141 = arith.maximumf %139, %140 : vector<14x16xf32>
    %c645 = arith.constant 645 : index
    %c0_99 = arith.constant 0 : index
    %142 = tpu.strided_load %arg9[%c645, %c0_99] {strides = array<i32: 2, 1>} : memref<784x16xf32, #tpu.memory_space<vmem>>, vector<14x16xf32>
    %143 = arith.maximumf %141, %142 : vector<14x16xf32>
    %144 = arith.truncf %143 : vector<14x16xf32> to vector<14x16xbf16>
    %c260 = arith.constant 260 : index
    %c0_100 = arith.constant 0 : index
    %145 = vector.load %arg10[%c260, %c0_100] : memref<372x16xbf16, #tpu.memory_space<vmem>>, vector<14x16xbf16>
    tpu.vector_store %arg10[%c260, %c0_100], %144 {strides = array<i32>} : memref<372x16xbf16, #tpu.memory_space<vmem>>, vector<14x16xbf16>,
    %c672 = arith.constant 672 : index
    %c0_101 = arith.constant 0 : index
    %146 = tpu.strided_load %arg9[%c672, %c0_101] {strides = array<i32: 2, 1>} : memref<784x16xf32, #tpu.memory_space<vmem>>, vector<14x16xf32>
    %c673 = arith.constant 673 : index
    %c0_102 = arith.constant 0 : index
    %147 = tpu.strided_load %arg9[%c673, %c0_102] {strides = array<i32: 2, 1>} : memref<784x16xf32, #tpu.memory_space<vmem>>, vector<14x16xf32>
    %148 = arith.maximumf %146, %147 : vector<14x16xf32>
    %c700 = arith.constant 700 : index
    %c0_103 = arith.constant 0 : index
    %149 = tpu.strided_load %arg9[%c700, %c0_103] {strides = array<i32: 2, 1>} : memref<784x16xf32, #tpu.memory_space<vmem>>, vector<14x16xf32>
    %150 = arith.maximumf %148, %149 : vector<14x16xf32>
    %c701 = arith.constant 701 : index
    %c0_104 = arith.constant 0 : index
    %151 = tpu.strided_load %arg9[%c701, %c0_104] {strides = array<i32: 2, 1>} : memref<784x16xf32, #tpu.memory_space<vmem>>, vector<14x16xf32>
    %152 = arith.maximumf %150, %151 : vector<14x16xf32>
    %153 = arith.truncf %152 : vector<14x16xf32> to vector<14x16xbf16>
    %c278 = arith.constant 278 : index
    %c0_105 = arith.constant 0 : index
    %154 = vector.load %arg10[%c278, %c0_105] : memref<372x16xbf16, #tpu.memory_space<vmem>>, vector<14x16xbf16>
    tpu.vector_store %arg10[%c278, %c0_105], %153 {strides = array<i32>} : memref<372x16xbf16, #tpu.memory_space<vmem>>, vector<14x16xbf16>,
    %c728 = arith.constant 728 : index
    %c0_106 = arith.constant 0 : index
    %155 = tpu.strided_load %arg9[%c728, %c0_106] {strides = array<i32: 2, 1>} : memref<784x16xf32, #tpu.memory_space<vmem>>, vector<14x16xf32>
    %c729 = arith.constant 729 : index
    %c0_107 = arith.constant 0 : index
    %156 = tpu.strided_load %arg9[%c729, %c0_107] {strides = array<i32: 2, 1>} : memref<784x16xf32, #tpu.memory_space<vmem>>, vector<14x16xf32>
    %157 = arith.maximumf %155, %156 : vector<14x16xf32>
    %c756 = arith.constant 756 : index
    %c0_108 = arith.constant 0 : index
    %158 = tpu.strided_load %arg9[%c756, %c0_108] {strides = array<i32: 2, 1>} : memref<784x16xf32, #tpu.memory_space<vmem>>, vector<14x16xf32>
    %159 = arith.maximumf %157, %158 : vector<14x16xf32>
    %c757 = arith.constant 757 : index
    %c0_109 = arith.constant 0 : index
    %160 = tpu.strided_load %arg9[%c757, %c0_109] {strides = array<i32: 2, 1>} : memref<784x16xf32, #tpu.memory_space<vmem>>, vector<14x16xf32>
    %161 = arith.maximumf %159, %160 : vector<14x16xf32>
    %162 = arith.truncf %161 : vector<14x16xf32> to vector<14x16xbf16>
    %c296 = arith.constant 296 : index
    %c0_110 = arith.constant 0 : index
    %163 = vector.load %arg10[%c296, %c0_110] : memref<372x16xbf16, #tpu.memory_space<vmem>>, vector<14x16xbf16>
    tpu.vector_store %arg10[%c296, %c0_110], %162 {strides = array<i32>} : memref<372x16xbf16, #tpu.memory_space<vmem>>, vector<14x16xbf16>,
    %c5 = arith.constant 5 : index
    %c0_111 = arith.constant 0 : index
    %164 = vector.load %arg10[%c5, %c0_111] : memref<372x16xbf16, #tpu.memory_space<vmem>>, vector<128x16xbf16>
    %c0_112 = arith.constant 0 : index
    %c0_113 = arith.constant 0 : index
    %c0_114 = arith.constant 0 : index
    %165 = vector.load %arg3[%c0_112, %c0_113, %c0_114] : memref<9x16x80xbf16, #tpu.memory_space<vmem>>, vector<1x16x80xbf16>
    %166 = vector.shape_cast %165 : vector<1x16x80xbf16> to vector<16x80xbf16>
    %cst_115 = arith.constant dense<0.000000e+00> : vector<128x80xf32>
    %167 = tpu.matmul %164, %166, %cst_115 {dimension_numbers = #tpu.dot_dimension_numbers<[1], [0], [0], [1], [0, 0, 1, 1], [], []>} : vector<128x16xbf16>, vector<16x80xbf16>, vector<128x80xf32> -> vector<128x80xf32>
    %c6 = arith.constant 6 : index
    %c0_116 = arith.constant 0 : index
    %168 = vector.load %arg10[%c6, %c0_116] : memref<372x16xbf16, #tpu.memory_space<vmem>>, vector<128x16xbf16>
    %c1_117 = arith.constant 1 : index
    %c0_118 = arith.constant 0 : index
    %c0_119 = arith.constant 0 : index
    %169 = vector.load %arg3[%c1_117, %c0_118, %c0_119] : memref<9x16x80xbf16, #tpu.memory_space<vmem>>, vector<1x16x80xbf16>
    %170 = vector.shape_cast %169 : vector<1x16x80xbf16> to vector<16x80xbf16>
    %cst_120 = arith.constant dense<0.000000e+00> : vector<128x80xf32>
    %171 = tpu.matmul %168, %170, %cst_120 {dimension_numbers = #tpu.dot_dimension_numbers<[1], [0], [0], [1], [0, 0, 1, 1], [], []>} : vector<128x16xbf16>, vector<16x80xbf16>, vector<128x80xf32> -> vector<128x80xf32>
    %172 = arith.addf %167, %171 : vector<128x80xf32>
    %c7 = arith.constant 7 : index
    %c0_121 = arith.constant 0 : index
    %173 = vector.load %arg10[%c7, %c0_121] : memref<372x16xbf16, #tpu.memory_space<vmem>>, vector<128x16xbf16>
    %c2 = arith.constant 2 : index
    %c0_122 = arith.constant 0 : index
    %c0_123 = arith.constant 0 : index
    %174 = vector.load %arg3[%c2, %c0_122, %c0_123] : memref<9x16x80xbf16, #tpu.memory_space<vmem>>, vector<1x16x80xbf16>
    %175 = vector.shape_cast %174 : vector<1x16x80xbf16> to vector<16x80xbf16>
    %cst_124 = arith.constant dense<0.000000e+00> : vector<128x80xf32>
    %176 = tpu.matmul %173, %175, %cst_124 {dimension_numbers = #tpu.dot_dimension_numbers<[1], [0], [0], [1], [0, 0, 1, 1], [], []>} : vector<128x16xbf16>, vector<16x80xbf16>, vector<128x80xf32> -> vector<128x80xf32>
    %177 = arith.addf %172, %176 : vector<128x80xf32>
    %c23 = arith.constant 23 : index
    %c0_125 = arith.constant 0 : index
    %178 = vector.load %arg10[%c23, %c0_125] : memref<372x16xbf16, #tpu.memory_space<vmem>>, vector<128x16xbf16>
    %c3 = arith.constant 3 : index
    %c0_126 = arith.constant 0 : index
    %c0_127 = arith.constant 0 : index
    %179 = vector.load %arg3[%c3, %c0_126, %c0_127] : memref<9x16x80xbf16, #tpu.memory_space<vmem>>, vector<1x16x80xbf16>
    %180 = vector.shape_cast %179 : vector<1x16x80xbf16> to vector<16x80xbf16>
    %cst_128 = arith.constant dense<0.000000e+00> : vector<128x80xf32>
    %181 = tpu.matmul %178, %180, %cst_128 {dimension_numbers = #tpu.dot_dimension_numbers<[1], [0], [0], [1], [0, 0, 1, 1], [], []>} : vector<128x16xbf16>, vector<16x80xbf16>, vector<128x80xf32> -> vector<128x80xf32>
    %182 = arith.addf %177, %181 : vector<128x80xf32>
    %c24 = arith.constant 24 : index
    %c0_129 = arith.constant 0 : index
    %183 = vector.load %arg10[%c24, %c0_129] : memref<372x16xbf16, #tpu.memory_space<vmem>>, vector<128x16xbf16>
    %c4 = arith.constant 4 : index
    %c0_130 = arith.constant 0 : index
    %c0_131 = arith.constant 0 : index
    %184 = vector.load %arg3[%c4, %c0_130, %c0_131] : memref<9x16x80xbf16, #tpu.memory_space<vmem>>, vector<1x16x80xbf16>
    %185 = vector.shape_cast %184 : vector<1x16x80xbf16> to vector<16x80xbf16>
    %cst_132 = arith.constant dense<0.000000e+00> : vector<128x80xf32>
    %186 = tpu.matmul %183, %185, %cst_132 {dimension_numbers = #tpu.dot_dimension_numbers<[1], [0], [0], [1], [0, 0, 1, 1], [], []>} : vector<128x16xbf16>, vector<16x80xbf16>, vector<128x80xf32> -> vector<128x80xf32>
    %187 = arith.addf %182, %186 : vector<128x80xf32>
    %c25 = arith.constant 25 : index
    %c0_133 = arith.constant 0 : index
    %188 = vector.load %arg10[%c25, %c0_133] : memref<372x16xbf16, #tpu.memory_space<vmem>>, vector<128x16xbf16>
    %c5_134 = arith.constant 5 : index
    %c0_135 = arith.constant 0 : index
    %c0_136 = arith.constant 0 : index
    %189 = vector.load %arg3[%c5_134, %c0_135, %c0_136] : memref<9x16x80xbf16, #tpu.memory_space<vmem>>, vector<1x16x80xbf16>
    %190 = vector.shape_cast %189 : vector<1x16x80xbf16> to vector<16x80xbf16>
    %cst_137 = arith.constant dense<0.000000e+00> : vector<128x80xf32>
    %191 = tpu.matmul %188, %190, %cst_137 {dimension_numbers = #tpu.dot_dimension_numbers<[1], [0], [0], [1], [0, 0, 1, 1], [], []>} : vector<128x16xbf16>, vector<16x80xbf16>, vector<128x80xf32> -> vector<128x80xf32>
    %192 = arith.addf %187, %191 : vector<128x80xf32>
    %c41 = arith.constant 41 : index
    %c0_138 = arith.constant 0 : index
    %193 = vector.load %arg10[%c41, %c0_138] : memref<372x16xbf16, #tpu.memory_space<vmem>>, vector<128x16xbf16>
    %c6_139 = arith.constant 6 : index
    %c0_140 = arith.constant 0 : index
    %c0_141 = arith.constant 0 : index
    %194 = vector.load %arg3[%c6_139, %c0_140, %c0_141] : memref<9x16x80xbf16, #tpu.memory_space<vmem>>, vector<1x16x80xbf16>
    %195 = vector.shape_cast %194 : vector<1x16x80xbf16> to vector<16x80xbf16>
    %cst_142 = arith.constant dense<0.000000e+00> : vector<128x80xf32>
    %196 = tpu.matmul %193, %195, %cst_142 {dimension_numbers = #tpu.dot_dimension_numbers<[1], [0], [0], [1], [0, 0, 1, 1], [], []>} : vector<128x16xbf16>, vector<16x80xbf16>, vector<128x80xf32> -> vector<128x80xf32>
    %197 = arith.addf %192, %196 : vector<128x80xf32>
    %c42 = arith.constant 42 : index
    %c0_143 = arith.constant 0 : index
    %198 = vector.load %arg10[%c42, %c0_143] : memref<372x16xbf16, #tpu.memory_space<vmem>>, vector<128x16xbf16>
    %c7_144 = arith.constant 7 : index
    %c0_145 = arith.constant 0 : index
    %c0_146 = arith.constant 0 : index
    %199 = vector.load %arg3[%c7_144, %c0_145, %c0_146] : memref<9x16x80xbf16, #tpu.memory_space<vmem>>, vector<1x16x80xbf16>
    %200 = vector.shape_cast %199 : vector<1x16x80xbf16> to vector<16x80xbf16>
    %cst_147 = arith.constant dense<0.000000e+00> : vector<128x80xf32>
    %201 = tpu.matmul %198, %200, %cst_147 {dimension_numbers = #tpu.dot_dimension_numbers<[1], [0], [0], [1], [0, 0, 1, 1], [], []>} : vector<128x16xbf16>, vector<16x80xbf16>, vector<128x80xf32> -> vector<128x80xf32>
    %202 = arith.addf %197, %201 : vector<128x80xf32>
    %c43 = arith.constant 43 : index
    %c0_148 = arith.constant 0 : index
    %203 = vector.load %arg10[%c43, %c0_148] : memref<372x16xbf16, #tpu.memory_space<vmem>>, vector<128x16xbf16>
    %c8 = arith.constant 8 : index
    %c0_149 = arith.constant 0 : index
    %c0_150 = arith.constant 0 : index
    %204 = vector.load %arg3[%c8, %c0_149, %c0_150] : memref<9x16x80xbf16, #tpu.memory_space<vmem>>, vector<1x16x80xbf16>
    %205 = vector.shape_cast %204 : vector<1x16x80xbf16> to vector<16x80xbf16>
    %cst_151 = arith.constant dense<0.000000e+00> : vector<128x80xf32>
    %206 = tpu.matmul %203, %205, %cst_151 {dimension_numbers = #tpu.dot_dimension_numbers<[1], [0], [0], [1], [0, 0, 1, 1], [], []>} : vector<128x16xbf16>, vector<16x80xbf16>, vector<128x80xf32> -> vector<128x80xf32>
    %207 = arith.addf %202, %206 : vector<128x80xf32>
    %cst_152 = arith.constant 0.000000e+00 : f32
    %208 = vector.broadcast %cst_152 : f32 to vector<128x80xf32>
    %209 = arith.maximumf %207, %208 : vector<128x80xf32>
    %c0_153 = arith.constant 0 : index
    %c0_154 = arith.constant 0 : index
    %210 = vector.load %arg11[%c0_153, %c0_154] : memref<324x80xf32, #tpu.memory_space<vmem>>, vector<128x80xf32>
    tpu.vector_store %arg11[%c0_153, %c0_154], %209 {strides = array<i32>} : memref<324x80xf32, #tpu.memory_space<vmem>>, vector<128x80xf32>,
    %c133 = arith.constant 133 : index
    %c0_155 = arith.constant 0 : index
    %211 = vector.load %arg10[%c133, %c0_155] : memref<372x16xbf16, #tpu.memory_space<vmem>>, vector<128x16xbf16>
    %c0_156 = arith.constant 0 : index
    %c0_157 = arith.constant 0 : index
    %c0_158 = arith.constant 0 : index
    %212 = vector.load %arg3[%c0_156, %c0_157, %c0_158] : memref<9x16x80xbf16, #tpu.memory_space<vmem>>, vector<1x16x80xbf16>
    %213 = vector.shape_cast %212 : vector<1x16x80xbf16> to vector<16x80xbf16>
    %cst_159 = arith.constant dense<0.000000e+00> : vector<128x80xf32>
    %214 = tpu.matmul %211, %213, %cst_159 {dimension_numbers = #tpu.dot_dimension_numbers<[1], [0], [0], [1], [0, 0, 1, 1], [], []>} : vector<128x16xbf16>, vector<16x80xbf16>, vector<128x80xf32> -> vector<128x80xf32>
    %c134_160 = arith.constant 134 : index
    %c0_161 = arith.constant 0 : index
    %215 = vector.load %arg10[%c134_160, %c0_161] : memref<372x16xbf16, #tpu.memory_space<vmem>>, vector<128x16xbf16>
    %c1_162 = arith.constant 1 : index
    %c0_163 = arith.constant 0 : index
    %c0_164 = arith.constant 0 : index
    %216 = vector.load %arg3[%c1_162, %c0_163, %c0_164] : memref<9x16x80xbf16, #tpu.memory_space<vmem>>, vector<1x16x80xbf16>
    %217 = vector.shape_cast %216 : vector<1x16x80xbf16> to vector<16x80xbf16>
    %cst_165 = arith.constant dense<0.000000e+00> : vector<128x80xf32>
    %218 = tpu.matmul %215, %217, %cst_165 {dimension_numbers = #tpu.dot_dimension_numbers<[1], [0], [0], [1], [0, 0, 1, 1], [], []>} : vector<128x16xbf16>, vector<16x80xbf16>, vector<128x80xf32> -> vector<128x80xf32>
    %219 = arith.addf %214, %218 : vector<128x80xf32>
    %c135 = arith.constant 135 : index
    %c0_166 = arith.constant 0 : index
    %220 = vector.load %arg10[%c135, %c0_166] : memref<372x16xbf16, #tpu.memory_space<vmem>>, vector<128x16xbf16>
    %c2_167 = arith.constant 2 : index
    %c0_168 = arith.constant 0 : index
    %c0_169 = arith.constant 0 : index
    %221 = vector.load %arg3[%c2_167, %c0_168, %c0_169] : memref<9x16x80xbf16, #tpu.memory_space<vmem>>, vector<1x16x80xbf16>
    %222 = vector.shape_cast %221 : vector<1x16x80xbf16> to vector<16x80xbf16>
    %cst_170 = arith.constant dense<0.000000e+00> : vector<128x80xf32>
    %223 = tpu.matmul %220, %222, %cst_170 {dimension_numbers = #tpu.dot_dimension_numbers<[1], [0], [0], [1], [0, 0, 1, 1], [], []>} : vector<128x16xbf16>, vector<16x80xbf16>, vector<128x80xf32> -> vector<128x80xf32>
    %224 = arith.addf %219, %223 : vector<128x80xf32>
    %c151 = arith.constant 151 : index
    %c0_171 = arith.constant 0 : index
    %225 = vector.load %arg10[%c151, %c0_171] : memref<372x16xbf16, #tpu.memory_space<vmem>>, vector<128x16xbf16>
    %c3_172 = arith.constant 3 : index
    %c0_173 = arith.constant 0 : index
    %c0_174 = arith.constant 0 : index
    %226 = vector.load %arg3[%c3_172, %c0_173, %c0_174] : memref<9x16x80xbf16, #tpu.memory_space<vmem>>, vector<1x16x80xbf16>
    %227 = vector.shape_cast %226 : vector<1x16x80xbf16> to vector<16x80xbf16>
    %cst_175 = arith.constant dense<0.000000e+00> : vector<128x80xf32>
    %228 = tpu.matmul %225, %227, %cst_175 {dimension_numbers = #tpu.dot_dimension_numbers<[1], [0], [0], [1], [0, 0, 1, 1], [], []>} : vector<128x16xbf16>, vector<16x80xbf16>, vector<128x80xf32> -> vector<128x80xf32>
    %229 = arith.addf %224, %228 : vector<128x80xf32>
    %c152_176 = arith.constant 152 : index
    %c0_177 = arith.constant 0 : index
    %230 = vector.load %arg10[%c152_176, %c0_177] : memref<372x16xbf16, #tpu.memory_space<vmem>>, vector<128x16xbf16>
    %c4_178 = arith.constant 4 : index
    %c0_179 = arith.constant 0 : index
    %c0_180 = arith.constant 0 : index
    %231 = vector.load %arg3[%c4_178, %c0_179, %c0_180] : memref<9x16x80xbf16, #tpu.memory_space<vmem>>, vector<1x16x80xbf16>
    %232 = vector.shape_cast %231 : vector<1x16x80xbf16> to vector<16x80xbf16>
    %cst_181 = arith.constant dense<0.000000e+00> : vector<128x80xf32>
    %233 = tpu.matmul %230, %232, %cst_181 {dimension_numbers = #tpu.dot_dimension_numbers<[1], [0], [0], [1], [0, 0, 1, 1], [], []>} : vector<128x16xbf16>, vector<16x80xbf16>, vector<128x80xf32> -> vector<128x80xf32>
    %234 = arith.addf %229, %233 : vector<128x80xf32>
    %c153 = arith.constant 153 : index
    %c0_182 = arith.constant 0 : index
    %235 = vector.load %arg10[%c153, %c0_182] : memref<372x16xbf16, #tpu.memory_space<vmem>>, vector<128x16xbf16>
    %c5_183 = arith.constant 5 : index
    %c0_184 = arith.constant 0 : index
    %c0_185 = arith.constant 0 : index
    %236 = vector.load %arg3[%c5_183, %c0_184, %c0_185] : memref<9x16x80xbf16, #tpu.memory_space<vmem>>, vector<1x16x80xbf16>
    %237 = vector.shape_cast %236 : vector<1x16x80xbf16> to vector<16x80xbf16>
    %cst_186 = arith.constant dense<0.000000e+00> : vector<128x80xf32>
    %238 = tpu.matmul %235, %237, %cst_186 {dimension_numbers = #tpu.dot_dimension_numbers<[1], [0], [0], [1], [0, 0, 1, 1], [], []>} : vector<128x16xbf16>, vector<16x80xbf16>, vector<128x80xf32> -> vector<128x80xf32>
    %239 = arith.addf %234, %238 : vector<128x80xf32>
    %c169_187 = arith.constant 169 : index
    %c0_188 = arith.constant 0 : index
    %240 = vector.load %arg10[%c169_187, %c0_188] : memref<372x16xbf16, #tpu.memory_space<vmem>>, vector<128x16xbf16>
    %c6_189 = arith.constant 6 : index
    %c0_190 = arith.constant 0 : index
    %c0_191 = arith.constant 0 : index
    %241 = vector.load %arg3[%c6_189, %c0_190, %c0_191] : memref<9x16x80xbf16, #tpu.memory_space<vmem>>, vector<1x16x80xbf16>
    %242 = vector.shape_cast %241 : vector<1x16x80xbf16> to vector<16x80xbf16>
    %cst_192 = arith.constant dense<0.000000e+00> : vector<128x80xf32>
    %243 = tpu.matmul %240, %242, %cst_192 {dimension_numbers = #tpu.dot_dimension_numbers<[1], [0], [0], [1], [0, 0, 1, 1], [], []>} : vector<128x16xbf16>, vector<16x80xbf16>, vector<128x80xf32> -> vector<128x80xf32>
    %244 = arith.addf %239, %243 : vector<128x80xf32>
    %c170_193 = arith.constant 170 : index
    %c0_194 = arith.constant 0 : index
    %245 = vector.load %arg10[%c170_193, %c0_194] : memref<372x16xbf16, #tpu.memory_space<vmem>>, vector<128x16xbf16>
    %c7_195 = arith.constant 7 : index
    %c0_196 = arith.constant 0 : index
    %c0_197 = arith.constant 0 : index
    %246 = vector.load %arg3[%c7_195, %c0_196, %c0_197] : memref<9x16x80xbf16, #tpu.memory_space<vmem>>, vector<1x16x80xbf16>
    %247 = vector.shape_cast %246 : vector<1x16x80xbf16> to vector<16x80xbf16>
    %cst_198 = arith.constant dense<0.000000e+00> : vector<128x80xf32>
    %248 = tpu.matmul %245, %247, %cst_198 {dimension_numbers = #tpu.dot_dimension_numbers<[1], [0], [0], [1], [0, 0, 1, 1], [], []>} : vector<128x16xbf16>, vector<16x80xbf16>, vector<128x80xf32> -> vector<128x80xf32>
    %249 = arith.addf %244, %248 : vector<128x80xf32>
    %c171 = arith.constant 171 : index
    %c0_199 = arith.constant 0 : index
    %250 = vector.load %arg10[%c171, %c0_199] : memref<372x16xbf16, #tpu.memory_space<vmem>>, vector<128x16xbf16>
    %c8_200 = arith.constant 8 : index
    %c0_201 = arith.constant 0 : index
    %c0_202 = arith.constant 0 : index
    %251 = vector.load %arg3[%c8_200, %c0_201, %c0_202] : memref<9x16x80xbf16, #tpu.memory_space<vmem>>, vector<1x16x80xbf16>
    %252 = vector.shape_cast %251 : vector<1x16x80xbf16> to vector<16x80xbf16>
    %cst_203 = arith.constant dense<0.000000e+00> : vector<128x80xf32>
    %253 = tpu.matmul %250, %252, %cst_203 {dimension_numbers = #tpu.dot_dimension_numbers<[1], [0], [0], [1], [0, 0, 1, 1], [], []>} : vector<128x16xbf16>, vector<16x80xbf16>, vector<128x80xf32> -> vector<128x80xf32>
    %254 = arith.addf %249, %253 : vector<128x80xf32>
    %cst_204 = arith.constant 0.000000e+00 : f32
    %255 = vector.broadcast %cst_204 : f32 to vector<128x80xf32>
    %256 = arith.maximumf %254, %255 : vector<128x80xf32>
    %c128_205 = arith.constant 128 : index
    %c0_206 = arith.constant 0 : index
    %257 = vector.load %arg11[%c128_205, %c0_206] : memref<324x80xf32, #tpu.memory_space<vmem>>, vector<128x80xf32>
    tpu.vector_store %arg11[%c128_205, %c0_206], %256 {strides = array<i32>} : memref<324x80xf32, #tpu.memory_space<vmem>>, vector<128x80xf32>,
    %c261 = arith.constant 261 : index
    %c0_207 = arith.constant 0 : index
    %258 = vector.load %arg10[%c261, %c0_207] : memref<372x16xbf16, #tpu.memory_space<vmem>>, vector<68x16xbf16>
    %c0_208 = arith.constant 0 : index
    %c0_209 = arith.constant 0 : index
    %c0_210 = arith.constant 0 : index
    %259 = vector.load %arg3[%c0_208, %c0_209, %c0_210] : memref<9x16x80xbf16, #tpu.memory_space<vmem>>, vector<1x16x80xbf16>
    %260 = vector.shape_cast %259 : vector<1x16x80xbf16> to vector<16x80xbf16>
    %cst_211 = arith.constant dense<0.000000e+00> : vector<68x80xf32>
    %261 = tpu.matmul %258, %260, %cst_211 {dimension_numbers = #tpu.dot_dimension_numbers<[1], [0], [0], [1], [0, 0, 1, 1], [], []>} : vector<68x16xbf16>, vector<16x80xbf16>, vector<68x80xf32> -> vector<68x80xf32>
    %c262 = arith.constant 262 : index
    %c0_212 = arith.constant 0 : index
    %262 = vector.load %arg10[%c262, %c0_212] : memref<372x16xbf16, #tpu.memory_space<vmem>>, vector<68x16xbf16>
    %c1_213 = arith.constant 1 : index
    %c0_214 = arith.constant 0 : index
    %c0_215 = arith.constant 0 : index
    %263 = vector.load %arg3[%c1_213, %c0_214, %c0_215] : memref<9x16x80xbf16, #tpu.memory_space<vmem>>, vector<1x16x80xbf16>
    %264 = vector.shape_cast %263 : vector<1x16x80xbf16> to vector<16x80xbf16>
    %cst_216 = arith.constant dense<0.000000e+00> : vector<68x80xf32>
    %265 = tpu.matmul %262, %264, %cst_216 {dimension_numbers = #tpu.dot_dimension_numbers<[1], [0], [0], [1], [0, 0, 1, 1], [], []>} : vector<68x16xbf16>, vector<16x80xbf16>, vector<68x80xf32> -> vector<68x80xf32>
    %266 = arith.addf %261, %265 : vector<68x80xf32>
    %c263 = arith.constant 263 : index
    %c0_217 = arith.constant 0 : index
    %267 = vector.load %arg10[%c263, %c0_217] : memref<372x16xbf16, #tpu.memory_space<vmem>>, vector<68x16xbf16>
    %c2_218 = arith.constant 2 : index
    %c0_219 = arith.constant 0 : index
    %c0_220 = arith.constant 0 : index
    %268 = vector.load %arg3[%c2_218, %c0_219, %c0_220] : memref<9x16x80xbf16, #tpu.memory_space<vmem>>, vector<1x16x80xbf16>
    %269 = vector.shape_cast %268 : vector<1x16x80xbf16> to vector<16x80xbf16>
    %cst_221 = arith.constant dense<0.000000e+00> : vector<68x80xf32>
    %270 = tpu.matmul %267, %269, %cst_221 {dimension_numbers = #tpu.dot_dimension_numbers<[1], [0], [0], [1], [0, 0, 1, 1], [], []>} : vector<68x16xbf16>, vector<16x80xbf16>, vector<68x80xf32> -> vector<68x80xf32>
    %271 = arith.addf %266, %270 : vector<68x80xf32>
    %c279 = arith.constant 279 : index
    %c0_222 = arith.constant 0 : index
    %272 = vector.load %arg10[%c279, %c0_222] : memref<372x16xbf16, #tpu.memory_space<vmem>>, vector<68x16xbf16>
    %c3_223 = arith.constant 3 : index
    %c0_224 = arith.constant 0 : index
    %c0_225 = arith.constant 0 : index
    %273 = vector.load %arg3[%c3_223, %c0_224, %c0_225] : memref<9x16x80xbf16, #tpu.memory_space<vmem>>, vector<1x16x80xbf16>
    %274 = vector.shape_cast %273 : vector<1x16x80xbf16> to vector<16x80xbf16>
    %cst_226 = arith.constant dense<0.000000e+00> : vector<68x80xf32>
    %275 = tpu.matmul %272, %274, %cst_226 {dimension_numbers = #tpu.dot_dimension_numbers<[1], [0], [0], [1], [0, 0, 1, 1], [], []>} : vector<68x16xbf16>, vector<16x80xbf16>, vector<68x80xf32> -> vector<68x80xf32>
    %276 = arith.addf %271, %275 : vector<68x80xf32>
    %c280_227 = arith.constant 280 : index
    %c0_228 = arith.constant 0 : index
    %277 = vector.load %arg10[%c280_227, %c0_228] : memref<372x16xbf16, #tpu.memory_space<vmem>>, vector<68x16xbf16>
    %c4_229 = arith.constant 4 : index
    %c0_230 = arith.constant 0 : index
    %c0_231 = arith.constant 0 : index
    %278 = vector.load %arg3[%c4_229, %c0_230, %c0_231] : memref<9x16x80xbf16, #tpu.memory_space<vmem>>, vector<1x16x80xbf16>
    %279 = vector.shape_cast %278 : vector<1x16x80xbf16> to vector<16x80xbf16>
    %cst_232 = arith.constant dense<0.000000e+00> : vector<68x80xf32>
    %280 = tpu.matmul %277, %279, %cst_232 {dimension_numbers = #tpu.dot_dimension_numbers<[1], [0], [0], [1], [0, 0, 1, 1], [], []>} : vector<68x16xbf16>, vector<16x80xbf16>, vector<68x80xf32> -> vector<68x80xf32>
    %281 = arith.addf %276, %280 : vector<68x80xf32>
    %c281_233 = arith.constant 281 : index
    %c0_234 = arith.constant 0 : index
    %282 = vector.load %arg10[%c281_233, %c0_234] : memref<372x16xbf16, #tpu.memory_space<vmem>>, vector<68x16xbf16>
    %c5_235 = arith.constant 5 : index
    %c0_236 = arith.constant 0 : index
    %c0_237 = arith.constant 0 : index
    %283 = vector.load %arg3[%c5_235, %c0_236, %c0_237] : memref<9x16x80xbf16, #tpu.memory_space<vmem>>, vector<1x16x80xbf16>
    %284 = vector.shape_cast %283 : vector<1x16x80xbf16> to vector<16x80xbf16>
    %cst_238 = arith.constant dense<0.000000e+00> : vector<68x80xf32>
    %285 = tpu.matmul %282, %284, %cst_238 {dimension_numbers = #tpu.dot_dimension_numbers<[1], [0], [0], [1], [0, 0, 1, 1], [], []>} : vector<68x16xbf16>, vector<16x80xbf16>, vector<68x80xf32> -> vector<68x80xf32>
    %286 = arith.addf %281, %285 : vector<68x80xf32>
    %c297 = arith.constant 297 : index
    %c0_239 = arith.constant 0 : index
    %287 = vector.load %arg10[%c297, %c0_239] : memref<372x16xbf16, #tpu.memory_space<vmem>>, vector<68x16xbf16>
    %c6_240 = arith.constant 6 : index
    %c0_241 = arith.constant 0 : index
    %c0_242 = arith.constant 0 : index
    %288 = vector.load %arg3[%c6_240, %c0_241, %c0_242] : memref<9x16x80xbf16, #tpu.memory_space<vmem>>, vector<1x16x80xbf16>
    %289 = vector.shape_cast %288 : vector<1x16x80xbf16> to vector<16x80xbf16>
    %cst_243 = arith.constant dense<0.000000e+00> : vector<68x80xf32>
    %290 = tpu.matmul %287, %289, %cst_243 {dimension_numbers = #tpu.dot_dimension_numbers<[1], [0], [0], [1], [0, 0, 1, 1], [], []>} : vector<68x16xbf16>, vector<16x80xbf16>, vector<68x80xf32> -> vector<68x80xf32>
    %291 = arith.addf %286, %290 : vector<68x80xf32>
    %c298 = arith.constant 298 : index
    %c0_244 = arith.constant 0 : index
    %292 = vector.load %arg10[%c298, %c0_244] : memref<372x16xbf16, #tpu.memory_space<vmem>>, vector<68x16xbf16>
    %c7_245 = arith.constant 7 : index
    %c0_246 = arith.constant 0 : index
    %c0_247 = arith.constant 0 : index
    %293 = vector.load %arg3[%c7_245, %c0_246, %c0_247] : memref<9x16x80xbf16, #tpu.memory_space<vmem>>, vector<1x16x80xbf16>
    %294 = vector.shape_cast %293 : vector<1x16x80xbf16> to vector<16x80xbf16>
    %cst_248 = arith.constant dense<0.000000e+00> : vector<68x80xf32>
    %295 = tpu.matmul %292, %294, %cst_248 {dimension_numbers = #tpu.dot_dimension_numbers<[1], [0], [0], [1], [0, 0, 1, 1], [], []>} : vector<68x16xbf16>, vector<16x80xbf16>, vector<68x80xf32> -> vector<68x80xf32>
    %296 = arith.addf %291, %295 : vector<68x80xf32>
    %c299 = arith.constant 299 : index
    %c0_249 = arith.constant 0 : index
    %297 = vector.load %arg10[%c299, %c0_249] : memref<372x16xbf16, #tpu.memory_space<vmem>>, vector<68x16xbf16>
    %c8_250 = arith.constant 8 : index
    %c0_251 = arith.constant 0 : index
    %c0_252 = arith.constant 0 : index
    %298 = vector.load %arg3[%c8_250, %c0_251, %c0_252] : memref<9x16x80xbf16, #tpu.memory_space<vmem>>, vector<1x16x80xbf16>
    %299 = vector.shape_cast %298 : vector<1x16x80xbf16> to vector<16x80xbf16>
    %cst_253 = arith.constant dense<0.000000e+00> : vector<68x80xf32>
    %300 = tpu.matmul %297, %299, %cst_253 {dimension_numbers = #tpu.dot_dimension_numbers<[1], [0], [0], [1], [0, 0, 1, 1], [], []>} : vector<68x16xbf16>, vector<16x80xbf16>, vector<68x80xf32> -> vector<68x80xf32>
    %301 = arith.addf %296, %300 : vector<68x80xf32>
    %cst_254 = arith.constant 0.000000e+00 : f32
    %302 = vector.broadcast %cst_254 : f32 to vector<68x80xf32>
    %303 = arith.maximumf %301, %302 : vector<68x80xf32>
    %c256_255 = arith.constant 256 : index
    %c0_256 = arith.constant 0 : index
    %304 = vector.load %arg11[%c256_255, %c0_256] : memref<324x80xf32, #tpu.memory_space<vmem>>, vector<68x80xf32>
    tpu.vector_store %arg11[%c256_255, %c0_256], %303 {strides = array<i32>} : memref<324x80xf32, #tpu.memory_space<vmem>>, vector<68x80xf32>,
    %cst_257 = arith.constant 0.000000e+00 : bf16
    %305 = vector.broadcast %cst_257 : bf16 to vector<132x80xbf16>
    %c0_258 = arith.constant 0 : index
    %c0_259 = arith.constant 0 : index
    %306 = vector.load %arg12[%c0_258, %c0_259] : memref<132x80xbf16, #tpu.memory_space<vmem>>, vector<132x80xbf16>
    tpu.vector_store %arg12[%c0_258, %c0_259], %305 {strides = array<i32>} : memref<132x80xbf16, #tpu.memory_space<vmem>>, vector<132x80xbf16>,
    %c19 = arith.constant 19 : index
    %c0_260 = arith.constant 0 : index
    %307 = tpu.strided_load %arg11[%c19, %c0_260] {strides = array<i32: 2, 1>} : memref<324x80xf32, #tpu.memory_space<vmem>>, vector<8x80xf32>
    %c20 = arith.constant 20 : index
    %c0_261 = arith.constant 0 : index
    %308 = tpu.strided_load %arg11[%c20, %c0_261] {strides = array<i32: 2, 1>} : memref<324x80xf32, #tpu.memory_space<vmem>>, vector<8x80xf32>
    %309 = arith.maximumf %307, %308 : vector<8x80xf32>
    %c37 = arith.constant 37 : index
    %c0_262 = arith.constant 0 : index
    %310 = tpu.strided_load %arg11[%c37, %c0_262] {strides = array<i32: 2, 1>} : memref<324x80xf32, #tpu.memory_space<vmem>>, vector<8x80xf32>
    %311 = arith.maximumf %309, %310 : vector<8x80xf32>
    %c38 = arith.constant 38 : index
    %c0_263 = arith.constant 0 : index
    %312 = tpu.strided_load %arg11[%c38, %c0_263] {strides = array<i32: 2, 1>} : memref<324x80xf32, #tpu.memory_space<vmem>>, vector<8x80xf32>
    %313 = arith.maximumf %311, %312 : vector<8x80xf32>
    %314 = arith.truncf %313 : vector<8x80xf32> to vector<8x80xbf16>
    %c27 = arith.constant 27 : index
    %c0_264 = arith.constant 0 : index
    %315 = vector.load %arg12[%c27, %c0_264] : memref<132x80xbf16, #tpu.memory_space<vmem>>, vector<8x80xbf16>
    tpu.vector_store %arg12[%c27, %c0_264], %314 {strides = array<i32>} : memref<132x80xbf16, #tpu.memory_space<vmem>>, vector<8x80xbf16>,
    %c55 = arith.constant 55 : index
    %c0_265 = arith.constant 0 : index
    %316 = tpu.strided_load %arg11[%c55, %c0_265] {strides = array<i32: 2, 1>} : memref<324x80xf32, #tpu.memory_space<vmem>>, vector<8x80xf32>
    %c56_266 = arith.constant 56 : index
    %c0_267 = arith.constant 0 : index
    %317 = tpu.strided_load %arg11[%c56_266, %c0_267] {strides = array<i32: 2, 1>} : memref<324x80xf32, #tpu.memory_space<vmem>>, vector<8x80xf32>
    %318 = arith.maximumf %316, %317 : vector<8x80xf32>
    %c73 = arith.constant 73 : index
    %c0_268 = arith.constant 0 : index
    %319 = tpu.strided_load %arg11[%c73, %c0_268] {strides = array<i32: 2, 1>} : memref<324x80xf32, #tpu.memory_space<vmem>>, vector<8x80xf32>
    %320 = arith.maximumf %318, %319 : vector<8x80xf32>
    %c74 = arith.constant 74 : index
    %c0_269 = arith.constant 0 : index
    %321 = tpu.strided_load %arg11[%c74, %c0_269] {strides = array<i32: 2, 1>} : memref<324x80xf32, #tpu.memory_space<vmem>>, vector<8x80xf32>
    %322 = arith.maximumf %320, %321 : vector<8x80xf32>
    %323 = arith.truncf %322 : vector<8x80xf32> to vector<8x80xbf16>
    %c37_270 = arith.constant 37 : index
    %c0_271 = arith.constant 0 : index
    %324 = vector.load %arg12[%c37_270, %c0_271] : memref<132x80xbf16, #tpu.memory_space<vmem>>, vector<8x80xbf16>
    tpu.vector_store %arg12[%c37_270, %c0_271], %323 {strides = array<i32>} : memref<132x80xbf16, #tpu.memory_space<vmem>>, vector<8x80xbf16>,
    %c91 = arith.constant 91 : index
    %c0_272 = arith.constant 0 : index
    %325 = tpu.strided_load %arg11[%c91, %c0_272] {strides = array<i32: 2, 1>} : memref<324x80xf32, #tpu.memory_space<vmem>>, vector<8x80xf32>
    %c92 = arith.constant 92 : index
    %c0_273 = arith.constant 0 : index
    %326 = tpu.strided_load %arg11[%c92, %c0_273] {strides = array<i32: 2, 1>} : memref<324x80xf32, #tpu.memory_space<vmem>>, vector<8x80xf32>
    %327 = arith.maximumf %325, %326 : vector<8x80xf32>
    %c109 = arith.constant 109 : index
    %c0_274 = arith.constant 0 : index
    %328 = tpu.strided_load %arg11[%c109, %c0_274] {strides = array<i32: 2, 1>} : memref<324x80xf32, #tpu.memory_space<vmem>>, vector<8x80xf32>
    %329 = arith.maximumf %327, %328 : vector<8x80xf32>
    %c110 = arith.constant 110 : index
    %c0_275 = arith.constant 0 : index
    %330 = tpu.strided_load %arg11[%c110, %c0_275] {strides = array<i32: 2, 1>} : memref<324x80xf32, #tpu.memory_space<vmem>>, vector<8x80xf32>
    %331 = arith.maximumf %329, %330 : vector<8x80xf32>
    %332 = arith.truncf %331 : vector<8x80xf32> to vector<8x80xbf16>
    %c47 = arith.constant 47 : index
    %c0_276 = arith.constant 0 : index
    %333 = vector.load %arg12[%c47, %c0_276] : memref<132x80xbf16, #tpu.memory_space<vmem>>, vector<8x80xbf16>
    tpu.vector_store %arg12[%c47, %c0_276], %332 {strides = array<i32>} : memref<132x80xbf16, #tpu.memory_space<vmem>>, vector<8x80xbf16>,
    %c127 = arith.constant 127 : index
    %c0_277 = arith.constant 0 : index
    %334 = tpu.strided_load %arg11[%c127, %c0_277] {strides = array<i32: 2, 1>} : memref<324x80xf32, #tpu.memory_space<vmem>>, vector<8x80xf32>
    %c128_278 = arith.constant 128 : index
    %c0_279 = arith.constant 0 : index
    %335 = tpu.strided_load %arg11[%c128_278, %c0_279] {strides = array<i32: 2, 1>} : memref<324x80xf32, #tpu.memory_space<vmem>>, vector<8x80xf32>
    %336 = arith.maximumf %334, %335 : vector<8x80xf32>
    %c145 = arith.constant 145 : index
    %c0_280 = arith.constant 0 : index
    %337 = tpu.strided_load %arg11[%c145, %c0_280] {strides = array<i32: 2, 1>} : memref<324x80xf32, #tpu.memory_space<vmem>>, vector<8x80xf32>
    %338 = arith.maximumf %336, %337 : vector<8x80xf32>
    %c146 = arith.constant 146 : index
    %c0_281 = arith.constant 0 : index
    %339 = tpu.strided_load %arg11[%c146, %c0_281] {strides = array<i32: 2, 1>} : memref<324x80xf32, #tpu.memory_space<vmem>>, vector<8x80xf32>
    %340 = arith.maximumf %338, %339 : vector<8x80xf32>
    %341 = arith.truncf %340 : vector<8x80xf32> to vector<8x80xbf16>
    %c57_282 = arith.constant 57 : index
    %c0_283 = arith.constant 0 : index
    %342 = vector.load %arg12[%c57_282, %c0_283] : memref<132x80xbf16, #tpu.memory_space<vmem>>, vector<8x80xbf16>
    tpu.vector_store %arg12[%c57_282, %c0_283], %341 {strides = array<i32>} : memref<132x80xbf16, #tpu.memory_space<vmem>>, vector<8x80xbf16>,
    %c163 = arith.constant 163 : index
    %c0_284 = arith.constant 0 : index
    %343 = tpu.strided_load %arg11[%c163, %c0_284] {strides = array<i32: 2, 1>} : memref<324x80xf32, #tpu.memory_space<vmem>>, vector<8x80xf32>
    %c164 = arith.constant 164 : index
    %c0_285 = arith.constant 0 : index
    %344 = tpu.strided_load %arg11[%c164, %c0_285] {strides = array<i32: 2, 1>} : memref<324x80xf32, #tpu.memory_space<vmem>>, vector<8x80xf32>
    %345 = arith.maximumf %343, %344 : vector<8x80xf32>
    %c181 = arith.constant 181 : index
    %c0_286 = arith.constant 0 : index
    %346 = tpu.strided_load %arg11[%c181, %c0_286] {strides = array<i32: 2, 1>} : memref<324x80xf32, #tpu.memory_space<vmem>>, vector<8x80xf32>
    %347 = arith.maximumf %345, %346 : vector<8x80xf32>
    %c182 = arith.constant 182 : index
    %c0_287 = arith.constant 0 : index
    %348 = tpu.strided_load %arg11[%c182, %c0_287] {strides = array<i32: 2, 1>} : memref<324x80xf32, #tpu.memory_space<vmem>>, vector<8x80xf32>
    %349 = arith.maximumf %347, %348 : vector<8x80xf32>
    %350 = arith.truncf %349 : vector<8x80xf32> to vector<8x80xbf16>
    %c67 = arith.constant 67 : index
    %c0_288 = arith.constant 0 : index
    %351 = vector.load %arg12[%c67, %c0_288] : memref<132x80xbf16, #tpu.memory_space<vmem>>, vector<8x80xbf16>
    tpu.vector_store %arg12[%c67, %c0_288], %350 {strides = array<i32>} : memref<132x80xbf16, #tpu.memory_space<vmem>>, vector<8x80xbf16>,
    %c199 = arith.constant 199 : index
    %c0_289 = arith.constant 0 : index
    %352 = tpu.strided_load %arg11[%c199, %c0_289] {strides = array<i32: 2, 1>} : memref<324x80xf32, #tpu.memory_space<vmem>>, vector<8x80xf32>
    %c200 = arith.constant 200 : index
    %c0_290 = arith.constant 0 : index
    %353 = tpu.strided_load %arg11[%c200, %c0_290] {strides = array<i32: 2, 1>} : memref<324x80xf32, #tpu.memory_space<vmem>>, vector<8x80xf32>
    %354 = arith.maximumf %352, %353 : vector<8x80xf32>
    %c217 = arith.constant 217 : index
    %c0_291 = arith.constant 0 : index
    %355 = tpu.strided_load %arg11[%c217, %c0_291] {strides = array<i32: 2, 1>} : memref<324x80xf32, #tpu.memory_space<vmem>>, vector<8x80xf32>
    %356 = arith.maximumf %354, %355 : vector<8x80xf32>
    %c218 = arith.constant 218 : index
    %c0_292 = arith.constant 0 : index
    %357 = tpu.strided_load %arg11[%c218, %c0_292] {strides = array<i32: 2, 1>} : memref<324x80xf32, #tpu.memory_space<vmem>>, vector<8x80xf32>
    %358 = arith.maximumf %356, %357 : vector<8x80xf32>
    %359 = arith.truncf %358 : vector<8x80xf32> to vector<8x80xbf16>
    %c77 = arith.constant 77 : index
    %c0_293 = arith.constant 0 : index
    %360 = vector.load %arg12[%c77, %c0_293] : memref<132x80xbf16, #tpu.memory_space<vmem>>, vector<8x80xbf16>
    tpu.vector_store %arg12[%c77, %c0_293], %359 {strides = array<i32>} : memref<132x80xbf16, #tpu.memory_space<vmem>>, vector<8x80xbf16>,
    %c235 = arith.constant 235 : index
    %c0_294 = arith.constant 0 : index
    %361 = tpu.strided_load %arg11[%c235, %c0_294] {strides = array<i32: 2, 1>} : memref<324x80xf32, #tpu.memory_space<vmem>>, vector<8x80xf32>
    %c236 = arith.constant 236 : index
    %c0_295 = arith.constant 0 : index
    %362 = tpu.strided_load %arg11[%c236, %c0_295] {strides = array<i32: 2, 1>} : memref<324x80xf32, #tpu.memory_space<vmem>>, vector<8x80xf32>
    %363 = arith.maximumf %361, %362 : vector<8x80xf32>
    %c253_296 = arith.constant 253 : index
    %c0_297 = arith.constant 0 : index
    %364 = tpu.strided_load %arg11[%c253_296, %c0_297] {strides = array<i32: 2, 1>} : memref<324x80xf32, #tpu.memory_space<vmem>>, vector<8x80xf32>
    %365 = arith.maximumf %363, %364 : vector<8x80xf32>
    %c254 = arith.constant 254 : index
    %c0_298 = arith.constant 0 : index
    %366 = tpu.strided_load %arg11[%c254, %c0_298] {strides = array<i32: 2, 1>} : memref<324x80xf32, #tpu.memory_space<vmem>>, vector<8x80xf32>
    %367 = arith.maximumf %365, %366 : vector<8x80xf32>
    %368 = arith.truncf %367 : vector<8x80xf32> to vector<8x80xbf16>
    %c87 = arith.constant 87 : index
    %c0_299 = arith.constant 0 : index
    %369 = vector.load %arg12[%c87, %c0_299] : memref<132x80xbf16, #tpu.memory_space<vmem>>, vector<8x80xbf16>
    tpu.vector_store %arg12[%c87, %c0_299], %368 {strides = array<i32>} : memref<132x80xbf16, #tpu.memory_space<vmem>>, vector<8x80xbf16>,
    %c271 = arith.constant 271 : index
    %c0_300 = arith.constant 0 : index
    %370 = tpu.strided_load %arg11[%c271, %c0_300] {strides = array<i32: 2, 1>} : memref<324x80xf32, #tpu.memory_space<vmem>>, vector<8x80xf32>
    %c272 = arith.constant 272 : index
    %c0_301 = arith.constant 0 : index
    %371 = tpu.strided_load %arg11[%c272, %c0_301] {strides = array<i32: 2, 1>} : memref<324x80xf32, #tpu.memory_space<vmem>>, vector<8x80xf32>
    %372 = arith.maximumf %370, %371 : vector<8x80xf32>
    %c289 = arith.constant 289 : index
    %c0_302 = arith.constant 0 : index
    %373 = tpu.strided_load %arg11[%c289, %c0_302] {strides = array<i32: 2, 1>} : memref<324x80xf32, #tpu.memory_space<vmem>>, vector<8x80xf32>
    %374 = arith.maximumf %372, %373 : vector<8x80xf32>
    %c290 = arith.constant 290 : index
    %c0_303 = arith.constant 0 : index
    %375 = tpu.strided_load %arg11[%c290, %c0_303] {strides = array<i32: 2, 1>} : memref<324x80xf32, #tpu.memory_space<vmem>>, vector<8x80xf32>
    %376 = arith.maximumf %374, %375 : vector<8x80xf32>
    %377 = arith.truncf %376 : vector<8x80xf32> to vector<8x80xbf16>
    %c97 = arith.constant 97 : index
    %c0_304 = arith.constant 0 : index
    %378 = vector.load %arg12[%c97, %c0_304] : memref<132x80xbf16, #tpu.memory_space<vmem>>, vector<8x80xbf16>
    tpu.vector_store %arg12[%c97, %c0_304], %377 {strides = array<i32>} : memref<132x80xbf16, #tpu.memory_space<vmem>>, vector<8x80xbf16>,
    %c5_305 = arith.constant 5 : index
    %c0_306 = arith.constant 0 : index
    %379 = vector.load %arg12[%c5_305, %c0_306] : memref<132x80xbf16, #tpu.memory_space<vmem>>, vector<100x80xbf16>
    %c0_307 = arith.constant 0 : index
    %c0_308 = arith.constant 0 : index
    %c0_309 = arith.constant 0 : index
    %380 = vector.load %arg4[%c0_307, %c0_308, %c0_309] : memref<9x80x16xbf16, #tpu.memory_space<vmem>>, vector<1x80x16xbf16>
    %381 = vector.shape_cast %380 : vector<1x80x16xbf16> to vector<80x16xbf16>
    %cst_310 = arith.constant dense<0.000000e+00> : vector<100x16xf32>
    %382 = tpu.matmul %379, %381, %cst_310 {dimension_numbers = #tpu.dot_dimension_numbers<[1], [0], [0], [1], [0, 0, 1, 1], [], []>} : vector<100x80xbf16>, vector<80x16xbf16>, vector<100x16xf32> -> vector<100x16xf32>
    %c6_311 = arith.constant 6 : index
    %c0_312 = arith.constant 0 : index
    %383 = vector.load %arg12[%c6_311, %c0_312] : memref<132x80xbf16, #tpu.memory_space<vmem>>, vector<100x80xbf16>
    %c1_313 = arith.constant 1 : index
    %c0_314 = arith.constant 0 : index
    %c0_315 = arith.constant 0 : index
    %384 = vector.load %arg4[%c1_313, %c0_314, %c0_315] : memref<9x80x16xbf16, #tpu.memory_space<vmem>>, vector<1x80x16xbf16>
    %385 = vector.shape_cast %384 : vector<1x80x16xbf16> to vector<80x16xbf16>
    %cst_316 = arith.constant dense<0.000000e+00> : vector<100x16xf32>
    %386 = tpu.matmul %383, %385, %cst_316 {dimension_numbers = #tpu.dot_dimension_numbers<[1], [0], [0], [1], [0, 0, 1, 1], [], []>} : vector<100x80xbf16>, vector<80x16xbf16>, vector<100x16xf32> -> vector<100x16xf32>
    %387 = arith.addf %382, %386 : vector<100x16xf32>
    %c7_317 = arith.constant 7 : index
    %c0_318 = arith.constant 0 : index
    %388 = vector.load %arg12[%c7_317, %c0_318] : memref<132x80xbf16, #tpu.memory_space<vmem>>, vector<100x80xbf16>
    %c2_319 = arith.constant 2 : index
    %c0_320 = arith.constant 0 : index
    %c0_321 = arith.constant 0 : index
    %389 = vector.load %arg4[%c2_319, %c0_320, %c0_321] : memref<9x80x16xbf16, #tpu.memory_space<vmem>>, vector<1x80x16xbf16>
    %390 = vector.shape_cast %389 : vector<1x80x16xbf16> to vector<80x16xbf16>
    %cst_322 = arith.constant dense<0.000000e+00> : vector<100x16xf32>
    %391 = tpu.matmul %388, %390, %cst_322 {dimension_numbers = #tpu.dot_dimension_numbers<[1], [0], [0], [1], [0, 0, 1, 1], [], []>} : vector<100x80xbf16>, vector<80x16xbf16>, vector<100x16xf32> -> vector<100x16xf32>
    %392 = arith.addf %387, %391 : vector<100x16xf32>
    %c15 = arith.constant 15 : index
    %c0_323 = arith.constant 0 : index
    %393 = vector.load %arg12[%c15, %c0_323] : memref<132x80xbf16, #tpu.memory_space<vmem>>, vector<100x80xbf16>
    %c3_324 = arith.constant 3 : index
    %c0_325 = arith.constant 0 : index
    %c0_326 = arith.constant 0 : index
    %394 = vector.load %arg4[%c3_324, %c0_325, %c0_326] : memref<9x80x16xbf16, #tpu.memory_space<vmem>>, vector<1x80x16xbf16>
    %395 = vector.shape_cast %394 : vector<1x80x16xbf16> to vector<80x16xbf16>
    %cst_327 = arith.constant dense<0.000000e+00> : vector<100x16xf32>
    %396 = tpu.matmul %393, %395, %cst_327 {dimension_numbers = #tpu.dot_dimension_numbers<[1], [0], [0], [1], [0, 0, 1, 1], [], []>} : vector<100x80xbf16>, vector<80x16xbf16>, vector<100x16xf32> -> vector<100x16xf32>
    %397 = arith.addf %392, %396 : vector<100x16xf32>
    %c16 = arith.constant 16 : index
    %c0_328 = arith.constant 0 : index
    %398 = vector.load %arg12[%c16, %c0_328] : memref<132x80xbf16, #tpu.memory_space<vmem>>, vector<100x80xbf16>
    %c4_329 = arith.constant 4 : index
    %c0_330 = arith.constant 0 : index
    %c0_331 = arith.constant 0 : index
    %399 = vector.load %arg4[%c4_329, %c0_330, %c0_331] : memref<9x80x16xbf16, #tpu.memory_space<vmem>>, vector<1x80x16xbf16>
    %400 = vector.shape_cast %399 : vector<1x80x16xbf16> to vector<80x16xbf16>
    %cst_332 = arith.constant dense<0.000000e+00> : vector<100x16xf32>
    %401 = tpu.matmul %398, %400, %cst_332 {dimension_numbers = #tpu.dot_dimension_numbers<[1], [0], [0], [1], [0, 0, 1, 1], [], []>} : vector<100x80xbf16>, vector<80x16xbf16>, vector<100x16xf32> -> vector<100x16xf32>
    %402 = arith.addf %397, %401 : vector<100x16xf32>
    %c17 = arith.constant 17 : index
    %c0_333 = arith.constant 0 : index
    %403 = vector.load %arg12[%c17, %c0_333] : memref<132x80xbf16, #tpu.memory_space<vmem>>, vector<100x80xbf16>
    %c5_334 = arith.constant 5 : index
    %c0_335 = arith.constant 0 : index
    %c0_336 = arith.constant 0 : index
    %404 = vector.load %arg4[%c5_334, %c0_335, %c0_336] : memref<9x80x16xbf16, #tpu.memory_space<vmem>>, vector<1x80x16xbf16>
    %405 = vector.shape_cast %404 : vector<1x80x16xbf16> to vector<80x16xbf16>
    %cst_337 = arith.constant dense<0.000000e+00> : vector<100x16xf32>
    %406 = tpu.matmul %403, %405, %cst_337 {dimension_numbers = #tpu.dot_dimension_numbers<[1], [0], [0], [1], [0, 0, 1, 1], [], []>} : vector<100x80xbf16>, vector<80x16xbf16>, vector<100x16xf32> -> vector<100x16xf32>
    %407 = arith.addf %402, %406 : vector<100x16xf32>
    %c25_338 = arith.constant 25 : index
    %c0_339 = arith.constant 0 : index
    %408 = vector.load %arg12[%c25_338, %c0_339] : memref<132x80xbf16, #tpu.memory_space<vmem>>, vector<100x80xbf16>
    %c6_340 = arith.constant 6 : index
    %c0_341 = arith.constant 0 : index
    %c0_342 = arith.constant 0 : index
    %409 = vector.load %arg4[%c6_340, %c0_341, %c0_342] : memref<9x80x16xbf16, #tpu.memory_space<vmem>>, vector<1x80x16xbf16>
    %410 = vector.shape_cast %409 : vector<1x80x16xbf16> to vector<80x16xbf16>
    %cst_343 = arith.constant dense<0.000000e+00> : vector<100x16xf32>
    %411 = tpu.matmul %408, %410, %cst_343 {dimension_numbers = #tpu.dot_dimension_numbers<[1], [0], [0], [1], [0, 0, 1, 1], [], []>} : vector<100x80xbf16>, vector<80x16xbf16>, vector<100x16xf32> -> vector<100x16xf32>
    %412 = arith.addf %407, %411 : vector<100x16xf32>
    %c26 = arith.constant 26 : index
    %c0_344 = arith.constant 0 : index
    %413 = vector.load %arg12[%c26, %c0_344] : memref<132x80xbf16, #tpu.memory_space<vmem>>, vector<100x80xbf16>
    %c7_345 = arith.constant 7 : index
    %c0_346 = arith.constant 0 : index
    %c0_347 = arith.constant 0 : index
    %414 = vector.load %arg4[%c7_345, %c0_346, %c0_347] : memref<9x80x16xbf16, #tpu.memory_space<vmem>>, vector<1x80x16xbf16>
    %415 = vector.shape_cast %414 : vector<1x80x16xbf16> to vector<80x16xbf16>
    %cst_348 = arith.constant dense<0.000000e+00> : vector<100x16xf32>
    %416 = tpu.matmul %413, %415, %cst_348 {dimension_numbers = #tpu.dot_dimension_numbers<[1], [0], [0], [1], [0, 0, 1, 1], [], []>} : vector<100x80xbf16>, vector<80x16xbf16>, vector<100x16xf32> -> vector<100x16xf32>
    %417 = arith.addf %412, %416 : vector<100x16xf32>
    %c27_349 = arith.constant 27 : index
    %c0_350 = arith.constant 0 : index
    %418 = vector.load %arg12[%c27_349, %c0_350] : memref<132x80xbf16, #tpu.memory_space<vmem>>, vector<100x80xbf16>
    %c8_351 = arith.constant 8 : index
    %c0_352 = arith.constant 0 : index
    %c0_353 = arith.constant 0 : index
    %419 = vector.load %arg4[%c8_351, %c0_352, %c0_353] : memref<9x80x16xbf16, #tpu.memory_space<vmem>>, vector<1x80x16xbf16>
    %420 = vector.shape_cast %419 : vector<1x80x16xbf16> to vector<80x16xbf16>
    %cst_354 = arith.constant dense<0.000000e+00> : vector<100x16xf32>
    %421 = tpu.matmul %418, %420, %cst_354 {dimension_numbers = #tpu.dot_dimension_numbers<[1], [0], [0], [1], [0, 0, 1, 1], [], []>} : vector<100x80xbf16>, vector<80x16xbf16>, vector<100x16xf32> -> vector<100x16xf32>
    %422 = arith.addf %417, %421 : vector<100x16xf32>
    %cst_355 = arith.constant 0.000000e+00 : f32
    %423 = vector.broadcast %cst_355 : f32 to vector<100x16xf32>
    %424 = arith.maximumf %422, %423 : vector<100x16xf32>
    %c0_356 = arith.constant 0 : index
    %c0_357 = arith.constant 0 : index
    %425 = vector.load %arg13[%c0_356, %c0_357] : memref<100x16xf32, #tpu.memory_space<vmem>>, vector<100x16xf32>
    tpu.vector_store %arg13[%c0_356, %c0_357], %424 {strides = array<i32>} : memref<100x16xf32, #tpu.memory_space<vmem>>, vector<100x16xf32>,
    %cst_358 = arith.constant 0.000000e+00 : bf16
    %426 = vector.broadcast %cst_358 : bf16 to vector<52x16xbf16>
    %c0_359 = arith.constant 0 : index
    %c0_360 = arith.constant 0 : index
    %427 = vector.load %arg14[%c0_359, %c0_360] : memref<52x16xbf16, #tpu.memory_space<vmem>>, vector<52x16xbf16>
    tpu.vector_store %arg14[%c0_359, %c0_360], %426 {strides = array<i32>} : memref<52x16xbf16, #tpu.memory_space<vmem>>, vector<52x16xbf16>,
    %c11 = arith.constant 11 : index
    %c0_361 = arith.constant 0 : index
    %428 = tpu.strided_load %arg13[%c11, %c0_361] {strides = array<i32: 2, 1>} : memref<100x16xf32, #tpu.memory_space<vmem>>, vector<4x16xf32>
    %c12 = arith.constant 12 : index
    %c0_362 = arith.constant 0 : index
    %429 = tpu.strided_load %arg13[%c12, %c0_362] {strides = array<i32: 2, 1>} : memref<100x16xf32, #tpu.memory_space<vmem>>, vector<4x16xf32>
    %430 = arith.addf %428, %429 : vector<4x16xf32>
    %c21 = arith.constant 21 : index
    %c0_363 = arith.constant 0 : index
    %431 = tpu.strided_load %arg13[%c21, %c0_363] {strides = array<i32: 2, 1>} : memref<100x16xf32, #tpu.memory_space<vmem>>, vector<4x16xf32>
    %432 = arith.addf %430, %431 : vector<4x16xf32>
    %c22 = arith.constant 22 : index
    %c0_364 = arith.constant 0 : index
    %433 = tpu.strided_load %arg13[%c22, %c0_364] {strides = array<i32: 2, 1>} : memref<100x16xf32, #tpu.memory_space<vmem>>, vector<4x16xf32>
    %434 = arith.addf %432, %433 : vector<4x16xf32>
    %cst_365 = arith.constant 2.500000e-01 : f32
    %435 = vector.broadcast %cst_365 : f32 to vector<4x16xf32>
    %436 = arith.mulf %434, %435 : vector<4x16xf32>
    %437 = arith.truncf %436 : vector<4x16xf32> to vector<4x16xbf16>
    %c15_366 = arith.constant 15 : index
    %c0_367 = arith.constant 0 : index
    %438 = vector.load %arg14[%c15_366, %c0_367] : memref<52x16xbf16, #tpu.memory_space<vmem>>, vector<4x16xbf16>
    tpu.vector_store %arg14[%c15_366, %c0_367], %437 {strides = array<i32>} : memref<52x16xbf16, #tpu.memory_space<vmem>>, vector<4x16xbf16>,
    %c31 = arith.constant 31 : index
    %c0_368 = arith.constant 0 : index
    %439 = tpu.strided_load %arg13[%c31, %c0_368] {strides = array<i32: 2, 1>} : memref<100x16xf32, #tpu.memory_space<vmem>>, vector<4x16xf32>
    %c32 = arith.constant 32 : index
    %c0_369 = arith.constant 0 : index
    %440 = tpu.strided_load %arg13[%c32, %c0_369] {strides = array<i32: 2, 1>} : memref<100x16xf32, #tpu.memory_space<vmem>>, vector<4x16xf32>
    %441 = arith.addf %439, %440 : vector<4x16xf32>
    %c41_370 = arith.constant 41 : index
    %c0_371 = arith.constant 0 : index
    %442 = tpu.strided_load %arg13[%c41_370, %c0_371] {strides = array<i32: 2, 1>} : memref<100x16xf32, #tpu.memory_space<vmem>>, vector<4x16xf32>
    %443 = arith.addf %441, %442 : vector<4x16xf32>
    %c42_372 = arith.constant 42 : index
    %c0_373 = arith.constant 0 : index
    %444 = tpu.strided_load %arg13[%c42_372, %c0_373] {strides = array<i32: 2, 1>} : memref<100x16xf32, #tpu.memory_space<vmem>>, vector<4x16xf32>
    %445 = arith.addf %443, %444 : vector<4x16xf32>
    %cst_374 = arith.constant 2.500000e-01 : f32
    %446 = vector.broadcast %cst_374 : f32 to vector<4x16xf32>
    %447 = arith.mulf %445, %446 : vector<4x16xf32>
    %448 = arith.truncf %447 : vector<4x16xf32> to vector<4x16xbf16>
    %c21_375 = arith.constant 21 : index
    %c0_376 = arith.constant 0 : index
    %449 = vector.load %arg14[%c21_375, %c0_376] : memref<52x16xbf16, #tpu.memory_space<vmem>>, vector<4x16xbf16>
    tpu.vector_store %arg14[%c21_375, %c0_376], %448 {strides = array<i32>} : memref<52x16xbf16, #tpu.memory_space<vmem>>, vector<4x16xbf16>,
    %c51 = arith.constant 51 : index
    %c0_377 = arith.constant 0 : index
    %450 = tpu.strided_load %arg13[%c51, %c0_377] {strides = array<i32: 2, 1>} : memref<100x16xf32, #tpu.memory_space<vmem>>, vector<4x16xf32>
    %c52 = arith.constant 52 : index
    %c0_378 = arith.constant 0 : index
    %451 = tpu.strided_load %arg13[%c52, %c0_378] {strides = array<i32: 2, 1>} : memref<100x16xf32, #tpu.memory_space<vmem>>, vector<4x16xf32>
    %452 = arith.addf %450, %451 : vector<4x16xf32>
    %c61 = arith.constant 61 : index
    %c0_379 = arith.constant 0 : index
    %453 = tpu.strided_load %arg13[%c61, %c0_379] {strides = array<i32: 2, 1>} : memref<100x16xf32, #tpu.memory_space<vmem>>, vector<4x16xf32>
    %454 = arith.addf %452, %453 : vector<4x16xf32>
    %c62_380 = arith.constant 62 : index
    %c0_381 = arith.constant 0 : index
    %455 = tpu.strided_load %arg13[%c62_380, %c0_381] {strides = array<i32: 2, 1>} : memref<100x16xf32, #tpu.memory_space<vmem>>, vector<4x16xf32>
    %456 = arith.addf %454, %455 : vector<4x16xf32>
    %cst_382 = arith.constant 2.500000e-01 : f32
    %457 = vector.broadcast %cst_382 : f32 to vector<4x16xf32>
    %458 = arith.mulf %456, %457 : vector<4x16xf32>
    %459 = arith.truncf %458 : vector<4x16xf32> to vector<4x16xbf16>
    %c27_383 = arith.constant 27 : index
    %c0_384 = arith.constant 0 : index
    %460 = vector.load %arg14[%c27_383, %c0_384] : memref<52x16xbf16, #tpu.memory_space<vmem>>, vector<4x16xbf16>
    tpu.vector_store %arg14[%c27_383, %c0_384], %459 {strides = array<i32>} : memref<52x16xbf16, #tpu.memory_space<vmem>>, vector<4x16xbf16>,
    %c71 = arith.constant 71 : index
    %c0_385 = arith.constant 0 : index
    %461 = tpu.strided_load %arg13[%c71, %c0_385] {strides = array<i32: 2, 1>} : memref<100x16xf32, #tpu.memory_space<vmem>>, vector<4x16xf32>
    %c72 = arith.constant 72 : index
    %c0_386 = arith.constant 0 : index
    %462 = tpu.strided_load %arg13[%c72, %c0_386] {strides = array<i32: 2, 1>} : memref<100x16xf32, #tpu.memory_space<vmem>>, vector<4x16xf32>
    %463 = arith.addf %461, %462 : vector<4x16xf32>
    %c81 = arith.constant 81 : index
    %c0_387 = arith.constant 0 : index
    %464 = tpu.strided_load %arg13[%c81, %c0_387] {strides = array<i32: 2, 1>} : memref<100x16xf32, #tpu.memory_space<vmem>>, vector<4x16xf32>
    %465 = arith.addf %463, %464 : vector<4x16xf32>
    %c82 = arith.constant 82 : index
    %c0_388 = arith.constant 0 : index
    %466 = tpu.strided_load %arg13[%c82, %c0_388] {strides = array<i32: 2, 1>} : memref<100x16xf32, #tpu.memory_space<vmem>>, vector<4x16xf32>
    %467 = arith.addf %465, %466 : vector<4x16xf32>
    %cst_389 = arith.constant 2.500000e-01 : f32
    %468 = vector.broadcast %cst_389 : f32 to vector<4x16xf32>
    %469 = arith.mulf %467, %468 : vector<4x16xf32>
    %470 = arith.truncf %469 : vector<4x16xf32> to vector<4x16xbf16>
    %c33 = arith.constant 33 : index
    %c0_390 = arith.constant 0 : index
    %471 = vector.load %arg14[%c33, %c0_390] : memref<52x16xbf16, #tpu.memory_space<vmem>>, vector<4x16xbf16>
    tpu.vector_store %arg14[%c33, %c0_390], %470 {strides = array<i32>} : memref<52x16xbf16, #tpu.memory_space<vmem>>, vector<4x16xbf16>,
    %c1_391 = arith.constant 1 : index
    %c0_392 = arith.constant 0 : index
    %472 = vector.load %arg14[%c1_391, %c0_392] : memref<52x16xbf16, #tpu.memory_space<vmem>>, vector<36x16xbf16>
    %c0_393 = arith.constant 0 : index
    %c0_394 = arith.constant 0 : index
    %c0_395 = arith.constant 0 : index
    %473 = vector.load %arg5[%c0_393, %c0_394, %c0_395] : memref<9x16x12xbf16, #tpu.memory_space<vmem>>, vector<1x16x12xbf16>
    %474 = vector.shape_cast %473 : vector<1x16x12xbf16> to vector<16x12xbf16>
    %cst_396 = arith.constant dense<0.000000e+00> : vector<36x12xf32>
    %475 = tpu.matmul %472, %474, %cst_396 {dimension_numbers = #tpu.dot_dimension_numbers<[1], [0], [0], [1], [0, 0, 1, 1], [], []>} : vector<36x16xbf16>, vector<16x12xbf16>, vector<36x12xf32> -> vector<36x12xf32>
    %c2_397 = arith.constant 2 : index
    %c0_398 = arith.constant 0 : index
    %476 = vector.load %arg14[%c2_397, %c0_398] : memref<52x16xbf16, #tpu.memory_space<vmem>>, vector<36x16xbf16>
    %c1_399 = arith.constant 1 : index
    %c0_400 = arith.constant 0 : index
    %c0_401 = arith.constant 0 : index
    %477 = vector.load %arg5[%c1_399, %c0_400, %c0_401] : memref<9x16x12xbf16, #tpu.memory_space<vmem>>, vector<1x16x12xbf16>
    %478 = vector.shape_cast %477 : vector<1x16x12xbf16> to vector<16x12xbf16>
    %cst_402 = arith.constant dense<0.000000e+00> : vector<36x12xf32>
    %479 = tpu.matmul %476, %478, %cst_402 {dimension_numbers = #tpu.dot_dimension_numbers<[1], [0], [0], [1], [0, 0, 1, 1], [], []>} : vector<36x16xbf16>, vector<16x12xbf16>, vector<36x12xf32> -> vector<36x12xf32>
    %480 = arith.addf %475, %479 : vector<36x12xf32>
    %c3_403 = arith.constant 3 : index
    %c0_404 = arith.constant 0 : index
    %481 = vector.load %arg14[%c3_403, %c0_404] : memref<52x16xbf16, #tpu.memory_space<vmem>>, vector<36x16xbf16>
    %c2_405 = arith.constant 2 : index
    %c0_406 = arith.constant 0 : index
    %c0_407 = arith.constant 0 : index
    %482 = vector.load %arg5[%c2_405, %c0_406, %c0_407] : memref<9x16x12xbf16, #tpu.memory_space<vmem>>, vector<1x16x12xbf16>
    %483 = vector.shape_cast %482 : vector<1x16x12xbf16> to vector<16x12xbf16>
    %cst_408 = arith.constant dense<0.000000e+00> : vector<36x12xf32>
    %484 = tpu.matmul %481, %483, %cst_408 {dimension_numbers = #tpu.dot_dimension_numbers<[1], [0], [0], [1], [0, 0, 1, 1], [], []>} : vector<36x16xbf16>, vector<16x12xbf16>, vector<36x12xf32> -> vector<36x12xf32>
    %485 = arith.addf %480, %484 : vector<36x12xf32>
    %c7_409 = arith.constant 7 : index
    %c0_410 = arith.constant 0 : index
    %486 = vector.load %arg14[%c7_409, %c0_410] : memref<52x16xbf16, #tpu.memory_space<vmem>>, vector<36x16xbf16>
    %c3_411 = arith.constant 3 : index
    %c0_412 = arith.constant 0 : index
    %c0_413 = arith.constant 0 : index
    %487 = vector.load %arg5[%c3_411, %c0_412, %c0_413] : memref<9x16x12xbf16, #tpu.memory_space<vmem>>, vector<1x16x12xbf16>
    %488 = vector.shape_cast %487 : vector<1x16x12xbf16> to vector<16x12xbf16>
    %cst_414 = arith.constant dense<0.000000e+00> : vector<36x12xf32>
    %489 = tpu.matmul %486, %488, %cst_414 {dimension_numbers = #tpu.dot_dimension_numbers<[1], [0], [0], [1], [0, 0, 1, 1], [], []>} : vector<36x16xbf16>, vector<16x12xbf16>, vector<36x12xf32> -> vector<36x12xf32>
    %490 = arith.addf %485, %489 : vector<36x12xf32>
    %c8_415 = arith.constant 8 : index
    %c0_416 = arith.constant 0 : index
    %491 = vector.load %arg14[%c8_415, %c0_416] : memref<52x16xbf16, #tpu.memory_space<vmem>>, vector<36x16xbf16>
    %c4_417 = arith.constant 4 : index
    %c0_418 = arith.constant 0 : index
    %c0_419 = arith.constant 0 : index
    %492 = vector.load %arg5[%c4_417, %c0_418, %c0_419] : memref<9x16x12xbf16, #tpu.memory_space<vmem>>, vector<1x16x12xbf16>
    %493 = vector.shape_cast %492 : vector<1x16x12xbf16> to vector<16x12xbf16>
    %cst_420 = arith.constant dense<0.000000e+00> : vector<36x12xf32>
    %494 = tpu.matmul %491, %493, %cst_420 {dimension_numbers = #tpu.dot_dimension_numbers<[1], [0], [0], [1], [0, 0, 1, 1], [], []>} : vector<36x16xbf16>, vector<16x12xbf16>, vector<36x12xf32> -> vector<36x12xf32>
    %495 = arith.addf %490, %494 : vector<36x12xf32>
    %c9 = arith.constant 9 : index
    %c0_421 = arith.constant 0 : index
    %496 = vector.load %arg14[%c9, %c0_421] : memref<52x16xbf16, #tpu.memory_space<vmem>>, vector<36x16xbf16>
    %c5_422 = arith.constant 5 : index
    %c0_423 = arith.constant 0 : index
    %c0_424 = arith.constant 0 : index
    %497 = vector.load %arg5[%c5_422, %c0_423, %c0_424] : memref<9x16x12xbf16, #tpu.memory_space<vmem>>, vector<1x16x12xbf16>
    %498 = vector.shape_cast %497 : vector<1x16x12xbf16> to vector<16x12xbf16>
    %cst_425 = arith.constant dense<0.000000e+00> : vector<36x12xf32>
    %499 = tpu.matmul %496, %498, %cst_425 {dimension_numbers = #tpu.dot_dimension_numbers<[1], [0], [0], [1], [0, 0, 1, 1], [], []>} : vector<36x16xbf16>, vector<16x12xbf16>, vector<36x12xf32> -> vector<36x12xf32>
    %500 = arith.addf %495, %499 : vector<36x12xf32>
    %c13 = arith.constant 13 : index
    %c0_426 = arith.constant 0 : index
    %501 = vector.load %arg14[%c13, %c0_426] : memref<52x16xbf16, #tpu.memory_space<vmem>>, vector<36x16xbf16>
    %c6_427 = arith.constant 6 : index
    %c0_428 = arith.constant 0 : index
    %c0_429 = arith.constant 0 : index
    %502 = vector.load %arg5[%c6_427, %c0_428, %c0_429] : memref<9x16x12xbf16, #tpu.memory_space<vmem>>, vector<1x16x12xbf16>
    %503 = vector.shape_cast %502 : vector<1x16x12xbf16> to vector<16x12xbf16>
    %cst_430 = arith.constant dense<0.000000e+00> : vector<36x12xf32>
    %504 = tpu.matmul %501, %503, %cst_430 {dimension_numbers = #tpu.dot_dimension_numbers<[1], [0], [0], [1], [0, 0, 1, 1], [], []>} : vector<36x16xbf16>, vector<16x12xbf16>, vector<36x12xf32> -> vector<36x12xf32>
    %505 = arith.addf %500, %504 : vector<36x12xf32>
    %c14 = arith.constant 14 : index
    %c0_431 = arith.constant 0 : index
    %506 = vector.load %arg14[%c14, %c0_431] : memref<52x16xbf16, #tpu.memory_space<vmem>>, vector<36x16xbf16>
    %c7_432 = arith.constant 7 : index
    %c0_433 = arith.constant 0 : index
    %c0_434 = arith.constant 0 : index
    %507 = vector.load %arg5[%c7_432, %c0_433, %c0_434] : memref<9x16x12xbf16, #tpu.memory_space<vmem>>, vector<1x16x12xbf16>
    %508 = vector.shape_cast %507 : vector<1x16x12xbf16> to vector<16x12xbf16>
    %cst_435 = arith.constant dense<0.000000e+00> : vector<36x12xf32>
    %509 = tpu.matmul %506, %508, %cst_435 {dimension_numbers = #tpu.dot_dimension_numbers<[1], [0], [0], [1], [0, 0, 1, 1], [], []>} : vector<36x16xbf16>, vector<16x12xbf16>, vector<36x12xf32> -> vector<36x12xf32>
    %510 = arith.addf %505, %509 : vector<36x12xf32>
    %c15_436 = arith.constant 15 : index
    %c0_437 = arith.constant 0 : index
    %511 = vector.load %arg14[%c15_436, %c0_437] : memref<52x16xbf16, #tpu.memory_space<vmem>>, vector<36x16xbf16>
    %c8_438 = arith.constant 8 : index
    %c0_439 = arith.constant 0 : index
    %c0_440 = arith.constant 0 : index
    %512 = vector.load %arg5[%c8_438, %c0_439, %c0_440] : memref<9x16x12xbf16, #tpu.memory_space<vmem>>, vector<1x16x12xbf16>
    %513 = vector.shape_cast %512 : vector<1x16x12xbf16> to vector<16x12xbf16>
    %cst_441 = arith.constant dense<0.000000e+00> : vector<36x12xf32>
    %514 = tpu.matmul %511, %513, %cst_441 {dimension_numbers = #tpu.dot_dimension_numbers<[1], [0], [0], [1], [0, 0, 1, 1], [], []>} : vector<36x16xbf16>, vector<16x12xbf16>, vector<36x12xf32> -> vector<36x12xf32>
    %515 = arith.addf %510, %514 : vector<36x12xf32>
    %cst_442 = arith.constant 0.000000e+00 : f32
    %516 = vector.broadcast %cst_442 : f32 to vector<36x12xf32>
    %517 = arith.maximumf %515, %516 : vector<36x12xf32>
    %c0_443 = arith.constant 0 : index
    %c0_444 = arith.constant 0 : index
    %518 = vector.load %arg15[%c0_443, %c0_444] : memref<36x12xf32, #tpu.memory_space<vmem>>, vector<36x12xf32>
    tpu.vector_store %arg15[%c0_443, %c0_444], %517 {strides = array<i32>} : memref<36x12xf32, #tpu.memory_space<vmem>>, vector<36x12xf32>,
    %c7_445 = arith.constant 7 : index
    %c0_446 = arith.constant 0 : index
    %519 = vector.load %arg15[%c7_445, %c0_446] : memref<36x12xf32, #tpu.memory_space<vmem>>, vector<1x12xf32>
    %520 = arith.truncf %519 : vector<1x12xf32> to vector<1x12xbf16>
    %c0_447 = arith.constant 0 : index
    %c0_448 = arith.constant 0 : index
    %c0_449 = arith.constant 0 : index
    %521 = vector.load %arg6[%c0_447, %c0_448, %c0_449] : memref<16x12x10xbf16, #tpu.memory_space<vmem>>, vector<1x12x10xbf16>
    %522 = vector.shape_cast %521 : vector<1x12x10xbf16> to vector<12x10xbf16>
    %cst_450 = arith.constant dense<0.000000e+00> : vector<1x10xf32>
    %523 = tpu.matmul %520, %522, %cst_450 {dimension_numbers = #tpu.dot_dimension_numbers<[1], [0], [0], [1], [0, 0, 1, 1], [], []>} : vector<1x12xbf16>, vector<12x10xbf16>, vector<1x10xf32> -> vector<1x10xf32>
    %c8_451 = arith.constant 8 : index
    %c0_452 = arith.constant 0 : index
    %524 = vector.load %arg15[%c8_451, %c0_452] : memref<36x12xf32, #tpu.memory_space<vmem>>, vector<1x12xf32>
    %525 = arith.truncf %524 : vector<1x12xf32> to vector<1x12xbf16>
    %c1_453 = arith.constant 1 : index
    %c0_454 = arith.constant 0 : index
    %c0_455 = arith.constant 0 : index
    %526 = vector.load %arg6[%c1_453, %c0_454, %c0_455] : memref<16x12x10xbf16, #tpu.memory_space<vmem>>, vector<1x12x10xbf16>
    %527 = vector.shape_cast %526 : vector<1x12x10xbf16> to vector<12x10xbf16>
    %cst_456 = arith.constant dense<0.000000e+00> : vector<1x10xf32>
    %528 = tpu.matmul %525, %527, %cst_456 {dimension_numbers = #tpu.dot_dimension_numbers<[1], [0], [0], [1], [0, 0, 1, 1], [], []>} : vector<1x12xbf16>, vector<12x10xbf16>, vector<1x10xf32> -> vector<1x10xf32>
    %529 = arith.addf %523, %528 : vector<1x10xf32>
    %c9_457 = arith.constant 9 : index
    %c0_458 = arith.constant 0 : index
    %530 = vector.load %arg15[%c9_457, %c0_458] : memref<36x12xf32, #tpu.memory_space<vmem>>, vector<1x12xf32>
    %531 = arith.truncf %530 : vector<1x12xf32> to vector<1x12xbf16>
    %c2_459 = arith.constant 2 : index
    %c0_460 = arith.constant 0 : index
    %c0_461 = arith.constant 0 : index
    %532 = vector.load %arg6[%c2_459, %c0_460, %c0_461] : memref<16x12x10xbf16, #tpu.memory_space<vmem>>, vector<1x12x10xbf16>
    %533 = vector.shape_cast %532 : vector<1x12x10xbf16> to vector<12x10xbf16>
    %cst_462 = arith.constant dense<0.000000e+00> : vector<1x10xf32>
    %534 = tpu.matmul %531, %533, %cst_462 {dimension_numbers = #tpu.dot_dimension_numbers<[1], [0], [0], [1], [0, 0, 1, 1], [], []>} : vector<1x12xbf16>, vector<12x10xbf16>, vector<1x10xf32> -> vector<1x10xf32>
    %535 = arith.addf %529, %534 : vector<1x10xf32>
    %c10 = arith.constant 10 : index
    %c0_463 = arith.constant 0 : index
    %536 = vector.load %arg15[%c10, %c0_463] : memref<36x12xf32, #tpu.memory_space<vmem>>, vector<1x12xf32>
    %537 = arith.truncf %536 : vector<1x12xf32> to vector<1x12xbf16>
    %c3_464 = arith.constant 3 : index
    %c0_465 = arith.constant 0 : index
    %c0_466 = arith.constant 0 : index
    %538 = vector.load %arg6[%c3_464, %c0_465, %c0_466] : memref<16x12x10xbf16, #tpu.memory_space<vmem>>, vector<1x12x10xbf16>
    %539 = vector.shape_cast %538 : vector<1x12x10xbf16> to vector<12x10xbf16>
    %cst_467 = arith.constant dense<0.000000e+00> : vector<1x10xf32>
    %540 = tpu.matmul %537, %539, %cst_467 {dimension_numbers = #tpu.dot_dimension_numbers<[1], [0], [0], [1], [0, 0, 1, 1], [], []>} : vector<1x12xbf16>, vector<12x10xbf16>, vector<1x10xf32> -> vector<1x10xf32>
    %541 = arith.addf %535, %540 : vector<1x10xf32>
    %c13_468 = arith.constant 13 : index
    %c0_469 = arith.constant 0 : index
    %542 = vector.load %arg15[%c13_468, %c0_469] : memref<36x12xf32, #tpu.memory_space<vmem>>, vector<1x12xf32>
    %543 = arith.truncf %542 : vector<1x12xf32> to vector<1x12xbf16>
    %c4_470 = arith.constant 4 : index
    %c0_471 = arith.constant 0 : index
    %c0_472 = arith.constant 0 : index
    %544 = vector.load %arg6[%c4_470, %c0_471, %c0_472] : memref<16x12x10xbf16, #tpu.memory_space<vmem>>, vector<1x12x10xbf16>
    %545 = vector.shape_cast %544 : vector<1x12x10xbf16> to vector<12x10xbf16>
    %cst_473 = arith.constant dense<0.000000e+00> : vector<1x10xf32>
    %546 = tpu.matmul %543, %545, %cst_473 {dimension_numbers = #tpu.dot_dimension_numbers<[1], [0], [0], [1], [0, 0, 1, 1], [], []>} : vector<1x12xbf16>, vector<12x10xbf16>, vector<1x10xf32> -> vector<1x10xf32>
    %547 = arith.addf %541, %546 : vector<1x10xf32>
    %c14_474 = arith.constant 14 : index
    %c0_475 = arith.constant 0 : index
    %548 = vector.load %arg15[%c14_474, %c0_475] : memref<36x12xf32, #tpu.memory_space<vmem>>, vector<1x12xf32>
    %549 = arith.truncf %548 : vector<1x12xf32> to vector<1x12xbf16>
    %c5_476 = arith.constant 5 : index
    %c0_477 = arith.constant 0 : index
    %c0_478 = arith.constant 0 : index
    %550 = vector.load %arg6[%c5_476, %c0_477, %c0_478] : memref<16x12x10xbf16, #tpu.memory_space<vmem>>, vector<1x12x10xbf16>
    %551 = vector.shape_cast %550 : vector<1x12x10xbf16> to vector<12x10xbf16>
    %cst_479 = arith.constant dense<0.000000e+00> : vector<1x10xf32>
    %552 = tpu.matmul %549, %551, %cst_479 {dimension_numbers = #tpu.dot_dimension_numbers<[1], [0], [0], [1], [0, 0, 1, 1], [], []>} : vector<1x12xbf16>, vector<12x10xbf16>, vector<1x10xf32> -> vector<1x10xf32>
    %553 = arith.addf %547, %552 : vector<1x10xf32>
    %c15_480 = arith.constant 15 : index
    %c0_481 = arith.constant 0 : index
    %554 = vector.load %arg15[%c15_480, %c0_481] : memref<36x12xf32, #tpu.memory_space<vmem>>, vector<1x12xf32>
    %555 = arith.truncf %554 : vector<1x12xf32> to vector<1x12xbf16>
    %c6_482 = arith.constant 6 : index
    %c0_483 = arith.constant 0 : index
    %c0_484 = arith.constant 0 : index
    %556 = vector.load %arg6[%c6_482, %c0_483, %c0_484] : memref<16x12x10xbf16, #tpu.memory_space<vmem>>, vector<1x12x10xbf16>
    %557 = vector.shape_cast %556 : vector<1x12x10xbf16> to vector<12x10xbf16>
    %cst_485 = arith.constant dense<0.000000e+00> : vector<1x10xf32>
    %558 = tpu.matmul %555, %557, %cst_485 {dimension_numbers = #tpu.dot_dimension_numbers<[1], [0], [0], [1], [0, 0, 1, 1], [], []>} : vector<1x12xbf16>, vector<12x10xbf16>, vector<1x10xf32> -> vector<1x10xf32>
    %559 = arith.addf %553, %558 : vector<1x10xf32>
    %c16_486 = arith.constant 16 : index
    %c0_487 = arith.constant 0 : index
    %560 = vector.load %arg15[%c16_486, %c0_487] : memref<36x12xf32, #tpu.memory_space<vmem>>, vector<1x12xf32>
    %561 = arith.truncf %560 : vector<1x12xf32> to vector<1x12xbf16>
    %c7_488 = arith.constant 7 : index
    %c0_489 = arith.constant 0 : index
    %c0_490 = arith.constant 0 : index
    %562 = vector.load %arg6[%c7_488, %c0_489, %c0_490] : memref<16x12x10xbf16, #tpu.memory_space<vmem>>, vector<1x12x10xbf16>
    %563 = vector.shape_cast %562 : vector<1x12x10xbf16> to vector<12x10xbf16>
    %cst_491 = arith.constant dense<0.000000e+00> : vector<1x10xf32>
    %564 = tpu.matmul %561, %563, %cst_491 {dimension_numbers = #tpu.dot_dimension_numbers<[1], [0], [0], [1], [0, 0, 1, 1], [], []>} : vector<1x12xbf16>, vector<12x10xbf16>, vector<1x10xf32> -> vector<1x10xf32>
    %565 = arith.addf %559, %564 : vector<1x10xf32>
    %c19_492 = arith.constant 19 : index
    %c0_493 = arith.constant 0 : index
    %566 = vector.load %arg15[%c19_492, %c0_493] : memref<36x12xf32, #tpu.memory_space<vmem>>, vector<1x12xf32>
    %567 = arith.truncf %566 : vector<1x12xf32> to vector<1x12xbf16>
    %c8_494 = arith.constant 8 : index
    %c0_495 = arith.constant 0 : index
    %c0_496 = arith.constant 0 : index
    %568 = vector.load %arg6[%c8_494, %c0_495, %c0_496] : memref<16x12x10xbf16, #tpu.memory_space<vmem>>, vector<1x12x10xbf16>
    %569 = vector.shape_cast %568 : vector<1x12x10xbf16> to vector<12x10xbf16>
    %cst_497 = arith.constant dense<0.000000e+00> : vector<1x10xf32>
    %570 = tpu.matmul %567, %569, %cst_497 {dimension_numbers = #tpu.dot_dimension_numbers<[1], [0], [0], [1], [0, 0, 1, 1], [], []>} : vector<1x12xbf16>, vector<12x10xbf16>, vector<1x10xf32> -> vector<1x10xf32>
    %571 = arith.addf %565, %570 : vector<1x10xf32>
    %c20_498 = arith.constant 20 : index
    %c0_499 = arith.constant 0 : index
    %572 = vector.load %arg15[%c20_498, %c0_499] : memref<36x12xf32, #tpu.memory_space<vmem>>, vector<1x12xf32>
    %573 = arith.truncf %572 : vector<1x12xf32> to vector<1x12xbf16>
    %c9_500 = arith.constant 9 : index
    %c0_501 = arith.constant 0 : index
    %c0_502 = arith.constant 0 : index
    %574 = vector.load %arg6[%c9_500, %c0_501, %c0_502] : memref<16x12x10xbf16, #tpu.memory_space<vmem>>, vector<1x12x10xbf16>
    %575 = vector.shape_cast %574 : vector<1x12x10xbf16> to vector<12x10xbf16>
    %cst_503 = arith.constant dense<0.000000e+00> : vector<1x10xf32>
    %576 = tpu.matmul %573, %575, %cst_503 {dimension_numbers = #tpu.dot_dimension_numbers<[1], [0], [0], [1], [0, 0, 1, 1], [], []>} : vector<1x12xbf16>, vector<12x10xbf16>, vector<1x10xf32> -> vector<1x10xf32>
    %577 = arith.addf %571, %576 : vector<1x10xf32>
    %c21_504 = arith.constant 21 : index
    %c0_505 = arith.constant 0 : index
    %578 = vector.load %arg15[%c21_504, %c0_505] : memref<36x12xf32, #tpu.memory_space<vmem>>, vector<1x12xf32>
    %579 = arith.truncf %578 : vector<1x12xf32> to vector<1x12xbf16>
    %c10_506 = arith.constant 10 : index
    %c0_507 = arith.constant 0 : index
    %c0_508 = arith.constant 0 : index
    %580 = vector.load %arg6[%c10_506, %c0_507, %c0_508] : memref<16x12x10xbf16, #tpu.memory_space<vmem>>, vector<1x12x10xbf16>
    %581 = vector.shape_cast %580 : vector<1x12x10xbf16> to vector<12x10xbf16>
    %cst_509 = arith.constant dense<0.000000e+00> : vector<1x10xf32>
    %582 = tpu.matmul %579, %581, %cst_509 {dimension_numbers = #tpu.dot_dimension_numbers<[1], [0], [0], [1], [0, 0, 1, 1], [], []>} : vector<1x12xbf16>, vector<12x10xbf16>, vector<1x10xf32> -> vector<1x10xf32>
    %583 = arith.addf %577, %582 : vector<1x10xf32>
    %c22_510 = arith.constant 22 : index
    %c0_511 = arith.constant 0 : index
    %584 = vector.load %arg15[%c22_510, %c0_511] : memref<36x12xf32, #tpu.memory_space<vmem>>, vector<1x12xf32>
    %585 = arith.truncf %584 : vector<1x12xf32> to vector<1x12xbf16>
    %c11_512 = arith.constant 11 : index
    %c0_513 = arith.constant 0 : index
    %c0_514 = arith.constant 0 : index
    %586 = vector.load %arg6[%c11_512, %c0_513, %c0_514] : memref<16x12x10xbf16, #tpu.memory_space<vmem>>, vector<1x12x10xbf16>
    %587 = vector.shape_cast %586 : vector<1x12x10xbf16> to vector<12x10xbf16>
    %cst_515 = arith.constant dense<0.000000e+00> : vector<1x10xf32>
    %588 = tpu.matmul %585, %587, %cst_515 {dimension_numbers = #tpu.dot_dimension_numbers<[1], [0], [0], [1], [0, 0, 1, 1], [], []>} : vector<1x12xbf16>, vector<12x10xbf16>, vector<1x10xf32> -> vector<1x10xf32>
    %589 = arith.addf %583, %588 : vector<1x10xf32>
    %c25_516 = arith.constant 25 : index
    %c0_517 = arith.constant 0 : index
    %590 = vector.load %arg15[%c25_516, %c0_517] : memref<36x12xf32, #tpu.memory_space<vmem>>, vector<1x12xf32>
    %591 = arith.truncf %590 : vector<1x12xf32> to vector<1x12xbf16>
    %c12_518 = arith.constant 12 : index
    %c0_519 = arith.constant 0 : index
    %c0_520 = arith.constant 0 : index
    %592 = vector.load %arg6[%c12_518, %c0_519, %c0_520] : memref<16x12x10xbf16, #tpu.memory_space<vmem>>, vector<1x12x10xbf16>
    %593 = vector.shape_cast %592 : vector<1x12x10xbf16> to vector<12x10xbf16>
    %cst_521 = arith.constant dense<0.000000e+00> : vector<1x10xf32>
    %594 = tpu.matmul %591, %593, %cst_521 {dimension_numbers = #tpu.dot_dimension_numbers<[1], [0], [0], [1], [0, 0, 1, 1], [], []>} : vector<1x12xbf16>, vector<12x10xbf16>, vector<1x10xf32> -> vector<1x10xf32>
    %595 = arith.addf %589, %594 : vector<1x10xf32>
    %c26_522 = arith.constant 26 : index
    %c0_523 = arith.constant 0 : index
    %596 = vector.load %arg15[%c26_522, %c0_523] : memref<36x12xf32, #tpu.memory_space<vmem>>, vector<1x12xf32>
    %597 = arith.truncf %596 : vector<1x12xf32> to vector<1x12xbf16>
    %c13_524 = arith.constant 13 : index
    %c0_525 = arith.constant 0 : index
    %c0_526 = arith.constant 0 : index
    %598 = vector.load %arg6[%c13_524, %c0_525, %c0_526] : memref<16x12x10xbf16, #tpu.memory_space<vmem>>, vector<1x12x10xbf16>
    %599 = vector.shape_cast %598 : vector<1x12x10xbf16> to vector<12x10xbf16>
    %cst_527 = arith.constant dense<0.000000e+00> : vector<1x10xf32>
    %600 = tpu.matmul %597, %599, %cst_527 {dimension_numbers = #tpu.dot_dimension_numbers<[1], [0], [0], [1], [0, 0, 1, 1], [], []>} : vector<1x12xbf16>, vector<12x10xbf16>, vector<1x10xf32> -> vector<1x10xf32>
    %601 = arith.addf %595, %600 : vector<1x10xf32>
    %c27_528 = arith.constant 27 : index
    %c0_529 = arith.constant 0 : index
    %602 = vector.load %arg15[%c27_528, %c0_529] : memref<36x12xf32, #tpu.memory_space<vmem>>, vector<1x12xf32>
    %603 = arith.truncf %602 : vector<1x12xf32> to vector<1x12xbf16>
    %c14_530 = arith.constant 14 : index
    %c0_531 = arith.constant 0 : index
    %c0_532 = arith.constant 0 : index
    %604 = vector.load %arg6[%c14_530, %c0_531, %c0_532] : memref<16x12x10xbf16, #tpu.memory_space<vmem>>, vector<1x12x10xbf16>
    %605 = vector.shape_cast %604 : vector<1x12x10xbf16> to vector<12x10xbf16>
    %cst_533 = arith.constant dense<0.000000e+00> : vector<1x10xf32>
    %606 = tpu.matmul %603, %605, %cst_533 {dimension_numbers = #tpu.dot_dimension_numbers<[1], [0], [0], [1], [0, 0, 1, 1], [], []>} : vector<1x12xbf16>, vector<12x10xbf16>, vector<1x10xf32> -> vector<1x10xf32>
    %607 = arith.addf %601, %606 : vector<1x10xf32>
    %c28_534 = arith.constant 28 : index
    %c0_535 = arith.constant 0 : index
    %608 = vector.load %arg15[%c28_534, %c0_535] : memref<36x12xf32, #tpu.memory_space<vmem>>, vector<1x12xf32>
    %609 = arith.truncf %608 : vector<1x12xf32> to vector<1x12xbf16>
    %c15_536 = arith.constant 15 : index
    %c0_537 = arith.constant 0 : index
    %c0_538 = arith.constant 0 : index
    %610 = vector.load %arg6[%c15_536, %c0_537, %c0_538] : memref<16x12x10xbf16, #tpu.memory_space<vmem>>, vector<1x12x10xbf16>
    %611 = vector.shape_cast %610 : vector<1x12x10xbf16> to vector<12x10xbf16>
    %cst_539 = arith.constant dense<0.000000e+00> : vector<1x10xf32>
    %612 = tpu.matmul %609, %611, %cst_539 {dimension_numbers = #tpu.dot_dimension_numbers<[1], [0], [0], [1], [0, 0, 1, 1], [], []>} : vector<1x12xbf16>, vector<12x10xbf16>, vector<1x10xf32> -> vector<1x10xf32>
    %613 = arith.addf %607, %612 : vector<1x10xf32>
    %c0_540 = arith.constant 0 : index
    %c0_541 = arith.constant 0 : index
    %614 = vector.load %arg7[%c0_540, %c0_541] : memref<1x10xf32, #tpu.memory_space<vmem>>, vector<1x10xf32>
    %615 = arith.addf %613, %614 : vector<1x10xf32>
    %c0_542 = arith.constant 0 : index
    %c0_543 = arith.constant 0 : index
    %c0_544 = arith.constant 0 : index
    %616 = vector.load %arg8[%c0_542, %c0_543, %c0_544] : memref<1x1x10xf32, #tpu.memory_space<vmem>>, vector<1x1x10xf32>
    %617 = vector.shape_cast %616 : vector<1x1x10xf32> to vector<1x10xf32>
    %618 = vector.shape_cast %615 : vector<1x10xf32> to vector<1x1x10xf32>
    tpu.vector_store %arg8[%c0_542, %c0_543, %c0_544], %618 {strides = array<i32>} : memref<1x1x10xf32, #tpu.memory_space<vmem>>, vector<1x1x10xf32>,
    return
  }
  func.func @transform_0(%arg0: i32) -> (i32, i32) {
    %c0_i32 = arith.constant 0 : i32
    %c0_i32_0 = arith.constant 0 : i32
    return %arg0, %c0_i32 : i32, i32
  }
  func.func @transform_1(%arg0: i32) -> (i32, i32) {
    %c0_i32 = arith.constant 0 : i32
    %c0_i32_0 = arith.constant 0 : i32
    %c0_i32_1 = arith.constant 0 : i32
    return %c0_i32, %c0_i32_0 : i32, i32
  }
  func.func @transform_2(%arg0: i32) -> (i32, i32, i32) {
    %c0_i32 = arith.constant 0 : i32
    %c0_i32_0 = arith.constant 0 : i32
    %c0_i32_1 = arith.constant 0 : i32
    %c0_i32_2 = arith.constant 0 : i32
    return %c0_i32, %c0_i32_0, %c0_i32_1 : i32, i32, i32
  }
  func.func @transform_3(%arg0: i32) -> (i32, i32, i32) {
    %c0_i32 = arith.constant 0 : i32
    %c0_i32_0 = arith.constant 0 : i32
    %c0_i32_1 = arith.constant 0 : i32
    %c0_i32_2 = arith.constant 0 : i32
    return %c0_i32, %c0_i32_0, %c0_i32_1 : i32, i32, i32
  }
  func.func @transform_4(%arg0: i32) -> (i32, i32, i32) {
    %c0_i32 = arith.constant 0 : i32
    %c0_i32_0 = arith.constant 0 : i32
    %c0_i32_1 = arith.constant 0 : i32
    %c0_i32_2 = arith.constant 0 : i32
    return %c0_i32, %c0_i32_0, %c0_i32_1 : i32, i32, i32
  }
  func.func @transform_5(%arg0: i32) -> (i32, i32, i32) {
    %c0_i32 = arith.constant 0 : i32
    %c0_i32_0 = arith.constant 0 : i32
    %c0_i32_1 = arith.constant 0 : i32
    %c0_i32_2 = arith.constant 0 : i32
    return %c0_i32, %c0_i32_0, %c0_i32_1 : i32, i32, i32
  }
  func.func @transform_6(%arg0: i32) -> (i32, i32) {
    %c0_i32 = arith.constant 0 : i32
    %c0_i32_0 = arith.constant 0 : i32
    %c0_i32_1 = arith.constant 0 : i32
    return %c0_i32, %c0_i32_0 : i32, i32
  }
  func.func @transform_7(%arg0: i32) -> (i32, i32, i32) {
    %c0_i32 = arith.constant 0 : i32
    %c0_i32_0 = arith.constant 0 : i32
    %c0_i32_1 = arith.constant 0 : i32
    return %arg0, %c0_i32, %c0_i32_0 : i32, i32, i32
  }
}

</mosaic_0001>

<llo_original>
// kernel: forward.1
$region0: #{forward.1}
  #allocation0 [shape = 'u32[]', space=smem, size = 0x4, offset = 0x4, fixed_abs, tag = 'smem constant byte address 0x4 - core index']
  #allocation1 [shape = 'u32[72,128]{1,0:T(1,128)}', space=vmem, size = 0x9000, scoped, tag = 'internal scratch']
  #allocation2 [shape = 'f32[784,16]{1,0:T(8,128)}', space=vmem, size = 0x62000, scoped, tag = 'scratch operand']
  #allocation3 [shape = 'bf16[372,16]{1,0:T(8,128)(2,1)}', space=vmem, size = 0x17800, scoped, tag = 'scratch operand']
  #allocation4 [shape = 'f32[324,80]{1,0:T(8,128)}', space=vmem, size = 0x29000, scoped, tag = 'scratch operand']
  #allocation5 [shape = 'bf16[132,80]{1,0:T(8,128)(2,1)}', space=vmem, size = 0x8800, scoped, tag = 'scratch operand']
  #allocation6 [shape = 'f32[100,16]{1,0:T(8,128)}', space=vmem, size = 0xd000, scoped, tag = 'scratch operand']
  #allocation7 [shape = 'bf16[52,16]{1,0:T(8,128)(2,1)}', space=vmem, size = 0x3800, scoped, tag = 'scratch operand']
  #allocation8 [shape = 'f32[36,12]{1,0:T(8,128)}', space=vmem, size = 0x5000, scoped, tag = 'scratch operand']
  %s0 = inlined_call_operand.vmem [shape: bf16[1568,27], index: 0, kind: input, shape index: {}]
  %s1 = inlined_call_operand.vmem [shape: bf16[27,16], index: 1, kind: input, shape index: {}]
  %s2 = inlined_call_operand.vmem [shape: bf16[9,16,80], index: 2, kind: input, shape index: {}]
  %s3 = inlined_call_operand.vmem [shape: bf16[9,80,16], index: 3, kind: input, shape index: {}]
  %s4 = inlined_call_operand.vmem [shape: bf16[9,16,12], index: 4, kind: input, shape index: {}]
  %s5 = inlined_call_operand.vmem [shape: bf16[16,12,10], index: 5, kind: input, shape index: {}]
  %s6 = inlined_call_operand.vmem [shape: f32[1,10], index: 6, kind: input, shape index: {}]
  %s7 = inlined_call_operand.hbm [shape: f32[2,1,10], index: 7, kind: output, shape index: {}]
  %s8 = sld [smem:[#allocation0]]
  $region61: #{forward.1} parent=0
    _
  %s10 = ssub.s32 1, %s8
  %s11 = scalar_select 0, %s10, %s8
  $region1: #{forward.1} parent=0
    #allocation9 [shape = 'u8[1024]{0}', space=vmem, size = 0x400, scoped, tag = 'output window, operand 0']
    #allocation10 [shape = 's32[2]{0}', space=sflag, size = 0x8, scoped, tag = 'scoped memory for forward.1']
    %12 = vsyncpa [#allocation10], 0
    %s13 = scalar_lea.sflag [#allocation10], 1
    %14 = vsyncpa %s13, 0
    loop: start=0, step=1, limit=4
    $region2: #{forward.1} parent=1 // loop_pre_header
      _
    $region3: #{forward.1} parent=1 // loop_header
      %s16 = sphi 0, %s20
      %p17 = scmp.ge.s32.totalorder %s16, 4
      %s26 = sphi 0, %s28
      %s29 = sphi 0, %s26
      %s30 = sphi 0, %s29
      %s46 = sphi 0, %s30
      %s50 = sphi 0, %s50
      %s52 = sphi 0, %s50
      %s53 = sphi 0, %s52
      %s67 = sphi 0, %s53
      %s71 = sphi 0, %s71
      %s73 = sphi 0, %s71
      %s74 = sphi 0, %s73
      %s88 = sphi 0, %s74
      %s92 = sphi 0, %s92
      %s94 = sphi 0, %s92
      %s95 = sphi 0, %s94
      %s109 = sphi 0, %s95
      %s113 = sphi 0, %s113
      %s115 = sphi 0, %s113
      %s116 = sphi 0, %s115
      %s130 = sphi 0, %s116
      %s134 = sphi 0, %s134
      %s136 = sphi 0, %s134
      %s137 = sphi 0, %s136
      %s151 = sphi 0, %s137
      %s155 = sphi 0, %s155
      %s157 = sphi 0, %s155
      %s158 = sphi 0, %s157
      %s172 = sphi 0, %s158
      %s178 = sphi 0, %s180
      %s181 = sphi 0, %s178
      %s182 = sphi 0, %s181
      %s198 = sphi 0, %s182
    $region4: #{forward.1} parent=1 // loop_header_branch
      %19 = sbr.rel (%p17) target = $region8
    $region5: #{forward.1} parent=1 // loop_body
      %s21 = ssub.s32 %s16, 1
      %s22 = ssub.s32 %s16, 2
      %s23 = sadd.s32 %s16, 1
      %s24 = ssub.s32 %s16, %s23
      %p25 = scmp.eq.s32.totalorder %s24, 0
      %s27 = sadd.s32 %s26, 1
      %s28 = scalar_select %p25, %s26, %s27
      %p31 = pneg %p25
      %p32 = scmp.eq.s32.totalorder %s16, 1
      %p33 = por %p31, %p32
      %p34 = scmp.ne.s32.totalorder %s26, %s29
      %p35 = scmp.eq.s32.totalorder %s16, 0
      %p36 = por %p34, %p35
      %p37 = scmp.ne.s32.totalorder %s26, %s29
      %p38 = scmp.eq.s32.totalorder %s21, 1
      %p39 = por %p37, %p38
      %p40 = scmp.ne.s32.totalorder %s29, %s30
      %p41 = scmp.eq.s32.totalorder %s21, 0
      %p42 = por %p40, %p41
      %p43 = scmp.ne.s32.totalorder %s29, %s30
      %p44 = scmp.eq.s32.totalorder %s22, 1
      %p45 = por %p43, %p44
      %p47 = scmp.ne.s32.totalorder %s30, %s46
      %p48 = scmp.eq.s32.totalorder %s22, 0
      %p49 = por %p47, %p48
      %s51 = sadd.s32 %s50, 1
      %p54 = scmp.eq.s32.totalorder %s16, 1
      %p55 = scmp.ne.s32.totalorder %s50, %s52
      %p56 = scmp.eq.s32.totalorder %s16, 0
      %p57 = por %p55, %p56
      %p58 = scmp.ne.s32.totalorder %s50, %s52
      %p59 = scmp.eq.s32.totalorder %s21, 1
      %p60 = por %p58, %p59
      %p61 = scmp.ne.s32.totalorder %s52, %s53
      %p62 = scmp.eq.s32.totalorder %s21, 0
      %p63 = por %p61, %p62
      %p64 = scmp.ne.s32.totalorder %s52, %s53
      %p65 = scmp.eq.s32.totalorder %s22, 1
      %p66 = por %p64, %p65
      %p68 = scmp.ne.s32.totalorder %s53, %s67
      %p69 = scmp.eq.s32.totalorder %s22, 0
      %p70 = por %p68, %p69
      %s72 = sadd.s32 %s71, 1
      %p75 = scmp.eq.s32.totalorder %s16, 1
      %p76 = scmp.ne.s32.totalorder %s71, %s73
      %p77 = scmp.eq.s32.totalorder %s16, 0
      %p78 = por %p76, %p77
      %p79 = scmp.ne.s32.totalorder %s71, %s73
      %p80 = scmp.eq.s32.totalorder %s21, 1
      %p81 = por %p79, %p80
      %p82 = scmp.ne.s32.totalorder %s73, %s74
      %p83 = scmp.eq.s32.totalorder %s21, 0
      %p84 = por %p82, %p83
      %p85 = scmp.ne.s32.totalorder %s73, %s74
      %p86 = scmp.eq.s32.totalorder %s22, 1
      %p87 = por %p85, %p86
      %p89 = scmp.ne.s32.totalorder %s74, %s88
      %p90 = scmp.eq.s32.totalorder %s22, 0
      %p91 = por %p89, %p90
      %s93 = sadd.s32 %s92, 1
      %p96 = scmp.eq.s32.totalorder %s16, 1
      %p97 = scmp.ne.s32.totalorder %s92, %s94
      %p98 = scmp.eq.s32.totalorder %s16, 0
      %p99 = por %p97, %p98
      %p100 = scmp.ne.s32.totalorder %s92, %s94
      %p101 = scmp.eq.s32.totalorder %s21, 1
      %p102 = por %p100, %p101
      %p103 = scmp.ne.s32.totalorder %s94, %s95
      %p104 = scmp.eq.s32.totalorder %s21, 0
      %p105 = por %p103, %p104
      %p106 = scmp.ne.s32.totalorder %s94, %s95
      %p107 = scmp.eq.s32.totalorder %s22, 1
      %p108 = por %p106, %p107
      %p110 = scmp.ne.s32.totalorder %s95, %s109
      %p111 = scmp.eq.s32.totalorder %s22, 0
      %p112 = por %p110, %p111
      %s114 = sadd.s32 %s113, 1
      %p117 = scmp.eq.s32.totalorder %s16, 1
      %p118 = scmp.ne.s32.totalorder %s113, %s115
      %p119 = scmp.eq.s32.totalorder %s16, 0
      %p120 = por %p118, %p119
      %p121 = scmp.ne.s32.totalorder %s113, %s115
      %p122 = scmp.eq.s32.totalorder %s21, 1
      %p123 = por %p121, %p122
      %p124 = scmp.ne.s32.totalorder %s115, %s116
      %p125 = scmp.eq.s32.totalorder %s21, 0
      %p126 = por %p124, %p125
      %p127 = scmp.ne.s32.totalorder %s115, %s116
      %p128 = scmp.eq.s32.totalorder %s22, 1
      %p129 = por %p127, %p128
      %p131 = scmp.ne.s32.totalorder %s116, %s130
      %p132 = scmp.eq.s32.totalorder %s22, 0
      %p133 = por %p131, %p132
      %s135 = sadd.s32 %s134, 1
      %p138 = scmp.eq.s32.totalorder %s16, 1
      %p139 = scmp.ne.s32.totalorder %s134, %s136
      %p140 = scmp.eq.s32.totalorder %s16, 0
      %p141 = por %p139, %p140
      %p142 = scmp.ne.s32.totalorder %s134, %s136
      %p143 = scmp.eq.s32.totalorder %s21, 1
      %p144 = por %p142, %p143
      %p145 = scmp.ne.s32.totalorder %s136, %s137
      %p146 = scmp.eq.s32.totalorder %s21, 0
      %p147 = por %p145, %p146
      %p148 = scmp.ne.s32.totalorder %s136, %s137
      %p149 = scmp.eq.s32.totalorder %s22, 1
      %p150 = por %p148, %p149
      %p152 = scmp.ne.s32.totalorder %s137, %s151
      %p153 = scmp.eq.s32.totalorder %s22, 0
      %p154 = por %p152, %p153
      %s156 = sadd.s32 %s155, 1
      %p159 = scmp.eq.s32.totalorder %s16, 1
      %p160 = scmp.ne.s32.totalorder %s155, %s157
      %p161 = scmp.eq.s32.totalorder %s16, 0
      %p162 = por %p160, %p161
      %p163 = scmp.ne.s32.totalorder %s155, %s157
      %p164 = scmp.eq.s32.totalorder %s21, 1
      %p165 = por %p163, %p164
      %p166 = scmp.ne.s32.totalorder %s157, %s158
      %p167 = scmp.eq.s32.totalorder %s21, 0
      %p168 = por %p166, %p167
      %p169 = scmp.ne.s32.totalorder %s157, %s158
      %p170 = scmp.eq.s32.totalorder %s22, 1
      %p171 = por %p169, %p170
      %p173 = scmp.ne.s32.totalorder %s158, %s172
      %p174 = scmp.eq.s32.totalorder %s22, 0
      %p175 = por %p173, %p174
      %s176 = ssub.s32 %s16, %s23
      %p177 = scmp.eq.s32.totalorder %s176, 0
      %s179 = sadd.s32 %s178, 1
      %s180 = scalar_select %p177, %s178, %s179
      %p183 = pneg %p177
      %p184 = scmp.eq.s32.totalorder %s16, 1
      %p185 = por %p183, %p184
      %p186 = scmp.ne.s32.totalorder %s178, %s181
      %p187 = scmp.eq.s32.totalorder %s16, 0
      %p188 = por %p186, %p187
      %p189 = scmp.ne.s32.totalorder %s178, %s181
      %p190 = scmp.eq.s32.totalorder %s21, 1
      %p191 = por %p189, %p190
      %p192 = scmp.ne.s32.totalorder %s181, %s182
      %p193 = scmp.eq.s32.totalorder %s21, 0
      %p194 = por %p192, %p193
      %p195 = scmp.ne.s32.totalorder %s181, %s182
      %p196 = scmp.eq.s32.totalorder %s22, 1
      %p197 = por %p195, %p196
      %p199 = scmp.ne.s32.totalorder %s182, %s198
      %p200 = scmp.eq.s32.totalorder %s22, 0
      %p201 = por %p199, %p200
      %p202 = scmp.le.s32.totalorder 1, %s16
      %p203 = scmp.lt.s32.totalorder %s16, 3
      %p204 = pnand %p202, %p203
      %p205 = pneg %p204
      // Predicated region
      $region9: #{forward.1} parent=5 // pred_check
        _
      $region10: #{forward.1} parent=5 // pred_check_branch
        %207 = sbr.rel (%p204) target = $region12
      $region11: #{forward.1} parent=5 // pred_region
        %s208 = ssub.s32 %s16, 1
        // Predicated region
        $region13: #{forward.1} parent=11 // pred_check
          %p209 = pneg %p63
        $region14: #{forward.1} parent=11 // pred_check_branch
          %211 = sbr.rel (%p209) target = $region16
        $region15: #{forward.1} parent=11 // pred_region
          _
        $region16: #{forward.1} parent=11 // pred_fallthru
          _
        // Predicated region
        $region17: #{forward.1} parent=11 // pred_check
          %p212 = pneg %p84
        $region18: #{forward.1} parent=11 // pred_check_branch
          %214 = sbr.rel (%p212) target = $region20
        $region19: #{forward.1} parent=11 // pred_region
          _
        $region20: #{forward.1} parent=11 // pred_fallthru
          _
        // Predicated region
        $region21: #{forward.1} parent=11 // pred_check
          %p215 = pneg %p105
        $region22: #{forward.1} parent=11 // pred_check_branch
          %217 = sbr.rel (%p215) target = $region24
        $region23: #{forward.1} parent=11 // pred_region
          _
        $region24: #{forward.1} parent=11 // pred_fallthru
          _
        // Predicated region
        $region25: #{forward.1} parent=11 // pred_check
          %p218 = pneg %p126
        $region26: #{forward.1} parent=11 // pred_check_branch
          %220 = sbr.rel (%p218) target = $region28
        $region27: #{forward.1} parent=11 // pred_region
          _
        $region28: #{forward.1} parent=11 // pred_fallthru
          _
        // Predicated region
        $region29: #{forward.1} parent=11 // pred_check
          %p221 = pneg %p147
        $region30: #{forward.1} parent=11 // pred_check_branch
          %223 = sbr.rel (%p221) target = $region32
        $region31: #{forward.1} parent=11 // pred_region
          _
        $region32: #{forward.1} parent=11 // pred_fallthru
          _
        // Predicated region
        $region33: #{forward.1} parent=11 // pred_check
          %p224 = pneg %p168
        $region34: #{forward.1} parent=11 // pred_check_branch
          %226 = sbr.rel (%p224) target = $region36
        $region35: #{forward.1} parent=11 // pred_region
          _
        $region36: #{forward.1} parent=11 // pred_fallthru
          _
      $region12: #{forward.1} parent=5 // pred_fallthru
        _
      %p227 = scmp.lt.s32.totalorder %s16, 2
      // Predicated region
      $region37: #{forward.1} parent=5 // pred_check
        %p228 = pneg %p227
      $region38: #{forward.1} parent=5 // pred_check_branch
        %230 = sbr.rel (%p228) target = $region40
      $region39: #{forward.1} parent=5 // pred_region
        // Predicated region
        $region41: #{forward.1} parent=39 // pred_check
          %p231 = pneg %p36
        $region42: #{forward.1} parent=39 // pred_check_branch
          %233 = sbr.rel (%p231) target = $region44
        $region43: #{forward.1} parent=39 // pred_region
          %s234 = smul.u32 98, %s16
          %p235 = scmp.lt.s32.totalorder %s234, 195
          %s236 = scalar_select %p235, %s234, 195
          %s237 = smul.addr %s236, 4
          %s238 = scalar_lea.vmem %s0, %s237
          %s239 = smul.u32 98, %s16
        $region44: #{forward.1} parent=39 // pred_fallthru
          _
      $region40: #{forward.1} parent=5 // pred_fallthru
        _
      %p240 = scmp.le.s32.totalorder 1, %s16
      %p241 = scmp.lt.s32.totalorder %s16, 3
      %p242 = pnand %p240, %p241
      %p243 = pneg %p242
      // Predicated region
      $region45: #{forward.1} parent=5 // pred_check
        _
      $region46: #{forward.1} parent=5 // pred_check_branch
        %245 = sbr.rel (%p242) target = $region48
      $region47: #{forward.1} parent=5 // pred_region
        %s246 = ssub.s32 %s16, 1
        %s247 = smul.u32 98, %s21
        %p248 = scmp.lt.s32.totalorder %s247, 195
        %s249 = scalar_select %p248, %s247, 195
        %s250 = smul.addr %s249, 4
        %s251 = scalar_lea.vmem %s0, %s250
        %p252 = pneg %p42
        %p253 = pneg %p39
        %p254 = pneg %p63
        %p255 = pneg %p60
        %p256 = pneg %p84
        %p257 = pneg %p81
        %p258 = pneg %p105
        %p259 = pneg %p102
        %p260 = pneg %p126
        %p261 = pneg %p123
        %p262 = pneg %p147
        %p263 = pneg %p144
        %p264 = pneg %p168
        %p265 = pneg %p165
        %p266 = pneg %p194
        %p267 = pneg %p191
        %s268 = sand.u32 %s181, 1
        %s269 = scalar_lea.sflag [#allocation10], %s268
        %s270 = sand.u32 %s181, 1
        %s271 = scalar_lea.vmem [#allocation9], %s270
        %s272 = smul.u32 98, %s21
        %p273 = scmp.lt.s32.totalorder %s272, 195
        %s274 = scalar_select %p273, %s272, 195
        %s275 = smul.addr %s274, 4
        %s276 = scalar_lea.vmem %s0, %s275
        %s277 = smul.u32 98, %s21
        %v279 = vld [vmem:[%s1] sm:$0xf]
        %v280 = vld [vmem:[%s1 + $0x4] sm:$0xf]
        %v281 = vld [vmem:[%s1 + $0x8] sm:$0xf]
        %v282 = vld [vmem:[%s1 + $0xc] sm:$0x3]
        %v283 = vld [vmem:[%s276] sm:$0xf]
        %v284 = vld [vmem:[%s276 + $0x4] sm:$0xf]
        %v285 = vld [vmem:[%s276 + $0x8] sm:$0xf]
        %v286 = vld [vmem:[%s276 + $0xc] sm:$0xf]
        %v287 = vld [vmem:[%s276 + $0x10] sm:$0xf]
        %v288 = vld [vmem:[%s276 + $0x14] sm:$0xf]
        %v289 = vld [vmem:[%s276 + $0x18] sm:$0xf]
        %v290 = vld [vmem:[%s276 + $0x1c] sm:$0xf]
        %v291 = vld [vmem:[%s276 + $0x20] sm:$0xf]
        %v292 = vld [vmem:[%s276 + $0x24] sm:$0xf]
        %v293 = vld [vmem:[%s276 + $0x28] sm:$0xf]
        %v294 = vld [vmem:[%s276 + $0x2c] sm:$0xf]
        %v295 = vld [vmem:[%s276 + $0x30] sm:$0xf]
        %v296 = vld [vmem:[%s276 + $0x34] sm:$0xf]
        %v297 = vld [vmem:[%s276 + $0x38] sm:$0xf]
        %v298 = vld [vmem:[%s276 + $0x3c] sm:$0xf]
        %v315 = vunpack.c.l.b16 %v283
        %v316 = vunpack.c.l.b16 %v284
        %v317 = vunpack.c.l.b16 %v285
        %v318 = vunpack.c.l.b16 %v286
        %v319 = vunpack.c.l.b16 %v287
        %v320 = vunpack.c.l.b16 %v288
        %v321 = vunpack.c.l.b16 %v289
        %v322 = vunpack.c.l.b16 %v290
        %v323 = vunpack.c.l.b16 %v291
        %v324 = vunpack.c.l.b16 %v292
        %v325 = vunpack.c.l.b16 %v293
        %v326 = vunpack.c.l.b16 %v294
        %v327 = vunpack.c.l.b16 %v295
        %v328 = vunpack.c.l.b16 %v296
        %v329 = vunpack.c.l.b16 %v297
        %v330 = vunpack.c.l.b16 %v298
        %v331 = vpack.c.b16 %v316, %v315
        %v332 = vpack.c.b16 %v318, %v317
        %v333 = vpack.c.b16 %v320, %v319
        %v334 = vpack.c.b16 %v322, %v321
        %v335 = vpack.c.b16 %v324, %v323
        %v336 = vpack.c.b16 %v326, %v325
        %v337 = vpack.c.b16 %v328, %v327
        %v338 = vpack.c.b16 %v330, %v329
        %v343 = vunpack.c.l.b16 %v279
        %v344 = vunpack.c.l.b16 %v280
        %v345 = vunpack.c.l.b16 %v281
        %v346 = vunpack.c.l.b16 %v282
        %v347 = vpack.c.b16 %v344, %v343
        %v348 = vpack.c.b16 %v346, %v345
        %vm350 = vcmask 220160
        %v352 = vsel %vm350, %v331, 0
        %v355 = vsel %vm350, %v332, 0
        %v358 = vsel %vm350, %v333, 0
        %v361 = vsel %vm350, %v334, 0
        %v364 = vsel %vm350, %v335, 0
        %v367 = vsel %vm350, %v336, 0
        %v370 = vsel %vm350, %v337, 0
        %v373 = vsel %vm350, %v338, 0
        %vm375 = vcmask 1044480
        %vm376 = vcmask 1045504
        %v377 = vsel %vm375, 4294967295, 65535
        %v378 = vsel %vm376, %v377, 0
        %v380 = vand.u32 %v348, %v378
        %382 = vmatpush.bf16.msra.mxu0 0
        %383 = vmatpush.bf16.msra.mxu0 0
        %384 = vmatpush.bf16.msra.mxu0 0
        %385 = vmatpush.bf16.msra.mxu0 0
        %386 = vmatpush.bf16.msra.mxu0 0
        %387 = vmatpush.bf16.msra.mxu0 0
        %388 = vmatpush.bf16.msra.mxu0 %v380
        %389 = vmatpush.bf16.msra.mxu0 %v347
        %390 = vmatmul.bf16.gmra.mxu0 %v352
        %v391 = vpop.f32.mrf.mxu0
        %v392 = vadd.f32 0.0, %v391
        %v393 = vpop.f32.mrf.mxu0
        %v394 = vadd.f32 0.0, %v393
        %395 = vmatmul.bf16.gmra.mxu0 %v355
        %v396 = vpop.f32.mrf.mxu0
        %v397 = vadd.f32 0.0, %v396
        %v398 = vpop.f32.mrf.mxu0
        %v399 = vadd.f32 0.0, %v398
        %400 = vmatmul.bf16.gmra.mxu0 %v358
        %v401 = vpop.f32.mrf.mxu0
        %v402 = vadd.f32 0.0, %v401
        %v403 = vpop.f32.mrf.mxu0
        %v404 = vadd.f32 0.0, %v403
        %405 = vmatmul.bf16.gmra.mxu0 %v361
        %v406 = vpop.f32.mrf.mxu0
        %v407 = vadd.f32 0.0, %v406
        %v408 = vpop.f32.mrf.mxu0
        %v409 = vadd.f32 0.0, %v408
        %410 = vmatmul.bf16.gmra.mxu0 %v364
        %v411 = vpop.f32.mrf.mxu0
        %v412 = vadd.f32 0.0, %v411
        %v413 = vpop.f32.mrf.mxu0
        %v414 = vadd.f32 0.0, %v413
        %415 = vmatmul.bf16.gmra.mxu0 %v367
        %v416 = vpop.f32.mrf.mxu0
        %v417 = vadd.f32 0.0, %v416
        %v418 = vpop.f32.mrf.mxu0
        %v419 = vadd.f32 0.0, %v418
        %420 = vmatmul.bf16.gmra.mxu0 %v370
        %v421 = vpop.f32.mrf.mxu0
        %v422 = vadd.f32 0.0, %v421
        %v423 = vpop.f32.mrf.mxu0
        %v424 = vadd.f32 0.0, %v423
        %425 = vmatmul.bf16.gmra.mxu0 %v373
        %v426 = vpop.f32.mrf.mxu0
        %v427 = vadd.f32 0.0, %v426
        %v428 = vpop.f32.mrf.mxu0
        %v429 = vadd.f32 0.0, %v428
        %430 = vdwg.mxu0
        %v431 = vmax.f32 %v392, 0.0
        %v432 = vmax.f32 %v394, 0.0
        %v433 = vmax.f32 %v397, 0.0
        %v434 = vmax.f32 %v399, 0.0
        %v435 = vmax.f32 %v402, 0.0
        %v436 = vmax.f32 %v404, 0.0
        %v437 = vmax.f32 %v407, 0.0
        %v438 = vmax.f32 %v409, 0.0
        %v439 = vmax.f32 %v412, 0.0
        %v440 = vmax.f32 %v414, 0.0
        %v441 = vmax.f32 %v417, 0.0
        %v442 = vmax.f32 %v419, 0.0
        %v443 = vmax.f32 %v422, 0.0
        %v444 = vmax.f32 %v424, 0.0
        %v445 = vmax.f32 %v427, 0.0
        %v446 = vmax.f32 %v429, 0.0
        %vm447 = vcmask 130048
        %448 = vst.msk [vmem:[#allocation2] sm:$0xff] %vm447, %v431
        %449 = vst.msk [vmem:[#allocation2 + $0x8] sm:$0xff] %vm447, %v432
        %450 = vst.msk [vmem:[#allocation2 + $0x10] sm:$0xff] %vm447, %v433
        %451 = vst.msk [vmem:[#allocation2 + $0x18] sm:$0xff] %vm447, %v434
        %452 = vst.msk [vmem:[#allocation2 + $0x20] sm:$0xff] %vm447, %v435
        %453 = vst.msk [vmem:[#allocation2 + $0x28] sm:$0xff] %vm447, %v436
        %454 = vst.msk [vmem:[#allocation2 + $0x30] sm:$0xff] %vm447, %v437
        %455 = vst.msk [vmem:[#allocation2 + $0x38] sm:$0xff] %vm447, %v438
        %456 = vst.msk [vmem:[#allocation2 + $0x40] sm:$0xff] %vm447, %v439
        %457 = vst.msk [vmem:[#allocation2 + $0x48] sm:$0xff] %vm447, %v440
        %458 = vst.msk [vmem:[#allocation2 + $0x50] sm:$0xff] %vm447, %v441
        %459 = vst.msk [vmem:[#allocation2 + $0x58] sm:$0xff] %vm447, %v442
        %460 = vst.msk [vmem:[#allocation2 + $0x60] sm:$0xff] %vm447, %v443
        %461 = vst.msk [vmem:[#allocation2 + $0x68] sm:$0xff] %vm447, %v444
        %462 = vst.msk [vmem:[#allocation2 + $0x70] sm:$0xff] %vm447, %v445
        %463 = vst.msk [vmem:[#allocation2 + $0x78] sm:$0xff] %vm447, %v446
        %v464 = vld [vmem:[%s276 + $0x40] sm:$0xf]
        %v465 = vld [vmem:[%s276 + $0x44] sm:$0xf]
        %v466 = vld [vmem:[%s276 + $0x48] sm:$0xf]
        %v467 = vld [vmem:[%s276 + $0x4c] sm:$0xf]
        %v468 = vld [vmem:[%s276 + $0x50] sm:$0xf]
        %v469 = vld [vmem:[%s276 + $0x54] sm:$0xf]
        %v470 = vld [vmem:[%s276 + $0x58] sm:$0xf]
        %v471 = vld [vmem:[%s276 + $0x5c] sm:$0xf]
        %v472 = vld [vmem:[%s276 + $0x60] sm:$0xf]
        %v473 = vld [vmem:[%s276 + $0x64] sm:$0xf]
        %v474 = vld [vmem:[%s276 + $0x68] sm:$0xf]
        %v475 = vld [vmem:[%s276 + $0x6c] sm:$0xf]
        %v476 = vld [vmem:[%s276 + $0x70] sm:$0xf]
        %v477 = vld [vmem:[%s276 + $0x74] sm:$0xf]
        %v478 = vld [vmem:[%s276 + $0x78] sm:$0xf]
        %v479 = vld [vmem:[%s276 + $0x7c] sm:$0xf]
        %v496 = vunpack.c.l.b16 %v464
        %v497 = vunpack.c.l.b16 %v465
        %v498 = vunpack.c.l.b16 %v466
        %v499 = vunpack.c.l.b16 %v467
        %v500 = vunpack.c.l.b16 %v468
        %v501 = vunpack.c.l.b16 %v469
        %v502 = vunpack.c.l.b16 %v470
        %v503 = vunpack.c.l.b16 %v471
        %v504 = vunpack.c.l.b16 %v472
        %v505 = vunpack.c.l.b16 %v473
        %v506 = vunpack.c.l.b16 %v474
        %v507 = vunpack.c.l.b16 %v475
        %v508 = vunpack.c.l.b16 %v476
        %v509 = vunpack.c.l.b16 %v477
        %v510 = vunpack.c.l.b16 %v478
        %v511 = vunpack.c.l.b16 %v479
        %v512 = vpack.c.b16 %v497, %v496
        %v513 = vpack.c.b16 %v499, %v498
        %v514 = vpack.c.b16 %v501, %v500
        %v515 = vpack.c.b16 %v503, %v502
        %v516 = vpack.c.b16 %v505, %v504
        %v517 = vpack.c.b16 %v507, %v506
        %v518 = vpack.c.b16 %v509, %v508
        %v519 = vpack.c.b16 %v511, %v510
        %v521 = vsel %vm350, %v512, 0
        %v524 = vsel %vm350, %v513, 0
        %v527 = vsel %vm350, %v514, 0
        %v530 = vsel %vm350, %v515, 0
        %v533 = vsel %vm350, %v516, 0
        %v536 = vsel %vm350, %v517, 0
        %v539 = vsel %vm350, %v518, 0
        %v542 = vsel %vm350, %v519, 0
        %544 = vmatpush.bf16.msra.mxu0 0
        %545 = vmatpush.bf16.msra.mxu0 0
        %546 = vmatpush.bf16.msra.mxu0 0
        %547 = vmatpush.bf16.msra.mxu0 0
        %548 = vmatpush.bf16.msra.mxu0 0
        %549 = vmatpush.bf16.msra.mxu0 0
        %550 = vmatpush.bf16.msra.mxu0 %v380
        %551 = vmatpush.bf16.msra.mxu0 %v347
        %552 = vmatmul.bf16.gmra.mxu0 %v521
        %v553 = vpop.f32.mrf.mxu0
        %v554 = vadd.f32 0.0, %v553
        %v555 = vpop.f32.mrf.mxu0
        %v556 = vadd.f32 0.0, %v555
        %557 = vmatmul.bf16.gmra.mxu0 %v524
        %v558 = vpop.f32.mrf.mxu0
        %v559 = vadd.f32 0.0, %v558
        %v560 = vpop.f32.mrf.mxu0
        %v561 = vadd.f32 0.0, %v560
        %562 = vmatmul.bf16.gmra.mxu0 %v527
        %v563 = vpop.f32.mrf.mxu0
        %v564 = vadd.f32 0.0, %v563
        %v565 = vpop.f32.mrf.mxu0
        %v566 = vadd.f32 0.0, %v565
        %567 = vmatmul.bf16.gmra.mxu0 %v530
        %v568 = vpop.f32.mrf.mxu0
        %v569 = vadd.f32 0.0, %v568
        %v570 = vpop.f32.mrf.mxu0
        %v571 = vadd.f32 0.0, %v570
        %572 = vmatmul.bf16.gmra.mxu0 %v533
        %v573 = vpop.f32.mrf.mxu0
        %v574 = vadd.f32 0.0, %v573
        %v575 = vpop.f32.mrf.mxu0
        %v576 = vadd.f32 0.0, %v575
        %577 = vmatmul.bf16.gmra.mxu0 %v536
        %v578 = vpop.f32.mrf.mxu0
        %v579 = vadd.f32 0.0, %v578
        %v580 = vpop.f32.mrf.mxu0
        %v581 = vadd.f32 0.0, %v580
        %582 = vmatmul.bf16.gmra.mxu0 %v539
        %v583 = vpop.f32.mrf.mxu0
        %v584 = vadd.f32 0.0, %v583
        %v585 = vpop.f32.mrf.mxu0
        %v586 = vadd.f32 0.0, %v585
        %587 = vmatmul.bf16.gmra.mxu0 %v542
        %v588 = vpop.f32.mrf.mxu0
        %v589 = vadd.f32 0.0, %v588
        %v590 = vpop.f32.mrf.mxu0
        %v591 = vadd.f32 0.0, %v590
        %592 = vdwg.mxu0
        %v593 = vmax.f32 %v554, 0.0
        %v594 = vmax.f32 %v556, 0.0
        %v595 = vmax.f32 %v559, 0.0
        %v596 = vmax.f32 %v561, 0.0
        %v597 = vmax.f32 %v564, 0.0
        %v598 = vmax.f32 %v566, 0.0
        %v599 = vmax.f32 %v569, 0.0
        %v600 = vmax.f32 %v571, 0.0
        %v601 = vmax.f32 %v574, 0.0
        %v602 = vmax.f32 %v576, 0.0
        %v603 = vmax.f32 %v579, 0.0
        %v604 = vmax.f32 %v581, 0.0
        %v605 = vmax.f32 %v584, 0.0
        %v606 = vmax.f32 %v586, 0.0
        %v607 = vmax.f32 %v589, 0.0
        %v608 = vmax.f32 %v591, 0.0
        %609 = vst.msk [vmem:[#allocation2 + $0x80] sm:$0xff] %vm447, %v593
        %610 = vst.msk [vmem:[#allocation2 + $0x88] sm:$0xff] %vm447, %v594
        %611 = vst.msk [vmem:[#allocation2 + $0x90] sm:$0xff] %vm447, %v595
        %612 = vst.msk [vmem:[#allocation2 + $0x98] sm:$0xff] %vm447, %v596
        %613 = vst.msk [vmem:[#allocation2 + $0xa0] sm:$0xff] %vm447, %v597
        %614 = vst.msk [vmem:[#allocation2 + $0xa8] sm:$0xff] %vm447, %v598
        %615 = vst.msk [vmem:[#allocation2 + $0xb0] sm:$0xff] %vm447, %v599
        %616 = vst.msk [vmem:[#allocation2 + $0xb8] sm:$0xff] %vm447, %v600
        %617 = vst.msk [vmem:[#allocation2 + $0xc0] sm:$0xff] %vm447, %v601
        %618 = vst.msk [vmem:[#allocation2 + $0xc8] sm:$0xff] %vm447, %v602
        %619 = vst.msk [vmem:[#allocation2 + $0xd0] sm:$0xff] %vm447, %v603
        %620 = vst.msk [vmem:[#allocation2 + $0xd8] sm:$0xff] %vm447, %v604
        %621 = vst.msk [vmem:[#allocation2 + $0xe0] sm:$0xff] %vm447, %v605
        %622 = vst.msk [vmem:[#allocation2 + $0xe8] sm:$0xff] %vm447, %v606
        %623 = vst.msk [vmem:[#allocation2 + $0xf0] sm:$0xff] %vm447, %v607
        %624 = vst.msk [vmem:[#allocation2 + $0xf8] sm:$0xff] %vm447, %v608
        %v625 = vld [vmem:[%s276 + $0x80] sm:$0xf]
        %v626 = vld [vmem:[%s276 + $0x84] sm:$0xf]
        %v627 = vld [vmem:[%s276 + $0x88] sm:$0xf]
        %v628 = vld [vmem:[%s276 + $0x8c] sm:$0xf]
        %v629 = vld [vmem:[%s276 + $0x90] sm:$0xf]
        %v630 = vld [vmem:[%s276 + $0x94] sm:$0xf]
        %v631 = vld [vmem:[%s276 + $0x98] sm:$0xf]
        %v632 = vld [vmem:[%s276 + $0x9c] sm:$0xf]
        %v633 = vld [vmem:[%s276 + $0xa0] sm:$0xf]
        %v634 = vld [vmem:[%s276 + $0xa4] sm:$0xf]
        %v635 = vld [vmem:[%s276 + $0xa8] sm:$0xf]
        %v636 = vld [vmem:[%s276 + $0xac] sm:$0xf]
        %v637 = vld [vmem:[%s276 + $0xb0] sm:$0xf]
        %v638 = vld [vmem:[%s276 + $0xb4] sm:$0xf]
        %v639 = vld [vmem:[%s276 + $0xb8] sm:$0xf]
        %v640 = vld [vmem:[%s276 + $0xbc] sm:$0xf]
        %v657 = vunpack.c.l.b16 %v625
        %v658 = vunpack.c.l.b16 %v626
        %v659 = vunpack.c.l.b16 %v627
        %v660 = vunpack.c.l.b16 %v628
        %v661 = vunpack.c.l.b16 %v629
        %v662 = vunpack.c.l.b16 %v630
        %v663 = vunpack.c.l.b16 %v631
        %v664 = vunpack.c.l.b16 %v632
        %v665 = vunpack.c.l.b16 %v633
        %v666 = vunpack.c.l.b16 %v634
        %v667 = vunpack.c.l.b16 %v635
        %v668 = vunpack.c.l.b16 %v636
        %v669 = vunpack.c.l.b16 %v637
        %v670 = vunpack.c.l.b16 %v638
        %v671 = vunpack.c.l.b16 %v639
        %v672 = vunpack.c.l.b16 %v640
        %v673 = vpack.c.b16 %v658, %v657
        %v674 = vpack.c.b16 %v660, %v659
        %v675 = vpack.c.b16 %v662, %v661
        %v676 = vpack.c.b16 %v664, %v663
        %v677 = vpack.c.b16 %v666, %v665
        %v678 = vpack.c.b16 %v668, %v667
        %v679 = vpack.c.b16 %v670, %v669
        %v680 = vpack.c.b16 %v672, %v671
        %v682 = vsel %vm350, %v673, 0
        %v685 = vsel %vm350, %v674, 0
        %v688 = vsel %vm350, %v675, 0
        %v691 = vsel %vm350, %v676, 0
        %v694 = vsel %vm350, %v677, 0
        %v697 = vsel %vm350, %v678, 0
        %v700 = vsel %vm350, %v679, 0
        %v703 = vsel %vm350, %v680, 0
        %705 = vmatpush.bf16.msra.mxu0 0
        %706 = vmatpush.bf16.msra.mxu0 0
        %707 = vmatpush.bf16.msra.mxu0 0
        %708 = vmatpush.bf16.msra.mxu0 0
        %709 = vmatpush.bf16.msra.mxu0 0
        %710 = vmatpush.bf16.msra.mxu0 0
        %711 = vmatpush.bf16.msra.mxu0 %v380
        %712 = vmatpush.bf16.msra.mxu0 %v347
        %713 = vmatmul.bf16.gmra.mxu0 %v682
        %v714 = vpop.f32.mrf.mxu0
        %v715 = vadd.f32 0.0, %v714
        %v716 = vpop.f32.mrf.mxu0
        %v717 = vadd.f32 0.0, %v716
        %718 = vmatmul.bf16.gmra.mxu0 %v685
        %v719 = vpop.f32.mrf.mxu0
        %v720 = vadd.f32 0.0, %v719
        %v721 = vpop.f32.mrf.mxu0
        %v722 = vadd.f32 0.0, %v721
        %723 = vmatmul.bf16.gmra.mxu0 %v688
        %v724 = vpop.f32.mrf.mxu0
        %v725 = vadd.f32 0.0, %v724
        %v726 = vpop.f32.mrf.mxu0
        %v727 = vadd.f32 0.0, %v726
        %728 = vmatmul.bf16.gmra.mxu0 %v691
        %v729 = vpop.f32.mrf.mxu0
        %v730 = vadd.f32 0.0, %v729
        %v731 = vpop.f32.mrf.mxu0
        %v732 = vadd.f32 0.0, %v731
        %733 = vmatmul.bf16.gmra.mxu0 %v694
        %v734 = vpop.f32.mrf.mxu0
        %v735 = vadd.f32 0.0, %v734
        %v736 = vpop.f32.mrf.mxu0
        %v737 = vadd.f32 0.0, %v736
        %738 = vmatmul.bf16.gmra.mxu0 %v697
        %v739 = vpop.f32.mrf.mxu0
        %v740 = vadd.f32 0.0, %v739
        %v741 = vpop.f32.mrf.mxu0
        %v742 = vadd.f32 0.0, %v741
        %743 = vmatmul.bf16.gmra.mxu0 %v700
        %v744 = vpop.f32.mrf.mxu0
        %v745 = vadd.f32 0.0, %v744
        %v746 = vpop.f32.mrf.mxu0
        %v747 = vadd.f32 0.0, %v746
        %748 = vmatmul.bf16.gmra.mxu0 %v703
        %v749 = vpop.f32.mrf.mxu0
        %v750 = vadd.f32 0.0, %v749
        %v751 = vpop.f32.mrf.mxu0
        %v752 = vadd.f32 0.0, %v751
        %753 = vdwg.mxu0
        %v754 = vmax.f32 %v715, 0.0
        %v755 = vmax.f32 %v717, 0.0
        %v756 = vmax.f32 %v720, 0.0
        %v757 = vmax.f32 %v722, 0.0
        %v758 = vmax.f32 %v725, 0.0
        %v759 = vmax.f32 %v727, 0.0
        %v760 = vmax.f32 %v730, 0.0
        %v761 = vmax.f32 %v732, 0.0
        %v762 = vmax.f32 %v735, 0.0
        %v763 = vmax.f32 %v737, 0.0
        %v764 = vmax.f32 %v740, 0.0
        %v765 = vmax.f32 %v742, 0.0
        %v766 = vmax.f32 %v745, 0.0
        %v767 = vmax.f32 %v747, 0.0
        %v768 = vmax.f32 %v750, 0.0
        %v769 = vmax.f32 %v752, 0.0
        %770 = vst.msk [vmem:[#allocation2 + $0x100] sm:$0xff] %vm447, %v754
        %771 = vst.msk [vmem:[#allocation2 + $0x108] sm:$0xff] %vm447, %v755
        %772 = vst.msk [vmem:[#allocation2 + $0x110] sm:$0xff] %vm447, %v756
        %773 = vst.msk [vmem:[#allocation2 + $0x118] sm:$0xff] %vm447, %v757
        %774 = vst.msk [vmem:[#allocation2 + $0x120] sm:$0xff] %vm447, %v758
        %775 = vst.msk [vmem:[#allocation2 + $0x128] sm:$0xff] %vm447, %v759
        %776 = vst.msk [vmem:[#allocation2 + $0x130] sm:$0xff] %vm447, %v760
        %777 = vst.msk [vmem:[#allocation2 + $0x138] sm:$0xff] %vm447, %v761
        %778 = vst.msk [vmem:[#allocation2 + $0x140] sm:$0xff] %vm447, %v762
        %779 = vst.msk [vmem:[#allocation2 + $0x148] sm:$0xff] %vm447, %v763
        %780 = vst.msk [vmem:[#allocation2 + $0x150] sm:$0xff] %vm447, %v764
        %781 = vst.msk [vmem:[#allocation2 + $0x158] sm:$0xff] %vm447, %v765
        %782 = vst.msk [vmem:[#allocation2 + $0x160] sm:$0xff] %vm447, %v766
        %783 = vst.msk [vmem:[#allocation2 + $0x168] sm:$0xff] %vm447, %v767
        %784 = vst.msk [vmem:[#allocation2 + $0x170] sm:$0xff] %vm447, %v768
        %785 = vst.msk [vmem:[#allocation2 + $0x178] sm:$0xff] %vm447, %v769
        %v786 = vld [vmem:[%s276 + $0xc0] sm:$0xf]
        %v787 = vld [vmem:[%s276 + $0xc4] sm:$0xf]
        %v788 = vld [vmem:[%s276 + $0xc8] sm:$0xf]
        %v789 = vld [vmem:[%s276 + $0xcc] sm:$0xf]
        %v790 = vld [vmem:[%s276 + $0xd0] sm:$0xf]
        %v791 = vld [vmem:[%s276 + $0xd4] sm:$0xf]
        %v792 = vld [vmem:[%s276 + $0xd8] sm:$0xf]
        %v793 = vld [vmem:[%s276 + $0xdc] sm:$0xf]
        %v794 = vld [vmem:[%s276 + $0xe0] sm:$0xf]
        %v795 = vld [vmem:[%s276 + $0xe4] sm:$0xf]
        %v796 = vld [vmem:[%s276 + $0xe8] sm:$0xf]
        %v797 = vld [vmem:[%s276 + $0xec] sm:$0xf]
        %v798 = vld [vmem:[%s276 + $0xf0] sm:$0xf]
        %v799 = vld [vmem:[%s276 + $0xf4] sm:$0xf]
        %v800 = vld [vmem:[%s276 + $0xf8] sm:$0xf]
        %v801 = vld [vmem:[%s276 + $0xfc] sm:$0xf]
        %v818 = vunpack.c.l.b16 %v786
        %v819 = vunpack.c.l.b16 %v787
        %v820 = vunpack.c.l.b16 %v788
        %v821 = vunpack.c.l.b16 %v789
        %v822 = vunpack.c.l.b16 %v790
        %v823 = vunpack.c.l.b16 %v791
        %v824 = vunpack.c.l.b16 %v792
        %v825 = vunpack.c.l.b16 %v793
        %v826 = vunpack.c.l.b16 %v794
        %v827 = vunpack.c.l.b16 %v795
        %v828 = vunpack.c.l.b16 %v796
        %v829 = vunpack.c.l.b16 %v797
        %v830 = vunpack.c.l.b16 %v798
        %v831 = vunpack.c.l.b16 %v799
        %v832 = vunpack.c.l.b16 %v800
        %v833 = vunpack.c.l.b16 %v801
        %v834 = vpack.c.b16 %v819, %v818
        %v835 = vpack.c.b16 %v821, %v820
        %v836 = vpack.c.b16 %v823, %v822
        %v837 = vpack.c.b16 %v825, %v824
        %v838 = vpack.c.b16 %v827, %v826
        %v839 = vpack.c.b16 %v829, %v828
        %v840 = vpack.c.b16 %v831, %v830
        %v841 = vpack.c.b16 %v833, %v832
        %v843 = vsel %vm350, %v834, 0
        %v846 = vsel %vm350, %v835, 0
        %v849 = vsel %vm350, %v836, 0
        %v852 = vsel %vm350, %v837, 0
        %v855 = vsel %vm350, %v838, 0
        %v858 = vsel %vm350, %v839, 0
        %v861 = vsel %vm350, %v840, 0
        %v864 = vsel %vm350, %v841, 0
        %866 = vmatpush.bf16.msra.mxu0 0
        %867 = vmatpush.bf16.msra.mxu0 0
        %868 = vmatpush.bf16.msra.mxu0 0
        %869 = vmatpush.bf16.msra.mxu0 0
        %870 = vmatpush.bf16.msra.mxu0 0
        %871 = vmatpush.bf16.msra.mxu0 0
        %872 = vmatpush.bf16.msra.mxu0 %v380
        %873 = vmatpush.bf16.msra.mxu0 %v347
        %874 = vmatmul.bf16.gmra.mxu0 %v843
        %v875 = vpop.f32.mrf.mxu0
        %v876 = vadd.f32 0.0, %v875
        %v877 = vpop.f32.mrf.mxu0
        %v878 = vadd.f32 0.0, %v877
        %879 = vmatmul.bf16.gmra.mxu0 %v846
        %v880 = vpop.f32.mrf.mxu0
        %v881 = vadd.f32 0.0, %v880
        %v882 = vpop.f32.mrf.mxu0
        %v883 = vadd.f32 0.0, %v882
        %884 = vmatmul.bf16.gmra.mxu0 %v849
        %v885 = vpop.f32.mrf.mxu0
        %v886 = vadd.f32 0.0, %v885
        %v887 = vpop.f32.mrf.mxu0
        %v888 = vadd.f32 0.0, %v887
        %889 = vmatmul.bf16.gmra.mxu0 %v852
        %v890 = vpop.f32.mrf.mxu0
        %v891 = vadd.f32 0.0, %v890
        %v892 = vpop.f32.mrf.mxu0
        %v893 = vadd.f32 0.0, %v892
        %894 = vmatmul.bf16.gmra.mxu0 %v855
        %v895 = vpop.f32.mrf.mxu0
        %v896 = vadd.f32 0.0, %v895
        %v897 = vpop.f32.mrf.mxu0
        %v898 = vadd.f32 0.0, %v897
        %899 = vmatmul.bf16.gmra.mxu0 %v858
        %v900 = vpop.f32.mrf.mxu0
        %v901 = vadd.f32 0.0, %v900
        %v902 = vpop.f32.mrf.mxu0
        %v903 = vadd.f32 0.0, %v902
        %904 = vmatmul.bf16.gmra.mxu0 %v861
        %v905 = vpop.f32.mrf.mxu0
        %v906 = vadd.f32 0.0, %v905
        %v907 = vpop.f32.mrf.mxu0
        %v908 = vadd.f32 0.0, %v907
        %909 = vmatmul.bf16.gmra.mxu0 %v864
        %v910 = vpop.f32.mrf.mxu0
        %v911 = vadd.f32 0.0, %v910
        %v912 = vpop.f32.mrf.mxu0
        %v913 = vadd.f32 0.0, %v912
        %914 = vdwg.mxu0
        %v915 = vmax.f32 %v876, 0.0
        %v916 = vmax.f32 %v878, 0.0
        %v917 = vmax.f32 %v881, 0.0
        %v918 = vmax.f32 %v883, 0.0
        %v919 = vmax.f32 %v886, 0.0
        %v920 = vmax.f32 %v888, 0.0
        %v921 = vmax.f32 %v891, 0.0
        %v922 = vmax.f32 %v893, 0.0
        %v923 = vmax.f32 %v896, 0.0
        %v924 = vmax.f32 %v898, 0.0
        %v925 = vmax.f32 %v901, 0.0
        %v926 = vmax.f32 %v903, 0.0
        %v927 = vmax.f32 %v906, 0.0
        %v928 = vmax.f32 %v908, 0.0
        %v929 = vmax.f32 %v911, 0.0
        %v930 = vmax.f32 %v913, 0.0
        %931 = vst.msk [vmem:[#allocation2 + $0x180] sm:$0xff] %vm447, %v915
        %932 = vst.msk [vmem:[#allocation2 + $0x188] sm:$0xff] %vm447, %v916
        %933 = vst.msk [vmem:[#allocation2 + $0x190] sm:$0xff] %vm447, %v917
        %934 = vst.msk [vmem:[#allocation2 + $0x198] sm:$0xff] %vm447, %v918
        %935 = vst.msk [vmem:[#allocation2 + $0x1a0] sm:$0xff] %vm447, %v919
        %936 = vst.msk [vmem:[#allocation2 + $0x1a8] sm:$0xff] %vm447, %v920
        %937 = vst.msk [vmem:[#allocation2 + $0x1b0] sm:$0xff] %vm447, %v921
        %938 = vst.msk [vmem:[#allocation2 + $0x1b8] sm:$0xff] %vm447, %v922
        %939 = vst.msk [vmem:[#allocation2 + $0x1c0] sm:$0xff] %vm447, %v923
        %940 = vst.msk [vmem:[#allocation2 + $0x1c8] sm:$0xff] %vm447, %v924
        %941 = vst.msk [vmem:[#allocation2 + $0x1d0] sm:$0xff] %vm447, %v925
        %942 = vst.msk [vmem:[#allocation2 + $0x1d8] sm:$0xff] %vm447, %v926
        %943 = vst.msk [vmem:[#allocation2 + $0x1e0] sm:$0xff] %vm447, %v927
        %944 = vst.msk [vmem:[#allocation2 + $0x1e8] sm:$0xff] %vm447, %v928
        %945 = vst.msk [vmem:[#allocation2 + $0x1f0] sm:$0xff] %vm447, %v929
        %946 = vst.msk [vmem:[#allocation2 + $0x1f8] sm:$0xff] %vm447, %v930
        %v947 = vld [vmem:[%s276 + $0x100] sm:$0xf]
        %v948 = vld [vmem:[%s276 + $0x104] sm:$0xf]
        %v949 = vld [vmem:[%s276 + $0x108] sm:$0xf]
        %v950 = vld [vmem:[%s276 + $0x10c] sm:$0xf]
        %v951 = vld [vmem:[%s276 + $0x110] sm:$0xf]
        %v952 = vld [vmem:[%s276 + $0x114] sm:$0xf]
        %v953 = vld [vmem:[%s276 + $0x118] sm:$0xf]
        %v954 = vld [vmem:[%s276 + $0x11c] sm:$0xf]
        %v955 = vld [vmem:[%s276 + $0x120] sm:$0xf]
        %v956 = vld [vmem:[%s276 + $0x124] sm:$0xf]
        %v957 = vld [vmem:[%s276 + $0x128] sm:$0xf]
        %v958 = vld [vmem:[%s276 + $0x12c] sm:$0xf]
        %v959 = vld [vmem:[%s276 + $0x130] sm:$0xf]
        %v960 = vld [vmem:[%s276 + $0x134] sm:$0xf]
        %v961 = vld [vmem:[%s276 + $0x138] sm:$0xf]
        %v962 = vld [vmem:[%s276 + $0x13c] sm:$0xf]
        %v979 = vunpack.c.l.b16 %v947
        %v980 = vunpack.c.l.b16 %v948
        %v981 = vunpack.c.l.b16 %v949
        %v982 = vunpack.c.l.b16 %v950
        %v983 = vunpack.c.l.b16 %v951
        %v984 = vunpack.c.l.b16 %v952
        %v985 = vunpack.c.l.b16 %v953
        %v986 = vunpack.c.l.b16 %v954
        %v987 = vunpack.c.l.b16 %v955
        %v988 = vunpack.c.l.b16 %v956
        %v989 = vunpack.c.l.b16 %v957
        %v990 = vunpack.c.l.b16 %v958
        %v991 = vunpack.c.l.b16 %v959
        %v992 = vunpack.c.l.b16 %v960
        %v993 = vunpack.c.l.b16 %v961
        %v994 = vunpack.c.l.b16 %v962
        %v995 = vpack.c.b16 %v980, %v979
        %v996 = vpack.c.b16 %v982, %v981
        %v997 = vpack.c.b16 %v984, %v983
        %v998 = vpack.c.b16 %v986, %v985
        %v999 = vpack.c.b16 %v988, %v987
        %v1000 = vpack.c.b16 %v990, %v989
        %v1001 = vpack.c.b16 %v992, %v991
        %v1002 = vpack.c.b16 %v994, %v993
        %v1004 = vsel %vm350, %v995, 0
        %v1007 = vsel %vm350, %v996, 0
        %v1010 = vsel %vm350, %v997, 0
        %v1013 = vsel %vm350, %v998, 0
        %v1016 = vsel %vm350, %v999, 0
        %v1019 = vsel %vm350, %v1000, 0
        %v1022 = vsel %vm350, %v1001, 0
        %v1025 = vsel %vm350, %v1002, 0
        %1027 = vmatpush.bf16.msra.mxu0 0
        %1028 = vmatpush.bf16.msra.mxu0 0
        %1029 = vmatpush.bf16.msra.mxu0 0
        %1030 = vmatpush.bf16.msra.mxu0 0
        %1031 = vmatpush.bf16.msra.mxu0 0
        %1032 = vmatpush.bf16.msra.mxu0 0
        %1033 = vmatpush.bf16.msra.mxu0 %v380
        %1034 = vmatpush.bf16.msra.mxu0 %v347
        %1035 = vmatmul.bf16.gmra.mxu0 %v1004
        %v1036 = vpop.f32.mrf.mxu0
        %v1037 = vadd.f32 0.0, %v1036
        %v1038 = vpop.f32.mrf.mxu0
        %v1039 = vadd.f32 0.0, %v1038
        %1040 = vmatmul.bf16.gmra.mxu0 %v1007
        %v1041 = vpop.f32.mrf.mxu0
        %v1042 = vadd.f32 0.0, %v1041
        %v1043 = vpop.f32.mrf.mxu0
        %v1044 = vadd.f32 0.0, %v1043
        %1045 = vmatmul.bf16.gmra.mxu0 %v1010
        %v1046 = vpop.f32.mrf.mxu0
        %v1047 = vadd.f32 0.0, %v1046
        %v1048 = vpop.f32.mrf.mxu0
        %v1049 = vadd.f32 0.0, %v1048
        %1050 = vmatmul.bf16.gmra.mxu0 %v1013
        %v1051 = vpop.f32.mrf.mxu0
        %v1052 = vadd.f32 0.0, %v1051
        %v1053 = vpop.f32.mrf.mxu0
        %v1054 = vadd.f32 0.0, %v1053
        %1055 = vmatmul.bf16.gmra.mxu0 %v1016
        %v1056 = vpop.f32.mrf.mxu0
        %v1057 = vadd.f32 0.0, %v1056
        %v1058 = vpop.f32.mrf.mxu0
        %v1059 = vadd.f32 0.0, %v1058
        %1060 = vmatmul.bf16.gmra.mxu0 %v1019
        %v1061 = vpop.f32.mrf.mxu0
        %v1062 = vadd.f32 0.0, %v1061
        %v1063 = vpop.f32.mrf.mxu0
        %v1064 = vadd.f32 0.0, %v1063
        %1065 = vmatmul.bf16.gmra.mxu0 %v1022
        %v1066 = vpop.f32.mrf.mxu0
        %v1067 = vadd.f32 0.0, %v1066
        %v1068 = vpop.f32.mrf.mxu0
        %v1069 = vadd.f32 0.0, %v1068
        %1070 = vmatmul.bf16.gmra.mxu0 %v1025
        %v1071 = vpop.f32.mrf.mxu0
        %v1072 = vadd.f32 0.0, %v1071
        %v1073 = vpop.f32.mrf.mxu0
        %v1074 = vadd.f32 0.0, %v1073
        %1075 = vdwg.mxu0
        %v1076 = vmax.f32 %v1037, 0.0
        %v1077 = vmax.f32 %v1039, 0.0
        %v1078 = vmax.f32 %v1042, 0.0
        %v1079 = vmax.f32 %v1044, 0.0
        %v1080 = vmax.f32 %v1047, 0.0
        %v1081 = vmax.f32 %v1049, 0.0
        %v1082 = vmax.f32 %v1052, 0.0
        %v1083 = vmax.f32 %v1054, 0.0
        %v1084 = vmax.f32 %v1057, 0.0
        %v1085 = vmax.f32 %v1059, 0.0
        %v1086 = vmax.f32 %v1062, 0.0
        %v1087 = vmax.f32 %v1064, 0.0
        %v1088 = vmax.f32 %v1067, 0.0
        %v1089 = vmax.f32 %v1069, 0.0
        %v1090 = vmax.f32 %v1072, 0.0
        %v1091 = vmax.f32 %v1074, 0.0
        %1092 = vst.msk [vmem:[#allocation2 + $0x200] sm:$0xff] %vm447, %v1076
        %1093 = vst.msk [vmem:[#allocation2 + $0x208] sm:$0xff] %vm447, %v1077
        %1094 = vst.msk [vmem:[#allocation2 + $0x210] sm:$0xff] %vm447, %v1078
        %1095 = vst.msk [vmem:[#allocation2 + $0x218] sm:$0xff] %vm447, %v1079
        %1096 = vst.msk [vmem:[#allocation2 + $0x220] sm:$0xff] %vm447, %v1080
        %1097 = vst.msk [vmem:[#allocation2 + $0x228] sm:$0xff] %vm447, %v1081
        %1098 = vst.msk [vmem:[#allocation2 + $0x230] sm:$0xff] %vm447, %v1082
        %1099 = vst.msk [vmem:[#allocation2 + $0x238] sm:$0xff] %vm447, %v1083
        %1100 = vst.msk [vmem:[#allocation2 + $0x240] sm:$0xff] %vm447, %v1084
        %1101 = vst.msk [vmem:[#allocation2 + $0x248] sm:$0xff] %vm447, %v1085
        %1102 = vst.msk [vmem:[#allocation2 + $0x250] sm:$0xff] %vm447, %v1086
        %1103 = vst.msk [vmem:[#allocation2 + $0x258] sm:$0xff] %vm447, %v1087
        %1104 = vst.msk [vmem:[#allocation2 + $0x260] sm:$0xff] %vm447, %v1088
        %1105 = vst.msk [vmem:[#allocation2 + $0x268] sm:$0xff] %vm447, %v1089
        %1106 = vst.msk [vmem:[#allocation2 + $0x270] sm:$0xff] %vm447, %v1090
        %1107 = vst.msk [vmem:[#allocation2 + $0x278] sm:$0xff] %vm447, %v1091
        %v1108 = vld [vmem:[%s276 + $0x140] sm:$0xf]
        %v1109 = vld [vmem:[%s276 + $0x144] sm:$0xf]
        %v1110 = vld [vmem:[%s276 + $0x148] sm:$0xf]
        %v1111 = vld [vmem:[%s276 + $0x14c] sm:$0xf]
        %v1112 = vld [vmem:[%s276 + $0x150] sm:$0xf]
        %v1113 = vld [vmem:[%s276 + $0x154] sm:$0xf]
        %v1114 = vld [vmem:[%s276 + $0x158] sm:$0xf]
        %v1115 = vld [vmem:[%s276 + $0x15c] sm:$0xf]
        %v1116 = vld [vmem:[%s276 + $0x160] sm:$0xf]
        %v1117 = vld [vmem:[%s276 + $0x164] sm:$0xf]
        %v1118 = vld [vmem:[%s276 + $0x168] sm:$0xf]
        %v1119 = vld [vmem:[%s276 + $0x16c] sm:$0xf]
        %v1120 = vld [vmem:[%s276 + $0x170] sm:$0xf]
        %v1121 = vld [vmem:[%s276 + $0x174] sm:$0xf]
        %v1122 = vld [vmem:[%s276 + $0x178] sm:$0xf]
        %v1123 = vld [vmem:[%s276 + $0x17c] sm:$0xf]
        %v1140 = vunpack.c.l.b16 %v1108
        %v1141 = vunpack.c.l.b16 %v1109
        %v1142 = vunpack.c.l.b16 %v1110
        %v1143 = vunpack.c.l.b16 %v1111
        %v1144 = vunpack.c.l.b16 %v1112
        %v1145 = vunpack.c.l.b16 %v1113
        %v1146 = vunpack.c.l.b16 %v1114
        %v1147 = vunpack.c.l.b16 %v1115
        %v1148 = vunpack.c.l.b16 %v1116
        %v1149 = vunpack.c.l.b16 %v1117
        %v1150 = vunpack.c.l.b16 %v1118
        %v1151 = vunpack.c.l.b16 %v1119
        %v1152 = vunpack.c.l.b16 %v1120
        %v1153 = vunpack.c.l.b16 %v1121
        %v1154 = vunpack.c.l.b16 %v1122
        %v1155 = vunpack.c.l.b16 %v1123
        %v1156 = vpack.c.b16 %v1141, %v1140
        %v1157 = vpack.c.b16 %v1143, %v1142
        %v1158 = vpack.c.b16 %v1145, %v1144
        %v1159 = vpack.c.b16 %v1147, %v1146
        %v1160 = vpack.c.b16 %v1149, %v1148
        %v1161 = vpack.c.b16 %v1151, %v1150
        %v1162 = vpack.c.b16 %v1153, %v1152
        %v1163 = vpack.c.b16 %v1155, %v1154
        %v1165 = vsel %vm350, %v1156, 0
        %v1168 = vsel %vm350, %v1157, 0
        %v1171 = vsel %vm350, %v1158, 0
        %v1174 = vsel %vm350, %v1159, 0
        %v1177 = vsel %vm350, %v1160, 0
        %v1180 = vsel %vm350, %v1161, 0
        %v1183 = vsel %vm350, %v1162, 0
        %v1186 = vsel %vm350, %v1163, 0
        %1188 = vmatpush.bf16.msra.mxu0 0
        %1189 = vmatpush.bf16.msra.mxu0 0
        %1190 = vmatpush.bf16.msra.mxu0 0
        %1191 = vmatpush.bf16.msra.mxu0 0
        %1192 = vmatpush.bf16.msra.mxu0 0
        %1193 = vmatpush.bf16.msra.mxu0 0
        %1194 = vmatpush.bf16.msra.mxu0 %v380
        %1195 = vmatpush.bf16.msra.mxu0 %v347
        %1196 = vmatmul.bf16.gmra.mxu0 %v1165
        %v1197 = vpop.f32.mrf.mxu0
        %v1198 = vadd.f32 0.0, %v1197
        %v1199 = vpop.f32.mrf.mxu0
        %v1200 = vadd.f32 0.0, %v1199
        %1201 = vmatmul.bf16.gmra.mxu0 %v1168
        %v1202 = vpop.f32.mrf.mxu0
        %v1203 = vadd.f32 0.0, %v1202
        %v1204 = vpop.f32.mrf.mxu0
        %v1205 = vadd.f32 0.0, %v1204
        %1206 = vmatmul.bf16.gmra.mxu0 %v1171
        %v1207 = vpop.f32.mrf.mxu0
        %v1208 = vadd.f32 0.0, %v1207
        %v1209 = vpop.f32.mrf.mxu0
        %v1210 = vadd.f32 0.0, %v1209
        %1211 = vmatmul.bf16.gmra.mxu0 %v1174
        %v1212 = vpop.f32.mrf.mxu0
        %v1213 = vadd.f32 0.0, %v1212
        %v1214 = vpop.f32.mrf.mxu0
        %v1215 = vadd.f32 0.0, %v1214
        %1216 = vmatmul.bf16.gmra.mxu0 %v1177
        %v1217 = vpop.f32.mrf.mxu0
        %v1218 = vadd.f32 0.0, %v1217
        %v1219 = vpop.f32.mrf.mxu0
        %v1220 = vadd.f32 0.0, %v1219
        %1221 = vmatmul.bf16.gmra.mxu0 %v1180
        %v1222 = vpop.f32.mrf.mxu0
        %v1223 = vadd.f32 0.0, %v1222
        %v1224 = vpop.f32.mrf.mxu0
        %v1225 = vadd.f32 0.0, %v1224
        %1226 = vmatmul.bf16.gmra.mxu0 %v1183
        %v1227 = vpop.f32.mrf.mxu0
        %v1228 = vadd.f32 0.0, %v1227
        %v1229 = vpop.f32.mrf.mxu0
        %v1230 = vadd.f32 0.0, %v1229
        %1231 = vmatmul.bf16.gmra.mxu0 %v1186
        %v1232 = vpop.f32.mrf.mxu0
        %v1233 = vadd.f32 0.0, %v1232
        %v1234 = vpop.f32.mrf.mxu0
        %v1235 = vadd.f32 0.0, %v1234
        %1236 = vdwg.mxu0
        %v1237 = vmax.f32 %v1198, 0.0
        %v1238 = vmax.f32 %v1200, 0.0
        %v1239 = vmax.f32 %v1203, 0.0
        %v1240 = vmax.f32 %v1205, 0.0
        %v1241 = vmax.f32 %v1208, 0.0
        %v1242 = vmax.f32 %v1210, 0.0
        %v1243 = vmax.f32 %v1213, 0.0
        %v1244 = vmax.f32 %v1215, 0.0
        %v1245 = vmax.f32 %v1218, 0.0
        %v1246 = vmax.f32 %v1220, 0.0
        %v1247 = vmax.f32 %v1223, 0.0
        %v1248 = vmax.f32 %v1225, 0.0
        %v1249 = vmax.f32 %v1228, 0.0
        %v1250 = vmax.f32 %v1230, 0.0
        %v1251 = vmax.f32 %v1233, 0.0
        %v1252 = vmax.f32 %v1235, 0.0
        %1253 = vst.msk [vmem:[#allocation2 + $0x280] sm:$0xff] %vm447, %v1237
        %1254 = vst.msk [vmem:[#allocation2 + $0x288] sm:$0xff] %vm447, %v1238
        %1255 = vst.msk [vmem:[#allocation2 + $0x290] sm:$0xff] %vm447, %v1239
        %1256 = vst.msk [vmem:[#allocation2 + $0x298] sm:$0xff] %vm447, %v1240
        %1257 = vst.msk [vmem:[#allocation2 + $0x2a0] sm:$0xff] %vm447, %v1241
        %1258 = vst.msk [vmem:[#allocation2 + $0x2a8] sm:$0xff] %vm447, %v1242
        %1259 = vst.msk [vmem:[#allocation2 + $0x2b0] sm:$0xff] %vm447, %v1243
        %1260 = vst.msk [vmem:[#allocation2 + $0x2b8] sm:$0xff] %vm447, %v1244
        %1261 = vst.msk [vmem:[#allocation2 + $0x2c0] sm:$0xff] %vm447, %v1245
        %1262 = vst.msk [vmem:[#allocation2 + $0x2c8] sm:$0xff] %vm447, %v1246
        %1263 = vst.msk [vmem:[#allocation2 + $0x2d0] sm:$0xff] %vm447, %v1247
        %1264 = vst.msk [vmem:[#allocation2 + $0x2d8] sm:$0xff] %vm447, %v1248
        %1265 = vst.msk [vmem:[#allocation2 + $0x2e0] sm:$0xff] %vm447, %v1249
        %1266 = vst.msk [vmem:[#allocation2 + $0x2e8] sm:$0xff] %vm447, %v1250
        %1267 = vst.msk [vmem:[#allocation2 + $0x2f0] sm:$0xff] %vm447, %v1251
        %1268 = vst.msk [vmem:[#allocation2 + $0x2f8] sm:$0xff] %vm447, %v1252
        %v1269 = vld [vmem:[%s276 + $0x180] sm:$0xf]
        %v1270 = vld [vmem:[%s276 + $0x184] sm:$0xf]
        %v1273 = vunpack.c.l.b16 %v1269
        %v1274 = vunpack.c.l.b16 %v1270
        %v1275 = vpack.c.b16 %v1274, %v1273
        %v1277 = vsel %vm350, %v1275, 0
        %1279 = vmatpush.bf16.msra.mxu0 0
        %1280 = vmatpush.bf16.msra.mxu0 0
        %1281 = vmatpush.bf16.msra.mxu0 0
        %1282 = vmatpush.bf16.msra.mxu0 0
        %1283 = vmatpush.bf16.msra.mxu0 0
        %1284 = vmatpush.bf16.msra.mxu0 0
        %1285 = vmatpush.bf16.msra.mxu0 %v380
        %1286 = vmatpush.bf16.msra.mxu0 %v347
        %1287 = vmatmul.bf16.gmra.mxu0 %v1277
        %v1288 = vpop.f32.mrf.mxu0
        %v1289 = vadd.f32 0.0, %v1288
        %v1290 = vpop.f32.mrf.mxu0
        %v1291 = vadd.f32 0.0, %v1290
        %1292 = vdwg.mxu0
        %v1293 = vmax.f32 %v1289, 0.0
        %v1294 = vmax.f32 %v1291, 0.0
        %1295 = vst.msk [vmem:[#allocation2 + $0x300] sm:$0xff] %vm447, %v1293
        %1296 = vst.msk [vmem:[#allocation2 + $0x308] sm:$0xff] %vm447, %v1294
        %vm1297 = vcmask 125952
        %1298 = vst.msk [vmem:[#allocation3] sm:$0xf] %vm1297, 0
        %1299 = vst.msk [vmem:[#allocation3 + $0x4] sm:$0xf] %vm1297, 0
        %1300 = vst.msk [vmem:[#allocation3 + $0x8] sm:$0xf] %vm1297, 0
        %1301 = vst.msk [vmem:[#allocation3 + $0xc] sm:$0xf] %vm1297, 0
        %1302 = vst.msk [vmem:[#allocation3 + $0x10] sm:$0xf] %vm1297, 0
        %1303 = vst.msk [vmem:[#allocation3 + $0x14] sm:$0xf] %vm1297, 0
        %1304 = vst.msk [vmem:[#allocation3 + $0x18] sm:$0xf] %vm1297, 0
        %1305 = vst.msk [vmem:[#allocation3 + $0x1c] sm:$0xf] %vm1297, 0
        %1306 = vst.msk [vmem:[#allocation3 + $0x20] sm:$0xf] %vm1297, 0
        %1307 = vst.msk [vmem:[#allocation3 + $0x24] sm:$0xf] %vm1297, 0
        %1308 = vst.msk [vmem:[#allocation3 + $0x28] sm:$0xf] %vm1297, 0
        %1309 = vst.msk [vmem:[#allocation3 + $0x2c] sm:$0xf] %vm1297, 0
        %1310 = vst.msk [vmem:[#allocation3 + $0x30] sm:$0xf] %vm1297, 0
        %1311 = vst.msk [vmem:[#allocation3 + $0x34] sm:$0xf] %vm1297, 0
        %1312 = vst.msk [vmem:[#allocation3 + $0x38] sm:$0xf] %vm1297, 0
        %1313 = vst.msk [vmem:[#allocation3 + $0x3c] sm:$0xf] %vm1297, 0
        %1314 = vst.msk [vmem:[#allocation3 + $0x40] sm:$0xf] %vm1297, 0
        %1315 = vst.msk [vmem:[#allocation3 + $0x44] sm:$0xf] %vm1297, 0
        %1316 = vst.msk [vmem:[#allocation3 + $0x48] sm:$0xf] %vm1297, 0
        %1317 = vst.msk [vmem:[#allocation3 + $0x4c] sm:$0xf] %vm1297, 0
        %1318 = vst.msk [vmem:[#allocation3 + $0x50] sm:$0xf] %vm1297, 0
        %1319 = vst.msk [vmem:[#allocation3 + $0x54] sm:$0xf] %vm1297, 0
        %1320 = vst.msk [vmem:[#allocation3 + $0x58] sm:$0xf] %vm1297, 0
        %1321 = vst.msk [vmem:[#allocation3 + $0x5c] sm:$0xf] %vm1297, 0
        %1322 = vst.msk [vmem:[#allocation3 + $0x60] sm:$0xf] %vm1297, 0
        %1323 = vst.msk [vmem:[#allocation3 + $0x64] sm:$0xf] %vm1297, 0
        %1324 = vst.msk [vmem:[#allocation3 + $0x68] sm:$0xf] %vm1297, 0
        %1325 = vst.msk [vmem:[#allocation3 + $0x6c] sm:$0xf] %vm1297, 0
        %1326 = vst.msk [vmem:[#allocation3 + $0x70] sm:$0xf] %vm1297, 0
        %1327 = vst.msk [vmem:[#allocation3 + $0x74] sm:$0xf] %vm1297, 0
        %1328 = vst.msk [vmem:[#allocation3 + $0x78] sm:$0xf] %vm1297, 0
        %1329 = vst.msk [vmem:[#allocation3 + $0x7c] sm:$0xf] %vm1297, 0
        %1330 = vst.msk [vmem:[#allocation3 + $0x80] sm:$0xf] %vm1297, 0
        %1331 = vst.msk [vmem:[#allocation3 + $0x84] sm:$0xf] %vm1297, 0
        %1332 = vst.msk [vmem:[#allocation3 + $0x88] sm:$0xf] %vm1297, 0
        %1333 = vst.msk [vmem:[#allocation3 + $0x8c] sm:$0xf] %vm1297, 0
        %1334 = vst.msk [vmem:[#allocation3 + $0x90] sm:$0xf] %vm1297, 0
        %1335 = vst.msk [vmem:[#allocation3 + $0x94] sm:$0xf] %vm1297, 0
        %1336 = vst.msk [vmem:[#allocation3 + $0x98] sm:$0xf] %vm1297, 0
        %1337 = vst.msk [vmem:[#allocation3 + $0x9c] sm:$0xf] %vm1297, 0
        %1338 = vst.msk [vmem:[#allocation3 + $0xa0] sm:$0xf] %vm1297, 0
        %1339 = vst.msk [vmem:[#allocation3 + $0xa4] sm:$0xf] %vm1297, 0
        %1340 = vst.msk [vmem:[#allocation3 + $0xa8] sm:$0xf] %vm1297, 0
        %1341 = vst.msk [vmem:[#allocation3 + $0xac] sm:$0xf] %vm1297, 0
        %1342 = vst.msk [vmem:[#allocation3 + $0xb0] sm:$0xf] %vm1297, 0
        %1343 = vst.msk [vmem:[#allocation3 + $0xb4] sm:$0xf] %vm1297, 0
        %vm1344 = vcmask 123904
        %1345 = vst.msk [vmem:[#allocation3 + $0xb8] sm:$0x3] %vm1344, 0
        %v1346 = vld [vmem:[#allocation2] ss:$2 sm:$0xff]
        %s1347 = scalar_lea.vmem [#allocation2], 16
        %v1348 = vld [vmem:[%s1347] ss:$2 sm:$0x3f]
        %s1349 = scalar_lea.vmem [#allocation2], 1
        %v1350 = vld [vmem:[%s1349] ss:$2 sm:$0xff]
        %s1351 = scalar_lea.vmem [#allocation2], 17
        %v1352 = vld [vmem:[%s1351] ss:$2 sm:$0x3f]
        %v1353 = vmax.f32 %v1346, %v1350
        %v1354 = vmax.f32 %v1348, %v1352
        %s1355 = scalar_lea.vmem [#allocation2], 28
        %v1356 = vld [vmem:[%s1355] ss:$2 sm:$0xff]
        %s1357 = scalar_lea.vmem [#allocation2], 44
        %v1358 = vld [vmem:[%s1357] ss:$2 sm:$0x3f]
        %v1359 = vmax.f32 %v1353, %v1356
        %v1360 = vmax.f32 %v1354, %v1358
        %s1361 = scalar_lea.vmem [#allocation2], 29
        %v1362 = vld [vmem:[%s1361] ss:$2 sm:$0xff]
        %s1363 = scalar_lea.vmem [#allocation2], 45
        %v1364 = vld [vmem:[%s1363] ss:$2 sm:$0x3f]
        %v1365 = vmax.f32 %v1359, %v1362
        %v1366 = vmax.f32 %v1360, %v1364
        %v1367 = vpack.c.bf16 %v1365, %v1365
        %v1368 = vpack.c.bf16 %v1366, %v1366
        %vm1371 = vcmask 1042432
        %vm1372 = vcmask 1046532
        %vm1373 = vmor %vm1371, %vm1372
        %v1374 = vrot.slane %v1367, 5
        %v1375 = vrot.slane %v1374, 4
        %v1376 = vrot.slane %v1368, 5
        %v1377 = vsel %vm1373, %v1375, %v1376
        %v1378 = vrot.slane %v1376, 4
        %vm1382 = vcmask 125955
        %1383 = vst.msk [vmem:[#allocation3 + $0x1c] sm:$0x8] %vm1382, %v1374
        %1384 = vst.msk [vmem:[#allocation3 + $0x20] sm:$0xf] %vm1297, %v1377
        %1385 = vst.msk [vmem:[#allocation3 + $0x24] sm:$0x3] %vm1344, %v1378
        %s1386 = scalar_lea.vmem [#allocation2], 56
        %v1387 = vld [vmem:[%s1386] ss:$2 sm:$0xff]
        %s1388 = scalar_lea.vmem [#allocation2], 72
        %v1389 = vld [vmem:[%s1388] ss:$2 sm:$0x3f]
        %s1390 = scalar_lea.vmem [#allocation2], 57
        %v1391 = vld [vmem:[%s1390] ss:$2 sm:$0xff]
        %s1392 = scalar_lea.vmem [#allocation2], 73
        %v1393 = vld [vmem:[%s1392] ss:$2 sm:$0x3f]
        %v1394 = vmax.f32 %v1387, %v1391
        %v1395 = vmax.f32 %v1389, %v1393
        %s1396 = scalar_lea.vmem [#allocation2], 84
        %v1397 = vld [vmem:[%s1396] ss:$2 sm:$0xff]
        %s1398 = scalar_lea.vmem [#allocation2], 100
        %v1399 = vld [vmem:[%s1398] ss:$2 sm:$0x3f]
        %v1400 = vmax.f32 %v1394, %v1397
        %v1401 = vmax.f32 %v1395, %v1399
        %s1402 = scalar_lea.vmem [#allocation2], 85
        %v1403 = vld [vmem:[%s1402] ss:$2 sm:$0xff]
        %s1404 = scalar_lea.vmem [#allocation2], 101
        %v1405 = vld [vmem:[%s1404] ss:$2 sm:$0x3f]
        %v1406 = vmax.f32 %v1400, %v1403
        %v1407 = vmax.f32 %v1401, %v1405
        %v1408 = vpack.c.bf16 %v1406, %v1406
        %v1409 = vpack.c.bf16 %v1407, %v1407
        %1410 = vst.msk [vmem:[#allocation3 + $0x28] sm:$0xf] %vm1297, %v1408
        %vm1411 = vcmask 124928
        %1412 = vst.msk [vmem:[#allocation3 + $0x2c] sm:$0x7] %vm1411, %v1409
        %s1413 = scalar_lea.vmem [#allocation2], 112
        %v1414 = vld [vmem:[%s1413] ss:$2 sm:$0xff]
        %s1415 = scalar_lea.vmem [#allocation2], 128
        %v1416 = vld [vmem:[%s1415] ss:$2 sm:$0x3f]
        %s1417 = scalar_lea.vmem [#allocation2], 113
        %v1418 = vld [vmem:[%s1417] ss:$2 sm:$0xff]
        %s1419 = scalar_lea.vmem [#allocation2], 129
        %v1420 = vld [vmem:[%s1419] ss:$2 sm:$0x3f]
        %v1421 = vmax.f32 %v1414, %v1418
        %v1422 = vmax.f32 %v1416, %v1420
        %s1423 = scalar_lea.vmem [#allocation2], 140
        %v1424 = vld [vmem:[%s1423] ss:$2 sm:$0xff]
        %s1425 = scalar_lea.vmem [#allocation2], 156
        %v1426 = vld [vmem:[%s1425] ss:$2 sm:$0x3f]
        %v1427 = vmax.f32 %v1421, %v1424
        %v1428 = vmax.f32 %v1422, %v1426
        %s1429 = scalar_lea.vmem [#allocation2], 141
        %v1430 = vld [vmem:[%s1429] ss:$2 sm:$0xff]
        %s1431 = scalar_lea.vmem [#allocation2], 157
        %v1432 = vld [vmem:[%s1431] ss:$2 sm:$0x3f]
        %v1433 = vmax.f32 %v1427, %v1430
        %v1434 = vmax.f32 %v1428, %v1432
        %v1435 = vpack.c.bf16 %v1433, %v1433
        %v1436 = vpack.c.bf16 %v1434, %v1434
        %vm1439 = vcmask 1040384
        %vm1440 = vcmask 1044484
        %vm1441 = vmor %vm1439, %vm1440
        %v1442 = vrot.slane %v1435, 7
        %v1443 = vrot.slane %v1442, 4
        %v1444 = vrot.slane %v1436, 7
        %v1445 = vsel %vm1441, %v1443, %v1444
        %vm1448 = vcmask 125953
        %1449 = vst.msk [vmem:[#allocation3 + $0x30] sm:$0xe] %vm1448, %v1442
        %1450 = vst.msk [vmem:[#allocation3 + $0x34] sm:$0xf] %vm1297, %v1445
        %s1451 = scalar_lea.vmem [#allocation2], 168
        %v1452 = vld [vmem:[%s1451] ss:$2 sm:$0xff]
        %s1453 = scalar_lea.vmem [#allocation2], 184
        %v1454 = vld [vmem:[%s1453] ss:$2 sm:$0x3f]
        %s1455 = scalar_lea.vmem [#allocation2], 169
        %v1456 = vld [vmem:[%s1455] ss:$2 sm:$0xff]
        %s1457 = scalar_lea.vmem [#allocation2], 185
        %v1458 = vld [vmem:[%s1457] ss:$2 sm:$0x3f]
        %v1459 = vmax.f32 %v1452, %v1456
        %v1460 = vmax.f32 %v1454, %v1458
        %s1461 = scalar_lea.vmem [#allocation2], 196
        %v1462 = vld [vmem:[%s1461] ss:$2 sm:$0xff]
        %s1463 = scalar_lea.vmem [#allocation2], 212
        %v1464 = vld [vmem:[%s1463] ss:$2 sm:$0x3f]
        %v1465 = vmax.f32 %v1459, %v1462
        %v1466 = vmax.f32 %v1460, %v1464
        %s1467 = scalar_lea.vmem [#allocation2], 197
        %v1468 = vld [vmem:[%s1467] ss:$2 sm:$0xff]
        %s1469 = scalar_lea.vmem [#allocation2], 213
        %v1470 = vld [vmem:[%s1469] ss:$2 sm:$0x3f]
        %v1471 = vmax.f32 %v1465, %v1468
        %v1472 = vmax.f32 %v1466, %v1470
        %v1473 = vpack.c.bf16 %v1471, %v1471
        %v1474 = vpack.c.bf16 %v1472, %v1472
        %vm1477 = vcmask 1041408
        %vm1478 = vcmask 1045508
        %vm1479 = vmor %vm1477, %vm1478
        %v1480 = vrot.slane %v1473, 6
        %v1481 = vrot.slane %v1480, 4
        %v1482 = vrot.slane %v1474, 6
        %v1483 = vsel %vm1479, %v1481, %v1482
        %v1484 = vrot.slane %v1482, 4
        %vm1488 = vcmask 125954
        %1489 = vst.msk [vmem:[#allocation3 + $0x38] sm:$0xc] %vm1488, %v1480
        %1490 = vst.msk [vmem:[#allocation3 + $0x3c] sm:$0xf] %vm1297, %v1483
        %vm1491 = vcmask 122880
        %1492 = vst.msk [vmem:[#allocation3 + $0x40] sm:$0x1] %vm1491, %v1484
        %s1493 = scalar_lea.vmem [#allocation2], 224
        %v1494 = vld [vmem:[%s1493] ss:$2 sm:$0xff]
        %s1495 = scalar_lea.vmem [#allocation2], 240
        %v1496 = vld [vmem:[%s1495] ss:$2 sm:$0x3f]
        %s1497 = scalar_lea.vmem [#allocation2], 225
        %v1498 = vld [vmem:[%s1497] ss:$2 sm:$0xff]
        %s1499 = scalar_lea.vmem [#allocation2], 241
        %v1500 = vld [vmem:[%s1499] ss:$2 sm:$0x3f]
        %v1501 = vmax.f32 %v1494, %v1498
        %v1502 = vmax.f32 %v1496, %v1500
        %s1503 = scalar_lea.vmem [#allocation2], 252
        %v1504 = vld [vmem:[%s1503] ss:$2 sm:$0xff]
        %s1505 = scalar_lea.vmem [#allocation2], 268
        %v1506 = vld [vmem:[%s1505] ss:$2 sm:$0x3f]
        %v1507 = vmax.f32 %v1501, %v1504
        %v1508 = vmax.f32 %v1502, %v1506
        %s1509 = scalar_lea.vmem [#allocation2], 253
        %v1510 = vld [vmem:[%s1509] ss:$2 sm:$0xff]
        %s1511 = scalar_lea.vmem [#allocation2], 269
        %v1512 = vld [vmem:[%s1511] ss:$2 sm:$0x3f]
        %v1513 = vmax.f32 %v1507, %v1510
        %v1514 = vmax.f32 %v1508, %v1512
        %v1515 = vpack.c.bf16 %v1513, %v1513
        %v1516 = vpack.c.bf16 %v1514, %v1514
        %v1519 = vrot.slane %v1515, 5
        %v1520 = vrot.slane %v1519, 4
        %v1521 = vrot.slane %v1516, 5
        %v1522 = vsel %vm1373, %v1520, %v1521
        %v1523 = vrot.slane %v1521, 4
        %1527 = vst.msk [vmem:[#allocation3 + $0x40] sm:$0x8] %vm1382, %v1519
        %1528 = vst.msk [vmem:[#allocation3 + $0x44] sm:$0xf] %vm1297, %v1522
        %1529 = vst.msk [vmem:[#allocation3 + $0x48] sm:$0x3] %vm1344, %v1523
        %s1530 = scalar_lea.vmem [#allocation2], 280
        %v1531 = vld [vmem:[%s1530] ss:$2 sm:$0xff]
        %s1532 = scalar_lea.vmem [#allocation2], 296
        %v1533 = vld [vmem:[%s1532] ss:$2 sm:$0x3f]
        %s1534 = scalar_lea.vmem [#allocation2], 281
        %v1535 = vld [vmem:[%s1534] ss:$2 sm:$0xff]
        %s1536 = scalar_lea.vmem [#allocation2], 297
        %v1537 = vld [vmem:[%s1536] ss:$2 sm:$0x3f]
        %v1538 = vmax.f32 %v1531, %v1535
        %v1539 = vmax.f32 %v1533, %v1537
        %s1540 = scalar_lea.vmem [#allocation2], 308
        %v1541 = vld [vmem:[%s1540] ss:$2 sm:$0xff]
        %s1542 = scalar_lea.vmem [#allocation2], 324
        %v1543 = vld [vmem:[%s1542] ss:$2 sm:$0x3f]
        %v1544 = vmax.f32 %v1538, %v1541
        %v1545 = vmax.f32 %v1539, %v1543
        %s1546 = scalar_lea.vmem [#allocation2], 309
        %v1547 = vld [vmem:[%s1546] ss:$2 sm:$0xff]
        %s1548 = scalar_lea.vmem [#allocation2], 325
        %v1549 = vld [vmem:[%s1548] ss:$2 sm:$0x3f]
        %v1550 = vmax.f32 %v1544, %v1547
        %v1551 = vmax.f32 %v1545, %v1549
        %v1552 = vpack.c.bf16 %v1550, %v1550
        %v1553 = vpack.c.bf16 %v1551, %v1551
        %1554 = vst.msk [vmem:[#allocation3 + $0x4c] sm:$0xf] %vm1297, %v1552
        %1555 = vst.msk [vmem:[#allocation3 + $0x50] sm:$0x7] %vm1411, %v1553
        %s1556 = scalar_lea.vmem [#allocation2], 336
        %v1557 = vld [vmem:[%s1556] ss:$2 sm:$0xff]
        %s1558 = scalar_lea.vmem [#allocation2], 352
        %v1559 = vld [vmem:[%s1558] ss:$2 sm:$0x3f]
        %s1560 = scalar_lea.vmem [#allocation2], 337
        %v1561 = vld [vmem:[%s1560] ss:$2 sm:$0xff]
        %s1562 = scalar_lea.vmem [#allocation2], 353
        %v1563 = vld [vmem:[%s1562] ss:$2 sm:$0x3f]
        %v1564 = vmax.f32 %v1557, %v1561
        %v1565 = vmax.f32 %v1559, %v1563
        %s1566 = scalar_lea.vmem [#allocation2], 364
        %v1567 = vld [vmem:[%s1566] ss:$2 sm:$0xff]
        %s1568 = scalar_lea.vmem [#allocation2], 380
        %v1569 = vld [vmem:[%s1568] ss:$2 sm:$0x3f]
        %v1570 = vmax.f32 %v1564, %v1567
        %v1571 = vmax.f32 %v1565, %v1569
        %s1572 = scalar_lea.vmem [#allocation2], 365
        %v1573 = vld [vmem:[%s1572] ss:$2 sm:$0xff]
        %s1574 = scalar_lea.vmem [#allocation2], 381
        %v1575 = vld [vmem:[%s1574] ss:$2 sm:$0x3f]
        %v1576 = vmax.f32 %v1570, %v1573
        %v1577 = vmax.f32 %v1571, %v1575
        %v1578 = vpack.c.bf16 %v1576, %v1576
        %v1579 = vpack.c.bf16 %v1577, %v1577
        %v1582 = vrot.slane %v1578, 7
        %v1583 = vrot.slane %v1582, 4
        %v1584 = vrot.slane %v1579, 7
        %v1585 = vsel %vm1441, %v1583, %v1584
        %1588 = vst.msk [vmem:[#allocation3 + $0x54] sm:$0xe] %vm1448, %v1582
        %1589 = vst.msk [vmem:[#allocation3 + $0x58] sm:$0xf] %vm1297, %v1585
        %s1590 = scalar_lea.vmem [#allocation2], 392
        %v1591 = vld [vmem:[%s1590] ss:$2 sm:$0xff]
        %s1592 = scalar_lea.vmem [#allocation2], 408
        %v1593 = vld [vmem:[%s1592] ss:$2 sm:$0x3f]
        %s1594 = scalar_lea.vmem [#allocation2], 393
        %v1595 = vld [vmem:[%s1594] ss:$2 sm:$0xff]
        %s1596 = scalar_lea.vmem [#allocation2], 409
        %v1597 = vld [vmem:[%s1596] ss:$2 sm:$0x3f]
        %v1598 = vmax.f32 %v1591, %v1595
        %v1599 = vmax.f32 %v1593, %v1597
        %s1600 = scalar_lea.vmem [#allocation2], 420
        %v1601 = vld [vmem:[%s1600] ss:$2 sm:$0xff]
        %s1602 = scalar_lea.vmem [#allocation2], 436
        %v1603 = vld [vmem:[%s1602] ss:$2 sm:$0x3f]
        %v1604 = vmax.f32 %v1598, %v1601
        %v1605 = vmax.f32 %v1599, %v1603
        %s1606 = scalar_lea.vmem [#allocation2], 421
        %v1607 = vld [vmem:[%s1606] ss:$2 sm:$0xff]
        %s1608 = scalar_lea.vmem [#allocation2], 437
        %v1609 = vld [vmem:[%s1608] ss:$2 sm:$0x3f]
        %v1610 = vmax.f32 %v1604, %v1607
        %v1611 = vmax.f32 %v1605, %v1609
        %v1612 = vpack.c.bf16 %v1610, %v1610
        %v1613 = vpack.c.bf16 %v1611, %v1611
        %v1616 = vrot.slane %v1612, 6
        %v1617 = vrot.slane %v1616, 4
        %v1618 = vrot.slane %v1613, 6
        %v1619 = vsel %vm1479, %v1617, %v1618
        %v1620 = vrot.slane %v1618, 4
        %1624 = vst.msk [vmem:[#allocation3 + $0x5c] sm:$0xc] %vm1488, %v1616
        %1625 = vst.msk [vmem:[#allocation3 + $0x60] sm:$0xf] %vm1297, %v1619
        %1626 = vst.msk [vmem:[#allocation3 + $0x64] sm:$0x1] %vm1491, %v1620
        %s1627 = scalar_lea.vmem [#allocation2], 448
        %v1628 = vld [vmem:[%s1627] ss:$2 sm:$0xff]
        %s1629 = scalar_lea.vmem [#allocation2], 464
        %v1630 = vld [vmem:[%s1629] ss:$2 sm:$0x3f]
        %s1631 = scalar_lea.vmem [#allocation2], 449
        %v1632 = vld [vmem:[%s1631] ss:$2 sm:$0xff]
        %s1633 = scalar_lea.vmem [#allocation2], 465
        %v1634 = vld [vmem:[%s1633] ss:$2 sm:$0x3f]
        %v1635 = vmax.f32 %v1628, %v1632
        %v1636 = vmax.f32 %v1630, %v1634
        %s1637 = scalar_lea.vmem [#allocation2], 476
        %v1638 = vld [vmem:[%s1637] ss:$2 sm:$0xff]
        %s1639 = scalar_lea.vmem [#allocation2], 492
        %v1640 = vld [vmem:[%s1639] ss:$2 sm:$0x3f]
        %v1641 = vmax.f32 %v1635, %v1638
        %v1642 = vmax.f32 %v1636, %v1640
        %s1643 = scalar_lea.vmem [#allocation2], 477
        %v1644 = vld [vmem:[%s1643] ss:$2 sm:$0xff]
        %s1645 = scalar_lea.vmem [#allocation2], 493
        %v1646 = vld [vmem:[%s1645] ss:$2 sm:$0x3f]
        %v1647 = vmax.f32 %v1641, %v1644
        %v1648 = vmax.f32 %v1642, %v1646
        %v1649 = vpack.c.bf16 %v1647, %v1647
        %v1650 = vpack.c.bf16 %v1648, %v1648
        %v1653 = vrot.slane %v1649, 5
        %v1654 = vrot.slane %v1653, 4
        %v1655 = vrot.slane %v1650, 5
        %v1656 = vsel %vm1373, %v1654, %v1655
        %v1657 = vrot.slane %v1655, 4
        %1661 = vst.msk [vmem:[#allocation3 + $0x64] sm:$0x8] %vm1382, %v1653
        %1662 = vst.msk [vmem:[#allocation3 + $0x68] sm:$0xf] %vm1297, %v1656
        %1663 = vst.msk [vmem:[#allocation3 + $0x6c] sm:$0x3] %vm1344, %v1657
        %s1664 = scalar_lea.vmem [#allocation2], 504
        %v1665 = vld [vmem:[%s1664] ss:$2 sm:$0xff]
        %s1666 = scalar_lea.vmem [#allocation2], 520
        %v1667 = vld [vmem:[%s1666] ss:$2 sm:$0x3f]
        %s1668 = scalar_lea.vmem [#allocation2], 505
        %v1669 = vld [vmem:[%s1668] ss:$2 sm:$0xff]
        %s1670 = scalar_lea.vmem [#allocation2], 521
        %v1671 = vld [vmem:[%s1670] ss:$2 sm:$0x3f]
        %v1672 = vmax.f32 %v1665, %v1669
        %v1673 = vmax.f32 %v1667, %v1671
        %s1674 = scalar_lea.vmem [#allocation2], 532
        %v1675 = vld [vmem:[%s1674] ss:$2 sm:$0xff]
        %s1676 = scalar_lea.vmem [#allocation2], 548
        %v1677 = vld [vmem:[%s1676] ss:$2 sm:$0x3f]
        %v1678 = vmax.f32 %v1672, %v1675
        %v1679 = vmax.f32 %v1673, %v1677
        %s1680 = scalar_lea.vmem [#allocation2], 533
        %v1681 = vld [vmem:[%s1680] ss:$2 sm:$0xff]
        %s1682 = scalar_lea.vmem [#allocation2], 549
        %v1683 = vld [vmem:[%s1682] ss:$2 sm:$0x3f]
        %v1684 = vmax.f32 %v1678, %v1681
        %v1685 = vmax.f32 %v1679, %v1683
        %v1686 = vpack.c.bf16 %v1684, %v1684
        %v1687 = vpack.c.bf16 %v1685, %v1685
        %1688 = vst.msk [vmem:[#allocation3 + $0x70] sm:$0xf] %vm1297, %v1686
        %1689 = vst.msk [vmem:[#allocation3 + $0x74] sm:$0x7] %vm1411, %v1687
        %s1690 = scalar_lea.vmem [#allocation2], 560
        %v1691 = vld [vmem:[%s1690] ss:$2 sm:$0xff]
        %s1692 = scalar_lea.vmem [#allocation2], 576
        %v1693 = vld [vmem:[%s1692] ss:$2 sm:$0x3f]
        %s1694 = scalar_lea.vmem [#allocation2], 561
        %v1695 = vld [vmem:[%s1694] ss:$2 sm:$0xff]
        %s1696 = scalar_lea.vmem [#allocation2], 577
        %v1697 = vld [vmem:[%s1696] ss:$2 sm:$0x3f]
        %v1698 = vmax.f32 %v1691, %v1695
        %v1699 = vmax.f32 %v1693, %v1697
        %s1700 = scalar_lea.vmem [#allocation2], 588
        %v1701 = vld [vmem:[%s1700] ss:$2 sm:$0xff]
        %s1702 = scalar_lea.vmem [#allocation2], 604
        %v1703 = vld [vmem:[%s1702] ss:$2 sm:$0x3f]
        %v1704 = vmax.f32 %v1698, %v1701
        %v1705 = vmax.f32 %v1699, %v1703
        %s1706 = scalar_lea.vmem [#allocation2], 589
        %v1707 = vld [vmem:[%s1706] ss:$2 sm:$0xff]
        %s1708 = scalar_lea.vmem [#allocation2], 605
        %v1709 = vld [vmem:[%s1708] ss:$2 sm:$0x3f]
        %v1710 = vmax.f32 %v1704, %v1707
        %v1711 = vmax.f32 %v1705, %v1709
        %v1712 = vpack.c.bf16 %v1710, %v1710
        %v1713 = vpack.c.bf16 %v1711, %v1711
        %v1716 = vrot.slane %v1712, 7
        %v1717 = vrot.slane %v1716, 4
        %v1718 = vrot.slane %v1713, 7
        %v1719 = vsel %vm1441, %v1717, %v1718
        %1722 = vst.msk [vmem:[#allocation3 + $0x78] sm:$0xe] %vm1448, %v1716
        %1723 = vst.msk [vmem:[#allocation3 + $0x7c] sm:$0xf] %vm1297, %v1719
        %s1724 = scalar_lea.vmem [#allocation2], 616
        %v1725 = vld [vmem:[%s1724] ss:$2 sm:$0xff]
        %s1726 = scalar_lea.vmem [#allocation2], 632
        %v1727 = vld [vmem:[%s1726] ss:$2 sm:$0x3f]
        %s1728 = scalar_lea.vmem [#allocation2], 617
        %v1729 = vld [vmem:[%s1728] ss:$2 sm:$0xff]
        %s1730 = scalar_lea.vmem [#allocation2], 633
        %v1731 = vld [vmem:[%s1730] ss:$2 sm:$0x3f]
        %v1732 = vmax.f32 %v1725, %v1729
        %v1733 = vmax.f32 %v1727, %v1731
        %s1734 = scalar_lea.vmem [#allocation2], 644
        %v1735 = vld [vmem:[%s1734] ss:$2 sm:$0xff]
        %s1736 = scalar_lea.vmem [#allocation2], 660
        %v1737 = vld [vmem:[%s1736] ss:$2 sm:$0x3f]
        %v1738 = vmax.f32 %v1732, %v1735
        %v1739 = vmax.f32 %v1733, %v1737
        %s1740 = scalar_lea.vmem [#allocation2], 645
        %v1741 = vld [vmem:[%s1740] ss:$2 sm:$0xff]
        %s1742 = scalar_lea.vmem [#allocation2], 661
        %v1743 = vld [vmem:[%s1742] ss:$2 sm:$0x3f]
        %v1744 = vmax.f32 %v1738, %v1741
        %v1745 = vmax.f32 %v1739, %v1743
        %v1746 = vpack.c.bf16 %v1744, %v1744
        %v1747 = vpack.c.bf16 %v1745, %v1745
        %v1750 = vrot.slane %v1746, 6
        %v1751 = vrot.slane %v1750, 4
        %v1752 = vrot.slane %v1747, 6
        %v1753 = vsel %vm1479, %v1751, %v1752
        %v1754 = vrot.slane %v1752, 4
        %1758 = vst.msk [vmem:[#allocation3 + $0x80] sm:$0xc] %vm1488, %v1750
        %1759 = vst.msk [vmem:[#allocation3 + $0x84] sm:$0xf] %vm1297, %v1753
        %1760 = vst.msk [vmem:[#allocation3 + $0x88] sm:$0x1] %vm1491, %v1754
        %s1761 = scalar_lea.vmem [#allocation2], 672
        %v1762 = vld [vmem:[%s1761] ss:$2 sm:$0xff]
        %s1763 = scalar_lea.vmem [#allocation2], 688
        %v1764 = vld [vmem:[%s1763] ss:$2 sm:$0x3f]
        %s1765 = scalar_lea.vmem [#allocation2], 673
        %v1766 = vld [vmem:[%s1765] ss:$2 sm:$0xff]
        %s1767 = scalar_lea.vmem [#allocation2], 689
        %v1768 = vld [vmem:[%s1767] ss:$2 sm:$0x3f]
        %v1769 = vmax.f32 %v1762, %v1766
        %v1770 = vmax.f32 %v1764, %v1768
        %s1771 = scalar_lea.vmem [#allocation2], 700
        %v1772 = vld [vmem:[%s1771] ss:$2 sm:$0xff]
        %s1773 = scalar_lea.vmem [#allocation2], 716
        %v1774 = vld [vmem:[%s1773] ss:$2 sm:$0x3f]
        %v1775 = vmax.f32 %v1769, %v1772
        %v1776 = vmax.f32 %v1770, %v1774
        %s1777 = scalar_lea.vmem [#allocation2], 701
        %v1778 = vld [vmem:[%s1777] ss:$2 sm:$0xff]
        %s1779 = scalar_lea.vmem [#allocation2], 717
        %v1780 = vld [vmem:[%s1779] ss:$2 sm:$0x3f]
        %v1781 = vmax.f32 %v1775, %v1778
        %v1782 = vmax.f32 %v1776, %v1780
        %v1783 = vpack.c.bf16 %v1781, %v1781
        %v1784 = vpack.c.bf16 %v1782, %v1782
        %v1787 = vrot.slane %v1783, 5
        %v1788 = vrot.slane %v1787, 4
        %v1789 = vrot.slane %v1784, 5
        %v1790 = vsel %vm1373, %v1788, %v1789
        %v1791 = vrot.slane %v1789, 4
        %1795 = vst.msk [vmem:[#allocation3 + $0x88] sm:$0x8] %vm1382, %v1787
        %1796 = vst.msk [vmem:[#allocation3 + $0x8c] sm:$0xf] %vm1297, %v1790
        %1797 = vst.msk [vmem:[#allocation3 + $0x90] sm:$0x3] %vm1344, %v1791
        %s1798 = scalar_lea.vmem [#allocation2], 728
        %v1799 = vld [vmem:[%s1798] ss:$2 sm:$0xff]
        %s1800 = scalar_lea.vmem [#allocation2], 744
        %v1801 = vld [vmem:[%s1800] ss:$2 sm:$0x3f]
        %s1802 = scalar_lea.vmem [#allocation2], 729
        %v1803 = vld [vmem:[%s1802] ss:$2 sm:$0xff]
        %s1804 = scalar_lea.vmem [#allocation2], 745
        %v1805 = vld [vmem:[%s1804] ss:$2 sm:$0x3f]
        %v1806 = vmax.f32 %v1799, %v1803
        %v1807 = vmax.f32 %v1801, %v1805
        %s1808 = scalar_lea.vmem [#allocation2], 756
        %v1809 = vld [vmem:[%s1808] ss:$2 sm:$0xff]
        %s1810 = scalar_lea.vmem [#allocation2], 772
        %v1811 = vld [vmem:[%s1810] ss:$2 sm:$0x3f]
        %v1812 = vmax.f32 %v1806, %v1809
        %v1813 = vmax.f32 %v1807, %v1811
        %s1814 = scalar_lea.vmem [#allocation2], 757
        %v1815 = vld [vmem:[%s1814] ss:$2 sm:$0xff]
        %s1816 = scalar_lea.vmem [#allocation2], 773
        %v1817 = vld [vmem:[%s1816] ss:$2 sm:$0x3f]
        %v1818 = vmax.f32 %v1812, %v1815
        %v1819 = vmax.f32 %v1813, %v1817
        %v1820 = vpack.c.bf16 %v1818, %v1818
        %v1821 = vpack.c.bf16 %v1819, %v1819
        %1822 = vst.msk [vmem:[#allocation3 + $0x94] sm:$0xf] %vm1297, %v1820
        %1823 = vst.msk [vmem:[#allocation3 + $0x98] sm:$0x7] %vm1411, %v1821
        %v1824 = vld [vmem:[#allocation3] sm:$0xc]
        %v1825 = vld [vmem:[#allocation3 + $0x4] sm:$0xf]
        %v1826 = vld [vmem:[#allocation3 + $0x8] sm:$0xf]
        %v1827 = vld [vmem:[#allocation3 + $0xc] sm:$0xf]
        %v1828 = vld [vmem:[#allocation3 + $0x10] sm:$0xf]
        %v1829 = vld [vmem:[#allocation3 + $0x14] sm:$0xf]
        %v1830 = vld [vmem:[#allocation3 + $0x18] sm:$0xf]
        %v1831 = vld [vmem:[#allocation3 + $0x1c] sm:$0xf]
        %v1832 = vld [vmem:[#allocation3 + $0x20] sm:$0xf]
        %v1833 = vld [vmem:[#allocation3 + $0x24] sm:$0xf]
        %v1834 = vld [vmem:[#allocation3 + $0x28] sm:$0xf]
        %v1835 = vld [vmem:[#allocation3 + $0x2c] sm:$0xf]
        %v1836 = vld [vmem:[#allocation3 + $0x30] sm:$0xf]
        %v1837 = vld [vmem:[#allocation3 + $0x34] sm:$0xf]
        %v1838 = vld [vmem:[#allocation3 + $0x38] sm:$0xf]
        %v1839 = vld [vmem:[#allocation3 + $0x3c] sm:$0xf]
        %v1840 = vld [vmem:[#allocation3 + $0x40] sm:$0x7]
        %v1841 = vld [vmem:[%s2] sm:$0xf]
        %v1842 = vld [vmem:[%s2 + $0x4] sm:$0xf]
        %v1843 = vld [vmem:[#allocation3] sm:$0x8]
        %s1844 = scalar_lea.vmem %s2, 8
        %v1845 = vld [vmem:[%s1844] sm:$0xf]
        %v1846 = vld [vmem:[%s1844 + $0x4] sm:$0xf]
        %v1864 = vunpack.c.l.b16 %v1843
        %v1865 = vunpack.c.l.b16 %v1825
        %v1866 = vunpack.c.l.b16 %v1826
        %v1867 = vunpack.c.l.b16 %v1827
        %v1868 = vunpack.c.l.b16 %v1828
        %v1869 = vunpack.c.l.b16 %v1829
        %v1870 = vunpack.c.l.b16 %v1830
        %v1871 = vunpack.c.l.b16 %v1831
        %v1872 = vunpack.c.l.b16 %v1832
        %v1873 = vunpack.c.l.b16 %v1833
        %v1874 = vunpack.c.l.b16 %v1834
        %v1875 = vunpack.c.l.b16 %v1835
        %v1876 = vunpack.c.l.b16 %v1836
        %v1877 = vunpack.c.l.b16 %v1837
        %v1878 = vunpack.c.l.b16 %v1838
        %v1879 = vunpack.c.l.b16 %v1839
        %v1880 = vunpack.c.l.b16 %v1840
        %v1881 = vpack.c.b16 %v1865, %v1864
        %v1882 = vpack.c.b16 %v1867, %v1866
        %v1883 = vpack.c.b16 %v1869, %v1868
        %v1884 = vpack.c.b16 %v1871, %v1870
        %v1885 = vpack.c.b16 %v1873, %v1872
        %v1886 = vpack.c.b16 %v1875, %v1874
        %v1887 = vpack.c.b16 %v1877, %v1876
        %v1888 = vpack.c.b16 %v1879, %v1878
        %v1889 = vpack.c.b16 %v1880, %v1880
        %vm1890 = vcmask 1044480
        %v1891 = vrot.slane %v1881, 3
        %v1892 = vrot.slane %v1882, 3
        %v1893 = vsel %vm1890, %v1891, %v1892
        %v1894 = vrot.slane %v1883, 3
        %v1895 = vsel %vm1890, %v1892, %v1894
        %v1896 = vrot.slane %v1884, 3
        %v1897 = vsel %vm1890, %v1894, %v1896
        %v1898 = vrot.slane %v1885, 3
        %v1899 = vsel %vm1890, %v1896, %v1898
        %v1900 = vrot.slane %v1886, 3
        %v1901 = vsel %vm1890, %v1898, %v1900
        %v1902 = vrot.slane %v1887, 3
        %v1903 = vsel %vm1890, %v1900, %v1902
        %v1904 = vrot.slane %v1888, 3
        %v1905 = vsel %vm1890, %v1902, %v1904
        %v1906 = vrot.slane %v1889, 3
        %v1907 = vsel %vm1890, %v1904, %v1906
        %v1910 = vunpack.c.l.b16 %v1845
        %v1911 = vunpack.c.l.b16 %v1846
        %v1912 = vpack.c.b16 %v1911, %v1910
        %v1915 = vsel %vm447, %v1893, 0
        %v1918 = vsel %vm447, %v1895, 0
        %v1921 = vsel %vm447, %v1897, 0
        %v1924 = vsel %vm447, %v1899, 0
        %v1927 = vsel %vm447, %v1901, 0
        %v1930 = vsel %vm447, %v1903, 0
        %v1933 = vsel %vm447, %v1905, 0
        %v1936 = vsel %vm447, %v1907, 0
        %1938 = vmatpush.bf16.msra.mxu0 0
        %1939 = vmatpush.bf16.msra.mxu0 0
        %1940 = vmatpush.bf16.msra.mxu0 0
        %1941 = vmatpush.bf16.msra.mxu0 0
        %1942 = vmatpush.bf16.msra.mxu0 0
        %1943 = vmatpush.bf16.msra.mxu0 0
        %1944 = vmatpush.bf16.msra.mxu0 0
        %1945 = vmatpush.bf16.msra.mxu0 %v1912
        %1946 = vmatmul.bf16.gmra.mxu0 %v1915
        %v1947 = vpop.f32.mrf.mxu0
        %v1948 = vadd.f32 0.0, %v1947
        %v1949 = vpop.f32.mrf.mxu0
        %v1950 = vadd.f32 0.0, %v1949
        %1951 = vmatmul.bf16.gmra.mxu0 %v1918
        %v1952 = vpop.f32.mrf.mxu0
        %v1953 = vadd.f32 0.0, %v1952
        %v1954 = vpop.f32.mrf.mxu0
        %v1955 = vadd.f32 0.0, %v1954
        %1956 = vmatmul.bf16.gmra.mxu0 %v1921
        %v1957 = vpop.f32.mrf.mxu0
        %v1958 = vadd.f32 0.0, %v1957
        %v1959 = vpop.f32.mrf.mxu0
        %v1960 = vadd.f32 0.0, %v1959
        %1961 = vmatmul.bf16.gmra.mxu0 %v1924
        %v1962 = vpop.f32.mrf.mxu0
        %v1963 = vadd.f32 0.0, %v1962
        %v1964 = vpop.f32.mrf.mxu0
        %v1965 = vadd.f32 0.0, %v1964
        %1966 = vmatmul.bf16.gmra.mxu0 %v1927
        %v1967 = vpop.f32.mrf.mxu0
        %v1968 = vadd.f32 0.0, %v1967
        %v1969 = vpop.f32.mrf.mxu0
        %v1970 = vadd.f32 0.0, %v1969
        %1971 = vmatmul.bf16.gmra.mxu0 %v1930
        %v1972 = vpop.f32.mrf.mxu0
        %v1973 = vadd.f32 0.0, %v1972
        %v1974 = vpop.f32.mrf.mxu0
        %v1975 = vadd.f32 0.0, %v1974
        %1976 = vmatmul.bf16.gmra.mxu0 %v1933
        %v1977 = vpop.f32.mrf.mxu0
        %v1978 = vadd.f32 0.0, %v1977
        %v1979 = vpop.f32.mrf.mxu0
        %v1980 = vadd.f32 0.0, %v1979
        %1981 = vmatmul.bf16.gmra.mxu0 %v1936
        %v1982 = vpop.f32.mrf.mxu0
        %v1983 = vadd.f32 0.0, %v1982
        %v1984 = vpop.f32.mrf.mxu0
        %v1985 = vadd.f32 0.0, %v1984
        %1986 = vdwg.mxu0
        %v1988 = vunpack.c.l.b16 %v1824
        %v1989 = vpack.c.b16 %v1865, %v1988
        %vm1990 = vsmask.f32 5376
        %v1992 = vshrl.u32 %v1989, 16
        %v1994 = vrot.slane %v1992, 2
        %v1995 = vshll.u32 %v1989, 16
        %v1997 = vrot.slane %v1995, 3
        %v1998 = vor.u32 %v1994, %v1997
        %v2000 = vshrl.u32 %v1882, 16
        %v2002 = vrot.slane %v2000, 2
        %v2003 = vshll.u32 %v1882, 16
        %v2005 = vrot.slane %v2003, 3
        %v2006 = vor.u32 %v2002, %v2005
        %v2007 = vsel %vm1990, %v1998, %v2006
        %v2009 = vshrl.u32 %v1883, 16
        %v2011 = vrot.slane %v2009, 2
        %v2012 = vshll.u32 %v1883, 16
        %v2014 = vrot.slane %v2012, 3
        %v2015 = vor.u32 %v2011, %v2014
        %v2016 = vsel %vm1990, %v2006, %v2015
        %v2018 = vshrl.u32 %v1884, 16
        %v2020 = vrot.slane %v2018, 2
        %v2021 = vshll.u32 %v1884, 16
        %v2023 = vrot.slane %v2021, 3
        %v2024 = vor.u32 %v2020, %v2023
        %v2025 = vsel %vm1990, %v2015, %v2024
        %v2027 = vshrl.u32 %v1885, 16
        %v2029 = vrot.slane %v2027, 2
        %v2030 = vshll.u32 %v1885, 16
        %v2032 = vrot.slane %v2030, 3
        %v2033 = vor.u32 %v2029, %v2032
        %v2034 = vsel %vm1990, %v2024, %v2033
        %v2036 = vshrl.u32 %v1886, 16
        %v2038 = vrot.slane %v2036, 2
        %v2039 = vshll.u32 %v1886, 16
        %v2041 = vrot.slane %v2039, 3
        %v2042 = vor.u32 %v2038, %v2041
        %v2043 = vsel %vm1990, %v2033, %v2042
        %v2045 = vshrl.u32 %v1887, 16
        %v2047 = vrot.slane %v2045, 2
        %v2048 = vshll.u32 %v1887, 16
        %v2050 = vrot.slane %v2048, 3
        %v2051 = vor.u32 %v2047, %v2050
        %v2052 = vsel %vm1990, %v2042, %v2051
        %v2054 = vshrl.u32 %v1888, 16
        %v2056 = vrot.slane %v2054, 2
        %v2057 = vshll.u32 %v1888, 16
        %v2059 = vrot.slane %v2057, 3
        %v2060 = vor.u32 %v2056, %v2059
        %v2061 = vsel %vm1990, %v2051, %v2060
        %v2063 = vshrl.u32 %v1889, 16
        %v2065 = vrot.slane %v2063, 2
        %v2066 = vshll.u32 %v1889, 16
        %v2068 = vrot.slane %v2066, 3
        %v2069 = vor.u32 %v2065, %v2068
        %v2070 = vsel %vm1990, %v2060, %v2069
        %v2073 = vunpack.c.l.b16 %v1841
        %v2074 = vunpack.c.l.b16 %v1842
        %v2075 = vpack.c.b16 %v2074, %v2073
        %v2078 = vsel %vm447, %v2007, 0
        %v2081 = vsel %vm447, %v2016, 0
        %v2084 = vsel %vm447, %v2025, 0
        %v2087 = vsel %vm447, %v2034, 0
        %v2090 = vsel %vm447, %v2043, 0
        %v2093 = vsel %vm447, %v2052, 0
        %v2096 = vsel %vm447, %v2061, 0
        %v2099 = vsel %vm447, %v2070, 0
        %2101 = vmatpush.bf16.msra.mxu0 0
        %2102 = vmatpush.bf16.msra.mxu0 0
        %2103 = vmatpush.bf16.msra.mxu0 0
        %2104 = vmatpush.bf16.msra.mxu0 0
        %2105 = vmatpush.bf16.msra.mxu0 0
        %2106 = vmatpush.bf16.msra.mxu0 0
        %2107 = vmatpush.bf16.msra.mxu0 0
        %2108 = vmatpush.bf16.msra.mxu0 %v2075
        %2109 = vmatmul.bf16.gmra.mxu0 %v2078
        %v2110 = vpop.f32.mrf.mxu0
        %v2111 = vadd.f32 %v1948, %v2110
        %v2112 = vpop.f32.mrf.mxu0
        %v2113 = vadd.f32 %v1950, %v2112
        %2114 = vmatmul.bf16.gmra.mxu0 %v2081
        %v2115 = vpop.f32.mrf.mxu0
        %v2116 = vadd.f32 %v1953, %v2115
        %v2117 = vpop.f32.mrf.mxu0
        %v2118 = vadd.f32 %v1955, %v2117
        %2119 = vmatmul.bf16.gmra.mxu0 %v2084
        %v2120 = vpop.f32.mrf.mxu0
        %v2121 = vadd.f32 %v1958, %v2120
        %v2122 = vpop.f32.mrf.mxu0
        %v2123 = vadd.f32 %v1960, %v2122
        %2124 = vmatmul.bf16.gmra.mxu0 %v2087
        %v2125 = vpop.f32.mrf.mxu0
        %v2126 = vadd.f32 %v1963, %v2125
        %v2127 = vpop.f32.mrf.mxu0
        %v2128 = vadd.f32 %v1965, %v2127
        %2129 = vmatmul.bf16.gmra.mxu0 %v2090
        %v2130 = vpop.f32.mrf.mxu0
        %v2131 = vadd.f32 %v1968, %v2130
        %v2132 = vpop.f32.mrf.mxu0
        %v2133 = vadd.f32 %v1970, %v2132
        %2134 = vmatmul.bf16.gmra.mxu0 %v2093
        %v2135 = vpop.f32.mrf.mxu0
        %v2136 = vadd.f32 %v1973, %v2135
        %v2137 = vpop.f32.mrf.mxu0
        %v2138 = vadd.f32 %v1975, %v2137
        %2139 = vmatmul.bf16.gmra.mxu0 %v2096
        %v2140 = vpop.f32.mrf.mxu0
        %v2141 = vadd.f32 %v1978, %v2140
        %v2142 = vpop.f32.mrf.mxu0
        %v2143 = vadd.f32 %v1980, %v2142
        %2144 = vmatmul.bf16.gmra.mxu0 %v2099
        %v2145 = vpop.f32.mrf.mxu0
        %v2146 = vadd.f32 %v1983, %v2145
        %v2147 = vpop.f32.mrf.mxu0
        %v2148 = vadd.f32 %v1985, %v2147
        %2149 = vdwg.mxu0
        %v2150 = vld [vmem:[#allocation3 + $0x40] sm:$0xf]
        %s2151 = scalar_lea.vmem %s2, 16
        %v2152 = vld [vmem:[%s2151] sm:$0xf]
        %v2153 = vld [vmem:[%s2151 + $0x4] sm:$0xf]
        %v2155 = vunpack.c.l.b16 %v2150
        %v2156 = vpack.c.b16 %v2155, %v2155
        %vm2157 = vsmask.f32 4352
        %v2159 = vshrl.u32 %v1881, 16
        %v2161 = vrot.slane %v2159, 3
        %v2162 = vshll.u32 %v1881, 16
        %v2164 = vrot.slane %v2162, 4
        %v2165 = vor.u32 %v2161, %v2164
        %v2166 = vrot.slane %v2000, 3
        %v2167 = vrot.slane %v2003, 4
        %v2168 = vor.u32 %v2166, %v2167
        %v2169 = vsel %vm2157, %v2165, %v2168
        %v2170 = vrot.slane %v2009, 3
        %v2171 = vrot.slane %v2012, 4
        %v2172 = vor.u32 %v2170, %v2171
        %v2173 = vsel %vm2157, %v2168, %v2172
        %v2174 = vrot.slane %v2018, 3
        %v2175 = vrot.slane %v2021, 4
        %v2176 = vor.u32 %v2174, %v2175
        %v2177 = vsel %vm2157, %v2172, %v2176
        %v2178 = vrot.slane %v2027, 3
        %v2179 = vrot.slane %v2030, 4
        %v2180 = vor.u32 %v2178, %v2179
        %v2181 = vsel %vm2157, %v2176, %v2180
        %v2182 = vrot.slane %v2036, 3
        %v2183 = vrot.slane %v2039, 4
        %v2184 = vor.u32 %v2182, %v2183
        %v2185 = vsel %vm2157, %v2180, %v2184
        %v2186 = vrot.slane %v2045, 3
        %v2187 = vrot.slane %v2048, 4
        %v2188 = vor.u32 %v2186, %v2187
        %v2189 = vsel %vm2157, %v2184, %v2188
        %v2190 = vrot.slane %v2054, 3
        %v2191 = vrot.slane %v2057, 4
        %v2192 = vor.u32 %v2190, %v2191
        %v2193 = vsel %vm2157, %v2188, %v2192
        %v2195 = vshrl.u32 %v2156, 16
        %v2197 = vrot.slane %v2195, 3
        %v2198 = vshll.u32 %v2156, 16
        %v2200 = vrot.slane %v2198, 4
        %v2201 = vor.u32 %v2197, %v2200
        %v2202 = vsel %vm2157, %v2192, %v2201
        %v2205 = vunpack.c.l.b16 %v2152
        %v2206 = vunpack.c.l.b16 %v2153
        %v2207 = vpack.c.b16 %v2206, %v2205
        %v2210 = vsel %vm447, %v2169, 0
        %v2213 = vsel %vm447, %v2173, 0
        %v2216 = vsel %vm447, %v2177, 0
        %v2219 = vsel %vm447, %v2181, 0
        %v2222 = vsel %vm447, %v2185, 0
        %v2225 = vsel %vm447, %v2189, 0
        %v2228 = vsel %vm447, %v2193, 0
        %v2231 = vsel %vm447, %v2202, 0
        %2233 = vmatpush.bf16.msra.mxu0 0
        %2234 = vmatpush.bf16.msra.mxu0 0
        %2235 = vmatpush.bf16.msra.mxu0 0
        %2236 = vmatpush.bf16.msra.mxu0 0
        %2237 = vmatpush.bf16.msra.mxu0 0
        %2238 = vmatpush.bf16.msra.mxu0 0
        %2239 = vmatpush.bf16.msra.mxu0 0
        %2240 = vmatpush.bf16.msra.mxu0 %v2207
        %2241 = vmatmul.bf16.gmra.mxu0 %v2210
        %v2242 = vpop.f32.mrf.mxu0
        %v2243 = vadd.f32 0.0, %v2242
        %v2244 = vpop.f32.mrf.mxu0
        %v2245 = vadd.f32 0.0, %v2244
        %2246 = vmatmul.bf16.gmra.mxu0 %v2213
        %v2247 = vpop.f32.mrf.mxu0
        %v2248 = vadd.f32 0.0, %v2247
        %v2249 = vpop.f32.mrf.mxu0
        %v2250 = vadd.f32 0.0, %v2249
        %2251 = vmatmul.bf16.gmra.mxu0 %v2216
        %v2252 = vpop.f32.mrf.mxu0
        %v2253 = vadd.f32 0.0, %v2252
        %v2254 = vpop.f32.mrf.mxu0
        %v2255 = vadd.f32 0.0, %v2254
        %2256 = vmatmul.bf16.gmra.mxu0 %v2219
        %v2257 = vpop.f32.mrf.mxu0
        %v2258 = vadd.f32 0.0, %v2257
        %v2259 = vpop.f32.mrf.mxu0
        %v2260 = vadd.f32 0.0, %v2259
        %2261 = vmatmul.bf16.gmra.mxu0 %v2222
        %v2262 = vpop.f32.mrf.mxu0
        %v2263 = vadd.f32 0.0, %v2262
        %v2264 = vpop.f32.mrf.mxu0
        %v2265 = vadd.f32 0.0, %v2264
        %2266 = vmatmul.bf16.gmra.mxu0 %v2225
        %v2267 = vpop.f32.mrf.mxu0
        %v2268 = vadd.f32 0.0, %v2267
        %v2269 = vpop.f32.mrf.mxu0
        %v2270 = vadd.f32 0.0, %v2269
        %2271 = vmatmul.bf16.gmra.mxu0 %v2228
        %v2272 = vpop.f32.mrf.mxu0
        %v2273 = vadd.f32 0.0, %v2272
        %v2274 = vpop.f32.mrf.mxu0
        %v2275 = vadd.f32 0.0, %v2274
        %2276 = vmatmul.bf16.gmra.mxu0 %v2231
        %v2277 = vpop.f32.mrf.mxu0
        %v2278 = vadd.f32 0.0, %v2277
        %v2279 = vpop.f32.mrf.mxu0
        %v2280 = vadd.f32 0.0, %v2279
        %2281 = vdwg.mxu0
        %v2282 = vadd.f32 %v2111, %v2243
        %v2283 = vadd.f32 %v2113, %v2245
        %v2284 = vadd.f32 %v2116, %v2248
        %v2285 = vadd.f32 %v2118, %v2250
        %v2286 = vadd.f32 %v2121, %v2253
        %v2287 = vadd.f32 %v2123, %v2255
        %v2288 = vadd.f32 %v2126, %v2258
        %v2289 = vadd.f32 %v2128, %v2260
        %v2290 = vadd.f32 %v2131, %v2263
        %v2291 = vadd.f32 %v2133, %v2265
        %v2292 = vadd.f32 %v2136, %v2268
        %v2293 = vadd.f32 %v2138, %v2270
        %v2294 = vadd.f32 %v2141, %v2273
        %v2295 = vadd.f32 %v2143, %v2275
        %v2296 = vadd.f32 %v2146, %v2278
        %v2297 = vadd.f32 %v2148, %v2280
        %v2298 = vld [vmem:[#allocation3 + $0x8] sm:$0x8]
        %v2299 = vld [vmem:[#allocation3 + $0xc] sm:$0xf]
        %v2300 = vld [vmem:[#allocation3 + $0x10] sm:$0xf]
        %v2301 = vld [vmem:[#allocation3 + $0x14] sm:$0xf]
        %v2302 = vld [vmem:[#allocation3 + $0x18] sm:$0xf]
        %v2303 = vld [vmem:[#allocation3 + $0x1c] sm:$0xf]
        %v2304 = vld [vmem:[#allocation3 + $0x20] sm:$0xf]
        %v2305 = vld [vmem:[#allocation3 + $0x24] sm:$0xf]
        %v2306 = vld [vmem:[#allocation3 + $0x28] sm:$0xf]
        %v2307 = vld [vmem:[#allocation3 + $0x2c] sm:$0xf]
        %v2308 = vld [vmem:[#allocation3 + $0x30] sm:$0xf]
        %v2309 = vld [vmem:[#allocation3 + $0x34] sm:$0xf]
        %v2310 = vld [vmem:[#allocation3 + $0x38] sm:$0xf]
        %v2311 = vld [vmem:[#allocation3 + $0x3c] sm:$0xf]
        %v2312 = vld [vmem:[#allocation3 + $0x40] sm:$0xf]
        %v2313 = vld [vmem:[#allocation3 + $0x44] sm:$0xf]
        %v2314 = vld [vmem:[#allocation3 + $0x48] sm:$0xf]
        %s2315 = scalar_lea.vmem %s2, 24
        %v2316 = vld [vmem:[%s2315] sm:$0xf]
        %v2317 = vld [vmem:[%s2315 + $0x4] sm:$0xf]
        %v2335 = vunpack.c.l.b16 %v2298
        %v2336 = vunpack.c.l.b16 %v2299
        %v2337 = vunpack.c.l.b16 %v2300
        %v2338 = vunpack.c.l.b16 %v2301
        %v2339 = vunpack.c.l.b16 %v2302
        %v2340 = vunpack.c.l.b16 %v2303
        %v2341 = vunpack.c.l.b16 %v2304
        %v2342 = vunpack.c.l.b16 %v2305
        %v2343 = vunpack.c.l.b16 %v2306
        %v2344 = vunpack.c.l.b16 %v2307
        %v2345 = vunpack.c.l.b16 %v2308
        %v2346 = vunpack.c.l.b16 %v2309
        %v2347 = vunpack.c.l.b16 %v2310
        %v2348 = vunpack.c.l.b16 %v2311
        %v2349 = vunpack.c.l.b16 %v2312
        %v2350 = vunpack.c.l.b16 %v2313
        %v2351 = vunpack.c.l.b16 %v2314
        %v2352 = vpack.c.b16 %v2336, %v2335
        %v2353 = vpack.c.b16 %v2338, %v2337
        %v2354 = vpack.c.b16 %v2340, %v2339
        %v2355 = vpack.c.b16 %v2342, %v2341
        %v2356 = vpack.c.b16 %v2344, %v2343
        %v2357 = vpack.c.b16 %v2346, %v2345
        %v2358 = vpack.c.b16 %v2348, %v2347
        %v2359 = vpack.c.b16 %v2350, %v2349
        %v2360 = vpack.c.b16 %v2351, %v2351
        %v2362 = vshrl.u32 %v2352, 16
        %v2364 = vrot.slane %v2362, 3
        %v2365 = vshll.u32 %v2352, 16
        %v2367 = vrot.slane %v2365, 4
        %v2368 = vor.u32 %v2364, %v2367
        %v2370 = vshrl.u32 %v2353, 16
        %v2372 = vrot.slane %v2370, 3
        %v2373 = vshll.u32 %v2353, 16
        %v2375 = vrot.slane %v2373, 4
        %v2376 = vor.u32 %v2372, %v2375
        %v2377 = vsel %vm2157, %v2368, %v2376
        %v2379 = vshrl.u32 %v2354, 16
        %v2381 = vrot.slane %v2379, 3
        %v2382 = vshll.u32 %v2354, 16
        %v2384 = vrot.slane %v2382, 4
        %v2385 = vor.u32 %v2381, %v2384
        %v2386 = vsel %vm2157, %v2376, %v2385
        %v2388 = vshrl.u32 %v2355, 16
        %v2390 = vrot.slane %v2388, 3
        %v2391 = vshll.u32 %v2355, 16
        %v2393 = vrot.slane %v2391, 4
        %v2394 = vor.u32 %v2390, %v2393
        %v2395 = vsel %vm2157, %v2385, %v2394
        %v2397 = vshrl.u32 %v2356, 16
        %v2399 = vrot.slane %v2397, 3
        %v2400 = vshll.u32 %v2356, 16
        %v2402 = vrot.slane %v2400, 4
        %v2403 = vor.u32 %v2399, %v2402
        %v2404 = vsel %vm2157, %v2394, %v2403
        %v2406 = vshrl.u32 %v2357, 16
        %v2408 = vrot.slane %v2406, 3
        %v2409 = vshll.u32 %v2357, 16
        %v2411 = vrot.slane %v2409, 4
        %v2412 = vor.u32 %v2408, %v2411
        %v2413 = vsel %vm2157, %v2403, %v2412
        %v2415 = vshrl.u32 %v2358, 16
        %v2417 = vrot.slane %v2415, 3
        %v2418 = vshll.u32 %v2358, 16
        %v2420 = vrot.slane %v2418, 4
        %v2421 = vor.u32 %v2417, %v2420
        %v2422 = vsel %vm2157, %v2412, %v2421
        %v2424 = vshrl.u32 %v2359, 16
        %v2426 = vrot.slane %v2424, 3
        %v2427 = vshll.u32 %v2359, 16
        %v2429 = vrot.slane %v2427, 4
        %v2430 = vor.u32 %v2426, %v2429
        %v2431 = vsel %vm2157, %v2421, %v2430
        %v2433 = vshrl.u32 %v2360, 16
        %v2435 = vrot.slane %v2433, 3
        %v2436 = vshll.u32 %v2360, 16
        %v2438 = vrot.slane %v2436, 4
        %v2439 = vor.u32 %v2435, %v2438
        %v2440 = vsel %vm2157, %v2430, %v2439
        %v2443 = vunpack.c.l.b16 %v2316
        %v2444 = vunpack.c.l.b16 %v2317
        %v2445 = vpack.c.b16 %v2444, %v2443
        %v2448 = vsel %vm447, %v2377, 0
        %v2451 = vsel %vm447, %v2386, 0
        %v2454 = vsel %vm447, %v2395, 0
        %v2457 = vsel %vm447, %v2404, 0
        %v2460 = vsel %vm447, %v2413, 0
        %v2463 = vsel %vm447, %v2422, 0
        %v2466 = vsel %vm447, %v2431, 0
        %v2469 = vsel %vm447, %v2440, 0
        %2471 = vmatpush.bf16.msra.mxu0 0
        %2472 = vmatpush.bf16.msra.mxu0 0
        %2473 = vmatpush.bf16.msra.mxu0 0
        %2474 = vmatpush.bf16.msra.mxu0 0
        %2475 = vmatpush.bf16.msra.mxu0 0
        %2476 = vmatpush.bf16.msra.mxu0 0
        %2477 = vmatpush.bf16.msra.mxu0 0
        %2478 = vmatpush.bf16.msra.mxu0 %v2445
        %2479 = vmatmul.bf16.gmra.mxu0 %v2448
        %v2480 = vpop.f32.mrf.mxu0
        %v2481 = vadd.f32 0.0, %v2480
        %v2482 = vpop.f32.mrf.mxu0
        %v2483 = vadd.f32 0.0, %v2482
        %2484 = vmatmul.bf16.gmra.mxu0 %v2451
        %v2485 = vpop.f32.mrf.mxu0
        %v2486 = vadd.f32 0.0, %v2485
        %v2487 = vpop.f32.mrf.mxu0
        %v2488 = vadd.f32 0.0, %v2487
        %2489 = vmatmul.bf16.gmra.mxu0 %v2454
        %v2490 = vpop.f32.mrf.mxu0
        %v2491 = vadd.f32 0.0, %v2490
        %v2492 = vpop.f32.mrf.mxu0
        %v2493 = vadd.f32 0.0, %v2492
        %2494 = vmatmul.bf16.gmra.mxu0 %v2457
        %v2495 = vpop.f32.mrf.mxu0
        %v2496 = vadd.f32 0.0, %v2495
        %v2497 = vpop.f32.mrf.mxu0
        %v2498 = vadd.f32 0.0, %v2497
        %2499 = vmatmul.bf16.gmra.mxu0 %v2460
        %v2500 = vpop.f32.mrf.mxu0
        %v2501 = vadd.f32 0.0, %v2500
        %v2502 = vpop.f32.mrf.mxu0
        %v2503 = vadd.f32 0.0, %v2502
        %2504 = vmatmul.bf16.gmra.mxu0 %v2463
        %v2505 = vpop.f32.mrf.mxu0
        %v2506 = vadd.f32 0.0, %v2505
        %v2507 = vpop.f32.mrf.mxu0
        %v2508 = vadd.f32 0.0, %v2507
        %2509 = vmatmul.bf16.gmra.mxu0 %v2466
        %v2510 = vpop.f32.mrf.mxu0
        %v2511 = vadd.f32 0.0, %v2510
        %v2512 = vpop.f32.mrf.mxu0
        %v2513 = vadd.f32 0.0, %v2512
        %2514 = vmatmul.bf16.gmra.mxu0 %v2469
        %v2515 = vpop.f32.mrf.mxu0
        %v2516 = vadd.f32 0.0, %v2515
        %v2517 = vpop.f32.mrf.mxu0
        %v2518 = vadd.f32 0.0, %v2517
        %2519 = vdwg.mxu0
        %v2520 = vadd.f32 %v2282, %v2481
        %v2521 = vadd.f32 %v2283, %v2483
        %v2522 = vadd.f32 %v2284, %v2486
        %v2523 = vadd.f32 %v2285, %v2488
        %v2524 = vadd.f32 %v2286, %v2491
        %v2525 = vadd.f32 %v2287, %v2493
        %v2526 = vadd.f32 %v2288, %v2496
        %v2527 = vadd.f32 %v2289, %v2498
        %v2528 = vadd.f32 %v2290, %v2501
        %v2529 = vadd.f32 %v2291, %v2503
        %v2530 = vadd.f32 %v2292, %v2506
        %v2531 = vadd.f32 %v2293, %v2508
        %v2532 = vadd.f32 %v2294, %v2511
        %v2533 = vadd.f32 %v2295, %v2513
        %v2534 = vadd.f32 %v2296, %v2516
        %v2535 = vadd.f32 %v2297, %v2518
        %s2536 = scalar_lea.vmem %s2, 32
        %v2537 = vld [vmem:[%s2536] sm:$0xf]
        %v2538 = vld [vmem:[%s2536 + $0x4] sm:$0xf]
        %v2539 = vpack.c.b16 %v2337, %v2336
        %v2540 = vpack.c.b16 %v2339, %v2338
        %v2541 = vpack.c.b16 %v2341, %v2340
        %v2542 = vpack.c.b16 %v2343, %v2342
        %v2543 = vpack.c.b16 %v2345, %v2344
        %v2544 = vpack.c.b16 %v2347, %v2346
        %v2545 = vpack.c.b16 %v2349, %v2348
        %v2546 = vpack.c.b16 %v2351, %v2350
        %v2549 = vunpack.c.l.b16 %v2537
        %v2550 = vunpack.c.l.b16 %v2538
        %v2551 = vpack.c.b16 %v2550, %v2549
        %v2554 = vsel %vm447, %v2539, 0
        %v2557 = vsel %vm447, %v2540, 0
        %v2560 = vsel %vm447, %v2541, 0
        %v2563 = vsel %vm447, %v2542, 0
        %v2566 = vsel %vm447, %v2543, 0
        %v2569 = vsel %vm447, %v2544, 0
        %v2572 = vsel %vm447, %v2545, 0
        %v2575 = vsel %vm447, %v2546, 0
        %2577 = vmatpush.bf16.msra.mxu0 0
        %2578 = vmatpush.bf16.msra.mxu0 0
        %2579 = vmatpush.bf16.msra.mxu0 0
        %2580 = vmatpush.bf16.msra.mxu0 0
        %2581 = vmatpush.bf16.msra.mxu0 0
        %2582 = vmatpush.bf16.msra.mxu0 0
        %2583 = vmatpush.bf16.msra.mxu0 0
        %2584 = vmatpush.bf16.msra.mxu0 %v2551
        %2585 = vmatmul.bf16.gmra.mxu0 %v2554
        %v2586 = vpop.f32.mrf.mxu0
        %v2587 = vadd.f32 0.0, %v2586
        %v2588 = vpop.f32.mrf.mxu0
        %v2589 = vadd.f32 0.0, %v2588
        %2590 = vmatmul.bf16.gmra.mxu0 %v2557
        %v2591 = vpop.f32.mrf.mxu0
        %v2592 = vadd.f32 0.0, %v2591
        %v2593 = vpop.f32.mrf.mxu0
        %v2594 = vadd.f32 0.0, %v2593
        %2595 = vmatmul.bf16.gmra.mxu0 %v2560
        %v2596 = vpop.f32.mrf.mxu0
        %v2597 = vadd.f32 0.0, %v2596
        %v2598 = vpop.f32.mrf.mxu0
        %v2599 = vadd.f32 0.0, %v2598
        %2600 = vmatmul.bf16.gmra.mxu0 %v2563
        %v2601 = vpop.f32.mrf.mxu0
        %v2602 = vadd.f32 0.0, %v2601
        %v2603 = vpop.f32.mrf.mxu0
        %v2604 = vadd.f32 0.0, %v2603
        %2605 = vmatmul.bf16.gmra.mxu0 %v2566
        %v2606 = vpop.f32.mrf.mxu0
        %v2607 = vadd.f32 0.0, %v2606
        %v2608 = vpop.f32.mrf.mxu0
        %v2609 = vadd.f32 0.0, %v2608
        %2610 = vmatmul.bf16.gmra.mxu0 %v2569
        %v2611 = vpop.f32.mrf.mxu0
        %v2612 = vadd.f32 0.0, %v2611
        %v2613 = vpop.f32.mrf.mxu0
        %v2614 = vadd.f32 0.0, %v2613
        %2615 = vmatmul.bf16.gmra.mxu0 %v2572
        %v2616 = vpop.f32.mrf.mxu0
        %v2617 = vadd.f32 0.0, %v2616
        %v2618 = vpop.f32.mrf.mxu0
        %v2619 = vadd.f32 0.0, %v2618
        %2620 = vmatmul.bf16.gmra.mxu0 %v2575
        %v2621 = vpop.f32.mrf.mxu0
        %v2622 = vadd.f32 0.0, %v2621
        %v2623 = vpop.f32.mrf.mxu0
        %v2624 = vadd.f32 0.0, %v2623
        %2625 = vdwg.mxu0
        %v2626 = vadd.f32 %v2520, %v2587
        %v2627 = vadd.f32 %v2521, %v2589
        %v2628 = vadd.f32 %v2522, %v2592
        %v2629 = vadd.f32 %v2523, %v2594
        %v2630 = vadd.f32 %v2524, %v2597
        %v2631 = vadd.f32 %v2525, %v2599
        %v2632 = vadd.f32 %v2526, %v2602
        %v2633 = vadd.f32 %v2527, %v2604
        %v2634 = vadd.f32 %v2528, %v2607
        %v2635 = vadd.f32 %v2529, %v2609
        %v2636 = vadd.f32 %v2530, %v2612
        %v2637 = vadd.f32 %v2531, %v2614
        %v2638 = vadd.f32 %v2532, %v2617
        %v2639 = vadd.f32 %v2533, %v2619
        %v2640 = vadd.f32 %v2534, %v2622
        %v2641 = vadd.f32 %v2535, %v2624
        %v2642 = vld [vmem:[#allocation3 + $0xc] sm:$0xf]
        %v2643 = vld [vmem:[#allocation3 + $0x10] sm:$0xf]
        %v2644 = vld [vmem:[#allocation3 + $0x14] sm:$0xf]
        %v2645 = vld [vmem:[#allocation3 + $0x18] sm:$0xf]
        %v2646 = vld [vmem:[#allocation3 + $0x1c] sm:$0xf]
        %v2647 = vld [vmem:[#allocation3 + $0x20] sm:$0xf]
        %v2648 = vld [vmem:[#allocation3 + $0x24] sm:$0xf]
        %v2649 = vld [vmem:[#allocation3 + $0x28] sm:$0xf]
        %v2650 = vld [vmem:[#allocation3 + $0x2c] sm:$0xf]
        %v2651 = vld [vmem:[#allocation3 + $0x30] sm:$0xf]
        %v2652 = vld [vmem:[#allocation3 + $0x34] sm:$0xf]
        %v2653 = vld [vmem:[#allocation3 + $0x38] sm:$0xf]
        %v2654 = vld [vmem:[#allocation3 + $0x3c] sm:$0xf]
        %v2655 = vld [vmem:[#allocation3 + $0x40] sm:$0xf]
        %v2656 = vld [vmem:[#allocation3 + $0x44] sm:$0xf]
        %v2657 = vld [vmem:[#allocation3 + $0x48] sm:$0xf]
        %v2658 = vld [vmem:[#allocation3 + $0x4c] sm:$0x1]
        %s2659 = scalar_lea.vmem %s2, 40
        %v2660 = vld [vmem:[%s2659] sm:$0xf]
        %v2661 = vld [vmem:[%s2659 + $0x4] sm:$0xf]
        %v2679 = vunpack.c.l.b16 %v2642
        %v2680 = vunpack.c.l.b16 %v2643
        %v2681 = vunpack.c.l.b16 %v2644
        %v2682 = vunpack.c.l.b16 %v2645
        %v2683 = vunpack.c.l.b16 %v2646
        %v2684 = vunpack.c.l.b16 %v2647
        %v2685 = vunpack.c.l.b16 %v2648
        %v2686 = vunpack.c.l.b16 %v2649
        %v2687 = vunpack.c.l.b16 %v2650
        %v2688 = vunpack.c.l.b16 %v2651
        %v2689 = vunpack.c.l.b16 %v2652
        %v2690 = vunpack.c.l.b16 %v2653
        %v2691 = vunpack.c.l.b16 %v2654
        %v2692 = vunpack.c.l.b16 %v2655
        %v2693 = vunpack.c.l.b16 %v2656
        %v2694 = vunpack.c.l.b16 %v2657
        %v2695 = vunpack.c.l.b16 %v2658
        %v2696 = vpack.c.b16 %v2680, %v2679
        %v2697 = vpack.c.b16 %v2682, %v2681
        %v2698 = vpack.c.b16 %v2684, %v2683
        %v2699 = vpack.c.b16 %v2686, %v2685
        %v2700 = vpack.c.b16 %v2688, %v2687
        %v2701 = vpack.c.b16 %v2690, %v2689
        %v2702 = vpack.c.b16 %v2692, %v2691
        %v2703 = vpack.c.b16 %v2694, %v2693
        %v2704 = vpack.c.b16 %v2695, %v2695
        %vm2705 = vsmask.f32 7424
        %v2707 = vshrl.u32 %v2696, 16
        %v2709 = vshll.u32 %v2696, 16
        %v2711 = vrot.slane %v2709, 1
        %v2712 = vor.u32 %v2707, %v2711
        %v2714 = vshll.u32 %v2697, 16
        %v2716 = vrot.slane %v2714, 1
        %v2717 = vsel %vm2705, %v2712, %v2716
        %v2718 = vshrl.u32 %v2697, 16
        %v2720 = vor.u32 %v2718, %v2716
        %v2722 = vshll.u32 %v2698, 16
        %v2724 = vrot.slane %v2722, 1
        %v2725 = vsel %vm2705, %v2720, %v2724
        %v2726 = vshrl.u32 %v2698, 16
        %v2728 = vor.u32 %v2726, %v2724
        %v2730 = vshll.u32 %v2699, 16
        %v2732 = vrot.slane %v2730, 1
        %v2733 = vsel %vm2705, %v2728, %v2732
        %v2734 = vshrl.u32 %v2699, 16
        %v2736 = vor.u32 %v2734, %v2732
        %v2738 = vshll.u32 %v2700, 16
        %v2740 = vrot.slane %v2738, 1
        %v2741 = vsel %vm2705, %v2736, %v2740
        %v2742 = vshrl.u32 %v2700, 16
        %v2744 = vor.u32 %v2742, %v2740
        %v2746 = vshll.u32 %v2701, 16
        %v2748 = vrot.slane %v2746, 1
        %v2749 = vsel %vm2705, %v2744, %v2748
        %v2750 = vshrl.u32 %v2701, 16
        %v2752 = vor.u32 %v2750, %v2748
        %v2754 = vshll.u32 %v2702, 16
        %v2756 = vrot.slane %v2754, 1
        %v2757 = vsel %vm2705, %v2752, %v2756
        %v2758 = vshrl.u32 %v2702, 16
        %v2760 = vor.u32 %v2758, %v2756
        %v2762 = vshll.u32 %v2703, 16
        %v2764 = vrot.slane %v2762, 1
        %v2765 = vsel %vm2705, %v2760, %v2764
        %v2766 = vshrl.u32 %v2703, 16
        %v2768 = vor.u32 %v2766, %v2764
        %v2770 = vshll.u32 %v2704, 16
        %v2772 = vrot.slane %v2770, 1
        %v2773 = vsel %vm2705, %v2768, %v2772
        %v2776 = vunpack.c.l.b16 %v2660
        %v2777 = vunpack.c.l.b16 %v2661
        %v2778 = vpack.c.b16 %v2777, %v2776
        %v2781 = vsel %vm447, %v2717, 0
        %v2784 = vsel %vm447, %v2725, 0
        %v2787 = vsel %vm447, %v2733, 0
        %v2790 = vsel %vm447, %v2741, 0
        %v2793 = vsel %vm447, %v2749, 0
        %v2796 = vsel %vm447, %v2757, 0
        %v2799 = vsel %vm447, %v2765, 0
        %v2802 = vsel %vm447, %v2773, 0
        %2804 = vmatpush.bf16.msra.mxu0 0
        %2805 = vmatpush.bf16.msra.mxu0 0
        %2806 = vmatpush.bf16.msra.mxu0 0
        %2807 = vmatpush.bf16.msra.mxu0 0
        %2808 = vmatpush.bf16.msra.mxu0 0
        %2809 = vmatpush.bf16.msra.mxu0 0
        %2810 = vmatpush.bf16.msra.mxu0 0
        %2811 = vmatpush.bf16.msra.mxu0 %v2778
        %2812 = vmatmul.bf16.gmra.mxu0 %v2781
        %v2813 = vpop.f32.mrf.mxu0
        %v2814 = vadd.f32 0.0, %v2813
        %v2815 = vpop.f32.mrf.mxu0
        %v2816 = vadd.f32 0.0, %v2815
        %2817 = vmatmul.bf16.gmra.mxu0 %v2784
        %v2818 = vpop.f32.mrf.mxu0
        %v2819 = vadd.f32 0.0, %v2818
        %v2820 = vpop.f32.mrf.mxu0
        %v2821 = vadd.f32 0.0, %v2820
        %2822 = vmatmul.bf16.gmra.mxu0 %v2787
        %v2823 = vpop.f32.mrf.mxu0
        %v2824 = vadd.f32 0.0, %v2823
        %v2825 = vpop.f32.mrf.mxu0
        %v2826 = vadd.f32 0.0, %v2825
        %2827 = vmatmul.bf16.gmra.mxu0 %v2790
        %v2828 = vpop.f32.mrf.mxu0
        %v2829 = vadd.f32 0.0, %v2828
        %v2830 = vpop.f32.mrf.mxu0
        %v2831 = vadd.f32 0.0, %v2830
        %2832 = vmatmul.bf16.gmra.mxu0 %v2793
        %v2833 = vpop.f32.mrf.mxu0
        %v2834 = vadd.f32 0.0, %v2833
        %v2835 = vpop.f32.mrf.mxu0
        %v2836 = vadd.f32 0.0, %v2835
        %2837 = vmatmul.bf16.gmra.mxu0 %v2796
        %v2838 = vpop.f32.mrf.mxu0
        %v2839 = vadd.f32 0.0, %v2838
        %v2840 = vpop.f32.mrf.mxu0
        %v2841 = vadd.f32 0.0, %v2840
        %2842 = vmatmul.bf16.gmra.mxu0 %v2799
        %v2843 = vpop.f32.mrf.mxu0
        %v2844 = vadd.f32 0.0, %v2843
        %v2845 = vpop.f32.mrf.mxu0
        %v2846 = vadd.f32 0.0, %v2845
        %2847 = vmatmul.bf16.gmra.mxu0 %v2802
        %v2848 = vpop.f32.mrf.mxu0
        %v2849 = vadd.f32 0.0, %v2848
        %v2850 = vpop.f32.mrf.mxu0
        %v2851 = vadd.f32 0.0, %v2850
        %2852 = vdwg.mxu0
        %v2853 = vadd.f32 %v2626, %v2814
        %v2854 = vadd.f32 %v2627, %v2816
        %v2855 = vadd.f32 %v2628, %v2819
        %v2856 = vadd.f32 %v2629, %v2821
        %v2857 = vadd.f32 %v2630, %v2824
        %v2858 = vadd.f32 %v2631, %v2826
        %v2859 = vadd.f32 %v2632, %v2829
        %v2860 = vadd.f32 %v2633, %v2831
        %v2861 = vadd.f32 %v2634, %v2834
        %v2862 = vadd.f32 %v2635, %v2836
        %v2863 = vadd.f32 %v2636, %v2839
        %v2864 = vadd.f32 %v2637, %v2841
        %v2865 = vadd.f32 %v2638, %v2844
        %v2866 = vadd.f32 %v2639, %v2846
        %v2867 = vadd.f32 %v2640, %v2849
        %v2868 = vadd.f32 %v2641, %v2851
        %v2869 = vld [vmem:[#allocation3 + $0x14] sm:$0xf]
        %v2870 = vld [vmem:[#allocation3 + $0x18] sm:$0xf]
        %v2871 = vld [vmem:[#allocation3 + $0x1c] sm:$0xf]
        %v2872 = vld [vmem:[#allocation3 + $0x20] sm:$0xf]
        %v2873 = vld [vmem:[#allocation3 + $0x24] sm:$0xf]
        %v2874 = vld [vmem:[#allocation3 + $0x28] sm:$0xf]
        %v2875 = vld [vmem:[#allocation3 + $0x2c] sm:$0xf]
        %v2876 = vld [vmem:[#allocation3 + $0x30] sm:$0xf]
        %v2877 = vld [vmem:[#allocation3 + $0x34] sm:$0xf]
        %v2878 = vld [vmem:[#allocation3 + $0x38] sm:$0xf]
        %v2879 = vld [vmem:[#allocation3 + $0x3c] sm:$0xf]
        %v2880 = vld [vmem:[#allocation3 + $0x40] sm:$0xf]
        %v2881 = vld [vmem:[#allocation3 + $0x44] sm:$0xf]
        %v2882 = vld [vmem:[#allocation3 + $0x48] sm:$0xf]
        %v2883 = vld [vmem:[#allocation3 + $0x4c] sm:$0xf]
        %v2884 = vld [vmem:[#allocation3 + $0x50] sm:$0xf]
        %v2885 = vld [vmem:[#allocation3 + $0x54] sm:$0x1]
        %s2886 = scalar_lea.vmem %s2, 48
        %v2887 = vld [vmem:[%s2886] sm:$0xf]
        %v2888 = vld [vmem:[%s2886 + $0x4] sm:$0xf]
        %v2906 = vunpack.c.l.b16 %v2869
        %v2907 = vunpack.c.l.b16 %v2870
        %v2908 = vunpack.c.l.b16 %v2871
        %v2909 = vunpack.c.l.b16 %v2872
        %v2910 = vunpack.c.l.b16 %v2873
        %v2911 = vunpack.c.l.b16 %v2874
        %v2912 = vunpack.c.l.b16 %v2875
        %v2913 = vunpack.c.l.b16 %v2876
        %v2914 = vunpack.c.l.b16 %v2877
        %v2915 = vunpack.c.l.b16 %v2878
        %v2916 = vunpack.c.l.b16 %v2879
        %v2917 = vunpack.c.l.b16 %v2880
        %v2918 = vunpack.c.l.b16 %v2881
        %v2919 = vunpack.c.l.b16 %v2882
        %v2920 = vunpack.c.l.b16 %v2883
        %v2921 = vunpack.c.l.b16 %v2884
        %v2922 = vunpack.c.l.b16 %v2885
        %v2923 = vpack.c.b16 %v2907, %v2906
        %v2924 = vpack.c.b16 %v2909, %v2908
        %v2925 = vpack.c.b16 %v2911, %v2910
        %v2926 = vpack.c.b16 %v2913, %v2912
        %v2927 = vpack.c.b16 %v2915, %v2914
        %v2928 = vpack.c.b16 %v2917, %v2916
        %v2929 = vpack.c.b16 %v2919, %v2918
        %v2930 = vpack.c.b16 %v2921, %v2920
        %v2931 = vpack.c.b16 %v2922, %v2922
        %v2933 = vshrl.u32 %v2923, 16
        %v2935 = vshll.u32 %v2923, 16
        %v2937 = vrot.slane %v2935, 1
        %v2938 = vor.u32 %v2933, %v2937
        %v2940 = vshll.u32 %v2924, 16
        %v2942 = vrot.slane %v2940, 1
        %v2943 = vsel %vm2705, %v2938, %v2942
        %v2944 = vshrl.u32 %v2924, 16
        %v2946 = vor.u32 %v2944, %v2942
        %v2948 = vshll.u32 %v2925, 16
        %v2950 = vrot.slane %v2948, 1
        %v2951 = vsel %vm2705, %v2946, %v2950
        %v2952 = vshrl.u32 %v2925, 16
        %v2954 = vor.u32 %v2952, %v2950
        %v2956 = vshll.u32 %v2926, 16
        %v2958 = vrot.slane %v2956, 1
        %v2959 = vsel %vm2705, %v2954, %v2958
        %v2960 = vshrl.u32 %v2926, 16
        %v2962 = vor.u32 %v2960, %v2958
        %v2964 = vshll.u32 %v2927, 16
        %v2966 = vrot.slane %v2964, 1
        %v2967 = vsel %vm2705, %v2962, %v2966
        %v2968 = vshrl.u32 %v2927, 16
        %v2970 = vor.u32 %v2968, %v2966
        %v2972 = vshll.u32 %v2928, 16
        %v2974 = vrot.slane %v2972, 1
        %v2975 = vsel %vm2705, %v2970, %v2974
        %v2976 = vshrl.u32 %v2928, 16
        %v2978 = vor.u32 %v2976, %v2974
        %v2980 = vshll.u32 %v2929, 16
        %v2982 = vrot.slane %v2980, 1
        %v2983 = vsel %vm2705, %v2978, %v2982
        %v2984 = vshrl.u32 %v2929, 16
        %v2986 = vor.u32 %v2984, %v2982
        %v2988 = vshll.u32 %v2930, 16
        %v2990 = vrot.slane %v2988, 1
        %v2991 = vsel %vm2705, %v2986, %v2990
        %v2992 = vshrl.u32 %v2930, 16
        %v2994 = vor.u32 %v2992, %v2990
        %v2996 = vshll.u32 %v2931, 16
        %v2998 = vrot.slane %v2996, 1
        %v2999 = vsel %vm2705, %v2994, %v2998
        %v3002 = vunpack.c.l.b16 %v2887
        %v3003 = vunpack.c.l.b16 %v2888
        %v3004 = vpack.c.b16 %v3003, %v3002
        %v3007 = vsel %vm447, %v2943, 0
        %v3010 = vsel %vm447, %v2951, 0
        %v3013 = vsel %vm447, %v2959, 0
        %v3016 = vsel %vm447, %v2967, 0
        %v3019 = vsel %vm447, %v2975, 0
        %v3022 = vsel %vm447, %v2983, 0
        %v3025 = vsel %vm447, %v2991, 0
        %v3028 = vsel %vm447, %v2999, 0
        %3030 = vmatpush.bf16.msra.mxu0 0
        %3031 = vmatpush.bf16.msra.mxu0 0
        %3032 = vmatpush.bf16.msra.mxu0 0
        %3033 = vmatpush.bf16.msra.mxu0 0
        %3034 = vmatpush.bf16.msra.mxu0 0
        %3035 = vmatpush.bf16.msra.mxu0 0
        %3036 = vmatpush.bf16.msra.mxu0 0
        %3037 = vmatpush.bf16.msra.mxu0 %v3004
        %3038 = vmatmul.bf16.gmra.mxu0 %v3007
        %v3039 = vpop.f32.mrf.mxu0
        %v3040 = vadd.f32 0.0, %v3039
        %v3041 = vpop.f32.mrf.mxu0
        %v3042 = vadd.f32 0.0, %v3041
        %3043 = vmatmul.bf16.gmra.mxu0 %v3010
        %v3044 = vpop.f32.mrf.mxu0
        %v3045 = vadd.f32 0.0, %v3044
        %v3046 = vpop.f32.mrf.mxu0
        %v3047 = vadd.f32 0.0, %v3046
        %3048 = vmatmul.bf16.gmra.mxu0 %v3013
        %v3049 = vpop.f32.mrf.mxu0
        %v3050 = vadd.f32 0.0, %v3049
        %v3051 = vpop.f32.mrf.mxu0
        %v3052 = vadd.f32 0.0, %v3051
        %3053 = vmatmul.bf16.gmra.mxu0 %v3016
        %v3054 = vpop.f32.mrf.mxu0
        %v3055 = vadd.f32 0.0, %v3054
        %v3056 = vpop.f32.mrf.mxu0
        %v3057 = vadd.f32 0.0, %v3056
        %3058 = vmatmul.bf16.gmra.mxu0 %v3019
        %v3059 = vpop.f32.mrf.mxu0
        %v3060 = vadd.f32 0.0, %v3059
        %v3061 = vpop.f32.mrf.mxu0
        %v3062 = vadd.f32 0.0, %v3061
        %3063 = vmatmul.bf16.gmra.mxu0 %v3022
        %v3064 = vpop.f32.mrf.mxu0
        %v3065 = vadd.f32 0.0, %v3064
        %v3066 = vpop.f32.mrf.mxu0
        %v3067 = vadd.f32 0.0, %v3066
        %3068 = vmatmul.bf16.gmra.mxu0 %v3025
        %v3069 = vpop.f32.mrf.mxu0
        %v3070 = vadd.f32 0.0, %v3069
        %v3071 = vpop.f32.mrf.mxu0
        %v3072 = vadd.f32 0.0, %v3071
        %3073 = vmatmul.bf16.gmra.mxu0 %v3028
        %v3074 = vpop.f32.mrf.mxu0
        %v3075 = vadd.f32 0.0, %v3074
        %v3076 = vpop.f32.mrf.mxu0
        %v3077 = vadd.f32 0.0, %v3076
        %3078 = vdwg.mxu0
        %v3079 = vadd.f32 %v2853, %v3040
        %v3080 = vadd.f32 %v2854, %v3042
        %v3081 = vadd.f32 %v2855, %v3045
        %v3082 = vadd.f32 %v2856, %v3047
        %v3083 = vadd.f32 %v2857, %v3050
        %v3084 = vadd.f32 %v2858, %v3052
        %v3085 = vadd.f32 %v2859, %v3055
        %v3086 = vadd.f32 %v2860, %v3057
        %v3087 = vadd.f32 %v2861, %v3060
        %v3088 = vadd.f32 %v2862, %v3062
        %v3089 = vadd.f32 %v2863, %v3065
        %v3090 = vadd.f32 %v2864, %v3067
        %v3091 = vadd.f32 %v2865, %v3070
        %v3092 = vadd.f32 %v2866, %v3072
        %v3093 = vadd.f32 %v2867, %v3075
        %v3094 = vadd.f32 %v2868, %v3077
        %v3095 = vld [vmem:[#allocation3 + $0x14] sm:$0xe]
        %s3096 = scalar_lea.vmem %s2, 56
        %v3097 = vld [vmem:[%s3096] sm:$0xf]
        %v3098 = vld [vmem:[%s3096 + $0x4] sm:$0xf]
        %v3100 = vunpack.c.l.b16 %v3095
        %v3101 = vpack.c.b16 %v2907, %v3100
        %vm3102 = vcmask 1046528
        %v3103 = vrot.slane %v3101, 1
        %v3104 = vrot.slane %v2924, 1
        %v3105 = vsel %vm3102, %v3103, %v3104
        %v3106 = vrot.slane %v2925, 1
        %v3107 = vsel %vm3102, %v3104, %v3106
        %v3108 = vrot.slane %v2926, 1
        %v3109 = vsel %vm3102, %v3106, %v3108
        %v3110 = vrot.slane %v2927, 1
        %v3111 = vsel %vm3102, %v3108, %v3110
        %v3112 = vrot.slane %v2928, 1
        %v3113 = vsel %vm3102, %v3110, %v3112
        %v3114 = vrot.slane %v2929, 1
        %v3115 = vsel %vm3102, %v3112, %v3114
        %v3116 = vrot.slane %v2930, 1
        %v3117 = vsel %vm3102, %v3114, %v3116
        %v3118 = vrot.slane %v2931, 1
        %v3119 = vsel %vm3102, %v3116, %v3118
        %v3122 = vunpack.c.l.b16 %v3097
        %v3123 = vunpack.c.l.b16 %v3098
        %v3124 = vpack.c.b16 %v3123, %v3122
        %v3127 = vsel %vm447, %v3105, 0
        %v3130 = vsel %vm447, %v3107, 0
        %v3133 = vsel %vm447, %v3109, 0
        %v3136 = vsel %vm447, %v3111, 0
        %v3139 = vsel %vm447, %v3113, 0
        %v3142 = vsel %vm447, %v3115, 0
        %v3145 = vsel %vm447, %v3117, 0
        %v3148 = vsel %vm447, %v3119, 0
        %3150 = vmatpush.bf16.msra.mxu0 0
        %3151 = vmatpush.bf16.msra.mxu0 0
        %3152 = vmatpush.bf16.msra.mxu0 0
        %3153 = vmatpush.bf16.msra.mxu0 0
        %3154 = vmatpush.bf16.msra.mxu0 0
        %3155 = vmatpush.bf16.msra.mxu0 0
        %3156 = vmatpush.bf16.msra.mxu0 0
        %3157 = vmatpush.bf16.msra.mxu0 %v3124
        %3158 = vmatmul.bf16.gmra.mxu0 %v3127
        %v3159 = vpop.f32.mrf.mxu0
        %v3160 = vadd.f32 0.0, %v3159
        %v3161 = vpop.f32.mrf.mxu0
        %v3162 = vadd.f32 0.0, %v3161
        %3163 = vmatmul.bf16.gmra.mxu0 %v3130
        %v3164 = vpop.f32.mrf.mxu0
        %v3165 = vadd.f32 0.0, %v3164
        %v3166 = vpop.f32.mrf.mxu0
        %v3167 = vadd.f32 0.0, %v3166
        %3168 = vmatmul.bf16.gmra.mxu0 %v3133
        %v3169 = vpop.f32.mrf.mxu0
        %v3170 = vadd.f32 0.0, %v3169
        %v3171 = vpop.f32.mrf.mxu0
        %v3172 = vadd.f32 0.0, %v3171
        %3173 = vmatmul.bf16.gmra.mxu0 %v3136
        %v3174 = vpop.f32.mrf.mxu0
        %v3175 = vadd.f32 0.0, %v3174
        %v3176 = vpop.f32.mrf.mxu0
        %v3177 = vadd.f32 0.0, %v3176
        %3178 = vmatmul.bf16.gmra.mxu0 %v3139
        %v3179 = vpop.f32.mrf.mxu0
        %v3180 = vadd.f32 0.0, %v3179
        %v3181 = vpop.f32.mrf.mxu0
        %v3182 = vadd.f32 0.0, %v3181
        %3183 = vmatmul.bf16.gmra.mxu0 %v3142
        %v3184 = vpop.f32.mrf.mxu0
        %v3185 = vadd.f32 0.0, %v3184
        %v3186 = vpop.f32.mrf.mxu0
        %v3187 = vadd.f32 0.0, %v3186
        %3188 = vmatmul.bf16.gmra.mxu0 %v3145
        %v3189 = vpop.f32.mrf.mxu0
        %v3190 = vadd.f32 0.0, %v3189
        %v3191 = vpop.f32.mrf.mxu0
        %v3192 = vadd.f32 0.0, %v3191
        %3193 = vmatmul.bf16.gmra.mxu0 %v3148
        %v3194 = vpop.f32.mrf.mxu0
        %v3195 = vadd.f32 0.0, %v3194
        %v3196 = vpop.f32.mrf.mxu0
        %v3197 = vadd.f32 0.0, %v3196
        %3198 = vdwg.mxu0
        %v3199 = vadd.f32 %v3079, %v3160
        %v3200 = vadd.f32 %v3080, %v3162
        %v3201 = vadd.f32 %v3081, %v3165
        %v3202 = vadd.f32 %v3082, %v3167
        %v3203 = vadd.f32 %v3083, %v3170
        %v3204 = vadd.f32 %v3084, %v3172
        %v3205 = vadd.f32 %v3085, %v3175
        %v3206 = vadd.f32 %v3086, %v3177
        %v3207 = vadd.f32 %v3087, %v3180
        %v3208 = vadd.f32 %v3088, %v3182
        %v3209 = vadd.f32 %v3089, %v3185
        %v3210 = vadd.f32 %v3090, %v3187
        %v3211 = vadd.f32 %v3091, %v3190
        %v3212 = vadd.f32 %v3092, %v3192
        %v3213 = vadd.f32 %v3093, %v3195
        %v3214 = vadd.f32 %v3094, %v3197
        %v3215 = vld [vmem:[#allocation3 + $0x54] sm:$0x3]
        %s3216 = scalar_lea.vmem %s2, 64
        %v3217 = vld [vmem:[%s3216] sm:$0xf]
        %v3218 = vld [vmem:[%s3216 + $0x4] sm:$0xf]
        %v3220 = vunpack.c.l.b16 %v3215
        %v3221 = vpack.c.b16 %v3220, %v3220
        %vm3222 = vsmask.f32 6400
        %v3224 = vshrl.u32 %v3101, 16
        %v3226 = vrot.slane %v3224, 1
        %v3227 = vshll.u32 %v3101, 16
        %v3229 = vrot.slane %v3227, 2
        %v3230 = vor.u32 %v3226, %v3229
        %v3231 = vrot.slane %v2944, 1
        %v3232 = vrot.slane %v2940, 2
        %v3233 = vor.u32 %v3231, %v3232
        %v3234 = vsel %vm3222, %v3230, %v3233
        %v3235 = vrot.slane %v2952, 1
        %v3236 = vrot.slane %v2948, 2
        %v3237 = vor.u32 %v3235, %v3236
        %v3238 = vsel %vm3222, %v3233, %v3237
        %v3239 = vrot.slane %v2960, 1
        %v3240 = vrot.slane %v2956, 2
        %v3241 = vor.u32 %v3239, %v3240
        %v3242 = vsel %vm3222, %v3237, %v3241
        %v3243 = vrot.slane %v2968, 1
        %v3244 = vrot.slane %v2964, 2
        %v3245 = vor.u32 %v3243, %v3244
        %v3246 = vsel %vm3222, %v3241, %v3245
        %v3247 = vrot.slane %v2976, 1
        %v3248 = vrot.slane %v2972, 2
        %v3249 = vor.u32 %v3247, %v3248
        %v3250 = vsel %vm3222, %v3245, %v3249
        %v3251 = vrot.slane %v2984, 1
        %v3252 = vrot.slane %v2980, 2
        %v3253 = vor.u32 %v3251, %v3252
        %v3254 = vsel %vm3222, %v3249, %v3253
        %v3255 = vrot.slane %v2992, 1
        %v3256 = vrot.slane %v2988, 2
        %v3257 = vor.u32 %v3255, %v3256
        %v3258 = vsel %vm3222, %v3253, %v3257
        %v3260 = vshrl.u32 %v3221, 16
        %v3262 = vrot.slane %v3260, 1
        %v3263 = vshll.u32 %v3221, 16
        %v3265 = vrot.slane %v3263, 2
        %v3266 = vor.u32 %v3262, %v3265
        %v3267 = vsel %vm3222, %v3257, %v3266
        %v3270 = vunpack.c.l.b16 %v3217
        %v3271 = vunpack.c.l.b16 %v3218
        %v3272 = vpack.c.b16 %v3271, %v3270
        %v3275 = vsel %vm447, %v3234, 0
        %v3278 = vsel %vm447, %v3238, 0
        %v3281 = vsel %vm447, %v3242, 0
        %v3284 = vsel %vm447, %v3246, 0
        %v3287 = vsel %vm447, %v3250, 0
        %v3290 = vsel %vm447, %v3254, 0
        %v3293 = vsel %vm447, %v3258, 0
        %v3296 = vsel %vm447, %v3267, 0
        %3298 = vmatpush.bf16.msra.mxu0 0
        %3299 = vmatpush.bf16.msra.mxu0 0
        %3300 = vmatpush.bf16.msra.mxu0 0
        %3301 = vmatpush.bf16.msra.mxu0 0
        %3302 = vmatpush.bf16.msra.mxu0 0
        %3303 = vmatpush.bf16.msra.mxu0 0
        %3304 = vmatpush.bf16.msra.mxu0 0
        %3305 = vmatpush.bf16.msra.mxu0 %v3272
        %3306 = vmatmul.bf16.gmra.mxu0 %v3275
        %v3307 = vpop.f32.mrf.mxu0
        %v3308 = vadd.f32 0.0, %v3307
        %v3309 = vpop.f32.mrf.mxu0
        %v3310 = vadd.f32 0.0, %v3309
        %3311 = vmatmul.bf16.gmra.mxu0 %v3278
        %v3312 = vpop.f32.mrf.mxu0
        %v3313 = vadd.f32 0.0, %v3312
        %v3314 = vpop.f32.mrf.mxu0
        %v3315 = vadd.f32 0.0, %v3314
        %3316 = vmatmul.bf16.gmra.mxu0 %v3281
        %v3317 = vpop.f32.mrf.mxu0
        %v3318 = vadd.f32 0.0, %v3317
        %v3319 = vpop.f32.mrf.mxu0
        %v3320 = vadd.f32 0.0, %v3319
        %3321 = vmatmul.bf16.gmra.mxu0 %v3284
        %v3322 = vpop.f32.mrf.mxu0
        %v3323 = vadd.f32 0.0, %v3322
        %v3324 = vpop.f32.mrf.mxu0
        %v3325 = vadd.f32 0.0, %v3324
        %3326 = vmatmul.bf16.gmra.mxu0 %v3287
        %v3327 = vpop.f32.mrf.mxu0
        %v3328 = vadd.f32 0.0, %v3327
        %v3329 = vpop.f32.mrf.mxu0
        %v3330 = vadd.f32 0.0, %v3329
        %3331 = vmatmul.bf16.gmra.mxu0 %v3290
        %v3332 = vpop.f32.mrf.mxu0
        %v3333 = vadd.f32 0.0, %v3332
        %v3334 = vpop.f32.mrf.mxu0
        %v3335 = vadd.f32 0.0, %v3334
        %3336 = vmatmul.bf16.gmra.mxu0 %v3293
        %v3337 = vpop.f32.mrf.mxu0
        %v3338 = vadd.f32 0.0, %v3337
        %v3339 = vpop.f32.mrf.mxu0
        %v3340 = vadd.f32 0.0, %v3339
        %3341 = vmatmul.bf16.gmra.mxu0 %v3296
        %v3342 = vpop.f32.mrf.mxu0
        %v3343 = vadd.f32 0.0, %v3342
        %v3344 = vpop.f32.mrf.mxu0
        %v3345 = vadd.f32 0.0, %v3344
        %3346 = vdwg.mxu0
        %v3347 = vadd.f32 %v3199, %v3308
        %v3348 = vadd.f32 %v3200, %v3310
        %v3349 = vadd.f32 %v3201, %v3313
        %v3350 = vadd.f32 %v3202, %v3315
        %v3351 = vadd.f32 %v3203, %v3318
        %v3352 = vadd.f32 %v3204, %v3320
        %v3353 = vadd.f32 %v3205, %v3323
        %v3354 = vadd.f32 %v3206, %v3325
        %v3355 = vadd.f32 %v3207, %v3328
        %v3356 = vadd.f32 %v3208, %v3330
        %v3357 = vadd.f32 %v3209, %v3333
        %v3358 = vadd.f32 %v3210, %v3335
        %v3359 = vadd.f32 %v3211, %v3338
        %v3360 = vadd.f32 %v3212, %v3340
        %v3361 = vadd.f32 %v3213, %v3343
        %v3362 = vadd.f32 %v3214, %v3345
        %v3363 = vmax.f32 %v3347, 0.0
        %v3364 = vmax.f32 %v3348, 0.0
        %v3365 = vmax.f32 %v3349, 0.0
        %v3366 = vmax.f32 %v3350, 0.0
        %v3367 = vmax.f32 %v3351, 0.0
        %v3368 = vmax.f32 %v3352, 0.0
        %v3369 = vmax.f32 %v3353, 0.0
        %v3370 = vmax.f32 %v3354, 0.0
        %v3371 = vmax.f32 %v3355, 0.0
        %v3372 = vmax.f32 %v3356, 0.0
        %v3373 = vmax.f32 %v3357, 0.0
        %v3374 = vmax.f32 %v3358, 0.0
        %v3375 = vmax.f32 %v3359, 0.0
        %v3376 = vmax.f32 %v3360, 0.0
        %v3377 = vmax.f32 %v3361, 0.0
        %v3378 = vmax.f32 %v3362, 0.0
        %vm3379 = vcmask 654336
        %3380 = vst.msk [vmem:[#allocation4] sm:$0xff] %vm3379, %v3363
        %3381 = vst.msk [vmem:[#allocation4 + $0x8] sm:$0xff] %vm3379, %v3364
        %3382 = vst.msk [vmem:[#allocation4 + $0x10] sm:$0xff] %vm3379, %v3365
        %3383 = vst.msk [vmem:[#allocation4 + $0x18] sm:$0xff] %vm3379, %v3366
        %3384 = vst.msk [vmem:[#allocation4 + $0x20] sm:$0xff] %vm3379, %v3367
        %3385 = vst.msk [vmem:[#allocation4 + $0x28] sm:$0xff] %vm3379, %v3368
        %3386 = vst.msk [vmem:[#allocation4 + $0x30] sm:$0xff] %vm3379, %v3369
        %3387 = vst.msk [vmem:[#allocation4 + $0x38] sm:$0xff] %vm3379, %v3370
        %3388 = vst.msk [vmem:[#allocation4 + $0x40] sm:$0xff] %vm3379, %v3371
        %3389 = vst.msk [vmem:[#allocation4 + $0x48] sm:$0xff] %vm3379, %v3372
        %3390 = vst.msk [vmem:[#allocation4 + $0x50] sm:$0xff] %vm3379, %v3373
        %3391 = vst.msk [vmem:[#allocation4 + $0x58] sm:$0xff] %vm3379, %v3374
        %3392 = vst.msk [vmem:[#allocation4 + $0x60] sm:$0xff] %vm3379, %v3375
        %3393 = vst.msk [vmem:[#allocation4 + $0x68] sm:$0xff] %vm3379, %v3376
        %3394 = vst.msk [vmem:[#allocation4 + $0x70] sm:$0xff] %vm3379, %v3377
        %3395 = vst.msk [vmem:[#allocation4 + $0x78] sm:$0xff] %vm3379, %v3378
        %v3396 = vld [vmem:[#allocation3 + $0x40] sm:$0xc]
        %v3397 = vld [vmem:[#allocation3 + $0x44] sm:$0xf]
        %v3398 = vld [vmem:[#allocation3 + $0x48] sm:$0xf]
        %v3399 = vld [vmem:[#allocation3 + $0x4c] sm:$0xf]
        %v3400 = vld [vmem:[#allocation3 + $0x50] sm:$0xf]
        %v3401 = vld [vmem:[#allocation3 + $0x54] sm:$0xf]
        %v3402 = vld [vmem:[#allocation3 + $0x58] sm:$0xf]
        %v3403 = vld [vmem:[#allocation3 + $0x5c] sm:$0xf]
        %v3404 = vld [vmem:[#allocation3 + $0x60] sm:$0xf]
        %v3405 = vld [vmem:[#allocation3 + $0x64] sm:$0xf]
        %v3406 = vld [vmem:[#allocation3 + $0x68] sm:$0xf]
        %v3407 = vld [vmem:[#allocation3 + $0x6c] sm:$0xf]
        %v3408 = vld [vmem:[#allocation3 + $0x70] sm:$0xf]
        %v3409 = vld [vmem:[#allocation3 + $0x74] sm:$0xf]
        %v3410 = vld [vmem:[#allocation3 + $0x78] sm:$0xf]
        %v3411 = vld [vmem:[#allocation3 + $0x7c] sm:$0xf]
        %v3412 = vld [vmem:[#allocation3 + $0x80] sm:$0x7]
        %v3413 = vld [vmem:[%s2] sm:$0xf]
        %v3414 = vld [vmem:[%s2 + $0x4] sm:$0xf]
        %v3415 = vld [vmem:[#allocation3 + $0x40] sm:$0x8]
        %v3416 = vld [vmem:[%s1844] sm:$0xf]
        %v3417 = vld [vmem:[%s1844 + $0x4] sm:$0xf]
        %v3435 = vunpack.c.l.b16 %v3415
        %v3436 = vunpack.c.l.b16 %v3397
        %v3437 = vunpack.c.l.b16 %v3398
        %v3438 = vunpack.c.l.b16 %v3399
        %v3439 = vunpack.c.l.b16 %v3400
        %v3440 = vunpack.c.l.b16 %v3401
        %v3441 = vunpack.c.l.b16 %v3402
        %v3442 = vunpack.c.l.b16 %v3403
        %v3443 = vunpack.c.l.b16 %v3404
        %v3444 = vunpack.c.l.b16 %v3405
        %v3445 = vunpack.c.l.b16 %v3406
        %v3446 = vunpack.c.l.b16 %v3407
        %v3447 = vunpack.c.l.b16 %v3408
        %v3448 = vunpack.c.l.b16 %v3409
        %v3449 = vunpack.c.l.b16 %v3410
        %v3450 = vunpack.c.l.b16 %v3411
        %v3451 = vunpack.c.l.b16 %v3412
        %v3452 = vpack.c.b16 %v3436, %v3435
        %v3453 = vpack.c.b16 %v3438, %v3437
        %v3454 = vpack.c.b16 %v3440, %v3439
        %v3455 = vpack.c.b16 %v3442, %v3441
        %v3456 = vpack.c.b16 %v3444, %v3443
        %v3457 = vpack.c.b16 %v3446, %v3445
        %v3458 = vpack.c.b16 %v3448, %v3447
        %v3459 = vpack.c.b16 %v3450, %v3449
        %v3460 = vpack.c.b16 %v3451, %v3451
        %v3461 = vrot.slane %v3452, 3
        %v3462 = vrot.slane %v3453, 3
        %v3463 = vsel %vm1890, %v3461, %v3462
        %v3464 = vrot.slane %v3454, 3
        %v3465 = vsel %vm1890, %v3462, %v3464
        %v3466 = vrot.slane %v3455, 3
        %v3467 = vsel %vm1890, %v3464, %v3466
        %v3468 = vrot.slane %v3456, 3
        %v3469 = vsel %vm1890, %v3466, %v3468
        %v3470 = vrot.slane %v3457, 3
        %v3471 = vsel %vm1890, %v3468, %v3470
        %v3472 = vrot.slane %v3458, 3
        %v3473 = vsel %vm1890, %v3470, %v3472
        %v3474 = vrot.slane %v3459, 3
        %v3475 = vsel %vm1890, %v3472, %v3474
        %v3476 = vrot.slane %v3460, 3
        %v3477 = vsel %vm1890, %v3474, %v3476
        %v3480 = vunpack.c.l.b16 %v3416
        %v3481 = vunpack.c.l.b16 %v3417
        %v3482 = vpack.c.b16 %v3481, %v3480
        %v3485 = vsel %vm447, %v3463, 0
        %v3488 = vsel %vm447, %v3465, 0
        %v3491 = vsel %vm447, %v3467, 0
        %v3494 = vsel %vm447, %v3469, 0
        %v3497 = vsel %vm447, %v3471, 0
        %v3500 = vsel %vm447, %v3473, 0
        %v3503 = vsel %vm447, %v3475, 0
        %v3506 = vsel %vm447, %v3477, 0
        %3508 = vmatpush.bf16.msra.mxu0 0
        %3509 = vmatpush.bf16.msra.mxu0 0
        %3510 = vmatpush.bf16.msra.mxu0 0
        %3511 = vmatpush.bf16.msra.mxu0 0
        %3512 = vmatpush.bf16.msra.mxu0 0
        %3513 = vmatpush.bf16.msra.mxu0 0
        %3514 = vmatpush.bf16.msra.mxu0 0
        %3515 = vmatpush.bf16.msra.mxu0 %v3482
        %3516 = vmatmul.bf16.gmra.mxu0 %v3485
        %v3517 = vpop.f32.mrf.mxu0
        %v3518 = vadd.f32 0.0, %v3517
        %v3519 = vpop.f32.mrf.mxu0
        %v3520 = vadd.f32 0.0, %v3519
        %3521 = vmatmul.bf16.gmra.mxu0 %v3488
        %v3522 = vpop.f32.mrf.mxu0
        %v3523 = vadd.f32 0.0, %v3522
        %v3524 = vpop.f32.mrf.mxu0
        %v3525 = vadd.f32 0.0, %v3524
        %3526 = vmatmul.bf16.gmra.mxu0 %v3491
        %v3527 = vpop.f32.mrf.mxu0
        %v3528 = vadd.f32 0.0, %v3527
        %v3529 = vpop.f32.mrf.mxu0
        %v3530 = vadd.f32 0.0, %v3529
        %3531 = vmatmul.bf16.gmra.mxu0 %v3494
        %v3532 = vpop.f32.mrf.mxu0
        %v3533 = vadd.f32 0.0, %v3532
        %v3534 = vpop.f32.mrf.mxu0
        %v3535 = vadd.f32 0.0, %v3534
        %3536 = vmatmul.bf16.gmra.mxu0 %v3497
        %v3537 = vpop.f32.mrf.mxu0
        %v3538 = vadd.f32 0.0, %v3537
        %v3539 = vpop.f32.mrf.mxu0
        %v3540 = vadd.f32 0.0, %v3539
        %3541 = vmatmul.bf16.gmra.mxu0 %v3500
        %v3542 = vpop.f32.mrf.mxu0
        %v3543 = vadd.f32 0.0, %v3542
        %v3544 = vpop.f32.mrf.mxu0
        %v3545 = vadd.f32 0.0, %v3544
        %3546 = vmatmul.bf16.gmra.mxu0 %v3503
        %v3547 = vpop.f32.mrf.mxu0
        %v3548 = vadd.f32 0.0, %v3547
        %v3549 = vpop.f32.mrf.mxu0
        %v3550 = vadd.f32 0.0, %v3549
        %3551 = vmatmul.bf16.gmra.mxu0 %v3506
        %v3552 = vpop.f32.mrf.mxu0
        %v3553 = vadd.f32 0.0, %v3552
        %v3554 = vpop.f32.mrf.mxu0
        %v3555 = vadd.f32 0.0, %v3554
        %3556 = vdwg.mxu0
        %v3558 = vunpack.c.l.b16 %v3396
        %v3559 = vpack.c.b16 %v3436, %v3558
        %v3561 = vshrl.u32 %v3559, 16
        %v3563 = vrot.slane %v3561, 2
        %v3564 = vshll.u32 %v3559, 16
        %v3566 = vrot.slane %v3564, 3
        %v3567 = vor.u32 %v3563, %v3566
        %v3569 = vshrl.u32 %v3453, 16
        %v3571 = vrot.slane %v3569, 2
        %v3572 = vshll.u32 %v3453, 16
        %v3574 = vrot.slane %v3572, 3
        %v3575 = vor.u32 %v3571, %v3574
        %v3576 = vsel %vm1990, %v3567, %v3575
        %v3578 = vshrl.u32 %v3454, 16
        %v3580 = vrot.slane %v3578, 2
        %v3581 = vshll.u32 %v3454, 16
        %v3583 = vrot.slane %v3581, 3
        %v3584 = vor.u32 %v3580, %v3583
        %v3585 = vsel %vm1990, %v3575, %v3584
        %v3587 = vshrl.u32 %v3455, 16
        %v3589 = vrot.slane %v3587, 2
        %v3590 = vshll.u32 %v3455, 16
        %v3592 = vrot.slane %v3590, 3
        %v3593 = vor.u32 %v3589, %v3592
        %v3594 = vsel %vm1990, %v3584, %v3593
        %v3596 = vshrl.u32 %v3456, 16
        %v3598 = vrot.slane %v3596, 2
        %v3599 = vshll.u32 %v3456, 16
        %v3601 = vrot.slane %v3599, 3
        %v3602 = vor.u32 %v3598, %v3601
        %v3603 = vsel %vm1990, %v3593, %v3602
        %v3605 = vshrl.u32 %v3457, 16
        %v3607 = vrot.slane %v3605, 2
        %v3608 = vshll.u32 %v3457, 16
        %v3610 = vrot.slane %v3608, 3
        %v3611 = vor.u32 %v3607, %v3610
        %v3612 = vsel %vm1990, %v3602, %v3611
        %v3614 = vshrl.u32 %v3458, 16
        %v3616 = vrot.slane %v3614, 2
        %v3617 = vshll.u32 %v3458, 16
        %v3619 = vrot.slane %v3617, 3
        %v3620 = vor.u32 %v3616, %v3619
        %v3621 = vsel %vm1990, %v3611, %v3620
        %v3623 = vshrl.u32 %v3459, 16
        %v3625 = vrot.slane %v3623, 2
        %v3626 = vshll.u32 %v3459, 16
        %v3628 = vrot.slane %v3626, 3
        %v3629 = vor.u32 %v3625, %v3628
        %v3630 = vsel %vm1990, %v3620, %v3629
        %v3632 = vshrl.u32 %v3460, 16
        %v3634 = vrot.slane %v3632, 2
        %v3635 = vshll.u32 %v3460, 16
        %v3637 = vrot.slane %v3635, 3
        %v3638 = vor.u32 %v3634, %v3637
        %v3639 = vsel %vm1990, %v3629, %v3638
        %v3642 = vunpack.c.l.b16 %v3413
        %v3643 = vunpack.c.l.b16 %v3414
        %v3644 = vpack.c.b16 %v3643, %v3642
        %v3647 = vsel %vm447, %v3576, 0
        %v3650 = vsel %vm447, %v3585, 0
        %v3653 = vsel %vm447, %v3594, 0
        %v3656 = vsel %vm447, %v3603, 0
        %v3659 = vsel %vm447, %v3612, 0
        %v3662 = vsel %vm447, %v3621, 0
        %v3665 = vsel %vm447, %v3630, 0
        %v3668 = vsel %vm447, %v3639, 0
        %3670 = vmatpush.bf16.msra.mxu0 0
        %3671 = vmatpush.bf16.msra.mxu0 0
        %3672 = vmatpush.bf16.msra.mxu0 0
        %3673 = vmatpush.bf16.msra.mxu0 0
        %3674 = vmatpush.bf16.msra.mxu0 0
        %3675 = vmatpush.bf16.msra.mxu0 0
        %3676 = vmatpush.bf16.msra.mxu0 0
        %3677 = vmatpush.bf16.msra.mxu0 %v3644
        %3678 = vmatmul.bf16.gmra.mxu0 %v3647
        %v3679 = vpop.f32.mrf.mxu0
        %v3680 = vadd.f32 %v3518, %v3679
        %v3681 = vpop.f32.mrf.mxu0
        %v3682 = vadd.f32 %v3520, %v3681
        %3683 = vmatmul.bf16.gmra.mxu0 %v3650
        %v3684 = vpop.f32.mrf.mxu0
        %v3685 = vadd.f32 %v3523, %v3684
        %v3686 = vpop.f32.mrf.mxu0
        %v3687 = vadd.f32 %v3525, %v3686
        %3688 = vmatmul.bf16.gmra.mxu0 %v3653
        %v3689 = vpop.f32.mrf.mxu0
        %v3690 = vadd.f32 %v3528, %v3689
        %v3691 = vpop.f32.mrf.mxu0
        %v3692 = vadd.f32 %v3530, %v3691
        %3693 = vmatmul.bf16.gmra.mxu0 %v3656
        %v3694 = vpop.f32.mrf.mxu0
        %v3695 = vadd.f32 %v3533, %v3694
        %v3696 = vpop.f32.mrf.mxu0
        %v3697 = vadd.f32 %v3535, %v3696
        %3698 = vmatmul.bf16.gmra.mxu0 %v3659
        %v3699 = vpop.f32.mrf.mxu0
        %v3700 = vadd.f32 %v3538, %v3699
        %v3701 = vpop.f32.mrf.mxu0
        %v3702 = vadd.f32 %v3540, %v3701
        %3703 = vmatmul.bf16.gmra.mxu0 %v3662
        %v3704 = vpop.f32.mrf.mxu0
        %v3705 = vadd.f32 %v3543, %v3704
        %v3706 = vpop.f32.mrf.mxu0
        %v3707 = vadd.f32 %v3545, %v3706
        %3708 = vmatmul.bf16.gmra.mxu0 %v3665
        %v3709 = vpop.f32.mrf.mxu0
        %v3710 = vadd.f32 %v3548, %v3709
        %v3711 = vpop.f32.mrf.mxu0
        %v3712 = vadd.f32 %v3550, %v3711
        %3713 = vmatmul.bf16.gmra.mxu0 %v3668
        %v3714 = vpop.f32.mrf.mxu0
        %v3715 = vadd.f32 %v3553, %v3714
        %v3716 = vpop.f32.mrf.mxu0
        %v3717 = vadd.f32 %v3555, %v3716
        %3718 = vdwg.mxu0
        %v3719 = vld [vmem:[#allocation3 + $0x80] sm:$0xf]
        %v3720 = vld [vmem:[%s2151] sm:$0xf]
        %v3721 = vld [vmem:[%s2151 + $0x4] sm:$0xf]
        %v3723 = vunpack.c.l.b16 %v3719
        %v3724 = vpack.c.b16 %v3723, %v3723
        %v3726 = vshrl.u32 %v3452, 16
        %v3728 = vrot.slane %v3726, 3
        %v3729 = vshll.u32 %v3452, 16
        %v3731 = vrot.slane %v3729, 4
        %v3732 = vor.u32 %v3728, %v3731
        %v3733 = vrot.slane %v3569, 3
        %v3734 = vrot.slane %v3572, 4
        %v3735 = vor.u32 %v3733, %v3734
        %v3736 = vsel %vm2157, %v3732, %v3735
        %v3737 = vrot.slane %v3578, 3
        %v3738 = vrot.slane %v3581, 4
        %v3739 = vor.u32 %v3737, %v3738
        %v3740 = vsel %vm2157, %v3735, %v3739
        %v3741 = vrot.slane %v3587, 3
        %v3742 = vrot.slane %v3590, 4
        %v3743 = vor.u32 %v3741, %v3742
        %v3744 = vsel %vm2157, %v3739, %v3743
        %v3745 = vrot.slane %v3596, 3
        %v3746 = vrot.slane %v3599, 4
        %v3747 = vor.u32 %v3745, %v3746
        %v3748 = vsel %vm2157, %v3743, %v3747
        %v3749 = vrot.slane %v3605, 3
        %v3750 = vrot.slane %v3608, 4
        %v3751 = vor.u32 %v3749, %v3750
        %v3752 = vsel %vm2157, %v3747, %v3751
        %v3753 = vrot.slane %v3614, 3
        %v3754 = vrot.slane %v3617, 4
        %v3755 = vor.u32 %v3753, %v3754
        %v3756 = vsel %vm2157, %v3751, %v3755
        %v3757 = vrot.slane %v3623, 3
        %v3758 = vrot.slane %v3626, 4
        %v3759 = vor.u32 %v3757, %v3758
        %v3760 = vsel %vm2157, %v3755, %v3759
        %v3762 = vshrl.u32 %v3724, 16
        %v3764 = vrot.slane %v3762, 3
        %v3765 = vshll.u32 %v3724, 16
        %v3767 = vrot.slane %v3765, 4
        %v3768 = vor.u32 %v3764, %v3767
        %v3769 = vsel %vm2157, %v3759, %v3768
        %v3772 = vunpack.c.l.b16 %v3720
        %v3773 = vunpack.c.l.b16 %v3721
        %v3774 = vpack.c.b16 %v3773, %v3772
        %v3777 = vsel %vm447, %v3736, 0
        %v3780 = vsel %vm447, %v3740, 0
        %v3783 = vsel %vm447, %v3744, 0
        %v3786 = vsel %vm447, %v3748, 0
        %v3789 = vsel %vm447, %v3752, 0
        %v3792 = vsel %vm447, %v3756, 0
        %v3795 = vsel %vm447, %v3760, 0
        %v3798 = vsel %vm447, %v3769, 0
        %3800 = vmatpush.bf16.msra.mxu0 0
        %3801 = vmatpush.bf16.msra.mxu0 0
        %3802 = vmatpush.bf16.msra.mxu0 0
        %3803 = vmatpush.bf16.msra.mxu0 0
        %3804 = vmatpush.bf16.msra.mxu0 0
        %3805 = vmatpush.bf16.msra.mxu0 0
        %3806 = vmatpush.bf16.msra.mxu0 0
        %3807 = vmatpush.bf16.msra.mxu0 %v3774
        %3808 = vmatmul.bf16.gmra.mxu0 %v3777
        %v3809 = vpop.f32.mrf.mxu0
        %v3810 = vadd.f32 0.0, %v3809
        %v3811 = vpop.f32.mrf.mxu0
        %v3812 = vadd.f32 0.0, %v3811
        %3813 = vmatmul.bf16.gmra.mxu0 %v3780
        %v3814 = vpop.f32.mrf.mxu0
        %v3815 = vadd.f32 0.0, %v3814
        %v3816 = vpop.f32.mrf.mxu0
        %v3817 = vadd.f32 0.0, %v3816
        %3818 = vmatmul.bf16.gmra.mxu0 %v3783
        %v3819 = vpop.f32.mrf.mxu0
        %v3820 = vadd.f32 0.0, %v3819
        %v3821 = vpop.f32.mrf.mxu0
        %v3822 = vadd.f32 0.0, %v3821
        %3823 = vmatmul.bf16.gmra.mxu0 %v3786
        %v3824 = vpop.f32.mrf.mxu0
        %v3825 = vadd.f32 0.0, %v3824
        %v3826 = vpop.f32.mrf.mxu0
        %v3827 = vadd.f32 0.0, %v3826
        %3828 = vmatmul.bf16.gmra.mxu0 %v3789
        %v3829 = vpop.f32.mrf.mxu0
        %v3830 = vadd.f32 0.0, %v3829
        %v3831 = vpop.f32.mrf.mxu0
        %v3832 = vadd.f32 0.0, %v3831
        %3833 = vmatmul.bf16.gmra.mxu0 %v3792
        %v3834 = vpop.f32.mrf.mxu0
        %v3835 = vadd.f32 0.0, %v3834
        %v3836 = vpop.f32.mrf.mxu0
        %v3837 = vadd.f32 0.0, %v3836
        %3838 = vmatmul.bf16.gmra.mxu0 %v3795
        %v3839 = vpop.f32.mrf.mxu0
        %v3840 = vadd.f32 0.0, %v3839
        %v3841 = vpop.f32.mrf.mxu0
        %v3842 = vadd.f32 0.0, %v3841
        %3843 = vmatmul.bf16.gmra.mxu0 %v3798
        %v3844 = vpop.f32.mrf.mxu0
        %v3845 = vadd.f32 0.0, %v3844
        %v3846 = vpop.f32.mrf.mxu0
        %v3847 = vadd.f32 0.0, %v3846
        %3848 = vdwg.mxu0
        %v3849 = vadd.f32 %v3680, %v3810
        %v3850 = vadd.f32 %v3682, %v3812
        %v3851 = vadd.f32 %v3685, %v3815
        %v3852 = vadd.f32 %v3687, %v3817
        %v3853 = vadd.f32 %v3690, %v3820
        %v3854 = vadd.f32 %v3692, %v3822
        %v3855 = vadd.f32 %v3695, %v3825
        %v3856 = vadd.f32 %v3697, %v3827
        %v3857 = vadd.f32 %v3700, %v3830
        %v3858 = vadd.f32 %v3702, %v3832
        %v3859 = vadd.f32 %v3705, %v3835
        %v3860 = vadd.f32 %v3707, %v3837
        %v3861 = vadd.f32 %v3710, %v3840
        %v3862 = vadd.f32 %v3712, %v3842
        %v3863 = vadd.f32 %v3715, %v3845
        %v3864 = vadd.f32 %v3717, %v3847
        %v3865 = vld [vmem:[#allocation3 + $0x48] sm:$0x8]
        %v3866 = vld [vmem:[#allocation3 + $0x4c] sm:$0xf]
        %v3867 = vld [vmem:[#allocation3 + $0x50] sm:$0xf]
        %v3868 = vld [vmem:[#allocation3 + $0x54] sm:$0xf]
        %v3869 = vld [vmem:[#allocation3 + $0x58] sm:$0xf]
        %v3870 = vld [vmem:[#allocation3 + $0x5c] sm:$0xf]
        %v3871 = vld [vmem:[#allocation3 + $0x60] sm:$0xf]
        %v3872 = vld [vmem:[#allocation3 + $0x64] sm:$0xf]
        %v3873 = vld [vmem:[#allocation3 + $0x68] sm:$0xf]
        %v3874 = vld [vmem:[#allocation3 + $0x6c] sm:$0xf]
        %v3875 = vld [vmem:[#allocation3 + $0x70] sm:$0xf]
        %v3876 = vld [vmem:[#allocation3 + $0x74] sm:$0xf]
        %v3877 = vld [vmem:[#allocation3 + $0x78] sm:$0xf]
        %v3878 = vld [vmem:[#allocation3 + $0x7c] sm:$0xf]
        %v3879 = vld [vmem:[#allocation3 + $0x80] sm:$0xf]
        %v3880 = vld [vmem:[#allocation3 + $0x84] sm:$0xf]
        %v3881 = vld [vmem:[#allocation3 + $0x88] sm:$0xf]
        %v3882 = vld [vmem:[%s2315] sm:$0xf]
        %v3883 = vld [vmem:[%s2315 + $0x4] sm:$0xf]
        %v3901 = vunpack.c.l.b16 %v3865
        %v3902 = vunpack.c.l.b16 %v3866
        %v3903 = vunpack.c.l.b16 %v3867
        %v3904 = vunpack.c.l.b16 %v3868
        %v3905 = vunpack.c.l.b16 %v3869
        %v3906 = vunpack.c.l.b16 %v3870
        %v3907 = vunpack.c.l.b16 %v3871
        %v3908 = vunpack.c.l.b16 %v3872
        %v3909 = vunpack.c.l.b16 %v3873
        %v3910 = vunpack.c.l.b16 %v3874
        %v3911 = vunpack.c.l.b16 %v3875
        %v3912 = vunpack.c.l.b16 %v3876
        %v3913 = vunpack.c.l.b16 %v3877
        %v3914 = vunpack.c.l.b16 %v3878
        %v3915 = vunpack.c.l.b16 %v3879
        %v3916 = vunpack.c.l.b16 %v3880
        %v3917 = vunpack.c.l.b16 %v3881
        %v3918 = vpack.c.b16 %v3902, %v3901
        %v3919 = vpack.c.b16 %v3904, %v3903
        %v3920 = vpack.c.b16 %v3906, %v3905
        %v3921 = vpack.c.b16 %v3908, %v3907
        %v3922 = vpack.c.b16 %v3910, %v3909
        %v3923 = vpack.c.b16 %v3912, %v3911
        %v3924 = vpack.c.b16 %v3914, %v3913
        %v3925 = vpack.c.b16 %v3916, %v3915
        %v3926 = vpack.c.b16 %v3917, %v3917
        %v3928 = vshrl.u32 %v3918, 16
        %v3930 = vrot.slane %v3928, 3
        %v3931 = vshll.u32 %v3918, 16
        %v3933 = vrot.slane %v3931, 4
        %v3934 = vor.u32 %v3930, %v3933
        %v3936 = vshrl.u32 %v3919, 16
        %v3938 = vrot.slane %v3936, 3
        %v3939 = vshll.u32 %v3919, 16
        %v3941 = vrot.slane %v3939, 4
        %v3942 = vor.u32 %v3938, %v3941
        %v3943 = vsel %vm2157, %v3934, %v3942
        %v3945 = vshrl.u32 %v3920, 16
        %v3947 = vrot.slane %v3945, 3
        %v3948 = vshll.u32 %v3920, 16
        %v3950 = vrot.slane %v3948, 4
        %v3951 = vor.u32 %v3947, %v3950
        %v3952 = vsel %vm2157, %v3942, %v3951
        %v3954 = vshrl.u32 %v3921, 16
        %v3956 = vrot.slane %v3954, 3
        %v3957 = vshll.u32 %v3921, 16
        %v3959 = vrot.slane %v3957, 4
        %v3960 = vor.u32 %v3956, %v3959
        %v3961 = vsel %vm2157, %v3951, %v3960
        %v3963 = vshrl.u32 %v3922, 16
        %v3965 = vrot.slane %v3963, 3
        %v3966 = vshll.u32 %v3922, 16
        %v3968 = vrot.slane %v3966, 4
        %v3969 = vor.u32 %v3965, %v3968
        %v3970 = vsel %vm2157, %v3960, %v3969
        %v3972 = vshrl.u32 %v3923, 16
        %v3974 = vrot.slane %v3972, 3
        %v3975 = vshll.u32 %v3923, 16
        %v3977 = vrot.slane %v3975, 4
        %v3978 = vor.u32 %v3974, %v3977
        %v3979 = vsel %vm2157, %v3969, %v3978
        %v3981 = vshrl.u32 %v3924, 16
        %v3983 = vrot.slane %v3981, 3
        %v3984 = vshll.u32 %v3924, 16
        %v3986 = vrot.slane %v3984, 4
        %v3987 = vor.u32 %v3983, %v3986
        %v3988 = vsel %vm2157, %v3978, %v3987
        %v3990 = vshrl.u32 %v3925, 16
        %v3992 = vrot.slane %v3990, 3
        %v3993 = vshll.u32 %v3925, 16
        %v3995 = vrot.slane %v3993, 4
        %v3996 = vor.u32 %v3992, %v3995
        %v3997 = vsel %vm2157, %v3987, %v3996
        %v3999 = vshrl.u32 %v3926, 16
        %v4001 = vrot.slane %v3999, 3
        %v4002 = vshll.u32 %v3926, 16
        %v4004 = vrot.slane %v4002, 4
        %v4005 = vor.u32 %v4001, %v4004
        %v4006 = vsel %vm2157, %v3996, %v4005
        %v4009 = vunpack.c.l.b16 %v3882
        %v4010 = vunpack.c.l.b16 %v3883
        %v4011 = vpack.c.b16 %v4010, %v4009
        %v4014 = vsel %vm447, %v3943, 0
        %v4017 = vsel %vm447, %v3952, 0
        %v4020 = vsel %vm447, %v3961, 0
        %v4023 = vsel %vm447, %v3970, 0
        %v4026 = vsel %vm447, %v3979, 0
        %v4029 = vsel %vm447, %v3988, 0
        %v4032 = vsel %vm447, %v3997, 0
        %v4035 = vsel %vm447, %v4006, 0
        %4037 = vmatpush.bf16.msra.mxu0 0
        %4038 = vmatpush.bf16.msra.mxu0 0
        %4039 = vmatpush.bf16.msra.mxu0 0
        %4040 = vmatpush.bf16.msra.mxu0 0
        %4041 = vmatpush.bf16.msra.mxu0 0
        %4042 = vmatpush.bf16.msra.mxu0 0
        %4043 = vmatpush.bf16.msra.mxu0 0
        %4044 = vmatpush.bf16.msra.mxu0 %v4011
        %4045 = vmatmul.bf16.gmra.mxu0 %v4014
        %v4046 = vpop.f32.mrf.mxu0
        %v4047 = vadd.f32 0.0, %v4046
        %v4048 = vpop.f32.mrf.mxu0
        %v4049 = vadd.f32 0.0, %v4048
        %4050 = vmatmul.bf16.gmra.mxu0 %v4017
        %v4051 = vpop.f32.mrf.mxu0
        %v4052 = vadd.f32 0.0, %v4051
        %v4053 = vpop.f32.mrf.mxu0
        %v4054 = vadd.f32 0.0, %v4053
        %4055 = vmatmul.bf16.gmra.mxu0 %v4020
        %v4056 = vpop.f32.mrf.mxu0
        %v4057 = vadd.f32 0.0, %v4056
        %v4058 = vpop.f32.mrf.mxu0
        %v4059 = vadd.f32 0.0, %v4058
        %4060 = vmatmul.bf16.gmra.mxu0 %v4023
        %v4061 = vpop.f32.mrf.mxu0
        %v4062 = vadd.f32 0.0, %v4061
        %v4063 = vpop.f32.mrf.mxu0
        %v4064 = vadd.f32 0.0, %v4063
        %4065 = vmatmul.bf16.gmra.mxu0 %v4026
        %v4066 = vpop.f32.mrf.mxu0
        %v4067 = vadd.f32 0.0, %v4066
        %v4068 = vpop.f32.mrf.mxu0
        %v4069 = vadd.f32 0.0, %v4068
        %4070 = vmatmul.bf16.gmra.mxu0 %v4029
        %v4071 = vpop.f32.mrf.mxu0
        %v4072 = vadd.f32 0.0, %v4071
        %v4073 = vpop.f32.mrf.mxu0
        %v4074 = vadd.f32 0.0, %v4073
        %4075 = vmatmul.bf16.gmra.mxu0 %v4032
        %v4076 = vpop.f32.mrf.mxu0
        %v4077 = vadd.f32 0.0, %v4076
        %v4078 = vpop.f32.mrf.mxu0
        %v4079 = vadd.f32 0.0, %v4078
        %4080 = vmatmul.bf16.gmra.mxu0 %v4035
        %v4081 = vpop.f32.mrf.mxu0
        %v4082 = vadd.f32 0.0, %v4081
        %v4083 = vpop.f32.mrf.mxu0
        %v4084 = vadd.f32 0.0, %v4083
        %4085 = vdwg.mxu0
        %v4086 = vadd.f32 %v3849, %v4047
        %v4087 = vadd.f32 %v3850, %v4049
        %v4088 = vadd.f32 %v3851, %v4052
        %v4089 = vadd.f32 %v3852, %v4054
        %v4090 = vadd.f32 %v3853, %v4057
        %v4091 = vadd.f32 %v3854, %v4059
        %v4092 = vadd.f32 %v3855, %v4062
        %v4093 = vadd.f32 %v3856, %v4064
        %v4094 = vadd.f32 %v3857, %v4067
        %v4095 = vadd.f32 %v3858, %v4069
        %v4096 = vadd.f32 %v3859, %v4072
        %v4097 = vadd.f32 %v3860, %v4074
        %v4098 = vadd.f32 %v3861, %v4077
        %v4099 = vadd.f32 %v3862, %v4079
        %v4100 = vadd.f32 %v3863, %v4082
        %v4101 = vadd.f32 %v3864, %v4084
        %v4102 = vld [vmem:[%s2536] sm:$0xf]
        %v4103 = vld [vmem:[%s2536 + $0x4] sm:$0xf]
        %v4104 = vpack.c.b16 %v3903, %v3902
        %v4105 = vpack.c.b16 %v3905, %v3904
        %v4106 = vpack.c.b16 %v3907, %v3906
        %v4107 = vpack.c.b16 %v3909, %v3908
        %v4108 = vpack.c.b16 %v3911, %v3910
        %v4109 = vpack.c.b16 %v3913, %v3912
        %v4110 = vpack.c.b16 %v3915, %v3914
        %v4111 = vpack.c.b16 %v3917, %v3916
        %v4114 = vunpack.c.l.b16 %v4102
        %v4115 = vunpack.c.l.b16 %v4103
        %v4116 = vpack.c.b16 %v4115, %v4114
        %v4119 = vsel %vm447, %v4104, 0
        %v4122 = vsel %vm447, %v4105, 0
        %v4125 = vsel %vm447, %v4106, 0
        %v4128 = vsel %vm447, %v4107, 0
        %v4131 = vsel %vm447, %v4108, 0
        %v4134 = vsel %vm447, %v4109, 0
        %v4137 = vsel %vm447, %v4110, 0
        %v4140 = vsel %vm447, %v4111, 0
        %4142 = vmatpush.bf16.msra.mxu0 0
        %4143 = vmatpush.bf16.msra.mxu0 0
        %4144 = vmatpush.bf16.msra.mxu0 0
        %4145 = vmatpush.bf16.msra.mxu0 0
        %4146 = vmatpush.bf16.msra.mxu0 0
        %4147 = vmatpush.bf16.msra.mxu0 0
        %4148 = vmatpush.bf16.msra.mxu0 0
        %4149 = vmatpush.bf16.msra.mxu0 %v4116
        %4150 = vmatmul.bf16.gmra.mxu0 %v4119
        %v4151 = vpop.f32.mrf.mxu0
        %v4152 = vadd.f32 0.0, %v4151
        %v4153 = vpop.f32.mrf.mxu0
        %v4154 = vadd.f32 0.0, %v4153
        %4155 = vmatmul.bf16.gmra.mxu0 %v4122
        %v4156 = vpop.f32.mrf.mxu0
        %v4157 = vadd.f32 0.0, %v4156
        %v4158 = vpop.f32.mrf.mxu0
        %v4159 = vadd.f32 0.0, %v4158
        %4160 = vmatmul.bf16.gmra.mxu0 %v4125
        %v4161 = vpop.f32.mrf.mxu0
        %v4162 = vadd.f32 0.0, %v4161
        %v4163 = vpop.f32.mrf.mxu0
        %v4164 = vadd.f32 0.0, %v4163
        %4165 = vmatmul.bf16.gmra.mxu0 %v4128
        %v4166 = vpop.f32.mrf.mxu0
        %v4167 = vadd.f32 0.0, %v4166
        %v4168 = vpop.f32.mrf.mxu0
        %v4169 = vadd.f32 0.0, %v4168
        %4170 = vmatmul.bf16.gmra.mxu0 %v4131
        %v4171 = vpop.f32.mrf.mxu0
        %v4172 = vadd.f32 0.0, %v4171
        %v4173 = vpop.f32.mrf.mxu0
        %v4174 = vadd.f32 0.0, %v4173
        %4175 = vmatmul.bf16.gmra.mxu0 %v4134
        %v4176 = vpop.f32.mrf.mxu0
        %v4177 = vadd.f32 0.0, %v4176
        %v4178 = vpop.f32.mrf.mxu0
        %v4179 = vadd.f32 0.0, %v4178
        %4180 = vmatmul.bf16.gmra.mxu0 %v4137
        %v4181 = vpop.f32.mrf.mxu0
        %v4182 = vadd.f32 0.0, %v4181
        %v4183 = vpop.f32.mrf.mxu0
        %v4184 = vadd.f32 0.0, %v4183
        %4185 = vmatmul.bf16.gmra.mxu0 %v4140
        %v4186 = vpop.f32.mrf.mxu0
        %v4187 = vadd.f32 0.0, %v4186
        %v4188 = vpop.f32.mrf.mxu0
        %v4189 = vadd.f32 0.0, %v4188
        %4190 = vdwg.mxu0
        %v4191 = vadd.f32 %v4086, %v4152
        %v4192 = vadd.f32 %v4087, %v4154
        %v4193 = vadd.f32 %v4088, %v4157
        %v4194 = vadd.f32 %v4089, %v4159
        %v4195 = vadd.f32 %v4090, %v4162
        %v4196 = vadd.f32 %v4091, %v4164
        %v4197 = vadd.f32 %v4092, %v4167
        %v4198 = vadd.f32 %v4093, %v4169
        %v4199 = vadd.f32 %v4094, %v4172
        %v4200 = vadd.f32 %v4095, %v4174
        %v4201 = vadd.f32 %v4096, %v4177
        %v4202 = vadd.f32 %v4097, %v4179
        %v4203 = vadd.f32 %v4098, %v4182
        %v4204 = vadd.f32 %v4099, %v4184
        %v4205 = vadd.f32 %v4100, %v4187
        %v4206 = vadd.f32 %v4101, %v4189
        %v4207 = vld [vmem:[#allocation3 + $0x4c] sm:$0xf]
        %v4208 = vld [vmem:[#allocation3 + $0x50] sm:$0xf]
        %v4209 = vld [vmem:[#allocation3 + $0x54] sm:$0xf]
        %v4210 = vld [vmem:[#allocation3 + $0x58] sm:$0xf]
        %v4211 = vld [vmem:[#allocation3 + $0x5c] sm:$0xf]
        %v4212 = vld [vmem:[#allocation3 + $0x60] sm:$0xf]
        %v4213 = vld [vmem:[#allocation3 + $0x64] sm:$0xf]
        %v4214 = vld [vmem:[#allocation3 + $0x68] sm:$0xf]
        %v4215 = vld [vmem:[#allocation3 + $0x6c] sm:$0xf]
        %v4216 = vld [vmem:[#allocation3 + $0x70] sm:$0xf]
        %v4217 = vld [vmem:[#allocation3 + $0x74] sm:$0xf]
        %v4218 = vld [vmem:[#allocation3 + $0x78] sm:$0xf]
        %v4219 = vld [vmem:[#allocation3 + $0x7c] sm:$0xf]
        %v4220 = vld [vmem:[#allocation3 + $0x80] sm:$0xf]
        %v4221 = vld [vmem:[#allocation3 + $0x84] sm:$0xf]
        %v4222 = vld [vmem:[#allocation3 + $0x88] sm:$0xf]
        %v4223 = vld [vmem:[#allocation3 + $0x8c] sm:$0x1]
        %v4224 = vld [vmem:[%s2659] sm:$0xf]
        %v4225 = vld [vmem:[%s2659 + $0x4] sm:$0xf]
        %v4243 = vunpack.c.l.b16 %v4207
        %v4244 = vunpack.c.l.b16 %v4208
        %v4245 = vunpack.c.l.b16 %v4209
        %v4246 = vunpack.c.l.b16 %v4210
        %v4247 = vunpack.c.l.b16 %v4211
        %v4248 = vunpack.c.l.b16 %v4212
        %v4249 = vunpack.c.l.b16 %v4213
        %v4250 = vunpack.c.l.b16 %v4214
        %v4251 = vunpack.c.l.b16 %v4215
        %v4252 = vunpack.c.l.b16 %v4216
        %v4253 = vunpack.c.l.b16 %v4217
        %v4254 = vunpack.c.l.b16 %v4218
        %v4255 = vunpack.c.l.b16 %v4219
        %v4256 = vunpack.c.l.b16 %v4220
        %v4257 = vunpack.c.l.b16 %v4221
        %v4258 = vunpack.c.l.b16 %v4222
        %v4259 = vunpack.c.l.b16 %v4223
        %v4260 = vpack.c.b16 %v4244, %v4243
        %v4261 = vpack.c.b16 %v4246, %v4245
        %v4262 = vpack.c.b16 %v4248, %v4247
        %v4263 = vpack.c.b16 %v4250, %v4249
        %v4264 = vpack.c.b16 %v4252, %v4251
        %v4265 = vpack.c.b16 %v4254, %v4253
        %v4266 = vpack.c.b16 %v4256, %v4255
        %v4267 = vpack.c.b16 %v4258, %v4257
        %v4268 = vpack.c.b16 %v4259, %v4259
        %v4270 = vshrl.u32 %v4260, 16
        %v4272 = vshll.u32 %v4260, 16
        %v4274 = vrot.slane %v4272, 1
        %v4275 = vor.u32 %v4270, %v4274
        %v4277 = vshll.u32 %v4261, 16
        %v4279 = vrot.slane %v4277, 1
        %v4280 = vsel %vm2705, %v4275, %v4279
        %v4281 = vshrl.u32 %v4261, 16
        %v4283 = vor.u32 %v4281, %v4279
        %v4285 = vshll.u32 %v4262, 16
        %v4287 = vrot.slane %v4285, 1
        %v4288 = vsel %vm2705, %v4283, %v4287
        %v4289 = vshrl.u32 %v4262, 16
        %v4291 = vor.u32 %v4289, %v4287
        %v4293 = vshll.u32 %v4263, 16
        %v4295 = vrot.slane %v4293, 1
        %v4296 = vsel %vm2705, %v4291, %v4295
        %v4297 = vshrl.u32 %v4263, 16
        %v4299 = vor.u32 %v4297, %v4295
        %v4301 = vshll.u32 %v4264, 16
        %v4303 = vrot.slane %v4301, 1
        %v4304 = vsel %vm2705, %v4299, %v4303
        %v4305 = vshrl.u32 %v4264, 16
        %v4307 = vor.u32 %v4305, %v4303
        %v4309 = vshll.u32 %v4265, 16
        %v4311 = vrot.slane %v4309, 1
        %v4312 = vsel %vm2705, %v4307, %v4311
        %v4313 = vshrl.u32 %v4265, 16
        %v4315 = vor.u32 %v4313, %v4311
        %v4317 = vshll.u32 %v4266, 16
        %v4319 = vrot.slane %v4317, 1
        %v4320 = vsel %vm2705, %v4315, %v4319
        %v4321 = vshrl.u32 %v4266, 16
        %v4323 = vor.u32 %v4321, %v4319
        %v4325 = vshll.u32 %v4267, 16
        %v4327 = vrot.slane %v4325, 1
        %v4328 = vsel %vm2705, %v4323, %v4327
        %v4329 = vshrl.u32 %v4267, 16
        %v4331 = vor.u32 %v4329, %v4327
        %v4333 = vshll.u32 %v4268, 16
        %v4335 = vrot.slane %v4333, 1
        %v4336 = vsel %vm2705, %v4331, %v4335
        %v4339 = vunpack.c.l.b16 %v4224
        %v4340 = vunpack.c.l.b16 %v4225
        %v4341 = vpack.c.b16 %v4340, %v4339
        %v4344 = vsel %vm447, %v4280, 0
        %v4347 = vsel %vm447, %v4288, 0
        %v4350 = vsel %vm447, %v4296, 0
        %v4353 = vsel %vm447, %v4304, 0
        %v4356 = vsel %vm447, %v4312, 0
        %v4359 = vsel %vm447, %v4320, 0
        %v4362 = vsel %vm447, %v4328, 0
        %v4365 = vsel %vm447, %v4336, 0
        %4367 = vmatpush.bf16.msra.mxu0 0
        %4368 = vmatpush.bf16.msra.mxu0 0
        %4369 = vmatpush.bf16.msra.mxu0 0
        %4370 = vmatpush.bf16.msra.mxu0 0
        %4371 = vmatpush.bf16.msra.mxu0 0
        %4372 = vmatpush.bf16.msra.mxu0 0
        %4373 = vmatpush.bf16.msra.mxu0 0
        %4374 = vmatpush.bf16.msra.mxu0 %v4341
        %4375 = vmatmul.bf16.gmra.mxu0 %v4344
        %v4376 = vpop.f32.mrf.mxu0
        %v4377 = vadd.f32 0.0, %v4376
        %v4378 = vpop.f32.mrf.mxu0
        %v4379 = vadd.f32 0.0, %v4378
        %4380 = vmatmul.bf16.gmra.mxu0 %v4347
        %v4381 = vpop.f32.mrf.mxu0
        %v4382 = vadd.f32 0.0, %v4381
        %v4383 = vpop.f32.mrf.mxu0
        %v4384 = vadd.f32 0.0, %v4383
        %4385 = vmatmul.bf16.gmra.mxu0 %v4350
        %v4386 = vpop.f32.mrf.mxu0
        %v4387 = vadd.f32 0.0, %v4386
        %v4388 = vpop.f32.mrf.mxu0
        %v4389 = vadd.f32 0.0, %v4388
        %4390 = vmatmul.bf16.gmra.mxu0 %v4353
        %v4391 = vpop.f32.mrf.mxu0
        %v4392 = vadd.f32 0.0, %v4391
        %v4393 = vpop.f32.mrf.mxu0
        %v4394 = vadd.f32 0.0, %v4393
        %4395 = vmatmul.bf16.gmra.mxu0 %v4356
        %v4396 = vpop.f32.mrf.mxu0
        %v4397 = vadd.f32 0.0, %v4396
        %v4398 = vpop.f32.mrf.mxu0
        %v4399 = vadd.f32 0.0, %v4398
        %4400 = vmatmul.bf16.gmra.mxu0 %v4359
        %v4401 = vpop.f32.mrf.mxu0
        %v4402 = vadd.f32 0.0, %v4401
        %v4403 = vpop.f32.mrf.mxu0
        %v4404 = vadd.f32 0.0, %v4403
        %4405 = vmatmul.bf16.gmra.mxu0 %v4362
        %v4406 = vpop.f32.mrf.mxu0
        %v4407 = vadd.f32 0.0, %v4406
        %v4408 = vpop.f32.mrf.mxu0
        %v4409 = vadd.f32 0.0, %v4408
        %4410 = vmatmul.bf16.gmra.mxu0 %v4365
        %v4411 = vpop.f32.mrf.mxu0
        %v4412 = vadd.f32 0.0, %v4411
        %v4413 = vpop.f32.mrf.mxu0
        %v4414 = vadd.f32 0.0, %v4413
        %4415 = vdwg.mxu0
        %v4416 = vadd.f32 %v4191, %v4377
        %v4417 = vadd.f32 %v4192, %v4379
        %v4418 = vadd.f32 %v4193, %v4382
        %v4419 = vadd.f32 %v4194, %v4384
        %v4420 = vadd.f32 %v4195, %v4387
        %v4421 = vadd.f32 %v4196, %v4389
        %v4422 = vadd.f32 %v4197, %v4392
        %v4423 = vadd.f32 %v4198, %v4394
        %v4424 = vadd.f32 %v4199, %v4397
        %v4425 = vadd.f32 %v4200, %v4399
        %v4426 = vadd.f32 %v4201, %v4402
        %v4427 = vadd.f32 %v4202, %v4404
        %v4428 = vadd.f32 %v4203, %v4407
        %v4429 = vadd.f32 %v4204, %v4409
        %v4430 = vadd.f32 %v4205, %v4412
        %v4431 = vadd.f32 %v4206, %v4414
        %v4432 = vld [vmem:[#allocation3 + $0x54] sm:$0xf]
        %v4433 = vld [vmem:[#allocation3 + $0x58] sm:$0xf]
        %v4434 = vld [vmem:[#allocation3 + $0x5c] sm:$0xf]
        %v4435 = vld [vmem:[#allocation3 + $0x60] sm:$0xf]
        %v4436 = vld [vmem:[#allocation3 + $0x64] sm:$0xf]
        %v4437 = vld [vmem:[#allocation3 + $0x68] sm:$0xf]
        %v4438 = vld [vmem:[#allocation3 + $0x6c] sm:$0xf]
        %v4439 = vld [vmem:[#allocation3 + $0x70] sm:$0xf]
        %v4440 = vld [vmem:[#allocation3 + $0x74] sm:$0xf]
        %v4441 = vld [vmem:[#allocation3 + $0x78] sm:$0xf]
        %v4442 = vld [vmem:[#allocation3 + $0x7c] sm:$0xf]
        %v4443 = vld [vmem:[#allocation3 + $0x80] sm:$0xf]
        %v4444 = vld [vmem:[#allocation3 + $0x84] sm:$0xf]
        %v4445 = vld [vmem:[#allocation3 + $0x88] sm:$0xf]
        %v4446 = vld [vmem:[#allocation3 + $0x8c] sm:$0xf]
        %v4447 = vld [vmem:[#allocation3 + $0x90] sm:$0xf]
        %v4448 = vld [vmem:[#allocation3 + $0x94] sm:$0x1]
        %v4449 = vld [vmem:[%s2886] sm:$0xf]
        %v4450 = vld [vmem:[%s2886 + $0x4] sm:$0xf]
        %v4468 = vunpack.c.l.b16 %v4432
        %v4469 = vunpack.c.l.b16 %v4433
        %v4470 = vunpack.c.l.b16 %v4434
        %v4471 = vunpack.c.l.b16 %v4435
        %v4472 = vunpack.c.l.b16 %v4436
        %v4473 = vunpack.c.l.b16 %v4437
        %v4474 = vunpack.c.l.b16 %v4438
        %v4475 = vunpack.c.l.b16 %v4439
        %v4476 = vunpack.c.l.b16 %v4440
        %v4477 = vunpack.c.l.b16 %v4441
        %v4478 = vunpack.c.l.b16 %v4442
        %v4479 = vunpack.c.l.b16 %v4443
        %v4480 = vunpack.c.l.b16 %v4444
        %v4481 = vunpack.c.l.b16 %v4445
        %v4482 = vunpack.c.l.b16 %v4446
        %v4483 = vunpack.c.l.b16 %v4447
        %v4484 = vunpack.c.l.b16 %v4448
        %v4485 = vpack.c.b16 %v4469, %v4468
        %v4486 = vpack.c.b16 %v4471, %v4470
        %v4487 = vpack.c.b16 %v4473, %v4472
        %v4488 = vpack.c.b16 %v4475, %v4474
        %v4489 = vpack.c.b16 %v4477, %v4476
        %v4490 = vpack.c.b16 %v4479, %v4478
        %v4491 = vpack.c.b16 %v4481, %v4480
        %v4492 = vpack.c.b16 %v4483, %v4482
        %v4493 = vpack.c.b16 %v4484, %v4484
        %v4495 = vshrl.u32 %v4485, 16
        %v4497 = vshll.u32 %v4485, 16
        %v4499 = vrot.slane %v4497, 1
        %v4500 = vor.u32 %v4495, %v4499
        %v4502 = vshll.u32 %v4486, 16
        %v4504 = vrot.slane %v4502, 1
        %v4505 = vsel %vm2705, %v4500, %v4504
        %v4506 = vshrl.u32 %v4486, 16
        %v4508 = vor.u32 %v4506, %v4504
        %v4510 = vshll.u32 %v4487, 16
        %v4512 = vrot.slane %v4510, 1
        %v4513 = vsel %vm2705, %v4508, %v4512
        %v4514 = vshrl.u32 %v4487, 16
        %v4516 = vor.u32 %v4514, %v4512
        %v4518 = vshll.u32 %v4488, 16
        %v4520 = vrot.slane %v4518, 1
        %v4521 = vsel %vm2705, %v4516, %v4520
        %v4522 = vshrl.u32 %v4488, 16
        %v4524 = vor.u32 %v4522, %v4520
        %v4526 = vshll.u32 %v4489, 16
        %v4528 = vrot.slane %v4526, 1
        %v4529 = vsel %vm2705, %v4524, %v4528
        %v4530 = vshrl.u32 %v4489, 16
        %v4532 = vor.u32 %v4530, %v4528
        %v4534 = vshll.u32 %v4490, 16
        %v4536 = vrot.slane %v4534, 1
        %v4537 = vsel %vm2705, %v4532, %v4536
        %v4538 = vshrl.u32 %v4490, 16
        %v4540 = vor.u32 %v4538, %v4536
        %v4542 = vshll.u32 %v4491, 16
        %v4544 = vrot.slane %v4542, 1
        %v4545 = vsel %vm2705, %v4540, %v4544
        %v4546 = vshrl.u32 %v4491, 16
        %v4548 = vor.u32 %v4546, %v4544
        %v4550 = vshll.u32 %v4492, 16
        %v4552 = vrot.slane %v4550, 1
        %v4553 = vsel %vm2705, %v4548, %v4552
        %v4554 = vshrl.u32 %v4492, 16
        %v4556 = vor.u32 %v4554, %v4552
        %v4558 = vshll.u32 %v4493, 16
        %v4560 = vrot.slane %v4558, 1
        %v4561 = vsel %vm2705, %v4556, %v4560
        %v4564 = vunpack.c.l.b16 %v4449
        %v4565 = vunpack.c.l.b16 %v4450
        %v4566 = vpack.c.b16 %v4565, %v4564
        %v4569 = vsel %vm447, %v4505, 0
        %v4572 = vsel %vm447, %v4513, 0
        %v4575 = vsel %vm447, %v4521, 0
        %v4578 = vsel %vm447, %v4529, 0
        %v4581 = vsel %vm447, %v4537, 0
        %v4584 = vsel %vm447, %v4545, 0
        %v4587 = vsel %vm447, %v4553, 0
        %v4590 = vsel %vm447, %v4561, 0
        %4592 = vmatpush.bf16.msra.mxu0 0
        %4593 = vmatpush.bf16.msra.mxu0 0
        %4594 = vmatpush.bf16.msra.mxu0 0
        %4595 = vmatpush.bf16.msra.mxu0 0
        %4596 = vmatpush.bf16.msra.mxu0 0
        %4597 = vmatpush.bf16.msra.mxu0 0
        %4598 = vmatpush.bf16.msra.mxu0 0
        %4599 = vmatpush.bf16.msra.mxu0 %v4566
        %4600 = vmatmul.bf16.gmra.mxu0 %v4569
        %v4601 = vpop.f32.mrf.mxu0
        %v4602 = vadd.f32 0.0, %v4601
        %v4603 = vpop.f32.mrf.mxu0
        %v4604 = vadd.f32 0.0, %v4603
        %4605 = vmatmul.bf16.gmra.mxu0 %v4572
        %v4606 = vpop.f32.mrf.mxu0
        %v4607 = vadd.f32 0.0, %v4606
        %v4608 = vpop.f32.mrf.mxu0
        %v4609 = vadd.f32 0.0, %v4608
        %4610 = vmatmul.bf16.gmra.mxu0 %v4575
        %v4611 = vpop.f32.mrf.mxu0
        %v4612 = vadd.f32 0.0, %v4611
        %v4613 = vpop.f32.mrf.mxu0
        %v4614 = vadd.f32 0.0, %v4613
        %4615 = vmatmul.bf16.gmra.mxu0 %v4578
        %v4616 = vpop.f32.mrf.mxu0
        %v4617 = vadd.f32 0.0, %v4616
        %v4618 = vpop.f32.mrf.mxu0
        %v4619 = vadd.f32 0.0, %v4618
        %4620 = vmatmul.bf16.gmra.mxu0 %v4581
        %v4621 = vpop.f32.mrf.mxu0
        %v4622 = vadd.f32 0.0, %v4621
        %v4623 = vpop.f32.mrf.mxu0
        %v4624 = vadd.f32 0.0, %v4623
        %4625 = vmatmul.bf16.gmra.mxu0 %v4584
        %v4626 = vpop.f32.mrf.mxu0
        %v4627 = vadd.f32 0.0, %v4626
        %v4628 = vpop.f32.mrf.mxu0
        %v4629 = vadd.f32 0.0, %v4628
        %4630 = vmatmul.bf16.gmra.mxu0 %v4587
        %v4631 = vpop.f32.mrf.mxu0
        %v4632 = vadd.f32 0.0, %v4631
        %v4633 = vpop.f32.mrf.mxu0
        %v4634 = vadd.f32 0.0, %v4633
        %4635 = vmatmul.bf16.gmra.mxu0 %v4590
        %v4636 = vpop.f32.mrf.mxu0
        %v4637 = vadd.f32 0.0, %v4636
        %v4638 = vpop.f32.mrf.mxu0
        %v4639 = vadd.f32 0.0, %v4638
        %4640 = vdwg.mxu0
        %v4641 = vadd.f32 %v4416, %v4602
        %v4642 = vadd.f32 %v4417, %v4604
        %v4643 = vadd.f32 %v4418, %v4607
        %v4644 = vadd.f32 %v4419, %v4609
        %v4645 = vadd.f32 %v4420, %v4612
        %v4646 = vadd.f32 %v4421, %v4614
        %v4647 = vadd.f32 %v4422, %v4617
        %v4648 = vadd.f32 %v4423, %v4619
        %v4649 = vadd.f32 %v4424, %v4622
        %v4650 = vadd.f32 %v4425, %v4624
        %v4651 = vadd.f32 %v4426, %v4627
        %v4652 = vadd.f32 %v4427, %v4629
        %v4653 = vadd.f32 %v4428, %v4632
        %v4654 = vadd.f32 %v4429, %v4634
        %v4655 = vadd.f32 %v4430, %v4637
        %v4656 = vadd.f32 %v4431, %v4639
        %v4657 = vld [vmem:[#allocation3 + $0x54] sm:$0xe]
        %v4658 = vld [vmem:[%s3096] sm:$0xf]
        %v4659 = vld [vmem:[%s3096 + $0x4] sm:$0xf]
        %v4661 = vunpack.c.l.b16 %v4657
        %v4662 = vpack.c.b16 %v4469, %v4661
        %v4663 = vrot.slane %v4662, 1
        %v4664 = vrot.slane %v4486, 1
        %v4665 = vsel %vm3102, %v4663, %v4664
        %v4666 = vrot.slane %v4487, 1
        %v4667 = vsel %vm3102, %v4664, %v4666
        %v4668 = vrot.slane %v4488, 1
        %v4669 = vsel %vm3102, %v4666, %v4668
        %v4670 = vrot.slane %v4489, 1
        %v4671 = vsel %vm3102, %v4668, %v4670
        %v4672 = vrot.slane %v4490, 1
        %v4673 = vsel %vm3102, %v4670, %v4672
        %v4674 = vrot.slane %v4491, 1
        %v4675 = vsel %vm3102, %v4672, %v4674
        %v4676 = vrot.slane %v4492, 1
        %v4677 = vsel %vm3102, %v4674, %v4676
        %v4678 = vrot.slane %v4493, 1
        %v4679 = vsel %vm3102, %v4676, %v4678
        %v4682 = vunpack.c.l.b16 %v4658
        %v4683 = vunpack.c.l.b16 %v4659
        %v4684 = vpack.c.b16 %v4683, %v4682
        %v4687 = vsel %vm447, %v4665, 0
        %v4690 = vsel %vm447, %v4667, 0
        %v4693 = vsel %vm447, %v4669, 0
        %v4696 = vsel %vm447, %v4671, 0
        %v4699 = vsel %vm447, %v4673, 0
        %v4702 = vsel %vm447, %v4675, 0
        %v4705 = vsel %vm447, %v4677, 0
        %v4708 = vsel %vm447, %v4679, 0
        %4710 = vmatpush.bf16.msra.mxu0 0
        %4711 = vmatpush.bf16.msra.mxu0 0
        %4712 = vmatpush.bf16.msra.mxu0 0
        %4713 = vmatpush.bf16.msra.mxu0 0
        %4714 = vmatpush.bf16.msra.mxu0 0
        %4715 = vmatpush.bf16.msra.mxu0 0
        %4716 = vmatpush.bf16.msra.mxu0 0
        %4717 = vmatpush.bf16.msra.mxu0 %v4684
        %4718 = vmatmul.bf16.gmra.mxu0 %v4687
        %v4719 = vpop.f32.mrf.mxu0
        %v4720 = vadd.f32 0.0, %v4719
        %v4721 = vpop.f32.mrf.mxu0
        %v4722 = vadd.f32 0.0, %v4721
        %4723 = vmatmul.bf16.gmra.mxu0 %v4690
        %v4724 = vpop.f32.mrf.mxu0
        %v4725 = vadd.f32 0.0, %v4724
        %v4726 = vpop.f32.mrf.mxu0
        %v4727 = vadd.f32 0.0, %v4726
        %4728 = vmatmul.bf16.gmra.mxu0 %v4693
        %v4729 = vpop.f32.mrf.mxu0
        %v4730 = vadd.f32 0.0, %v4729
        %v4731 = vpop.f32.mrf.mxu0
        %v4732 = vadd.f32 0.0, %v4731
        %4733 = vmatmul.bf16.gmra.mxu0 %v4696
        %v4734 = vpop.f32.mrf.mxu0
        %v4735 = vadd.f32 0.0, %v4734
        %v4736 = vpop.f32.mrf.mxu0
        %v4737 = vadd.f32 0.0, %v4736
        %4738 = vmatmul.bf16.gmra.mxu0 %v4699
        %v4739 = vpop.f32.mrf.mxu0
        %v4740 = vadd.f32 0.0, %v4739
        %v4741 = vpop.f32.mrf.mxu0
        %v4742 = vadd.f32 0.0, %v4741
        %4743 = vmatmul.bf16.gmra.mxu0 %v4702
        %v4744 = vpop.f32.mrf.mxu0
        %v4745 = vadd.f32 0.0, %v4744
        %v4746 = vpop.f32.mrf.mxu0
        %v4747 = vadd.f32 0.0, %v4746
        %4748 = vmatmul.bf16.gmra.mxu0 %v4705
        %v4749 = vpop.f32.mrf.mxu0
        %v4750 = vadd.f32 0.0, %v4749
        %v4751 = vpop.f32.mrf.mxu0
        %v4752 = vadd.f32 0.0, %v4751
        %4753 = vmatmul.bf16.gmra.mxu0 %v4708
        %v4754 = vpop.f32.mrf.mxu0
        %v4755 = vadd.f32 0.0, %v4754
        %v4756 = vpop.f32.mrf.mxu0
        %v4757 = vadd.f32 0.0, %v4756
        %4758 = vdwg.mxu0
        %v4759 = vadd.f32 %v4641, %v4720
        %v4760 = vadd.f32 %v4642, %v4722
        %v4761 = vadd.f32 %v4643, %v4725
        %v4762 = vadd.f32 %v4644, %v4727
        %v4763 = vadd.f32 %v4645, %v4730
        %v4764 = vadd.f32 %v4646, %v4732
        %v4765 = vadd.f32 %v4647, %v4735
        %v4766 = vadd.f32 %v4648, %v4737
        %v4767 = vadd.f32 %v4649, %v4740
        %v4768 = vadd.f32 %v4650, %v4742
        %v4769 = vadd.f32 %v4651, %v4745
        %v4770 = vadd.f32 %v4652, %v4747
        %v4771 = vadd.f32 %v4653, %v4750
        %v4772 = vadd.f32 %v4654, %v4752
        %v4773 = vadd.f32 %v4655, %v4755
        %v4774 = vadd.f32 %v4656, %v4757
        %v4775 = vld [vmem:[#allocation3 + $0x94] sm:$0x3]
        %v4776 = vld [vmem:[%s3216] sm:$0xf]
        %v4777 = vld [vmem:[%s3216 + $0x4] sm:$0xf]
        %v4779 = vunpack.c.l.b16 %v4775
        %v4780 = vpack.c.b16 %v4779, %v4779
        %v4782 = vshrl.u32 %v4662, 16
        %v4784 = vrot.slane %v4782, 1
        %v4785 = vshll.u32 %v4662, 16
        %v4787 = vrot.slane %v4785, 2
        %v4788 = vor.u32 %v4784, %v4787
        %v4789 = vrot.slane %v4506, 1
        %v4790 = vrot.slane %v4502, 2
        %v4791 = vor.u32 %v4789, %v4790
        %v4792 = vsel %vm3222, %v4788, %v4791
        %v4793 = vrot.slane %v4514, 1
        %v4794 = vrot.slane %v4510, 2
        %v4795 = vor.u32 %v4793, %v4794
        %v4796 = vsel %vm3222, %v4791, %v4795
        %v4797 = vrot.slane %v4522, 1
        %v4798 = vrot.slane %v4518, 2
        %v4799 = vor.u32 %v4797, %v4798
        %v4800 = vsel %vm3222, %v4795, %v4799
        %v4801 = vrot.slane %v4530, 1
        %v4802 = vrot.slane %v4526, 2
        %v4803 = vor.u32 %v4801, %v4802
        %v4804 = vsel %vm3222, %v4799, %v4803
        %v4805 = vrot.slane %v4538, 1
        %v4806 = vrot.slane %v4534, 2
        %v4807 = vor.u32 %v4805, %v4806
        %v4808 = vsel %vm3222, %v4803, %v4807
        %v4809 = vrot.slane %v4546, 1
        %v4810 = vrot.slane %v4542, 2
        %v4811 = vor.u32 %v4809, %v4810
        %v4812 = vsel %vm3222, %v4807, %v4811
        %v4813 = vrot.slane %v4554, 1
        %v4814 = vrot.slane %v4550, 2
        %v4815 = vor.u32 %v4813, %v4814
        %v4816 = vsel %vm3222, %v4811, %v4815
        %v4818 = vshrl.u32 %v4780, 16
        %v4820 = vrot.slane %v4818, 1
        %v4821 = vshll.u32 %v4780, 16
        %v4823 = vrot.slane %v4821, 2
        %v4824 = vor.u32 %v4820, %v4823
        %v4825 = vsel %vm3222, %v4815, %v4824
        %v4828 = vunpack.c.l.b16 %v4776
        %v4829 = vunpack.c.l.b16 %v4777
        %v4830 = vpack.c.b16 %v4829, %v4828
        %v4833 = vsel %vm447, %v4792, 0
        %v4836 = vsel %vm447, %v4796, 0
        %v4839 = vsel %vm447, %v4800, 0
        %v4842 = vsel %vm447, %v4804, 0
        %v4845 = vsel %vm447, %v4808, 0
        %v4848 = vsel %vm447, %v4812, 0
        %v4851 = vsel %vm447, %v4816, 0
        %v4854 = vsel %vm447, %v4825, 0
        %4856 = vmatpush.bf16.msra.mxu0 0
        %4857 = vmatpush.bf16.msra.mxu0 0
        %4858 = vmatpush.bf16.msra.mxu0 0
        %4859 = vmatpush.bf16.msra.mxu0 0
        %4860 = vmatpush.bf16.msra.mxu0 0
        %4861 = vmatpush.bf16.msra.mxu0 0
        %4862 = vmatpush.bf16.msra.mxu0 0
        %4863 = vmatpush.bf16.msra.mxu0 %v4830
        %4864 = vmatmul.bf16.gmra.mxu0 %v4833
        %v4865 = vpop.f32.mrf.mxu0
        %v4866 = vadd.f32 0.0, %v4865
        %v4867 = vpop.f32.mrf.mxu0
        %v4868 = vadd.f32 0.0, %v4867
        %4869 = vmatmul.bf16.gmra.mxu0 %v4836
        %v4870 = vpop.f32.mrf.mxu0
        %v4871 = vadd.f32 0.0, %v4870
        %v4872 = vpop.f32.mrf.mxu0
        %v4873 = vadd.f32 0.0, %v4872
        %4874 = vmatmul.bf16.gmra.mxu0 %v4839
        %v4875 = vpop.f32.mrf.mxu0
        %v4876 = vadd.f32 0.0, %v4875
        %v4877 = vpop.f32.mrf.mxu0
        %v4878 = vadd.f32 0.0, %v4877
        %4879 = vmatmul.bf16.gmra.mxu0 %v4842
        %v4880 = vpop.f32.mrf.mxu0
        %v4881 = vadd.f32 0.0, %v4880
        %v4882 = vpop.f32.mrf.mxu0
        %v4883 = vadd.f32 0.0, %v4882
        %4884 = vmatmul.bf16.gmra.mxu0 %v4845
        %v4885 = vpop.f32.mrf.mxu0
        %v4886 = vadd.f32 0.0, %v4885
        %v4887 = vpop.f32.mrf.mxu0
        %v4888 = vadd.f32 0.0, %v4887
        %4889 = vmatmul.bf16.gmra.mxu0 %v4848
        %v4890 = vpop.f32.mrf.mxu0
        %v4891 = vadd.f32 0.0, %v4890
        %v4892 = vpop.f32.mrf.mxu0
        %v4893 = vadd.f32 0.0, %v4892
        %4894 = vmatmul.bf16.gmra.mxu0 %v4851
        %v4895 = vpop.f32.mrf.mxu0
        %v4896 = vadd.f32 0.0, %v4895
        %v4897 = vpop.f32.mrf.mxu0
        %v4898 = vadd.f32 0.0, %v4897
        %4899 = vmatmul.bf16.gmra.mxu0 %v4854
        %v4900 = vpop.f32.mrf.mxu0
        %v4901 = vadd.f32 0.0, %v4900
        %v4902 = vpop.f32.mrf.mxu0
        %v4903 = vadd.f32 0.0, %v4902
        %4904 = vdwg.mxu0
        %v4905 = vadd.f32 %v4759, %v4866
        %v4906 = vadd.f32 %v4760, %v4868
        %v4907 = vadd.f32 %v4761, %v4871
        %v4908 = vadd.f32 %v4762, %v4873
        %v4909 = vadd.f32 %v4763, %v4876
        %v4910 = vadd.f32 %v4764, %v4878
        %v4911 = vadd.f32 %v4765, %v4881
        %v4912 = vadd.f32 %v4766, %v4883
        %v4913 = vadd.f32 %v4767, %v4886
        %v4914 = vadd.f32 %v4768, %v4888
        %v4915 = vadd.f32 %v4769, %v4891
        %v4916 = vadd.f32 %v4770, %v4893
        %v4917 = vadd.f32 %v4771, %v4896
        %v4918 = vadd.f32 %v4772, %v4898
        %v4919 = vadd.f32 %v4773, %v4901
        %v4920 = vadd.f32 %v4774, %v4903
        %v4921 = vmax.f32 %v4905, 0.0
        %v4922 = vmax.f32 %v4906, 0.0
        %v4923 = vmax.f32 %v4907, 0.0
        %v4924 = vmax.f32 %v4908, 0.0
        %v4925 = vmax.f32 %v4909, 0.0
        %v4926 = vmax.f32 %v4910, 0.0
        %v4927 = vmax.f32 %v4911, 0.0
        %v4928 = vmax.f32 %v4912, 0.0
        %v4929 = vmax.f32 %v4913, 0.0
        %v4930 = vmax.f32 %v4914, 0.0
        %v4931 = vmax.f32 %v4915, 0.0
        %v4932 = vmax.f32 %v4916, 0.0
        %v4933 = vmax.f32 %v4917, 0.0
        %v4934 = vmax.f32 %v4918, 0.0
        %v4935 = vmax.f32 %v4919, 0.0
        %v4936 = vmax.f32 %v4920, 0.0
        %4937 = vst.msk [vmem:[#allocation4 + $0x80] sm:$0xff] %vm3379, %v4921
        %4938 = vst.msk [vmem:[#allocation4 + $0x88] sm:$0xff] %vm3379, %v4922
        %4939 = vst.msk [vmem:[#allocation4 + $0x90] sm:$0xff] %vm3379, %v4923
        %4940 = vst.msk [vmem:[#allocation4 + $0x98] sm:$0xff] %vm3379, %v4924
        %4941 = vst.msk [vmem:[#allocation4 + $0xa0] sm:$0xff] %vm3379, %v4925
        %4942 = vst.msk [vmem:[#allocation4 + $0xa8] sm:$0xff] %vm3379, %v4926
        %4943 = vst.msk [vmem:[#allocation4 + $0xb0] sm:$0xff] %vm3379, %v4927
        %4944 = vst.msk [vmem:[#allocation4 + $0xb8] sm:$0xff] %vm3379, %v4928
        %4945 = vst.msk [vmem:[#allocation4 + $0xc0] sm:$0xff] %vm3379, %v4929
        %4946 = vst.msk [vmem:[#allocation4 + $0xc8] sm:$0xff] %vm3379, %v4930
        %4947 = vst.msk [vmem:[#allocation4 + $0xd0] sm:$0xff] %vm3379, %v4931
        %4948 = vst.msk [vmem:[#allocation4 + $0xd8] sm:$0xff] %vm3379, %v4932
        %4949 = vst.msk [vmem:[#allocation4 + $0xe0] sm:$0xff] %vm3379, %v4933
        %4950 = vst.msk [vmem:[#allocation4 + $0xe8] sm:$0xff] %vm3379, %v4934
        %4951 = vst.msk [vmem:[#allocation4 + $0xf0] sm:$0xff] %vm3379, %v4935
        %4952 = vst.msk [vmem:[#allocation4 + $0xf8] sm:$0xff] %vm3379, %v4936
        %v4953 = vld [vmem:[#allocation3 + $0x80] sm:$0xc]
        %v4954 = vld [vmem:[#allocation3 + $0x84] sm:$0xf]
        %v4955 = vld [vmem:[#allocation3 + $0x88] sm:$0xf]
        %v4956 = vld [vmem:[#allocation3 + $0x8c] sm:$0xf]
        %v4957 = vld [vmem:[#allocation3 + $0x90] sm:$0xf]
        %v4958 = vld [vmem:[#allocation3 + $0x94] sm:$0xf]
        %v4959 = vld [vmem:[#allocation3 + $0x98] sm:$0xf]
        %v4960 = vld [vmem:[#allocation3 + $0x9c] sm:$0xf]
        %v4961 = vld [vmem:[#allocation3 + $0xa0] sm:$0xf]
        %v4962 = vld [vmem:[#allocation3 + $0xa4] sm:$0x1]
        %v4963 = vld [vmem:[%s2] sm:$0xf]
        %v4964 = vld [vmem:[%s2 + $0x4] sm:$0xf]
        %v4965 = vld [vmem:[#allocation3 + $0x80] sm:$0x8]
        %v4966 = vld [vmem:[%s1844] sm:$0xf]
        %v4967 = vld [vmem:[%s1844 + $0x4] sm:$0xf]
        %v4978 = vunpack.c.l.b16 %v4965
        %v4979 = vunpack.c.l.b16 %v4954
        %v4980 = vunpack.c.l.b16 %v4955
        %v4981 = vunpack.c.l.b16 %v4956
        %v4982 = vunpack.c.l.b16 %v4957
        %v4983 = vunpack.c.l.b16 %v4958
        %v4984 = vunpack.c.l.b16 %v4959
        %v4985 = vunpack.c.l.b16 %v4960
        %v4986 = vunpack.c.l.b16 %v4961
        %v4987 = vunpack.c.l.b16 %v4962
        %v4988 = vpack.c.b16 %v4979, %v4978
        %v4989 = vpack.c.b16 %v4981, %v4980
        %v4990 = vpack.c.b16 %v4983, %v4982
        %v4991 = vpack.c.b16 %v4985, %v4984
        %v4992 = vpack.c.b16 %v4987, %v4986
        %v4993 = vrot.slane %v4988, 3
        %v4994 = vrot.slane %v4989, 3
        %v4995 = vsel %vm1890, %v4993, %v4994
        %v4996 = vrot.slane %v4990, 3
        %v4997 = vsel %vm1890, %v4994, %v4996
        %v4998 = vrot.slane %v4991, 3
        %v4999 = vsel %vm1890, %v4996, %v4998
        %v5000 = vrot.slane %v4992, 3
        %v5001 = vsel %vm1890, %v4998, %v5000
        %v5004 = vunpack.c.l.b16 %v4966
        %v5005 = vunpack.c.l.b16 %v4967
        %v5006 = vpack.c.b16 %v5005, %v5004
        %v5009 = vsel %vm447, %v4995, 0
        %v5012 = vsel %vm447, %v4997, 0
        %v5015 = vsel %vm447, %v4999, 0
        %v5018 = vsel %vm447, %v5001, 0
        %v5021 = vsel %vm447, %v5000, 0
        %5023 = vmatpush.bf16.msra.mxu0 0
        %5024 = vmatpush.bf16.msra.mxu0 0
        %5025 = vmatpush.bf16.msra.mxu0 0
        %5026 = vmatpush.bf16.msra.mxu0 0
        %5027 = vmatpush.bf16.msra.mxu0 0
        %5028 = vmatpush.bf16.msra.mxu0 0
        %5029 = vmatpush.bf16.msra.mxu0 0
        %5030 = vmatpush.bf16.msra.mxu0 %v5006
        %5031 = vmatmul.bf16.gmra.mxu0 %v5009
        %v5032 = vpop.f32.mrf.mxu0
        %v5033 = vadd.f32 0.0, %v5032
        %v5034 = vpop.f32.mrf.mxu0
        %v5035 = vadd.f32 0.0, %v5034
        %5036 = vmatmul.bf16.gmra.mxu0 %v5012
        %v5037 = vpop.f32.mrf.mxu0
        %v5038 = vadd.f32 0.0, %v5037
        %v5039 = vpop.f32.mrf.mxu0
        %v5040 = vadd.f32 0.0, %v5039
        %5041 = vmatmul.bf16.gmra.mxu0 %v5015
        %v5042 = vpop.f32.mrf.mxu0
        %v5043 = vadd.f32 0.0, %v5042
        %v5044 = vpop.f32.mrf.mxu0
        %v5045 = vadd.f32 0.0, %v5044
        %5046 = vmatmul.bf16.gmra.mxu0 %v5018
        %v5047 = vpop.f32.mrf.mxu0
        %v5048 = vadd.f32 0.0, %v5047
        %v5049 = vpop.f32.mrf.mxu0
        %v5050 = vadd.f32 0.0, %v5049
        %5051 = vmatmul.bf16.gmra.mxu0 %v5021
        %v5052 = vpop.f32.mrf.mxu0
        %v5053 = vadd.f32 0.0, %v5052
        %v5054 = vpop.f32.mrf.mxu0
        %5055 = vdwg.mxu0
        %v5057 = vunpack.c.l.b16 %v4953
        %v5058 = vpack.c.b16 %v4979, %v5057
        %v5060 = vshrl.u32 %v5058, 16
        %v5062 = vrot.slane %v5060, 2
        %v5063 = vshll.u32 %v5058, 16
        %v5065 = vrot.slane %v5063, 3
        %v5066 = vor.u32 %v5062, %v5065
        %v5068 = vshrl.u32 %v4989, 16
        %v5070 = vrot.slane %v5068, 2
        %v5071 = vshll.u32 %v4989, 16
        %v5073 = vrot.slane %v5071, 3
        %v5074 = vor.u32 %v5070, %v5073
        %v5075 = vsel %vm1990, %v5066, %v5074
        %v5077 = vshrl.u32 %v4990, 16
        %v5079 = vrot.slane %v5077, 2
        %v5080 = vshll.u32 %v4990, 16
        %v5082 = vrot.slane %v5080, 3
        %v5083 = vor.u32 %v5079, %v5082
        %v5084 = vsel %vm1990, %v5074, %v5083
        %v5086 = vshrl.u32 %v4991, 16
        %v5088 = vrot.slane %v5086, 2
        %v5089 = vshll.u32 %v4991, 16
        %v5091 = vrot.slane %v5089, 3
        %v5092 = vor.u32 %v5088, %v5091
        %v5093 = vsel %vm1990, %v5083, %v5092
        %v5095 = vshrl.u32 %v4992, 16
        %v5097 = vrot.slane %v5095, 2
        %v5098 = vshll.u32 %v4992, 16
        %v5100 = vrot.slane %v5098, 3
        %v5101 = vor.u32 %v5097, %v5100
        %v5102 = vsel %vm1990, %v5092, %v5101
        %v5105 = vunpack.c.l.b16 %v4963
        %v5106 = vunpack.c.l.b16 %v4964
        %v5107 = vpack.c.b16 %v5106, %v5105
        %v5110 = vsel %vm447, %v5075, 0
        %v5113 = vsel %vm447, %v5084, 0
        %v5116 = vsel %vm447, %v5093, 0
        %v5119 = vsel %vm447, %v5102, 0
        %v5122 = vsel %vm447, %v5101, 0
        %5124 = vmatpush.bf16.msra.mxu0 0
        %5125 = vmatpush.bf16.msra.mxu0 0
        %5126 = vmatpush.bf16.msra.mxu0 0
        %5127 = vmatpush.bf16.msra.mxu0 0
        %5128 = vmatpush.bf16.msra.mxu0 0
        %5129 = vmatpush.bf16.msra.mxu0 0
        %5130 = vmatpush.bf16.msra.mxu0 0
        %5131 = vmatpush.bf16.msra.mxu0 %v5107
        %5132 = vmatmul.bf16.gmra.mxu0 %v5110
        %v5133 = vpop.f32.mrf.mxu0
        %v5134 = vadd.f32 %v5033, %v5133
        %v5135 = vpop.f32.mrf.mxu0
        %v5136 = vadd.f32 %v5035, %v5135
        %5137 = vmatmul.bf16.gmra.mxu0 %v5113
        %v5138 = vpop.f32.mrf.mxu0
        %v5139 = vadd.f32 %v5038, %v5138
        %v5140 = vpop.f32.mrf.mxu0
        %v5141 = vadd.f32 %v5040, %v5140
        %5142 = vmatmul.bf16.gmra.mxu0 %v5116
        %v5143 = vpop.f32.mrf.mxu0
        %v5144 = vadd.f32 %v5043, %v5143
        %v5145 = vpop.f32.mrf.mxu0
        %v5146 = vadd.f32 %v5045, %v5145
        %5147 = vmatmul.bf16.gmra.mxu0 %v5119
        %v5148 = vpop.f32.mrf.mxu0
        %v5149 = vadd.f32 %v5048, %v5148
        %v5150 = vpop.f32.mrf.mxu0
        %v5151 = vadd.f32 %v5050, %v5150
        %5152 = vmatmul.bf16.gmra.mxu0 %v5122
        %v5153 = vpop.f32.mrf.mxu0
        %v5154 = vadd.f32 %v5053, %v5153
        %v5155 = vpop.f32.mrf.mxu0
        %5156 = vdwg.mxu0
        %v5157 = vld [vmem:[#allocation3 + $0xa4] sm:$0x3]
        %v5158 = vld [vmem:[%s2151] sm:$0xf]
        %v5159 = vld [vmem:[%s2151 + $0x4] sm:$0xf]
        %v5161 = vunpack.c.l.b16 %v5157
        %v5162 = vpack.c.b16 %v5161, %v4986
        %v5164 = vshrl.u32 %v4988, 16
        %v5166 = vrot.slane %v5164, 3
        %v5167 = vshll.u32 %v4988, 16
        %v5169 = vrot.slane %v5167, 4
        %v5170 = vor.u32 %v5166, %v5169
        %v5171 = vrot.slane %v5068, 3
        %v5172 = vrot.slane %v5071, 4
        %v5173 = vor.u32 %v5171, %v5172
        %v5174 = vsel %vm2157, %v5170, %v5173
        %v5175 = vrot.slane %v5077, 3
        %v5176 = vrot.slane %v5080, 4
        %v5177 = vor.u32 %v5175, %v5176
        %v5178 = vsel %vm2157, %v5173, %v5177
        %v5179 = vrot.slane %v5086, 3
        %v5180 = vrot.slane %v5089, 4
        %v5181 = vor.u32 %v5179, %v5180
        %v5182 = vsel %vm2157, %v5177, %v5181
        %v5184 = vshrl.u32 %v5162, 16
        %v5186 = vrot.slane %v5184, 3
        %v5187 = vshll.u32 %v5162, 16
        %v5189 = vrot.slane %v5187, 4
        %v5190 = vor.u32 %v5186, %v5189
        %v5191 = vsel %vm2157, %v5181, %v5190
        %v5194 = vunpack.c.l.b16 %v5158
        %v5195 = vunpack.c.l.b16 %v5159
        %v5196 = vpack.c.b16 %v5195, %v5194
        %v5199 = vsel %vm447, %v5174, 0
        %v5202 = vsel %vm447, %v5178, 0
        %v5205 = vsel %vm447, %v5182, 0
        %v5208 = vsel %vm447, %v5191, 0
        %v5211 = vsel %vm447, %v5190, 0
        %5213 = vmatpush.bf16.msra.mxu0 0
        %5214 = vmatpush.bf16.msra.mxu0 0
        %5215 = vmatpush.bf16.msra.mxu0 0
        %5216 = vmatpush.bf16.msra.mxu0 0
        %5217 = vmatpush.bf16.msra.mxu0 0
        %5218 = vmatpush.bf16.msra.mxu0 0
        %5219 = vmatpush.bf16.msra.mxu0 0
        %5220 = vmatpush.bf16.msra.mxu0 %v5196
        %5221 = vmatmul.bf16.gmra.mxu0 %v5199
        %v5222 = vpop.f32.mrf.mxu0
        %v5223 = vadd.f32 0.0, %v5222
        %v5224 = vpop.f32.mrf.mxu0
        %v5225 = vadd.f32 0.0, %v5224
        %5226 = vmatmul.bf16.gmra.mxu0 %v5202
        %v5227 = vpop.f32.mrf.mxu0
        %v5228 = vadd.f32 0.0, %v5227
        %v5229 = vpop.f32.mrf.mxu0
        %v5230 = vadd.f32 0.0, %v5229
        %5231 = vmatmul.bf16.gmra.mxu0 %v5205
        %v5232 = vpop.f32.mrf.mxu0
        %v5233 = vadd.f32 0.0, %v5232
        %v5234 = vpop.f32.mrf.mxu0
        %v5235 = vadd.f32 0.0, %v5234
        %5236 = vmatmul.bf16.gmra.mxu0 %v5208
        %v5237 = vpop.f32.mrf.mxu0
        %v5238 = vadd.f32 0.0, %v5237
        %v5239 = vpop.f32.mrf.mxu0
        %v5240 = vadd.f32 0.0, %v5239
        %5241 = vmatmul.bf16.gmra.mxu0 %v5211
        %v5242 = vpop.f32.mrf.mxu0
        %v5243 = vadd.f32 0.0, %v5242
        %v5244 = vpop.f32.mrf.mxu0
        %5245 = vdwg.mxu0
        %v5246 = vadd.f32 %v5134, %v5223
        %v5247 = vadd.f32 %v5136, %v5225
        %v5248 = vadd.f32 %v5139, %v5228
        %v5249 = vadd.f32 %v5141, %v5230
        %v5250 = vadd.f32 %v5144, %v5233
        %v5251 = vadd.f32 %v5146, %v5235
        %v5252 = vadd.f32 %v5149, %v5238
        %v5253 = vadd.f32 %v5151, %v5240
        %v5254 = vadd.f32 %v5154, %v5243
        %v5255 = vld [vmem:[#allocation3 + $0x88] sm:$0x8]
        %v5256 = vld [vmem:[#allocation3 + $0x8c] sm:$0xf]
        %v5257 = vld [vmem:[#allocation3 + $0x90] sm:$0xf]
        %v5258 = vld [vmem:[#allocation3 + $0x94] sm:$0xf]
        %v5259 = vld [vmem:[#allocation3 + $0x98] sm:$0xf]
        %v5260 = vld [vmem:[#allocation3 + $0x9c] sm:$0xf]
        %v5261 = vld [vmem:[#allocation3 + $0xa0] sm:$0xf]
        %v5262 = vld [vmem:[#allocation3 + $0xa4] sm:$0xf]
        %v5263 = vld [vmem:[#allocation3 + $0xa8] sm:$0xf]
        %v5264 = vld [vmem:[#allocation3 + $0xac] sm:$0x3]
        %v5265 = vld [vmem:[%s2315] sm:$0xf]
        %v5266 = vld [vmem:[%s2315 + $0x4] sm:$0xf]
        %v5277 = vunpack.c.l.b16 %v5255
        %v5278 = vunpack.c.l.b16 %v5256
        %v5279 = vunpack.c.l.b16 %v5257
        %v5280 = vunpack.c.l.b16 %v5258
        %v5281 = vunpack.c.l.b16 %v5259
        %v5282 = vunpack.c.l.b16 %v5260
        %v5283 = vunpack.c.l.b16 %v5261
        %v5284 = vunpack.c.l.b16 %v5262
        %v5285 = vunpack.c.l.b16 %v5263
        %v5286 = vunpack.c.l.b16 %v5264
        %v5287 = vpack.c.b16 %v5278, %v5277
        %v5288 = vpack.c.b16 %v5280, %v5279
        %v5289 = vpack.c.b16 %v5282, %v5281
        %v5290 = vpack.c.b16 %v5284, %v5283
        %v5291 = vpack.c.b16 %v5286, %v5285
        %v5293 = vshrl.u32 %v5287, 16
        %v5295 = vrot.slane %v5293, 3
        %v5296 = vshll.u32 %v5287, 16
        %v5298 = vrot.slane %v5296, 4
        %v5299 = vor.u32 %v5295, %v5298
        %v5301 = vshrl.u32 %v5288, 16
        %v5303 = vrot.slane %v5301, 3
        %v5304 = vshll.u32 %v5288, 16
        %v5306 = vrot.slane %v5304, 4
        %v5307 = vor.u32 %v5303, %v5306
        %v5308 = vsel %vm2157, %v5299, %v5307
        %v5310 = vshrl.u32 %v5289, 16
        %v5312 = vrot.slane %v5310, 3
        %v5313 = vshll.u32 %v5289, 16
        %v5315 = vrot.slane %v5313, 4
        %v5316 = vor.u32 %v5312, %v5315
        %v5317 = vsel %vm2157, %v5307, %v5316
        %v5319 = vshrl.u32 %v5290, 16
        %v5321 = vrot.slane %v5319, 3
        %v5322 = vshll.u32 %v5290, 16
        %v5324 = vrot.slane %v5322, 4
        %v5325 = vor.u32 %v5321, %v5324
        %v5326 = vsel %vm2157, %v5316, %v5325
        %v5328 = vshrl.u32 %v5291, 16
        %v5330 = vrot.slane %v5328, 3
        %v5331 = vshll.u32 %v5291, 16
        %v5333 = vrot.slane %v5331, 4
        %v5334 = vor.u32 %v5330, %v5333
        %v5335 = vsel %vm2157, %v5325, %v5334
        %v5338 = vunpack.c.l.b16 %v5265
        %v5339 = vunpack.c.l.b16 %v5266
        %v5340 = vpack.c.b16 %v5339, %v5338
        %v5343 = vsel %vm447, %v5308, 0
        %v5346 = vsel %vm447, %v5317, 0
        %v5349 = vsel %vm447, %v5326, 0
        %v5352 = vsel %vm447, %v5335, 0
        %v5355 = vsel %vm447, %v5334, 0
        %5357 = vmatpush.bf16.msra.mxu0 0
        %5358 = vmatpush.bf16.msra.mxu0 0
        %5359 = vmatpush.bf16.msra.mxu0 0
        %5360 = vmatpush.bf16.msra.mxu0 0
        %5361 = vmatpush.bf16.msra.mxu0 0
        %5362 = vmatpush.bf16.msra.mxu0 0
        %5363 = vmatpush.bf16.msra.mxu0 0
        %5364 = vmatpush.bf16.msra.mxu0 %v5340
        %5365 = vmatmul.bf16.gmra.mxu0 %v5343
        %v5366 = vpop.f32.mrf.mxu0
        %v5367 = vadd.f32 0.0, %v5366
        %v5368 = vpop.f32.mrf.mxu0
        %v5369 = vadd.f32 0.0, %v5368
        %5370 = vmatmul.bf16.gmra.mxu0 %v5346
        %v5371 = vpop.f32.mrf.mxu0
        %v5372 = vadd.f32 0.0, %v5371
        %v5373 = vpop.f32.mrf.mxu0
        %v5374 = vadd.f32 0.0, %v5373
        %5375 = vmatmul.bf16.gmra.mxu0 %v5349
        %v5376 = vpop.f32.mrf.mxu0
        %v5377 = vadd.f32 0.0, %v5376
        %v5378 = vpop.f32.mrf.mxu0
        %v5379 = vadd.f32 0.0, %v5378
        %5380 = vmatmul.bf16.gmra.mxu0 %v5352
        %v5381 = vpop.f32.mrf.mxu0
        %v5382 = vadd.f32 0.0, %v5381
        %v5383 = vpop.f32.mrf.mxu0
        %v5384 = vadd.f32 0.0, %v5383
        %5385 = vmatmul.bf16.gmra.mxu0 %v5355
        %v5386 = vpop.f32.mrf.mxu0
        %v5387 = vadd.f32 0.0, %v5386
        %v5388 = vpop.f32.mrf.mxu0
        %5389 = vdwg.mxu0
        %v5390 = vadd.f32 %v5246, %v5367
        %v5391 = vadd.f32 %v5247, %v5369
        %v5392 = vadd.f32 %v5248, %v5372
        %v5393 = vadd.f32 %v5249, %v5374
        %v5394 = vadd.f32 %v5250, %v5377
        %v5395 = vadd.f32 %v5251, %v5379
        %v5396 = vadd.f32 %v5252, %v5382
        %v5397 = vadd.f32 %v5253, %v5384
        %v5398 = vadd.f32 %v5254, %v5387
        %v5399 = vld [vmem:[%s2536] sm:$0xf]
        %v5400 = vld [vmem:[%s2536 + $0x4] sm:$0xf]
        %v5401 = vpack.c.b16 %v5279, %v5278
        %v5402 = vpack.c.b16 %v5281, %v5280
        %v5403 = vpack.c.b16 %v5283, %v5282
        %v5404 = vpack.c.b16 %v5285, %v5284
        %v5405 = vpack.c.b16 %v5286, %v5286
        %v5408 = vunpack.c.l.b16 %v5399
        %v5409 = vunpack.c.l.b16 %v5400
        %v5410 = vpack.c.b16 %v5409, %v5408
        %v5413 = vsel %vm447, %v5401, 0
        %v5416 = vsel %vm447, %v5402, 0
        %v5419 = vsel %vm447, %v5403, 0
        %v5422 = vsel %vm447, %v5404, 0
        %v5425 = vsel %vm447, %v5405, 0
        %5427 = vmatpush.bf16.msra.mxu0 0
        %5428 = vmatpush.bf16.msra.mxu0 0
        %5429 = vmatpush.bf16.msra.mxu0 0
        %5430 = vmatpush.bf16.msra.mxu0 0
        %5431 = vmatpush.bf16.msra.mxu0 0
        %5432 = vmatpush.bf16.msra.mxu0 0
        %5433 = vmatpush.bf16.msra.mxu0 0
        %5434 = vmatpush.bf16.msra.mxu0 %v5410
        %5435 = vmatmul.bf16.gmra.mxu0 %v5413
        %v5436 = vpop.f32.mrf.mxu0
        %v5437 = vadd.f32 0.0, %v5436
        %v5438 = vpop.f32.mrf.mxu0
        %v5439 = vadd.f32 0.0, %v5438
        %5440 = vmatmul.bf16.gmra.mxu0 %v5416
        %v5441 = vpop.f32.mrf.mxu0
        %v5442 = vadd.f32 0.0, %v5441
        %v5443 = vpop.f32.mrf.mxu0
        %v5444 = vadd.f32 0.0, %v5443
        %5445 = vmatmul.bf16.gmra.mxu0 %v5419
        %v5446 = vpop.f32.mrf.mxu0
        %v5447 = vadd.f32 0.0, %v5446
        %v5448 = vpop.f32.mrf.mxu0
        %v5449 = vadd.f32 0.0, %v5448
        %5450 = vmatmul.bf16.gmra.mxu0 %v5422
        %v5451 = vpop.f32.mrf.mxu0
        %v5452 = vadd.f32 0.0, %v5451
        %v5453 = vpop.f32.mrf.mxu0
        %v5454 = vadd.f32 0.0, %v5453
        %5455 = vmatmul.bf16.gmra.mxu0 %v5425
        %v5456 = vpop.f32.mrf.mxu0
        %v5457 = vadd.f32 0.0, %v5456
        %v5458 = vpop.f32.mrf.mxu0
        %5459 = vdwg.mxu0
        %v5460 = vadd.f32 %v5390, %v5437
        %v5461 = vadd.f32 %v5391, %v5439
        %v5462 = vadd.f32 %v5392, %v5442
        %v5463 = vadd.f32 %v5393, %v5444
        %v5464 = vadd.f32 %v5394, %v5447
        %v5465 = vadd.f32 %v5395, %v5449
        %v5466 = vadd.f32 %v5396, %v5452
        %v5467 = vadd.f32 %v5397, %v5454
        %v5468 = vadd.f32 %v5398, %v5457
        %v5469 = vld [vmem:[#allocation3 + $0xac] sm:$0x7]
        %v5470 = vld [vmem:[%s2659] sm:$0xf]
        %v5471 = vld [vmem:[%s2659 + $0x4] sm:$0xf]
        %v5473 = vunpack.c.l.b16 %v5469
        %v5474 = vpack.c.b16 %v5473, %v5473
        %v5475 = vshrl.u32 %v5401, 16
        %v5477 = vshll.u32 %v5401, 16
        %v5479 = vrot.slane %v5477, 1
        %v5480 = vor.u32 %v5475, %v5479
        %v5481 = vshll.u32 %v5402, 16
        %v5483 = vrot.slane %v5481, 1
        %v5484 = vsel %vm2705, %v5480, %v5483
        %v5485 = vshrl.u32 %v5402, 16
        %v5487 = vor.u32 %v5485, %v5483
        %v5488 = vshll.u32 %v5403, 16
        %v5490 = vrot.slane %v5488, 1
        %v5491 = vsel %vm2705, %v5487, %v5490
        %v5492 = vshrl.u32 %v5403, 16
        %v5494 = vor.u32 %v5492, %v5490
        %v5495 = vshll.u32 %v5404, 16
        %v5497 = vrot.slane %v5495, 1
        %v5498 = vsel %vm2705, %v5494, %v5497
        %v5499 = vshrl.u32 %v5404, 16
        %v5501 = vor.u32 %v5499, %v5497
        %v5503 = vshll.u32 %v5474, 16
        %v5505 = vrot.slane %v5503, 1
        %v5506 = vsel %vm2705, %v5501, %v5505
        %v5507 = vshrl.u32 %v5474, 16
        %v5509 = vor.u32 %v5507, %v5505
        %v5512 = vunpack.c.l.b16 %v5470
        %v5513 = vunpack.c.l.b16 %v5471
        %v5514 = vpack.c.b16 %v5513, %v5512
        %v5517 = vsel %vm447, %v5484, 0
        %v5520 = vsel %vm447, %v5491, 0
        %v5523 = vsel %vm447, %v5498, 0
        %v5526 = vsel %vm447, %v5506, 0
        %v5529 = vsel %vm447, %v5509, 0
        %5531 = vmatpush.bf16.msra.mxu0 0
        %5532 = vmatpush.bf16.msra.mxu0 0
        %5533 = vmatpush.bf16.msra.mxu0 0
        %5534 = vmatpush.bf16.msra.mxu0 0
        %5535 = vmatpush.bf16.msra.mxu0 0
        %5536 = vmatpush.bf16.msra.mxu0 0
        %5537 = vmatpush.bf16.msra.mxu0 0
        %5538 = vmatpush.bf16.msra.mxu0 %v5514
        %5539 = vmatmul.bf16.gmra.mxu0 %v5517
        %v5540 = vpop.f32.mrf.mxu0
        %v5541 = vadd.f32 0.0, %v5540
        %v5542 = vpop.f32.mrf.mxu0
        %v5543 = vadd.f32 0.0, %v5542
        %5544 = vmatmul.bf16.gmra.mxu0 %v5520
        %v5545 = vpop.f32.mrf.mxu0
        %v5546 = vadd.f32 0.0, %v5545
        %v5547 = vpop.f32.mrf.mxu0
        %v5548 = vadd.f32 0.0, %v5547
        %5549 = vmatmul.bf16.gmra.mxu0 %v5523
        %v5550 = vpop.f32.mrf.mxu0
        %v5551 = vadd.f32 0.0, %v5550
        %v5552 = vpop.f32.mrf.mxu0
        %v5553 = vadd.f32 0.0, %v5552
        %5554 = vmatmul.bf16.gmra.mxu0 %v5526
        %v5555 = vpop.f32.mrf.mxu0
        %v5556 = vadd.f32 0.0, %v5555
        %v5557 = vpop.f32.mrf.mxu0
        %v5558 = vadd.f32 0.0, %v5557
        %5559 = vmatmul.bf16.gmra.mxu0 %v5529
        %v5560 = vpop.f32.mrf.mxu0
        %v5561 = vadd.f32 0.0, %v5560
        %v5562 = vpop.f32.mrf.mxu0
        %5563 = vdwg.mxu0
        %v5564 = vadd.f32 %v5460, %v5541
        %v5565 = vadd.f32 %v5461, %v5543
        %v5566 = vadd.f32 %v5462, %v5546
        %v5567 = vadd.f32 %v5463, %v5548
        %v5568 = vadd.f32 %v5464, %v5551
        %v5569 = vadd.f32 %v5465, %v5553
        %v5570 = vadd.f32 %v5466, %v5556
        %v5571 = vadd.f32 %v5467, %v5558
        %v5572 = vadd.f32 %v5468, %v5561
        %v5573 = vld [vmem:[#allocation3 + $0x94] sm:$0xf]
        %v5574 = vld [vmem:[#allocation3 + $0x98] sm:$0xf]
        %v5575 = vld [vmem:[#allocation3 + $0x9c] sm:$0xf]
        %v5576 = vld [vmem:[#allocation3 + $0xa0] sm:$0xf]
        %v5577 = vld [vmem:[#allocation3 + $0xa4] sm:$0xf]
        %v5578 = vld [vmem:[#allocation3 + $0xa8] sm:$0xf]
        %v5579 = vld [vmem:[#allocation3 + $0xac] sm:$0xf]
        %v5580 = vld [vmem:[#allocation3 + $0xb0] sm:$0xf]
        %v5581 = vld [vmem:[#allocation3 + $0xb4] sm:$0x7]
        %v5582 = vld [vmem:[%s2886] sm:$0xf]
        %v5583 = vld [vmem:[%s2886 + $0x4] sm:$0xf]
        %v5593 = vunpack.c.l.b16 %v5573
        %v5594 = vunpack.c.l.b16 %v5574
        %v5595 = vunpack.c.l.b16 %v5575
        %v5596 = vunpack.c.l.b16 %v5576
        %v5597 = vunpack.c.l.b16 %v5577
        %v5598 = vunpack.c.l.b16 %v5578
        %v5599 = vunpack.c.l.b16 %v5579
        %v5600 = vunpack.c.l.b16 %v5580
        %v5601 = vunpack.c.l.b16 %v5581
        %v5602 = vpack.c.b16 %v5594, %v5593
        %v5603 = vpack.c.b16 %v5596, %v5595
        %v5604 = vpack.c.b16 %v5598, %v5597
        %v5605 = vpack.c.b16 %v5600, %v5599
        %v5606 = vpack.c.b16 %v5601, %v5601
        %v5608 = vshrl.u32 %v5602, 16
        %v5610 = vshll.u32 %v5602, 16
        %v5612 = vrot.slane %v5610, 1
        %v5613 = vor.u32 %v5608, %v5612
        %v5615 = vshll.u32 %v5603, 16
        %v5617 = vrot.slane %v5615, 1
        %v5618 = vsel %vm2705, %v5613, %v5617
        %v5619 = vshrl.u32 %v5603, 16
        %v5621 = vor.u32 %v5619, %v5617
        %v5623 = vshll.u32 %v5604, 16
        %v5625 = vrot.slane %v5623, 1
        %v5626 = vsel %vm2705, %v5621, %v5625
        %v5627 = vshrl.u32 %v5604, 16
        %v5629 = vor.u32 %v5627, %v5625
        %v5631 = vshll.u32 %v5605, 16
        %v5633 = vrot.slane %v5631, 1
        %v5634 = vsel %vm2705, %v5629, %v5633
        %v5635 = vshrl.u32 %v5605, 16
        %v5637 = vor.u32 %v5635, %v5633
        %v5639 = vshll.u32 %v5606, 16
        %v5641 = vrot.slane %v5639, 1
        %v5642 = vsel %vm2705, %v5637, %v5641
        %v5643 = vshrl.u32 %v5606, 16
        %v5645 = vor.u32 %v5643, %v5641
        %v5648 = vunpack.c.l.b16 %v5582
        %v5649 = vunpack.c.l.b16 %v5583
        %v5650 = vpack.c.b16 %v5649, %v5648
        %v5653 = vsel %vm447, %v5618, 0
        %v5656 = vsel %vm447, %v5626, 0
        %v5659 = vsel %vm447, %v5634, 0
        %v5662 = vsel %vm447, %v5642, 0
        %v5665 = vsel %vm447, %v5645, 0
        %5667 = vmatpush.bf16.msra.mxu0 0
        %5668 = vmatpush.bf16.msra.mxu0 0
        %5669 = vmatpush.bf16.msra.mxu0 0
        %5670 = vmatpush.bf16.msra.mxu0 0
        %5671 = vmatpush.bf16.msra.mxu0 0
        %5672 = vmatpush.bf16.msra.mxu0 0
        %5673 = vmatpush.bf16.msra.mxu0 0
        %5674 = vmatpush.bf16.msra.mxu0 %v5650
        %5675 = vmatmul.bf16.gmra.mxu0 %v5653
        %v5676 = vpop.f32.mrf.mxu0
        %v5677 = vadd.f32 0.0, %v5676
        %v5678 = vpop.f32.mrf.mxu0
        %v5679 = vadd.f32 0.0, %v5678
        %5680 = vmatmul.bf16.gmra.mxu0 %v5656
        %v5681 = vpop.f32.mrf.mxu0
        %v5682 = vadd.f32 0.0, %v5681
        %v5683 = vpop.f32.mrf.mxu0
        %v5684 = vadd.f32 0.0, %v5683
        %5685 = vmatmul.bf16.gmra.mxu0 %v5659
        %v5686 = vpop.f32.mrf.mxu0
        %v5687 = vadd.f32 0.0, %v5686
        %v5688 = vpop.f32.mrf.mxu0
        %v5689 = vadd.f32 0.0, %v5688
        %5690 = vmatmul.bf16.gmra.mxu0 %v5662
        %v5691 = vpop.f32.mrf.mxu0
        %v5692 = vadd.f32 0.0, %v5691
        %v5693 = vpop.f32.mrf.mxu0
        %v5694 = vadd.f32 0.0, %v5693
        %5695 = vmatmul.bf16.gmra.mxu0 %v5665
        %v5696 = vpop.f32.mrf.mxu0
        %v5697 = vadd.f32 0.0, %v5696
        %v5698 = vpop.f32.mrf.mxu0
        %5699 = vdwg.mxu0
        %v5700 = vadd.f32 %v5564, %v5677
        %v5701 = vadd.f32 %v5565, %v5679
        %v5702 = vadd.f32 %v5566, %v5682
        %v5703 = vadd.f32 %v5567, %v5684
        %v5704 = vadd.f32 %v5568, %v5687
        %v5705 = vadd.f32 %v5569, %v5689
        %v5706 = vadd.f32 %v5570, %v5692
        %v5707 = vadd.f32 %v5571, %v5694
        %v5708 = vadd.f32 %v5572, %v5697
        %v5709 = vld [vmem:[#allocation3 + $0x94] sm:$0xe]
        %v5710 = vld [vmem:[%s3096] sm:$0xf]
        %v5711 = vld [vmem:[%s3096 + $0x4] sm:$0xf]
        %v5713 = vunpack.c.l.b16 %v5709
        %v5714 = vpack.c.b16 %v5594, %v5713
        %v5715 = vrot.slane %v5714, 1
        %v5716 = vrot.slane %v5603, 1
        %v5717 = vsel %vm3102, %v5715, %v5716
        %v5718 = vrot.slane %v5604, 1
        %v5719 = vsel %vm3102, %v5716, %v5718
        %v5720 = vrot.slane %v5605, 1
        %v5721 = vsel %vm3102, %v5718, %v5720
        %v5722 = vrot.slane %v5606, 1
        %v5723 = vsel %vm3102, %v5720, %v5722
        %v5726 = vunpack.c.l.b16 %v5710
        %v5727 = vunpack.c.l.b16 %v5711
        %v5728 = vpack.c.b16 %v5727, %v5726
        %v5731 = vsel %vm447, %v5717, 0
        %v5734 = vsel %vm447, %v5719, 0
        %v5737 = vsel %vm447, %v5721, 0
        %v5740 = vsel %vm447, %v5723, 0
        %v5743 = vsel %vm447, %v5722, 0
        %5745 = vmatpush.bf16.msra.mxu0 0
        %5746 = vmatpush.bf16.msra.mxu0 0
        %5747 = vmatpush.bf16.msra.mxu0 0
        %5748 = vmatpush.bf16.msra.mxu0 0
        %5749 = vmatpush.bf16.msra.mxu0 0
        %5750 = vmatpush.bf16.msra.mxu0 0
        %5751 = vmatpush.bf16.msra.mxu0 0
        %5752 = vmatpush.bf16.msra.mxu0 %v5728
        %5753 = vmatmul.bf16.gmra.mxu0 %v5731
        %v5754 = vpop.f32.mrf.mxu0
        %v5755 = vadd.f32 0.0, %v5754
        %v5756 = vpop.f32.mrf.mxu0
        %v5757 = vadd.f32 0.0, %v5756
        %5758 = vmatmul.bf16.gmra.mxu0 %v5734
        %v5759 = vpop.f32.mrf.mxu0
        %v5760 = vadd.f32 0.0, %v5759
        %v5761 = vpop.f32.mrf.mxu0
        %v5762 = vadd.f32 0.0, %v5761
        %5763 = vmatmul.bf16.gmra.mxu0 %v5737
        %v5764 = vpop.f32.mrf.mxu0
        %v5765 = vadd.f32 0.0, %v5764
        %v5766 = vpop.f32.mrf.mxu0
        %v5767 = vadd.f32 0.0, %v5766
        %5768 = vmatmul.bf16.gmra.mxu0 %v5740
        %v5769 = vpop.f32.mrf.mxu0
        %v5770 = vadd.f32 0.0, %v5769
        %v5771 = vpop.f32.mrf.mxu0
        %v5772 = vadd.f32 0.0, %v5771
        %5773 = vmatmul.bf16.gmra.mxu0 %v5743
        %v5774 = vpop.f32.mrf.mxu0
        %v5775 = vadd.f32 0.0, %v5774
        %v5776 = vpop.f32.mrf.mxu0
        %5777 = vdwg.mxu0
        %v5778 = vadd.f32 %v5700, %v5755
        %v5779 = vadd.f32 %v5701, %v5757
        %v5780 = vadd.f32 %v5702, %v5760
        %v5781 = vadd.f32 %v5703, %v5762
        %v5782 = vadd.f32 %v5704, %v5765
        %v5783 = vadd.f32 %v5705, %v5767
        %v5784 = vadd.f32 %v5706, %v5770
        %v5785 = vadd.f32 %v5707, %v5772
        %v5786 = vadd.f32 %v5708, %v5775
        %v5787 = vld [vmem:[#allocation3 + $0xb4] sm:$0xf]
        %v5788 = vld [vmem:[%s3216] sm:$0xf]
        %v5789 = vld [vmem:[%s3216 + $0x4] sm:$0xf]
        %v5791 = vunpack.c.l.b16 %v5787
        %v5792 = vpack.c.b16 %v5791, %v5791
        %v5794 = vshrl.u32 %v5714, 16
        %v5796 = vrot.slane %v5794, 1
        %v5797 = vshll.u32 %v5714, 16
        %v5799 = vrot.slane %v5797, 2
        %v5800 = vor.u32 %v5796, %v5799
        %v5801 = vrot.slane %v5619, 1
        %v5802 = vrot.slane %v5615, 2
        %v5803 = vor.u32 %v5801, %v5802
        %v5804 = vsel %vm3222, %v5800, %v5803
        %v5805 = vrot.slane %v5627, 1
        %v5806 = vrot.slane %v5623, 2
        %v5807 = vor.u32 %v5805, %v5806
        %v5808 = vsel %vm3222, %v5803, %v5807
        %v5809 = vrot.slane %v5635, 1
        %v5810 = vrot.slane %v5631, 2
        %v5811 = vor.u32 %v5809, %v5810
        %v5812 = vsel %vm3222, %v5807, %v5811
        %v5814 = vshrl.u32 %v5792, 16
        %v5816 = vrot.slane %v5814, 1
        %v5817 = vshll.u32 %v5792, 16
        %v5819 = vrot.slane %v5817, 2
        %v5820 = vor.u32 %v5816, %v5819
        %v5821 = vsel %vm3222, %v5811, %v5820
        %v5824 = vunpack.c.l.b16 %v5788
        %v5825 = vunpack.c.l.b16 %v5789
        %v5826 = vpack.c.b16 %v5825, %v5824
        %v5829 = vsel %vm447, %v5804, 0
        %v5832 = vsel %vm447, %v5808, 0
        %v5835 = vsel %vm447, %v5812, 0
        %v5838 = vsel %vm447, %v5821, 0
        %v5841 = vsel %vm447, %v5820, 0
        %5843 = vmatpush.bf16.msra.mxu0 0
        %5844 = vmatpush.bf16.msra.mxu0 0
        %5845 = vmatpush.bf16.msra.mxu0 0
        %5846 = vmatpush.bf16.msra.mxu0 0
        %5847 = vmatpush.bf16.msra.mxu0 0
        %5848 = vmatpush.bf16.msra.mxu0 0
        %5849 = vmatpush.bf16.msra.mxu0 0
        %5850 = vmatpush.bf16.msra.mxu0 %v5826
        %5851 = vmatmul.bf16.gmra.mxu0 %v5829
        %v5852 = vpop.f32.mrf.mxu0
        %v5853 = vadd.f32 0.0, %v5852
        %v5854 = vpop.f32.mrf.mxu0
        %v5855 = vadd.f32 0.0, %v5854
        %5856 = vmatmul.bf16.gmra.mxu0 %v5832
        %v5857 = vpop.f32.mrf.mxu0
        %v5858 = vadd.f32 0.0, %v5857
        %v5859 = vpop.f32.mrf.mxu0
        %v5860 = vadd.f32 0.0, %v5859
        %5861 = vmatmul.bf16.gmra.mxu0 %v5835
        %v5862 = vpop.f32.mrf.mxu0
        %v5863 = vadd.f32 0.0, %v5862
        %v5864 = vpop.f32.mrf.mxu0
        %v5865 = vadd.f32 0.0, %v5864
        %5866 = vmatmul.bf16.gmra.mxu0 %v5838
        %v5867 = vpop.f32.mrf.mxu0
        %v5868 = vadd.f32 0.0, %v5867
        %v5869 = vpop.f32.mrf.mxu0
        %v5870 = vadd.f32 0.0, %v5869
        %5871 = vmatmul.bf16.gmra.mxu0 %v5841
        %v5872 = vpop.f32.mrf.mxu0
        %v5873 = vadd.f32 0.0, %v5872
        %v5874 = vpop.f32.mrf.mxu0
        %5875 = vdwg.mxu0
        %v5876 = vadd.f32 %v5778, %v5853
        %v5877 = vadd.f32 %v5779, %v5855
        %v5878 = vadd.f32 %v5780, %v5858
        %v5879 = vadd.f32 %v5781, %v5860
        %v5880 = vadd.f32 %v5782, %v5863
        %v5881 = vadd.f32 %v5783, %v5865
        %v5882 = vadd.f32 %v5784, %v5868
        %v5883 = vadd.f32 %v5785, %v5870
        %v5884 = vadd.f32 %v5786, %v5873
        %v5885 = vmax.f32 %v5876, 0.0
        %v5886 = vmax.f32 %v5877, 0.0
        %v5887 = vmax.f32 %v5878, 0.0
        %v5888 = vmax.f32 %v5879, 0.0
        %v5889 = vmax.f32 %v5880, 0.0
        %v5890 = vmax.f32 %v5881, 0.0
        %v5891 = vmax.f32 %v5882, 0.0
        %v5892 = vmax.f32 %v5883, 0.0
        %v5893 = vmax.f32 %v5884, 0.0
        %5894 = vst.msk [vmem:[#allocation4 + $0x100] sm:$0xff] %vm3379, %v5885
        %5895 = vst.msk [vmem:[#allocation4 + $0x108] sm:$0xff] %vm3379, %v5886
        %5896 = vst.msk [vmem:[#allocation4 + $0x110] sm:$0xff] %vm3379, %v5887
        %5897 = vst.msk [vmem:[#allocation4 + $0x118] sm:$0xff] %vm3379, %v5888
        %5898 = vst.msk [vmem:[#allocation4 + $0x120] sm:$0xff] %vm3379, %v5889
        %5899 = vst.msk [vmem:[#allocation4 + $0x128] sm:$0xff] %vm3379, %v5890
        %5900 = vst.msk [vmem:[#allocation4 + $0x130] sm:$0xff] %vm3379, %v5891
        %5901 = vst.msk [vmem:[#allocation4 + $0x138] sm:$0xff] %vm3379, %v5892
        %vm5902 = vcmask 650240
        %5903 = vst.msk [vmem:[#allocation4 + $0x140] sm:$0xf] %vm5902, %v5893
        %5904 = vst.msk [vmem:[#allocation5] sm:$0xf] %vm5902, 0
        %5905 = vst.msk [vmem:[#allocation5 + $0x4] sm:$0xf] %vm5902, 0
        %5906 = vst.msk [vmem:[#allocation5 + $0x8] sm:$0xf] %vm5902, 0
        %5907 = vst.msk [vmem:[#allocation5 + $0xc] sm:$0xf] %vm5902, 0
        %5908 = vst.msk [vmem:[#allocation5 + $0x10] sm:$0xf] %vm5902, 0
        %5909 = vst.msk [vmem:[#allocation5 + $0x14] sm:$0xf] %vm5902, 0
        %5910 = vst.msk [vmem:[#allocation5 + $0x18] sm:$0xf] %vm5902, 0
        %5911 = vst.msk [vmem:[#allocation5 + $0x1c] sm:$0xf] %vm5902, 0
        %5912 = vst.msk [vmem:[#allocation5 + $0x20] sm:$0xf] %vm5902, 0
        %5913 = vst.msk [vmem:[#allocation5 + $0x24] sm:$0xf] %vm5902, 0
        %5914 = vst.msk [vmem:[#allocation5 + $0x28] sm:$0xf] %vm5902, 0
        %5915 = vst.msk [vmem:[#allocation5 + $0x2c] sm:$0xf] %vm5902, 0
        %5916 = vst.msk [vmem:[#allocation5 + $0x30] sm:$0xf] %vm5902, 0
        %5917 = vst.msk [vmem:[#allocation5 + $0x34] sm:$0xf] %vm5902, 0
        %5918 = vst.msk [vmem:[#allocation5 + $0x38] sm:$0xf] %vm5902, 0
        %5919 = vst.msk [vmem:[#allocation5 + $0x3c] sm:$0xf] %vm5902, 0
        %vm5920 = vcmask 648192
        %5921 = vst.msk [vmem:[#allocation5 + $0x40] sm:$0x3] %vm5920, 0
        %s5922 = scalar_lea.vmem [#allocation4], 19
        %v5923 = vld [vmem:[%s5922] ss:$2 sm:$0xff]
        %s5924 = scalar_lea.vmem [#allocation4], 20
        %v5925 = vld [vmem:[%s5924] ss:$2 sm:$0xff]
        %v5926 = vmax.f32 %v5923, %v5925
        %s5927 = scalar_lea.vmem [#allocation4], 37
        %v5928 = vld [vmem:[%s5927] ss:$2 sm:$0xff]
        %v5929 = vmax.f32 %v5926, %v5928
        %s5930 = scalar_lea.vmem [#allocation4], 38
        %v5931 = vld [vmem:[%s5930] ss:$2 sm:$0xff]
        %v5932 = vmax.f32 %v5929, %v5931
        %v5933 = vpack.c.bf16 %v5932, %v5932
        %v5935 = vshrl.u32 %v5933, 16
        %v5937 = vrot.slane %v5935, 6
        %v5938 = vshll.u32 %v5933, 16
        %v5940 = vrot.slane %v5938, 7
        %v5941 = vor.u32 %v5937, %v5940
        %v5942 = vrot.slane %v5941, 4
        %vm5945 = vcmask 650241
        %vm5946 = vsmask.f32 7942
        %vm5947 = vmand %vm5945, %vm5946
        %v5948 = vld [vmem:[#allocation5 + $0xc] sm:$0xe]
        %v5949 = vsel %vm5947, %v5941, %v5948
        %5950 = vst [vmem:[#allocation5 + $0xc] sm:$0xe] %v5949
        %vm5951 = vcmask 648192
        %vm5952 = vsmask.f32 1280
        %vm5953 = vmand %vm5951, %vm5952
        %v5954 = vld [vmem:[#allocation5 + $0x10] sm:$0x3]
        %v5955 = vsel %vm5953, %v5942, %v5954
        %5956 = vst [vmem:[#allocation5 + $0x10] sm:$0x3] %v5955
        %s5957 = scalar_lea.vmem [#allocation4], 55
        %v5958 = vld [vmem:[%s5957] ss:$2 sm:$0xff]
        %s5959 = scalar_lea.vmem [#allocation4], 56
        %v5960 = vld [vmem:[%s5959] ss:$2 sm:$0xff]
        %v5961 = vmax.f32 %v5958, %v5960
        %s5962 = scalar_lea.vmem [#allocation4], 73
        %v5963 = vld [vmem:[%s5962] ss:$2 sm:$0xff]
        %v5964 = vmax.f32 %v5961, %v5963
        %s5965 = scalar_lea.vmem [#allocation4], 74
        %v5966 = vld [vmem:[%s5965] ss:$2 sm:$0xff]
        %v5967 = vmax.f32 %v5964, %v5966
        %v5968 = vpack.c.bf16 %v5967, %v5967
        %v5970 = vshrl.u32 %v5968, 16
        %v5972 = vrot.slane %v5970, 5
        %v5973 = vshll.u32 %v5968, 16
        %v5975 = vrot.slane %v5973, 6
        %v5976 = vor.u32 %v5972, %v5975
        %v5977 = vrot.slane %v5976, 4
        %vm5980 = vcmask 650242
        %vm5981 = vsmask.f32 7946
        %vm5982 = vmand %vm5980, %vm5981
        %v5983 = vld [vmem:[#allocation5 + $0x10] sm:$0xc]
        %v5984 = vsel %vm5982, %v5976, %v5983
        %5985 = vst [vmem:[#allocation5 + $0x10] sm:$0xc] %v5984
        %vm5986 = vcmask 649216
        %vm5987 = vsmask.f32 2304
        %vm5988 = vmand %vm5986, %vm5987
        %v5989 = vld [vmem:[#allocation5 + $0x14] sm:$0x7]
        %v5990 = vsel %vm5988, %v5977, %v5989
        %5991 = vst [vmem:[#allocation5 + $0x14] sm:$0x7] %v5990
        %s5992 = scalar_lea.vmem [#allocation4], 91
        %v5993 = vld [vmem:[%s5992] ss:$2 sm:$0xff]
        %s5994 = scalar_lea.vmem [#allocation4], 92
        %v5995 = vld [vmem:[%s5994] ss:$2 sm:$0xff]
        %v5996 = vmax.f32 %v5993, %v5995
        %s5997 = scalar_lea.vmem [#allocation4], 109
        %v5998 = vld [vmem:[%s5997] ss:$2 sm:$0xff]
        %v5999 = vmax.f32 %v5996, %v5998
        %s6000 = scalar_lea.vmem [#allocation4], 110
        %v6001 = vld [vmem:[%s6000] ss:$2 sm:$0xff]
        %v6002 = vmax.f32 %v5999, %v6001
        %v6003 = vpack.c.bf16 %v6002, %v6002
        %v6005 = vshll.u32 %v6003, 16
        %v6007 = vrot.slane %v6005, 5
        %v6008 = vshrl.u32 %v6003, 16
        %v6010 = vrot.slane %v6008, 4
        %v6011 = vor.u32 %v6010, %v6007
        %v6012 = vrot.slane %v6011, 4
        %vm6015 = vcmask 650243
        %vm6016 = vsmask.f32 7950
        %vm6017 = vmand %vm6015, %vm6016
        %v6018 = vld [vmem:[#allocation5 + $0x14] sm:$0x8]
        %v6019 = vsel %vm6017, %v6007, %v6018
        %6020 = vst [vmem:[#allocation5 + $0x14] sm:$0x8] %v6019
        %vm6021 = vcmask 650240
        %vm6022 = vsmask.f32 3328
        %vm6023 = vmand %vm6021, %vm6022
        %v6024 = vld [vmem:[#allocation5 + $0x18] sm:$0xf]
        %v6025 = vsel %vm6023, %v6012, %v6024
        %6026 = vst [vmem:[#allocation5 + $0x18] sm:$0xf] %v6025
        %s6027 = scalar_lea.vmem [#allocation4], 127
        %v6028 = vld [vmem:[%s6027] ss:$2 sm:$0xff]
        %s6029 = scalar_lea.vmem [#allocation4], 128
        %v6030 = vld [vmem:[%s6029] ss:$2 sm:$0xff]
        %v6031 = vmax.f32 %v6028, %v6030
        %s6032 = scalar_lea.vmem [#allocation4], 145
        %v6033 = vld [vmem:[%s6032] ss:$2 sm:$0xff]
        %v6034 = vmax.f32 %v6031, %v6033
        %s6035 = scalar_lea.vmem [#allocation4], 146
        %v6036 = vld [vmem:[%s6035] ss:$2 sm:$0xff]
        %v6037 = vmax.f32 %v6034, %v6036
        %v6038 = vpack.c.bf16 %v6037, %v6037
        %v6040 = vshrl.u32 %v6038, 16
        %v6042 = vrot.slane %v6040, 7
        %v6043 = vshll.u32 %v6038, 16
        %v6045 = vor.u32 %v6042, %v6043
        %v6046 = vrot.slane %v6042, 4
        %vm6049 = vsmask.f32 7938
        %vm6050 = vmand %vm6021, %vm6049
        %v6051 = vld [vmem:[#allocation5 + $0x1c] sm:$0xf]
        %v6052 = vsel %vm6050, %v6045, %v6051
        %6053 = vst [vmem:[#allocation5 + $0x1c] sm:$0xf] %v6052
        %vm6054 = vcmask 647168
        %vm6055 = vsmask.f32 256
        %vm6056 = vmand %vm6054, %vm6055
        %v6057 = vld [vmem:[#allocation5 + $0x20] sm:$0x1]
        %v6058 = vsel %vm6056, %v6046, %v6057
        %6059 = vst [vmem:[#allocation5 + $0x20] sm:$0x1] %v6058
        %s6060 = scalar_lea.vmem [#allocation4], 163
        %v6061 = vld [vmem:[%s6060] ss:$2 sm:$0xff]
        %s6062 = scalar_lea.vmem [#allocation4], 164
        %v6063 = vld [vmem:[%s6062] ss:$2 sm:$0xff]
        %v6064 = vmax.f32 %v6061, %v6063
        %s6065 = scalar_lea.vmem [#allocation4], 181
        %v6066 = vld [vmem:[%s6065] ss:$2 sm:$0xff]
        %v6067 = vmax.f32 %v6064, %v6066
        %s6068 = scalar_lea.vmem [#allocation4], 182
        %v6069 = vld [vmem:[%s6068] ss:$2 sm:$0xff]
        %v6070 = vmax.f32 %v6067, %v6069
        %v6071 = vpack.c.bf16 %v6070, %v6070
        %v6073 = vshrl.u32 %v6071, 16
        %v6075 = vrot.slane %v6073, 6
        %v6076 = vshll.u32 %v6071, 16
        %v6078 = vrot.slane %v6076, 7
        %v6079 = vor.u32 %v6075, %v6078
        %v6080 = vrot.slane %v6079, 4
        %v6083 = vld [vmem:[#allocation5 + $0x20] sm:$0xe]
        %v6084 = vsel %vm5947, %v6079, %v6083
        %6085 = vst [vmem:[#allocation5 + $0x20] sm:$0xe] %v6084
        %v6086 = vld [vmem:[#allocation5 + $0x24] sm:$0x3]
        %v6087 = vsel %vm5953, %v6080, %v6086
        %6088 = vst [vmem:[#allocation5 + $0x24] sm:$0x3] %v6087
        %s6089 = scalar_lea.vmem [#allocation4], 199
        %v6090 = vld [vmem:[%s6089] ss:$2 sm:$0xff]
        %s6091 = scalar_lea.vmem [#allocation4], 200
        %v6092 = vld [vmem:[%s6091] ss:$2 sm:$0xff]
        %v6093 = vmax.f32 %v6090, %v6092
        %s6094 = scalar_lea.vmem [#allocation4], 217
        %v6095 = vld [vmem:[%s6094] ss:$2 sm:$0xff]
        %v6096 = vmax.f32 %v6093, %v6095
        %s6097 = scalar_lea.vmem [#allocation4], 218
        %v6098 = vld [vmem:[%s6097] ss:$2 sm:$0xff]
        %v6099 = vmax.f32 %v6096, %v6098
        %v6100 = vpack.c.bf16 %v6099, %v6099
        %v6102 = vshrl.u32 %v6100, 16
        %v6104 = vrot.slane %v6102, 5
        %v6105 = vshll.u32 %v6100, 16
        %v6107 = vrot.slane %v6105, 6
        %v6108 = vor.u32 %v6104, %v6107
        %v6109 = vrot.slane %v6108, 4
        %v6112 = vld [vmem:[#allocation5 + $0x24] sm:$0xc]
        %v6113 = vsel %vm5982, %v6108, %v6112
        %6114 = vst [vmem:[#allocation5 + $0x24] sm:$0xc] %v6113
        %v6115 = vld [vmem:[#allocation5 + $0x28] sm:$0x7]
        %v6116 = vsel %vm5988, %v6109, %v6115
        %6117 = vst [vmem:[#allocation5 + $0x28] sm:$0x7] %v6116
        %s6118 = scalar_lea.vmem [#allocation4], 235
        %v6119 = vld [vmem:[%s6118] ss:$2 sm:$0xff]
        %s6120 = scalar_lea.vmem [#allocation4], 236
        %v6121 = vld [vmem:[%s6120] ss:$2 sm:$0xff]
        %v6122 = vmax.f32 %v6119, %v6121
        %s6123 = scalar_lea.vmem [#allocation4], 253
        %v6124 = vld [vmem:[%s6123] ss:$2 sm:$0xff]
        %v6125 = vmax.f32 %v6122, %v6124
        %s6126 = scalar_lea.vmem [#allocation4], 254
        %v6127 = vld [vmem:[%s6126] ss:$2 sm:$0xff]
        %v6128 = vmax.f32 %v6125, %v6127
        %v6129 = vpack.c.bf16 %v6128, %v6128
        %v6131 = vshll.u32 %v6129, 16
        %v6133 = vrot.slane %v6131, 5
        %v6134 = vshrl.u32 %v6129, 16
        %v6136 = vrot.slane %v6134, 4
        %v6137 = vor.u32 %v6136, %v6133
        %v6138 = vrot.slane %v6137, 4
        %v6141 = vld [vmem:[#allocation5 + $0x28] sm:$0x8]
        %v6142 = vsel %vm6017, %v6133, %v6141
        %6143 = vst [vmem:[#allocation5 + $0x28] sm:$0x8] %v6142
        %v6144 = vld [vmem:[#allocation5 + $0x2c] sm:$0xf]
        %v6145 = vsel %vm6023, %v6138, %v6144
        %6146 = vst [vmem:[#allocation5 + $0x2c] sm:$0xf] %v6145
        %s6147 = scalar_lea.vmem [#allocation4], 271
        %v6148 = vld [vmem:[%s6147] ss:$2 sm:$0xff]
        %s6149 = scalar_lea.vmem [#allocation4], 272
        %v6150 = vld [vmem:[%s6149] ss:$2 sm:$0xff]
        %v6151 = vmax.f32 %v6148, %v6150
        %s6152 = scalar_lea.vmem [#allocation4], 289
        %v6153 = vld [vmem:[%s6152] ss:$2 sm:$0xff]
        %v6154 = vmax.f32 %v6151, %v6153
        %s6155 = scalar_lea.vmem [#allocation4], 290
        %v6156 = vld [vmem:[%s6155] ss:$2 sm:$0xff]
        %v6157 = vmax.f32 %v6154, %v6156
        %v6158 = vpack.c.bf16 %v6157, %v6157
        %v6160 = vshrl.u32 %v6158, 16
        %v6162 = vrot.slane %v6160, 7
        %v6163 = vshll.u32 %v6158, 16
        %v6165 = vor.u32 %v6162, %v6163
        %v6166 = vrot.slane %v6162, 4
        %v6169 = vld [vmem:[#allocation5 + $0x30] sm:$0xf]
        %v6170 = vsel %vm6050, %v6165, %v6169
        %6171 = vst [vmem:[#allocation5 + $0x30] sm:$0xf] %v6170
        %v6172 = vld [vmem:[#allocation5 + $0x34] sm:$0x1]
        %v6173 = vsel %vm6056, %v6166, %v6172
        %6174 = vst [vmem:[#allocation5 + $0x34] sm:$0x1] %v6173
        %v6175 = vld [vmem:[#allocation5] sm:$0xc]
        %v6176 = vld [vmem:[#allocation5 + $0x4] sm:$0xf]
        %v6177 = vld [vmem:[#allocation5 + $0x8] sm:$0xf]
        %v6178 = vld [vmem:[#allocation5 + $0xc] sm:$0xf]
        %v6179 = vld [vmem:[#allocation5 + $0x10] sm:$0xf]
        %v6180 = vld [vmem:[#allocation5 + $0x14] sm:$0xf]
        %v6181 = vld [vmem:[#allocation5 + $0x18] sm:$0xf]
        %v6182 = vld [vmem:[#allocation5 + $0x1c] sm:$0xf]
        %v6183 = vld [vmem:[#allocation5 + $0x20] sm:$0xf]
        %v6184 = vld [vmem:[#allocation5 + $0x24] sm:$0xf]
        %v6185 = vld [vmem:[#allocation5 + $0x28] sm:$0xf]
        %v6186 = vld [vmem:[#allocation5 + $0x2c] sm:$0xf]
        %v6187 = vld [vmem:[#allocation5 + $0x30] sm:$0xf]
        %v6188 = vld [vmem:[#allocation5 + $0x34] sm:$0x1]
        %v6189 = vld [vmem:[%s3] sm:$0xf]
        %v6190 = vld [vmem:[%s3 + $0x4] sm:$0xf]
        %v6191 = vld [vmem:[%s3 + $0x8] sm:$0xf]
        %v6192 = vld [vmem:[%s3 + $0xc] sm:$0xf]
        %v6193 = vld [vmem:[%s3 + $0x10] sm:$0xf]
        %v6194 = vld [vmem:[%s3 + $0x14] sm:$0xf]
        %v6195 = vld [vmem:[%s3 + $0x18] sm:$0xf]
        %v6196 = vld [vmem:[%s3 + $0x1c] sm:$0xf]
        %v6197 = vld [vmem:[%s3 + $0x20] sm:$0xf]
        %v6198 = vld [vmem:[%s3 + $0x24] sm:$0xf]
        %v6199 = vld [vmem:[#allocation5] sm:$0x8]
        %s6200 = scalar_lea.vmem %s3, 40
        %v6201 = vld [vmem:[%s6200] sm:$0xf]
        %v6202 = vld [vmem:[%s6200 + $0x4] sm:$0xf]
        %v6203 = vld [vmem:[%s6200 + $0x8] sm:$0xf]
        %v6204 = vld [vmem:[%s6200 + $0xc] sm:$0xf]
        %v6205 = vld [vmem:[%s6200 + $0x10] sm:$0xf]
        %v6206 = vld [vmem:[%s6200 + $0x14] sm:$0xf]
        %v6207 = vld [vmem:[%s6200 + $0x18] sm:$0xf]
        %v6208 = vld [vmem:[%s6200 + $0x1c] sm:$0xf]
        %v6209 = vld [vmem:[%s6200 + $0x20] sm:$0xf]
        %v6210 = vld [vmem:[%s6200 + $0x24] sm:$0xf]
        %v6225 = vunpack.c.l.b16 %v6199
        %v6226 = vunpack.c.l.b16 %v6176
        %v6227 = vunpack.c.l.b16 %v6177
        %v6228 = vunpack.c.l.b16 %v6178
        %v6229 = vunpack.c.l.b16 %v6179
        %v6230 = vunpack.c.l.b16 %v6180
        %v6231 = vunpack.c.l.b16 %v6181
        %v6232 = vunpack.c.l.b16 %v6182
        %v6233 = vunpack.c.l.b16 %v6183
        %v6234 = vunpack.c.l.b16 %v6184
        %v6235 = vunpack.c.l.b16 %v6185
        %v6236 = vunpack.c.l.b16 %v6186
        %v6237 = vunpack.c.l.b16 %v6187
        %v6238 = vunpack.c.l.b16 %v6188
        %v6239 = vpack.c.b16 %v6226, %v6225
        %v6240 = vpack.c.b16 %v6228, %v6227
        %v6241 = vpack.c.b16 %v6230, %v6229
        %v6242 = vpack.c.b16 %v6232, %v6231
        %v6243 = vpack.c.b16 %v6234, %v6233
        %v6244 = vpack.c.b16 %v6236, %v6235
        %v6245 = vpack.c.b16 %v6238, %v6237
        %v6246 = vrot.slane %v6239, 3
        %v6247 = vrot.slane %v6240, 3
        %v6248 = vsel %vm1890, %v6246, %v6247
        %v6249 = vrot.slane %v6241, 3
        %v6250 = vsel %vm1890, %v6247, %v6249
        %v6251 = vrot.slane %v6242, 3
        %v6252 = vsel %vm1890, %v6249, %v6251
        %v6253 = vrot.slane %v6243, 3
        %v6254 = vsel %vm1890, %v6251, %v6253
        %v6255 = vrot.slane %v6244, 3
        %v6256 = vsel %vm1890, %v6253, %v6255
        %v6257 = vrot.slane %v6245, 3
        %v6258 = vsel %vm1890, %v6255, %v6257
        %v6269 = vunpack.c.l.b16 %v6201
        %v6270 = vunpack.c.l.b16 %v6202
        %v6271 = vunpack.c.l.b16 %v6203
        %v6272 = vunpack.c.l.b16 %v6204
        %v6273 = vunpack.c.l.b16 %v6205
        %v6274 = vunpack.c.l.b16 %v6206
        %v6275 = vunpack.c.l.b16 %v6207
        %v6276 = vunpack.c.l.b16 %v6208
        %v6277 = vunpack.c.l.b16 %v6209
        %v6278 = vunpack.c.l.b16 %v6210
        %v6279 = vpack.c.b16 %v6270, %v6269
        %v6280 = vpack.c.b16 %v6272, %v6271
        %v6281 = vpack.c.b16 %v6274, %v6273
        %v6282 = vpack.c.b16 %v6276, %v6275
        %v6283 = vpack.c.b16 %v6278, %v6277
        %v6290 = vsel %vm3379, %v6248, 0
        %v6293 = vsel %vm3379, %v6250, 0
        %v6296 = vsel %vm3379, %v6252, 0
        %v6299 = vsel %vm3379, %v6254, 0
        %v6302 = vsel %vm3379, %v6256, 0
        %v6305 = vsel %vm3379, %v6258, 0
        %v6308 = vsel %vm3379, %v6257, 0
        %6310 = vmatpush.bf16.msra.mxu0 0
        %6311 = vmatpush.bf16.msra.mxu0 0
        %6312 = vmatpush.bf16.msra.mxu0 0
        %6313 = vmatpush.bf16.msra.mxu0 %v6283
        %6314 = vmatpush.bf16.msra.mxu0 %v6282
        %6315 = vmatpush.bf16.msra.mxu0 %v6281
        %6316 = vmatpush.bf16.msra.mxu0 %v6280
        %6317 = vmatpush.bf16.msra.mxu0 %v6279
        %6318 = vmatmul.bf16.gmra.mxu0 %v6290
        %v6319 = vpop.f32.mrf.mxu0
        %v6320 = vadd.f32 0.0, %v6319
        %v6321 = vpop.f32.mrf.mxu0
        %v6322 = vadd.f32 0.0, %v6321
        %6323 = vmatmul.bf16.gmra.mxu0 %v6293
        %v6324 = vpop.f32.mrf.mxu0
        %v6325 = vadd.f32 0.0, %v6324
        %v6326 = vpop.f32.mrf.mxu0
        %v6327 = vadd.f32 0.0, %v6326
        %6328 = vmatmul.bf16.gmra.mxu0 %v6296
        %v6329 = vpop.f32.mrf.mxu0
        %v6330 = vadd.f32 0.0, %v6329
        %v6331 = vpop.f32.mrf.mxu0
        %v6332 = vadd.f32 0.0, %v6331
        %6333 = vmatmul.bf16.gmra.mxu0 %v6299
        %v6334 = vpop.f32.mrf.mxu0
        %v6335 = vadd.f32 0.0, %v6334
        %v6336 = vpop.f32.mrf.mxu0
        %v6337 = vadd.f32 0.0, %v6336
        %6338 = vmatmul.bf16.gmra.mxu0 %v6302
        %v6339 = vpop.f32.mrf.mxu0
        %v6340 = vadd.f32 0.0, %v6339
        %v6341 = vpop.f32.mrf.mxu0
        %v6342 = vadd.f32 0.0, %v6341
        %6343 = vmatmul.bf16.gmra.mxu0 %v6305
        %v6344 = vpop.f32.mrf.mxu0
        %v6345 = vadd.f32 0.0, %v6344
        %v6346 = vpop.f32.mrf.mxu0
        %v6347 = vadd.f32 0.0, %v6346
        %6348 = vmatmul.bf16.gmra.mxu0 %v6308
        %v6349 = vpop.f32.mrf.mxu0
        %v6350 = vadd.f32 0.0, %v6349
        %v6351 = vpop.f32.mrf.mxu0
        %6352 = vdwg.mxu0
        %v6354 = vunpack.c.l.b16 %v6175
        %v6355 = vpack.c.b16 %v6226, %v6354
        %v6357 = vshrl.u32 %v6355, 16
        %v6359 = vrot.slane %v6357, 2
        %v6360 = vshll.u32 %v6355, 16
        %v6362 = vrot.slane %v6360, 3
        %v6363 = vor.u32 %v6359, %v6362
        %v6365 = vshrl.u32 %v6240, 16
        %v6367 = vrot.slane %v6365, 2
        %v6368 = vshll.u32 %v6240, 16
        %v6370 = vrot.slane %v6368, 3
        %v6371 = vor.u32 %v6367, %v6370
        %v6372 = vsel %vm1990, %v6363, %v6371
        %v6374 = vshrl.u32 %v6241, 16
        %v6376 = vrot.slane %v6374, 2
        %v6377 = vshll.u32 %v6241, 16
        %v6379 = vrot.slane %v6377, 3
        %v6380 = vor.u32 %v6376, %v6379
        %v6381 = vsel %vm1990, %v6371, %v6380
        %v6383 = vshrl.u32 %v6242, 16
        %v6385 = vrot.slane %v6383, 2
        %v6386 = vshll.u32 %v6242, 16
        %v6388 = vrot.slane %v6386, 3
        %v6389 = vor.u32 %v6385, %v6388
        %v6390 = vsel %vm1990, %v6380, %v6389
        %v6392 = vshrl.u32 %v6243, 16
        %v6394 = vrot.slane %v6392, 2
        %v6395 = vshll.u32 %v6243, 16
        %v6397 = vrot.slane %v6395, 3
        %v6398 = vor.u32 %v6394, %v6397
        %v6399 = vsel %vm1990, %v6389, %v6398
        %v6401 = vshrl.u32 %v6244, 16
        %v6403 = vrot.slane %v6401, 2
        %v6404 = vshll.u32 %v6244, 16
        %v6406 = vrot.slane %v6404, 3
        %v6407 = vor.u32 %v6403, %v6406
        %v6408 = vsel %vm1990, %v6398, %v6407
        %v6410 = vshrl.u32 %v6245, 16
        %v6412 = vrot.slane %v6410, 2
        %v6413 = vshll.u32 %v6245, 16
        %v6415 = vrot.slane %v6413, 3
        %v6416 = vor.u32 %v6412, %v6415
        %v6417 = vsel %vm1990, %v6407, %v6416
        %v6428 = vunpack.c.l.b16 %v6189
        %v6429 = vunpack.c.l.b16 %v6190
        %v6430 = vunpack.c.l.b16 %v6191
        %v6431 = vunpack.c.l.b16 %v6192
        %v6432 = vunpack.c.l.b16 %v6193
        %v6433 = vunpack.c.l.b16 %v6194
        %v6434 = vunpack.c.l.b16 %v6195
        %v6435 = vunpack.c.l.b16 %v6196
        %v6436 = vunpack.c.l.b16 %v6197
        %v6437 = vunpack.c.l.b16 %v6198
        %v6438 = vpack.c.b16 %v6429, %v6428
        %v6439 = vpack.c.b16 %v6431, %v6430
        %v6440 = vpack.c.b16 %v6433, %v6432
        %v6441 = vpack.c.b16 %v6435, %v6434
        %v6442 = vpack.c.b16 %v6437, %v6436
        %v6449 = vsel %vm3379, %v6372, 0
        %v6452 = vsel %vm3379, %v6381, 0
        %v6455 = vsel %vm3379, %v6390, 0
        %v6458 = vsel %vm3379, %v6399, 0
        %v6461 = vsel %vm3379, %v6408, 0
        %v6464 = vsel %vm3379, %v6417, 0
        %v6467 = vsel %vm3379, %v6416, 0
        %6469 = vmatpush.bf16.msra.mxu0 0
        %6470 = vmatpush.bf16.msra.mxu0 0
        %6471 = vmatpush.bf16.msra.mxu0 0
        %6472 = vmatpush.bf16.msra.mxu0 %v6442
        %6473 = vmatpush.bf16.msra.mxu0 %v6441
        %6474 = vmatpush.bf16.msra.mxu0 %v6440
        %6475 = vmatpush.bf16.msra.mxu0 %v6439
        %6476 = vmatpush.bf16.msra.mxu0 %v6438
        %6477 = vmatmul.bf16.gmra.mxu0 %v6449
        %v6478 = vpop.f32.mrf.mxu0
        %v6479 = vadd.f32 %v6320, %v6478
        %v6480 = vpop.f32.mrf.mxu0
        %v6481 = vadd.f32 %v6322, %v6480
        %6482 = vmatmul.bf16.gmra.mxu0 %v6452
        %v6483 = vpop.f32.mrf.mxu0
        %v6484 = vadd.f32 %v6325, %v6483
        %v6485 = vpop.f32.mrf.mxu0
        %v6486 = vadd.f32 %v6327, %v6485
        %6487 = vmatmul.bf16.gmra.mxu0 %v6455
        %v6488 = vpop.f32.mrf.mxu0
        %v6489 = vadd.f32 %v6330, %v6488
        %v6490 = vpop.f32.mrf.mxu0
        %v6491 = vadd.f32 %v6332, %v6490
        %6492 = vmatmul.bf16.gmra.mxu0 %v6458
        %v6493 = vpop.f32.mrf.mxu0
        %v6494 = vadd.f32 %v6335, %v6493
        %v6495 = vpop.f32.mrf.mxu0
        %v6496 = vadd.f32 %v6337, %v6495
        %6497 = vmatmul.bf16.gmra.mxu0 %v6461
        %v6498 = vpop.f32.mrf.mxu0
        %v6499 = vadd.f32 %v6340, %v6498
        %v6500 = vpop.f32.mrf.mxu0
        %v6501 = vadd.f32 %v6342, %v6500
        %6502 = vmatmul.bf16.gmra.mxu0 %v6464
        %v6503 = vpop.f32.mrf.mxu0
        %v6504 = vadd.f32 %v6345, %v6503
        %v6505 = vpop.f32.mrf.mxu0
        %v6506 = vadd.f32 %v6347, %v6505
        %6507 = vmatmul.bf16.gmra.mxu0 %v6467
        %v6508 = vpop.f32.mrf.mxu0
        %v6509 = vadd.f32 %v6350, %v6508
        %v6510 = vpop.f32.mrf.mxu0
        %6511 = vdwg.mxu0
        %v6512 = vld [vmem:[#allocation5 + $0x34] sm:$0x3]
        %s6513 = scalar_lea.vmem %s3, 80
        %v6514 = vld [vmem:[%s6513] sm:$0xf]
        %v6515 = vld [vmem:[%s6513 + $0x4] sm:$0xf]
        %v6516 = vld [vmem:[%s6513 + $0x8] sm:$0xf]
        %v6517 = vld [vmem:[%s6513 + $0xc] sm:$0xf]
        %v6518 = vld [vmem:[%s6513 + $0x10] sm:$0xf]
        %v6519 = vld [vmem:[%s6513 + $0x14] sm:$0xf]
        %v6520 = vld [vmem:[%s6513 + $0x18] sm:$0xf]
        %v6521 = vld [vmem:[%s6513 + $0x1c] sm:$0xf]
        %v6522 = vld [vmem:[%s6513 + $0x20] sm:$0xf]
        %v6523 = vld [vmem:[%s6513 + $0x24] sm:$0xf]
        %v6525 = vunpack.c.l.b16 %v6512
        %v6526 = vpack.c.b16 %v6525, %v6237
        %v6528 = vshrl.u32 %v6239, 16
        %v6530 = vrot.slane %v6528, 3
        %v6531 = vshll.u32 %v6239, 16
        %v6533 = vrot.slane %v6531, 4
        %v6534 = vor.u32 %v6530, %v6533
        %v6535 = vrot.slane %v6365, 3
        %v6536 = vrot.slane %v6368, 4
        %v6537 = vor.u32 %v6535, %v6536
        %v6538 = vsel %vm2157, %v6534, %v6537
        %v6539 = vrot.slane %v6374, 3
        %v6540 = vrot.slane %v6377, 4
        %v6541 = vor.u32 %v6539, %v6540
        %v6542 = vsel %vm2157, %v6537, %v6541
        %v6543 = vrot.slane %v6383, 3
        %v6544 = vrot.slane %v6386, 4
        %v6545 = vor.u32 %v6543, %v6544
        %v6546 = vsel %vm2157, %v6541, %v6545
        %v6547 = vrot.slane %v6392, 3
        %v6548 = vrot.slane %v6395, 4
        %v6549 = vor.u32 %v6547, %v6548
        %v6550 = vsel %vm2157, %v6545, %v6549
        %v6551 = vrot.slane %v6401, 3
        %v6552 = vrot.slane %v6404, 4
        %v6553 = vor.u32 %v6551, %v6552
        %v6554 = vsel %vm2157, %v6549, %v6553
        %v6556 = vshrl.u32 %v6526, 16
        %v6558 = vrot.slane %v6556, 3
        %v6559 = vshll.u32 %v6526, 16
        %v6561 = vrot.slane %v6559, 4
        %v6562 = vor.u32 %v6558, %v6561
        %v6563 = vsel %vm2157, %v6553, %v6562
        %v6574 = vunpack.c.l.b16 %v6514
        %v6575 = vunpack.c.l.b16 %v6515
        %v6576 = vunpack.c.l.b16 %v6516
        %v6577 = vunpack.c.l.b16 %v6517
        %v6578 = vunpack.c.l.b16 %v6518
        %v6579 = vunpack.c.l.b16 %v6519
        %v6580 = vunpack.c.l.b16 %v6520
        %v6581 = vunpack.c.l.b16 %v6521
        %v6582 = vunpack.c.l.b16 %v6522
        %v6583 = vunpack.c.l.b16 %v6523
        %v6584 = vpack.c.b16 %v6575, %v6574
        %v6585 = vpack.c.b16 %v6577, %v6576
        %v6586 = vpack.c.b16 %v6579, %v6578
        %v6587 = vpack.c.b16 %v6581, %v6580
        %v6588 = vpack.c.b16 %v6583, %v6582
        %v6595 = vsel %vm3379, %v6538, 0
        %v6598 = vsel %vm3379, %v6542, 0
        %v6601 = vsel %vm3379, %v6546, 0
        %v6604 = vsel %vm3379, %v6550, 0
        %v6607 = vsel %vm3379, %v6554, 0
        %v6610 = vsel %vm3379, %v6563, 0
        %v6613 = vsel %vm3379, %v6562, 0
        %6615 = vmatpush.bf16.msra.mxu0 0
        %6616 = vmatpush.bf16.msra.mxu0 0
        %6617 = vmatpush.bf16.msra.mxu0 0
        %6618 = vmatpush.bf16.msra.mxu0 %v6588
        %6619 = vmatpush.bf16.msra.mxu0 %v6587
        %6620 = vmatpush.bf16.msra.mxu0 %v6586
        %6621 = vmatpush.bf16.msra.mxu0 %v6585
        %6622 = vmatpush.bf16.msra.mxu0 %v6584
        %6623 = vmatmul.bf16.gmra.mxu0 %v6595
        %v6624 = vpop.f32.mrf.mxu0
        %v6625 = vadd.f32 0.0, %v6624
        %v6626 = vpop.f32.mrf.mxu0
        %v6627 = vadd.f32 0.0, %v6626
        %6628 = vmatmul.bf16.gmra.mxu0 %v6598
        %v6629 = vpop.f32.mrf.mxu0
        %v6630 = vadd.f32 0.0, %v6629
        %v6631 = vpop.f32.mrf.mxu0
        %v6632 = vadd.f32 0.0, %v6631
        %6633 = vmatmul.bf16.gmra.mxu0 %v6601
        %v6634 = vpop.f32.mrf.mxu0
        %v6635 = vadd.f32 0.0, %v6634
        %v6636 = vpop.f32.mrf.mxu0
        %v6637 = vadd.f32 0.0, %v6636
        %6638 = vmatmul.bf16.gmra.mxu0 %v6604
        %v6639 = vpop.f32.mrf.mxu0
        %v6640 = vadd.f32 0.0, %v6639
        %v6641 = vpop.f32.mrf.mxu0
        %v6642 = vadd.f32 0.0, %v6641
        %6643 = vmatmul.bf16.gmra.mxu0 %v6607
        %v6644 = vpop.f32.mrf.mxu0
        %v6645 = vadd.f32 0.0, %v6644
        %v6646 = vpop.f32.mrf.mxu0
        %v6647 = vadd.f32 0.0, %v6646
        %6648 = vmatmul.bf16.gmra.mxu0 %v6610
        %v6649 = vpop.f32.mrf.mxu0
        %v6650 = vadd.f32 0.0, %v6649
        %v6651 = vpop.f32.mrf.mxu0
        %v6652 = vadd.f32 0.0, %v6651
        %6653 = vmatmul.bf16.gmra.mxu0 %v6613
        %v6654 = vpop.f32.mrf.mxu0
        %v6655 = vadd.f32 0.0, %v6654
        %v6656 = vpop.f32.mrf.mxu0
        %6657 = vdwg.mxu0
        %v6658 = vadd.f32 %v6479, %v6625
        %v6659 = vadd.f32 %v6481, %v6627
        %v6660 = vadd.f32 %v6484, %v6630
        %v6661 = vadd.f32 %v6486, %v6632
        %v6662 = vadd.f32 %v6489, %v6635
        %v6663 = vadd.f32 %v6491, %v6637
        %v6664 = vadd.f32 %v6494, %v6640
        %v6665 = vadd.f32 %v6496, %v6642
        %v6666 = vadd.f32 %v6499, %v6645
        %v6667 = vadd.f32 %v6501, %v6647
        %v6668 = vadd.f32 %v6504, %v6650
        %v6669 = vadd.f32 %v6506, %v6652
        %v6670 = vadd.f32 %v6509, %v6655
        %v6671 = vld [vmem:[#allocation5 + $0x4] sm:$0x8]
        %v6672 = vld [vmem:[#allocation5 + $0x8] sm:$0xf]
        %v6673 = vld [vmem:[#allocation5 + $0xc] sm:$0xf]
        %v6674 = vld [vmem:[#allocation5 + $0x10] sm:$0xf]
        %v6675 = vld [vmem:[#allocation5 + $0x14] sm:$0xf]
        %v6676 = vld [vmem:[#allocation5 + $0x18] sm:$0xf]
        %v6677 = vld [vmem:[#allocation5 + $0x1c] sm:$0xf]
        %v6678 = vld [vmem:[#allocation5 + $0x20] sm:$0xf]
        %v6679 = vld [vmem:[#allocation5 + $0x24] sm:$0xf]
        %v6680 = vld [vmem:[#allocation5 + $0x28] sm:$0xf]
        %v6681 = vld [vmem:[#allocation5 + $0x2c] sm:$0xf]
        %v6682 = vld [vmem:[#allocation5 + $0x30] sm:$0xf]
        %v6683 = vld [vmem:[#allocation5 + $0x34] sm:$0xf]
        %v6684 = vld [vmem:[#allocation5 + $0x38] sm:$0x3]
        %s6685 = scalar_lea.vmem %s3, 120
        %v6686 = vld [vmem:[%s6685] sm:$0xf]
        %v6687 = vld [vmem:[%s6685 + $0x4] sm:$0xf]
        %v6688 = vld [vmem:[%s6685 + $0x8] sm:$0xf]
        %v6689 = vld [vmem:[%s6685 + $0xc] sm:$0xf]
        %v6690 = vld [vmem:[%s6685 + $0x10] sm:$0xf]
        %v6691 = vld [vmem:[%s6685 + $0x14] sm:$0xf]
        %v6692 = vld [vmem:[%s6685 + $0x18] sm:$0xf]
        %v6693 = vld [vmem:[%s6685 + $0x1c] sm:$0xf]
        %v6694 = vld [vmem:[%s6685 + $0x20] sm:$0xf]
        %v6695 = vld [vmem:[%s6685 + $0x24] sm:$0xf]
        %v6710 = vunpack.c.l.b16 %v6671
        %v6711 = vunpack.c.l.b16 %v6672
        %v6712 = vunpack.c.l.b16 %v6673
        %v6713 = vunpack.c.l.b16 %v6674
        %v6714 = vunpack.c.l.b16 %v6675
        %v6715 = vunpack.c.l.b16 %v6676
        %v6716 = vunpack.c.l.b16 %v6677
        %v6717 = vunpack.c.l.b16 %v6678
        %v6718 = vunpack.c.l.b16 %v6679
        %v6719 = vunpack.c.l.b16 %v6680
        %v6720 = vunpack.c.l.b16 %v6681
        %v6721 = vunpack.c.l.b16 %v6682
        %v6722 = vunpack.c.l.b16 %v6683
        %v6723 = vunpack.c.l.b16 %v6684
        %v6724 = vpack.c.b16 %v6711, %v6710
        %v6725 = vpack.c.b16 %v6713, %v6712
        %v6726 = vpack.c.b16 %v6715, %v6714
        %v6727 = vpack.c.b16 %v6717, %v6716
        %v6728 = vpack.c.b16 %v6719, %v6718
        %v6729 = vpack.c.b16 %v6721, %v6720
        %v6730 = vpack.c.b16 %v6723, %v6722
        %v6732 = vshrl.u32 %v6724, 16
        %v6734 = vrot.slane %v6732, 3
        %v6735 = vshll.u32 %v6724, 16
        %v6737 = vrot.slane %v6735, 4
        %v6738 = vor.u32 %v6734, %v6737
        %v6740 = vshrl.u32 %v6725, 16
        %v6742 = vrot.slane %v6740, 3
        %v6743 = vshll.u32 %v6725, 16
        %v6745 = vrot.slane %v6743, 4
        %v6746 = vor.u32 %v6742, %v6745
        %v6747 = vsel %vm2157, %v6738, %v6746
        %v6749 = vshrl.u32 %v6726, 16
        %v6751 = vrot.slane %v6749, 3
        %v6752 = vshll.u32 %v6726, 16
        %v6754 = vrot.slane %v6752, 4
        %v6755 = vor.u32 %v6751, %v6754
        %v6756 = vsel %vm2157, %v6746, %v6755
        %v6758 = vshrl.u32 %v6727, 16
        %v6760 = vrot.slane %v6758, 3
        %v6761 = vshll.u32 %v6727, 16
        %v6763 = vrot.slane %v6761, 4
        %v6764 = vor.u32 %v6760, %v6763
        %v6765 = vsel %vm2157, %v6755, %v6764
        %v6767 = vshrl.u32 %v6728, 16
        %v6769 = vrot.slane %v6767, 3
        %v6770 = vshll.u32 %v6728, 16
        %v6772 = vrot.slane %v6770, 4
        %v6773 = vor.u32 %v6769, %v6772
        %v6774 = vsel %vm2157, %v6764, %v6773
        %v6776 = vshrl.u32 %v6729, 16
        %v6778 = vrot.slane %v6776, 3
        %v6779 = vshll.u32 %v6729, 16
        %v6781 = vrot.slane %v6779, 4
        %v6782 = vor.u32 %v6778, %v6781
        %v6783 = vsel %vm2157, %v6773, %v6782
        %v6785 = vshrl.u32 %v6730, 16
        %v6787 = vrot.slane %v6785, 3
        %v6788 = vshll.u32 %v6730, 16
        %v6790 = vrot.slane %v6788, 4
        %v6791 = vor.u32 %v6787, %v6790
        %v6792 = vsel %vm2157, %v6782, %v6791
        %v6803 = vunpack.c.l.b16 %v6686
        %v6804 = vunpack.c.l.b16 %v6687
        %v6805 = vunpack.c.l.b16 %v6688
        %v6806 = vunpack.c.l.b16 %v6689
        %v6807 = vunpack.c.l.b16 %v6690
        %v6808 = vunpack.c.l.b16 %v6691
        %v6809 = vunpack.c.l.b16 %v6692
        %v6810 = vunpack.c.l.b16 %v6693
        %v6811 = vunpack.c.l.b16 %v6694
        %v6812 = vunpack.c.l.b16 %v6695
        %v6813 = vpack.c.b16 %v6804, %v6803
        %v6814 = vpack.c.b16 %v6806, %v6805
        %v6815 = vpack.c.b16 %v6808, %v6807
        %v6816 = vpack.c.b16 %v6810, %v6809
        %v6817 = vpack.c.b16 %v6812, %v6811
        %v6824 = vsel %vm3379, %v6747, 0
        %v6827 = vsel %vm3379, %v6756, 0
        %v6830 = vsel %vm3379, %v6765, 0
        %v6833 = vsel %vm3379, %v6774, 0
        %v6836 = vsel %vm3379, %v6783, 0
        %v6839 = vsel %vm3379, %v6792, 0
        %v6842 = vsel %vm3379, %v6791, 0
        %6844 = vmatpush.bf16.msra.mxu0 0
        %6845 = vmatpush.bf16.msra.mxu0 0
        %6846 = vmatpush.bf16.msra.mxu0 0
        %6847 = vmatpush.bf16.msra.mxu0 %v6817
        %6848 = vmatpush.bf16.msra.mxu0 %v6816
        %6849 = vmatpush.bf16.msra.mxu0 %v6815
        %6850 = vmatpush.bf16.msra.mxu0 %v6814
        %6851 = vmatpush.bf16.msra.mxu0 %v6813
        %6852 = vmatmul.bf16.gmra.mxu0 %v6824
        %v6853 = vpop.f32.mrf.mxu0
        %v6854 = vadd.f32 0.0, %v6853
        %v6855 = vpop.f32.mrf.mxu0
        %v6856 = vadd.f32 0.0, %v6855
        %6857 = vmatmul.bf16.gmra.mxu0 %v6827
        %v6858 = vpop.f32.mrf.mxu0
        %v6859 = vadd.f32 0.0, %v6858
        %v6860 = vpop.f32.mrf.mxu0
        %v6861 = vadd.f32 0.0, %v6860
        %6862 = vmatmul.bf16.gmra.mxu0 %v6830
        %v6863 = vpop.f32.mrf.mxu0
        %v6864 = vadd.f32 0.0, %v6863
        %v6865 = vpop.f32.mrf.mxu0
        %v6866 = vadd.f32 0.0, %v6865
        %6867 = vmatmul.bf16.gmra.mxu0 %v6833
        %v6868 = vpop.f32.mrf.mxu0
        %v6869 = vadd.f32 0.0, %v6868
        %v6870 = vpop.f32.mrf.mxu0
        %v6871 = vadd.f32 0.0, %v6870
        %6872 = vmatmul.bf16.gmra.mxu0 %v6836
        %v6873 = vpop.f32.mrf.mxu0
        %v6874 = vadd.f32 0.0, %v6873
        %v6875 = vpop.f32.mrf.mxu0
        %v6876 = vadd.f32 0.0, %v6875
        %6877 = vmatmul.bf16.gmra.mxu0 %v6839
        %v6878 = vpop.f32.mrf.mxu0
        %v6879 = vadd.f32 0.0, %v6878
        %v6880 = vpop.f32.mrf.mxu0
        %v6881 = vadd.f32 0.0, %v6880
        %6882 = vmatmul.bf16.gmra.mxu0 %v6842
        %v6883 = vpop.f32.mrf.mxu0
        %v6884 = vadd.f32 0.0, %v6883
        %v6885 = vpop.f32.mrf.mxu0
        %6886 = vdwg.mxu0
        %v6887 = vadd.f32 %v6658, %v6854
        %v6888 = vadd.f32 %v6659, %v6856
        %v6889 = vadd.f32 %v6660, %v6859
        %v6890 = vadd.f32 %v6661, %v6861
        %v6891 = vadd.f32 %v6662, %v6864
        %v6892 = vadd.f32 %v6663, %v6866
        %v6893 = vadd.f32 %v6664, %v6869
        %v6894 = vadd.f32 %v6665, %v6871
        %v6895 = vadd.f32 %v6666, %v6874
        %v6896 = vadd.f32 %v6667, %v6876
        %v6897 = vadd.f32 %v6668, %v6879
        %v6898 = vadd.f32 %v6669, %v6881
        %v6899 = vadd.f32 %v6670, %v6884
        %s6900 = scalar_lea.vmem %s3, 160
        %v6901 = vld [vmem:[%s6900] sm:$0xf]
        %v6902 = vld [vmem:[%s6900 + $0x4] sm:$0xf]
        %v6903 = vld [vmem:[%s6900 + $0x8] sm:$0xf]
        %v6904 = vld [vmem:[%s6900 + $0xc] sm:$0xf]
        %v6905 = vld [vmem:[%s6900 + $0x10] sm:$0xf]
        %v6906 = vld [vmem:[%s6900 + $0x14] sm:$0xf]
        %v6907 = vld [vmem:[%s6900 + $0x18] sm:$0xf]
        %v6908 = vld [vmem:[%s6900 + $0x1c] sm:$0xf]
        %v6909 = vld [vmem:[%s6900 + $0x20] sm:$0xf]
        %v6910 = vld [vmem:[%s6900 + $0x24] sm:$0xf]
        %v6911 = vpack.c.b16 %v6712, %v6711
        %v6912 = vpack.c.b16 %v6714, %v6713
        %v6913 = vpack.c.b16 %v6716, %v6715
        %v6914 = vpack.c.b16 %v6718, %v6717
        %v6915 = vpack.c.b16 %v6720, %v6719
        %v6916 = vpack.c.b16 %v6722, %v6721
        %v6917 = vpack.c.b16 %v6723, %v6723
        %v6928 = vunpack.c.l.b16 %v6901
        %v6929 = vunpack.c.l.b16 %v6902
        %v6930 = vunpack.c.l.b16 %v6903
        %v6931 = vunpack.c.l.b16 %v6904
        %v6932 = vunpack.c.l.b16 %v6905
        %v6933 = vunpack.c.l.b16 %v6906
        %v6934 = vunpack.c.l.b16 %v6907
        %v6935 = vunpack.c.l.b16 %v6908
        %v6936 = vunpack.c.l.b16 %v6909
        %v6937 = vunpack.c.l.b16 %v6910
        %v6938 = vpack.c.b16 %v6929, %v6928
        %v6939 = vpack.c.b16 %v6931, %v6930
        %v6940 = vpack.c.b16 %v6933, %v6932
        %v6941 = vpack.c.b16 %v6935, %v6934
        %v6942 = vpack.c.b16 %v6937, %v6936
        %v6949 = vsel %vm3379, %v6911, 0
        %v6952 = vsel %vm3379, %v6912, 0
        %v6955 = vsel %vm3379, %v6913, 0
        %v6958 = vsel %vm3379, %v6914, 0
        %v6961 = vsel %vm3379, %v6915, 0
        %v6964 = vsel %vm3379, %v6916, 0
        %v6967 = vsel %vm3379, %v6917, 0
        %6969 = vmatpush.bf16.msra.mxu0 0
        %6970 = vmatpush.bf16.msra.mxu0 0
        %6971 = vmatpush.bf16.msra.mxu0 0
        %6972 = vmatpush.bf16.msra.mxu0 %v6942
        %6973 = vmatpush.bf16.msra.mxu0 %v6941
        %6974 = vmatpush.bf16.msra.mxu0 %v6940
        %6975 = vmatpush.bf16.msra.mxu0 %v6939
        %6976 = vmatpush.bf16.msra.mxu0 %v6938
        %6977 = vmatmul.bf16.gmra.mxu0 %v6949
        %v6978 = vpop.f32.mrf.mxu0
        %v6979 = vadd.f32 0.0, %v6978
        %v6980 = vpop.f32.mrf.mxu0
        %v6981 = vadd.f32 0.0, %v6980
        %6982 = vmatmul.bf16.gmra.mxu0 %v6952
        %v6983 = vpop.f32.mrf.mxu0
        %v6984 = vadd.f32 0.0, %v6983
        %v6985 = vpop.f32.mrf.mxu0
        %v6986 = vadd.f32 0.0, %v6985
        %6987 = vmatmul.bf16.gmra.mxu0 %v6955
        %v6988 = vpop.f32.mrf.mxu0
        %v6989 = vadd.f32 0.0, %v6988
        %v6990 = vpop.f32.mrf.mxu0
        %v6991 = vadd.f32 0.0, %v6990
        %6992 = vmatmul.bf16.gmra.mxu0 %v6958
        %v6993 = vpop.f32.mrf.mxu0
        %v6994 = vadd.f32 0.0, %v6993
        %v6995 = vpop.f32.mrf.mxu0
        %v6996 = vadd.f32 0.0, %v6995
        %6997 = vmatmul.bf16.gmra.mxu0 %v6961
        %v6998 = vpop.f32.mrf.mxu0
        %v6999 = vadd.f32 0.0, %v6998
        %v7000 = vpop.f32.mrf.mxu0
        %v7001 = vadd.f32 0.0, %v7000
        %7002 = vmatmul.bf16.gmra.mxu0 %v6964
        %v7003 = vpop.f32.mrf.mxu0
        %v7004 = vadd.f32 0.0, %v7003
        %v7005 = vpop.f32.mrf.mxu0
        %v7006 = vadd.f32 0.0, %v7005
        %7007 = vmatmul.bf16.gmra.mxu0 %v6967
        %v7008 = vpop.f32.mrf.mxu0
        %v7009 = vadd.f32 0.0, %v7008
        %v7010 = vpop.f32.mrf.mxu0
        %7011 = vdwg.mxu0
        %v7012 = vadd.f32 %v6887, %v6979
        %v7013 = vadd.f32 %v6888, %v6981
        %v7014 = vadd.f32 %v6889, %v6984
        %v7015 = vadd.f32 %v6890, %v6986
        %v7016 = vadd.f32 %v6891, %v6989
        %v7017 = vadd.f32 %v6892, %v6991
        %v7018 = vadd.f32 %v6893, %v6994
        %v7019 = vadd.f32 %v6894, %v6996
        %v7020 = vadd.f32 %v6895, %v6999
        %v7021 = vadd.f32 %v6896, %v7001
        %v7022 = vadd.f32 %v6897, %v7004
        %v7023 = vadd.f32 %v6898, %v7006
        %v7024 = vadd.f32 %v6899, %v7009
        %v7025 = vld [vmem:[#allocation5 + $0x38] sm:$0x7]
        %s7026 = scalar_lea.vmem %s3, 200
        %v7027 = vld [vmem:[%s7026] sm:$0xf]
        %v7028 = vld [vmem:[%s7026 + $0x4] sm:$0xf]
        %v7029 = vld [vmem:[%s7026 + $0x8] sm:$0xf]
        %v7030 = vld [vmem:[%s7026 + $0xc] sm:$0xf]
        %v7031 = vld [vmem:[%s7026 + $0x10] sm:$0xf]
        %v7032 = vld [vmem:[%s7026 + $0x14] sm:$0xf]
        %v7033 = vld [vmem:[%s7026 + $0x18] sm:$0xf]
        %v7034 = vld [vmem:[%s7026 + $0x1c] sm:$0xf]
        %v7035 = vld [vmem:[%s7026 + $0x20] sm:$0xf]
        %v7036 = vld [vmem:[%s7026 + $0x24] sm:$0xf]
        %v7038 = vunpack.c.l.b16 %v7025
        %v7039 = vpack.c.b16 %v7038, %v7038
        %v7040 = vshrl.u32 %v6911, 16
        %v7042 = vshll.u32 %v6911, 16
        %v7044 = vrot.slane %v7042, 1
        %v7045 = vor.u32 %v7040, %v7044
        %v7046 = vshll.u32 %v6912, 16
        %v7048 = vrot.slane %v7046, 1
        %v7049 = vsel %vm2705, %v7045, %v7048
        %v7050 = vshrl.u32 %v6912, 16
        %v7052 = vor.u32 %v7050, %v7048
        %v7053 = vshll.u32 %v6913, 16
        %v7055 = vrot.slane %v7053, 1
        %v7056 = vsel %vm2705, %v7052, %v7055
        %v7057 = vshrl.u32 %v6913, 16
        %v7059 = vor.u32 %v7057, %v7055
        %v7060 = vshll.u32 %v6914, 16
        %v7062 = vrot.slane %v7060, 1
        %v7063 = vsel %vm2705, %v7059, %v7062
        %v7064 = vshrl.u32 %v6914, 16
        %v7066 = vor.u32 %v7064, %v7062
        %v7067 = vshll.u32 %v6915, 16
        %v7069 = vrot.slane %v7067, 1
        %v7070 = vsel %vm2705, %v7066, %v7069
        %v7071 = vshrl.u32 %v6915, 16
        %v7073 = vor.u32 %v7071, %v7069
        %v7074 = vshll.u32 %v6916, 16
        %v7076 = vrot.slane %v7074, 1
        %v7077 = vsel %vm2705, %v7073, %v7076
        %v7078 = vshrl.u32 %v6916, 16
        %v7080 = vor.u32 %v7078, %v7076
        %v7082 = vshll.u32 %v7039, 16
        %v7084 = vrot.slane %v7082, 1
        %v7085 = vsel %vm2705, %v7080, %v7084
        %v7086 = vshrl.u32 %v7039, 16
        %v7088 = vor.u32 %v7086, %v7084
        %v7099 = vunpack.c.l.b16 %v7027
        %v7100 = vunpack.c.l.b16 %v7028
        %v7101 = vunpack.c.l.b16 %v7029
        %v7102 = vunpack.c.l.b16 %v7030
        %v7103 = vunpack.c.l.b16 %v7031
        %v7104 = vunpack.c.l.b16 %v7032
        %v7105 = vunpack.c.l.b16 %v7033
        %v7106 = vunpack.c.l.b16 %v7034
        %v7107 = vunpack.c.l.b16 %v7035
        %v7108 = vunpack.c.l.b16 %v7036
        %v7109 = vpack.c.b16 %v7100, %v7099
        %v7110 = vpack.c.b16 %v7102, %v7101
        %v7111 = vpack.c.b16 %v7104, %v7103
        %v7112 = vpack.c.b16 %v7106, %v7105
        %v7113 = vpack.c.b16 %v7108, %v7107
        %v7120 = vsel %vm3379, %v7049, 0
        %v7123 = vsel %vm3379, %v7056, 0
        %v7126 = vsel %vm3379, %v7063, 0
        %v7129 = vsel %vm3379, %v7070, 0
        %v7132 = vsel %vm3379, %v7077, 0
        %v7135 = vsel %vm3379, %v7085, 0
        %v7138 = vsel %vm3379, %v7088, 0
        %7140 = vmatpush.bf16.msra.mxu0 0
        %7141 = vmatpush.bf16.msra.mxu0 0
        %7142 = vmatpush.bf16.msra.mxu0 0
        %7143 = vmatpush.bf16.msra.mxu0 %v7113
        %7144 = vmatpush.bf16.msra.mxu0 %v7112
        %7145 = vmatpush.bf16.msra.mxu0 %v7111
        %7146 = vmatpush.bf16.msra.mxu0 %v7110
        %7147 = vmatpush.bf16.msra.mxu0 %v7109
        %7148 = vmatmul.bf16.gmra.mxu0 %v7120
        %v7149 = vpop.f32.mrf.mxu0
        %v7150 = vadd.f32 0.0, %v7149
        %v7151 = vpop.f32.mrf.mxu0
        %v7152 = vadd.f32 0.0, %v7151
        %7153 = vmatmul.bf16.gmra.mxu0 %v7123
        %v7154 = vpop.f32.mrf.mxu0
        %v7155 = vadd.f32 0.0, %v7154
        %v7156 = vpop.f32.mrf.mxu0
        %v7157 = vadd.f32 0.0, %v7156
        %7158 = vmatmul.bf16.gmra.mxu0 %v7126
        %v7159 = vpop.f32.mrf.mxu0
        %v7160 = vadd.f32 0.0, %v7159
        %v7161 = vpop.f32.mrf.mxu0
        %v7162 = vadd.f32 0.0, %v7161
        %7163 = vmatmul.bf16.gmra.mxu0 %v7129
        %v7164 = vpop.f32.mrf.mxu0
        %v7165 = vadd.f32 0.0, %v7164
        %v7166 = vpop.f32.mrf.mxu0
        %v7167 = vadd.f32 0.0, %v7166
        %7168 = vmatmul.bf16.gmra.mxu0 %v7132
        %v7169 = vpop.f32.mrf.mxu0
        %v7170 = vadd.f32 0.0, %v7169
        %v7171 = vpop.f32.mrf.mxu0
        %v7172 = vadd.f32 0.0, %v7171
        %7173 = vmatmul.bf16.gmra.mxu0 %v7135
        %v7174 = vpop.f32.mrf.mxu0
        %v7175 = vadd.f32 0.0, %v7174
        %v7176 = vpop.f32.mrf.mxu0
        %v7177 = vadd.f32 0.0, %v7176
        %7178 = vmatmul.bf16.gmra.mxu0 %v7138
        %v7179 = vpop.f32.mrf.mxu0
        %v7180 = vadd.f32 0.0, %v7179
        %v7181 = vpop.f32.mrf.mxu0
        %7182 = vdwg.mxu0
        %v7183 = vadd.f32 %v7012, %v7150
        %v7184 = vadd.f32 %v7013, %v7152
        %v7185 = vadd.f32 %v7014, %v7155
        %v7186 = vadd.f32 %v7015, %v7157
        %v7187 = vadd.f32 %v7016, %v7160
        %v7188 = vadd.f32 %v7017, %v7162
        %v7189 = vadd.f32 %v7018, %v7165
        %v7190 = vadd.f32 %v7019, %v7167
        %v7191 = vadd.f32 %v7020, %v7170
        %v7192 = vadd.f32 %v7021, %v7172
        %v7193 = vadd.f32 %v7022, %v7175
        %v7194 = vadd.f32 %v7023, %v7177
        %v7195 = vadd.f32 %v7024, %v7180
        %v7196 = vld [vmem:[#allocation5 + $0xc] sm:$0xf]
        %v7197 = vld [vmem:[#allocation5 + $0x10] sm:$0xf]
        %v7198 = vld [vmem:[#allocation5 + $0x14] sm:$0xf]
        %v7199 = vld [vmem:[#allocation5 + $0x18] sm:$0xf]
        %v7200 = vld [vmem:[#allocation5 + $0x1c] sm:$0xf]
        %v7201 = vld [vmem:[#allocation5 + $0x20] sm:$0xf]
        %v7202 = vld [vmem:[#allocation5 + $0x24] sm:$0xf]
        %v7203 = vld [vmem:[#allocation5 + $0x28] sm:$0xf]
        %v7204 = vld [vmem:[#allocation5 + $0x2c] sm:$0xf]
        %v7205 = vld [vmem:[#allocation5 + $0x30] sm:$0xf]
        %v7206 = vld [vmem:[#allocation5 + $0x34] sm:$0xf]
        %v7207 = vld [vmem:[#allocation5 + $0x38] sm:$0xf]
        %v7208 = vld [vmem:[#allocation5 + $0x3c] sm:$0x7]
        %s7209 = scalar_lea.vmem %s3, 240
        %v7210 = vld [vmem:[%s7209] sm:$0xf]
        %v7211 = vld [vmem:[%s7209 + $0x4] sm:$0xf]
        %v7212 = vld [vmem:[%s7209 + $0x8] sm:$0xf]
        %v7213 = vld [vmem:[%s7209 + $0xc] sm:$0xf]
        %v7214 = vld [vmem:[%s7209 + $0x10] sm:$0xf]
        %v7215 = vld [vmem:[%s7209 + $0x14] sm:$0xf]
        %v7216 = vld [vmem:[%s7209 + $0x18] sm:$0xf]
        %v7217 = vld [vmem:[%s7209 + $0x1c] sm:$0xf]
        %v7218 = vld [vmem:[%s7209 + $0x20] sm:$0xf]
        %v7219 = vld [vmem:[%s7209 + $0x24] sm:$0xf]
        %v7233 = vunpack.c.l.b16 %v7196
        %v7234 = vunpack.c.l.b16 %v7197
        %v7235 = vunpack.c.l.b16 %v7198
        %v7236 = vunpack.c.l.b16 %v7199
        %v7237 = vunpack.c.l.b16 %v7200
        %v7238 = vunpack.c.l.b16 %v7201
        %v7239 = vunpack.c.l.b16 %v7202
        %v7240 = vunpack.c.l.b16 %v7203
        %v7241 = vunpack.c.l.b16 %v7204
        %v7242 = vunpack.c.l.b16 %v7205
        %v7243 = vunpack.c.l.b16 %v7206
        %v7244 = vunpack.c.l.b16 %v7207
        %v7245 = vunpack.c.l.b16 %v7208
        %v7246 = vpack.c.b16 %v7234, %v7233
        %v7247 = vpack.c.b16 %v7236, %v7235
        %v7248 = vpack.c.b16 %v7238, %v7237
        %v7249 = vpack.c.b16 %v7240, %v7239
        %v7250 = vpack.c.b16 %v7242, %v7241
        %v7251 = vpack.c.b16 %v7244, %v7243
        %v7252 = vpack.c.b16 %v7245, %v7245
        %v7254 = vshrl.u32 %v7246, 16
        %v7256 = vshll.u32 %v7246, 16
        %v7258 = vrot.slane %v7256, 1
        %v7259 = vor.u32 %v7254, %v7258
        %v7261 = vshll.u32 %v7247, 16
        %v7263 = vrot.slane %v7261, 1
        %v7264 = vsel %vm2705, %v7259, %v7263
        %v7265 = vshrl.u32 %v7247, 16
        %v7267 = vor.u32 %v7265, %v7263
        %v7269 = vshll.u32 %v7248, 16
        %v7271 = vrot.slane %v7269, 1
        %v7272 = vsel %vm2705, %v7267, %v7271
        %v7273 = vshrl.u32 %v7248, 16
        %v7275 = vor.u32 %v7273, %v7271
        %v7277 = vshll.u32 %v7249, 16
        %v7279 = vrot.slane %v7277, 1
        %v7280 = vsel %vm2705, %v7275, %v7279
        %v7281 = vshrl.u32 %v7249, 16
        %v7283 = vor.u32 %v7281, %v7279
        %v7285 = vshll.u32 %v7250, 16
        %v7287 = vrot.slane %v7285, 1
        %v7288 = vsel %vm2705, %v7283, %v7287
        %v7289 = vshrl.u32 %v7250, 16
        %v7291 = vor.u32 %v7289, %v7287
        %v7293 = vshll.u32 %v7251, 16
        %v7295 = vrot.slane %v7293, 1
        %v7296 = vsel %vm2705, %v7291, %v7295
        %v7297 = vshrl.u32 %v7251, 16
        %v7299 = vor.u32 %v7297, %v7295
        %v7301 = vshll.u32 %v7252, 16
        %v7303 = vrot.slane %v7301, 1
        %v7304 = vsel %vm2705, %v7299, %v7303
        %v7305 = vshrl.u32 %v7252, 16
        %v7307 = vor.u32 %v7305, %v7303
        %v7318 = vunpack.c.l.b16 %v7210
        %v7319 = vunpack.c.l.b16 %v7211
        %v7320 = vunpack.c.l.b16 %v7212
        %v7321 = vunpack.c.l.b16 %v7213
        %v7322 = vunpack.c.l.b16 %v7214
        %v7323 = vunpack.c.l.b16 %v7215
        %v7324 = vunpack.c.l.b16 %v7216
        %v7325 = vunpack.c.l.b16 %v7217
        %v7326 = vunpack.c.l.b16 %v7218
        %v7327 = vunpack.c.l.b16 %v7219
        %v7328 = vpack.c.b16 %v7319, %v7318
        %v7329 = vpack.c.b16 %v7321, %v7320
        %v7330 = vpack.c.b16 %v7323, %v7322
        %v7331 = vpack.c.b16 %v7325, %v7324
        %v7332 = vpack.c.b16 %v7327, %v7326
        %v7339 = vsel %vm3379, %v7264, 0
        %v7342 = vsel %vm3379, %v7272, 0
        %v7345 = vsel %vm3379, %v7280, 0
        %v7348 = vsel %vm3379, %v7288, 0
        %v7351 = vsel %vm3379, %v7296, 0
        %v7354 = vsel %vm3379, %v7304, 0
        %v7357 = vsel %vm3379, %v7307, 0
        %7359 = vmatpush.bf16.msra.mxu0 0
        %7360 = vmatpush.bf16.msra.mxu0 0
        %7361 = vmatpush.bf16.msra.mxu0 0
        %7362 = vmatpush.bf16.msra.mxu0 %v7332
        %7363 = vmatpush.bf16.msra.mxu0 %v7331
        %7364 = vmatpush.bf16.msra.mxu0 %v7330
        %7365 = vmatpush.bf16.msra.mxu0 %v7329
        %7366 = vmatpush.bf16.msra.mxu0 %v7328
        %7367 = vmatmul.bf16.gmra.mxu0 %v7339
        %v7368 = vpop.f32.mrf.mxu0
        %v7369 = vadd.f32 0.0, %v7368
        %v7370 = vpop.f32.mrf.mxu0
        %v7371 = vadd.f32 0.0, %v7370
        %7372 = vmatmul.bf16.gmra.mxu0 %v7342
        %v7373 = vpop.f32.mrf.mxu0
        %v7374 = vadd.f32 0.0, %v7373
        %v7375 = vpop.f32.mrf.mxu0
        %v7376 = vadd.f32 0.0, %v7375
        %7377 = vmatmul.bf16.gmra.mxu0 %v7345
        %v7378 = vpop.f32.mrf.mxu0
        %v7379 = vadd.f32 0.0, %v7378
        %v7380 = vpop.f32.mrf.mxu0
        %v7381 = vadd.f32 0.0, %v7380
        %7382 = vmatmul.bf16.gmra.mxu0 %v7348
        %v7383 = vpop.f32.mrf.mxu0
        %v7384 = vadd.f32 0.0, %v7383
        %v7385 = vpop.f32.mrf.mxu0
        %v7386 = vadd.f32 0.0, %v7385
        %7387 = vmatmul.bf16.gmra.mxu0 %v7351
        %v7388 = vpop.f32.mrf.mxu0
        %v7389 = vadd.f32 0.0, %v7388
        %v7390 = vpop.f32.mrf.mxu0
        %v7391 = vadd.f32 0.0, %v7390
        %7392 = vmatmul.bf16.gmra.mxu0 %v7354
        %v7393 = vpop.f32.mrf.mxu0
        %v7394 = vadd.f32 0.0, %v7393
        %v7395 = vpop.f32.mrf.mxu0
        %v7396 = vadd.f32 0.0, %v7395
        %7397 = vmatmul.bf16.gmra.mxu0 %v7357
        %v7398 = vpop.f32.mrf.mxu0
        %v7399 = vadd.f32 0.0, %v7398
        %v7400 = vpop.f32.mrf.mxu0
        %7401 = vdwg.mxu0
        %v7402 = vadd.f32 %v7183, %v7369
        %v7403 = vadd.f32 %v7184, %v7371
        %v7404 = vadd.f32 %v7185, %v7374
        %v7405 = vadd.f32 %v7186, %v7376
        %v7406 = vadd.f32 %v7187, %v7379
        %v7407 = vadd.f32 %v7188, %v7381
        %v7408 = vadd.f32 %v7189, %v7384
        %v7409 = vadd.f32 %v7190, %v7386
        %v7410 = vadd.f32 %v7191, %v7389
        %v7411 = vadd.f32 %v7192, %v7391
        %v7412 = vadd.f32 %v7193, %v7394
        %v7413 = vadd.f32 %v7194, %v7396
        %v7414 = vadd.f32 %v7195, %v7399
        %v7415 = vld [vmem:[#allocation5 + $0xc] sm:$0xe]
        %s7416 = scalar_lea.vmem %s3, 280
        %v7417 = vld [vmem:[%s7416] sm:$0xf]
        %v7418 = vld [vmem:[%s7416 + $0x4] sm:$0xf]
        %v7419 = vld [vmem:[%s7416 + $0x8] sm:$0xf]
        %v7420 = vld [vmem:[%s7416 + $0xc] sm:$0xf]
        %v7421 = vld [vmem:[%s7416 + $0x10] sm:$0xf]
        %v7422 = vld [vmem:[%s7416 + $0x14] sm:$0xf]
        %v7423 = vld [vmem:[%s7416 + $0x18] sm:$0xf]
        %v7424 = vld [vmem:[%s7416 + $0x1c] sm:$0xf]
        %v7425 = vld [vmem:[%s7416 + $0x20] sm:$0xf]
        %v7426 = vld [vmem:[%s7416 + $0x24] sm:$0xf]
        %v7428 = vunpack.c.l.b16 %v7415
        %v7429 = vpack.c.b16 %v7234, %v7428
        %v7430 = vrot.slane %v7429, 1
        %v7431 = vrot.slane %v7247, 1
        %v7432 = vsel %vm3102, %v7430, %v7431
        %v7433 = vrot.slane %v7248, 1
        %v7434 = vsel %vm3102, %v7431, %v7433
        %v7435 = vrot.slane %v7249, 1
        %v7436 = vsel %vm3102, %v7433, %v7435
        %v7437 = vrot.slane %v7250, 1
        %v7438 = vsel %vm3102, %v7435, %v7437
        %v7439 = vrot.slane %v7251, 1
        %v7440 = vsel %vm3102, %v7437, %v7439
        %v7441 = vrot.slane %v7252, 1
        %v7442 = vsel %vm3102, %v7439, %v7441
        %v7453 = vunpack.c.l.b16 %v7417
        %v7454 = vunpack.c.l.b16 %v7418
        %v7455 = vunpack.c.l.b16 %v7419
        %v7456 = vunpack.c.l.b16 %v7420
        %v7457 = vunpack.c.l.b16 %v7421
        %v7458 = vunpack.c.l.b16 %v7422
        %v7459 = vunpack.c.l.b16 %v7423
        %v7460 = vunpack.c.l.b16 %v7424
        %v7461 = vunpack.c.l.b16 %v7425
        %v7462 = vunpack.c.l.b16 %v7426
        %v7463 = vpack.c.b16 %v7454, %v7453
        %v7464 = vpack.c.b16 %v7456, %v7455
        %v7465 = vpack.c.b16 %v7458, %v7457
        %v7466 = vpack.c.b16 %v7460, %v7459
        %v7467 = vpack.c.b16 %v7462, %v7461
        %v7474 = vsel %vm3379, %v7432, 0
        %v7477 = vsel %vm3379, %v7434, 0
        %v7480 = vsel %vm3379, %v7436, 0
        %v7483 = vsel %vm3379, %v7438, 0
        %v7486 = vsel %vm3379, %v7440, 0
        %v7489 = vsel %vm3379, %v7442, 0
        %v7492 = vsel %vm3379, %v7441, 0
        %7494 = vmatpush.bf16.msra.mxu0 0
        %7495 = vmatpush.bf16.msra.mxu0 0
        %7496 = vmatpush.bf16.msra.mxu0 0
        %7497 = vmatpush.bf16.msra.mxu0 %v7467
        %7498 = vmatpush.bf16.msra.mxu0 %v7466
        %7499 = vmatpush.bf16.msra.mxu0 %v7465
        %7500 = vmatpush.bf16.msra.mxu0 %v7464
        %7501 = vmatpush.bf16.msra.mxu0 %v7463
        %7502 = vmatmul.bf16.gmra.mxu0 %v7474
        %v7503 = vpop.f32.mrf.mxu0
        %v7504 = vadd.f32 0.0, %v7503
        %v7505 = vpop.f32.mrf.mxu0
        %v7506 = vadd.f32 0.0, %v7505
        %7507 = vmatmul.bf16.gmra.mxu0 %v7477
        %v7508 = vpop.f32.mrf.mxu0
        %v7509 = vadd.f32 0.0, %v7508
        %v7510 = vpop.f32.mrf.mxu0
        %v7511 = vadd.f32 0.0, %v7510
        %7512 = vmatmul.bf16.gmra.mxu0 %v7480
        %v7513 = vpop.f32.mrf.mxu0
        %v7514 = vadd.f32 0.0, %v7513
        %v7515 = vpop.f32.mrf.mxu0
        %v7516 = vadd.f32 0.0, %v7515
        %7517 = vmatmul.bf16.gmra.mxu0 %v7483
        %v7518 = vpop.f32.mrf.mxu0
        %v7519 = vadd.f32 0.0, %v7518
        %v7520 = vpop.f32.mrf.mxu0
        %v7521 = vadd.f32 0.0, %v7520
        %7522 = vmatmul.bf16.gmra.mxu0 %v7486
        %v7523 = vpop.f32.mrf.mxu0
        %v7524 = vadd.f32 0.0, %v7523
        %v7525 = vpop.f32.mrf.mxu0
        %v7526 = vadd.f32 0.0, %v7525
        %7527 = vmatmul.bf16.gmra.mxu0 %v7489
        %v7528 = vpop.f32.mrf.mxu0
        %v7529 = vadd.f32 0.0, %v7528
        %v7530 = vpop.f32.mrf.mxu0
        %v7531 = vadd.f32 0.0, %v7530
        %7532 = vmatmul.bf16.gmra.mxu0 %v7492
        %v7533 = vpop.f32.mrf.mxu0
        %v7534 = vadd.f32 0.0, %v7533
        %v7535 = vpop.f32.mrf.mxu0
        %7536 = vdwg.mxu0
        %v7537 = vadd.f32 %v7402, %v7504
        %v7538 = vadd.f32 %v7403, %v7506
        %v7539 = vadd.f32 %v7404, %v7509
        %v7540 = vadd.f32 %v7405, %v7511
        %v7541 = vadd.f32 %v7406, %v7514
        %v7542 = vadd.f32 %v7407, %v7516
        %v7543 = vadd.f32 %v7408, %v7519
        %v7544 = vadd.f32 %v7409, %v7521
        %v7545 = vadd.f32 %v7410, %v7524
        %v7546 = vadd.f32 %v7411, %v7526
        %v7547 = vadd.f32 %v7412, %v7529
        %v7548 = vadd.f32 %v7413, %v7531
        %v7549 = vadd.f32 %v7414, %v7534
        %v7550 = vld [vmem:[#allocation5 + $0x3c] sm:$0xf]
        %s7551 = scalar_lea.vmem %s3, 320
        %v7552 = vld [vmem:[%s7551] sm:$0xf]
        %v7553 = vld [vmem:[%s7551 + $0x4] sm:$0xf]
        %v7554 = vld [vmem:[%s7551 + $0x8] sm:$0xf]
        %v7555 = vld [vmem:[%s7551 + $0xc] sm:$0xf]
        %v7556 = vld [vmem:[%s7551 + $0x10] sm:$0xf]
        %v7557 = vld [vmem:[%s7551 + $0x14] sm:$0xf]
        %v7558 = vld [vmem:[%s7551 + $0x18] sm:$0xf]
        %v7559 = vld [vmem:[%s7551 + $0x1c] sm:$0xf]
        %v7560 = vld [vmem:[%s7551 + $0x20] sm:$0xf]
        %v7561 = vld [vmem:[%s7551 + $0x24] sm:$0xf]
        %v7563 = vunpack.c.l.b16 %v7550
        %v7564 = vpack.c.b16 %v7563, %v7563
        %v7566 = vshrl.u32 %v7429, 16
        %v7568 = vrot.slane %v7566, 1
        %v7569 = vshll.u32 %v7429, 16
        %v7571 = vrot.slane %v7569, 2
        %v7572 = vor.u32 %v7568, %v7571
        %v7573 = vrot.slane %v7265, 1
        %v7574 = vrot.slane %v7261, 2
        %v7575 = vor.u32 %v7573, %v7574
        %v7576 = vsel %vm3222, %v7572, %v7575
        %v7577 = vrot.slane %v7273, 1
        %v7578 = vrot.slane %v7269, 2
        %v7579 = vor.u32 %v7577, %v7578
        %v7580 = vsel %vm3222, %v7575, %v7579
        %v7581 = vrot.slane %v7281, 1
        %v7582 = vrot.slane %v7277, 2
        %v7583 = vor.u32 %v7581, %v7582
        %v7584 = vsel %vm3222, %v7579, %v7583
        %v7585 = vrot.slane %v7289, 1
        %v7586 = vrot.slane %v7285, 2
        %v7587 = vor.u32 %v7585, %v7586
        %v7588 = vsel %vm3222, %v7583, %v7587
        %v7589 = vrot.slane %v7297, 1
        %v7590 = vrot.slane %v7293, 2
        %v7591 = vor.u32 %v7589, %v7590
        %v7592 = vsel %vm3222, %v7587, %v7591
        %v7594 = vshrl.u32 %v7564, 16
        %v7596 = vrot.slane %v7594, 1
        %v7597 = vshll.u32 %v7564, 16
        %v7599 = vrot.slane %v7597, 2
        %v7600 = vor.u32 %v7596, %v7599
        %v7601 = vsel %vm3222, %v7591, %v7600
        %v7612 = vunpack.c.l.b16 %v7552
        %v7613 = vunpack.c.l.b16 %v7553
        %v7614 = vunpack.c.l.b16 %v7554
        %v7615 = vunpack.c.l.b16 %v7555
        %v7616 = vunpack.c.l.b16 %v7556
        %v7617 = vunpack.c.l.b16 %v7557
        %v7618 = vunpack.c.l.b16 %v7558
        %v7619 = vunpack.c.l.b16 %v7559
        %v7620 = vunpack.c.l.b16 %v7560
        %v7621 = vunpack.c.l.b16 %v7561
        %v7622 = vpack.c.b16 %v7613, %v7612
        %v7623 = vpack.c.b16 %v7615, %v7614
        %v7624 = vpack.c.b16 %v7617, %v7616
        %v7625 = vpack.c.b16 %v7619, %v7618
        %v7626 = vpack.c.b16 %v7621, %v7620
        %v7633 = vsel %vm3379, %v7576, 0
        %v7636 = vsel %vm3379, %v7580, 0
        %v7639 = vsel %vm3379, %v7584, 0
        %v7642 = vsel %vm3379, %v7588, 0
        %v7645 = vsel %vm3379, %v7592, 0
        %v7648 = vsel %vm3379, %v7601, 0
        %v7651 = vsel %vm3379, %v7600, 0
        %7653 = vmatpush.bf16.msra.mxu0 0
        %7654 = vmatpush.bf16.msra.mxu0 0
        %7655 = vmatpush.bf16.msra.mxu0 0
        %7656 = vmatpush.bf16.msra.mxu0 %v7626
        %7657 = vmatpush.bf16.msra.mxu0 %v7625
        %7658 = vmatpush.bf16.msra.mxu0 %v7624
        %7659 = vmatpush.bf16.msra.mxu0 %v7623
        %7660 = vmatpush.bf16.msra.mxu0 %v7622
        %7661 = vmatmul.bf16.gmra.mxu0 %v7633
        %v7662 = vpop.f32.mrf.mxu0
        %v7663 = vadd.f32 0.0, %v7662
        %v7664 = vpop.f32.mrf.mxu0
        %v7665 = vadd.f32 0.0, %v7664
        %7666 = vmatmul.bf16.gmra.mxu0 %v7636
        %v7667 = vpop.f32.mrf.mxu0
        %v7668 = vadd.f32 0.0, %v7667
        %v7669 = vpop.f32.mrf.mxu0
        %v7670 = vadd.f32 0.0, %v7669
        %7671 = vmatmul.bf16.gmra.mxu0 %v7639
        %v7672 = vpop.f32.mrf.mxu0
        %v7673 = vadd.f32 0.0, %v7672
        %v7674 = vpop.f32.mrf.mxu0
        %v7675 = vadd.f32 0.0, %v7674
        %7676 = vmatmul.bf16.gmra.mxu0 %v7642
        %v7677 = vpop.f32.mrf.mxu0
        %v7678 = vadd.f32 0.0, %v7677
        %v7679 = vpop.f32.mrf.mxu0
        %v7680 = vadd.f32 0.0, %v7679
        %7681 = vmatmul.bf16.gmra.mxu0 %v7645
        %v7682 = vpop.f32.mrf.mxu0
        %v7683 = vadd.f32 0.0, %v7682
        %v7684 = vpop.f32.mrf.mxu0
        %v7685 = vadd.f32 0.0, %v7684
        %7686 = vmatmul.bf16.gmra.mxu0 %v7648
        %v7687 = vpop.f32.mrf.mxu0
        %v7688 = vadd.f32 0.0, %v7687
        %v7689 = vpop.f32.mrf.mxu0
        %v7690 = vadd.f32 0.0, %v7689
        %7691 = vmatmul.bf16.gmra.mxu0 %v7651
        %v7692 = vpop.f32.mrf.mxu0
        %v7693 = vadd.f32 0.0, %v7692
        %v7694 = vpop.f32.mrf.mxu0
        %7695 = vdwg.mxu0
        %v7696 = vadd.f32 %v7537, %v7663
        %v7697 = vadd.f32 %v7538, %v7665
        %v7698 = vadd.f32 %v7539, %v7668
        %v7699 = vadd.f32 %v7540, %v7670
        %v7700 = vadd.f32 %v7541, %v7673
        %v7701 = vadd.f32 %v7542, %v7675
        %v7702 = vadd.f32 %v7543, %v7678
        %v7703 = vadd.f32 %v7544, %v7680
        %v7704 = vadd.f32 %v7545, %v7683
        %v7705 = vadd.f32 %v7546, %v7685
        %v7706 = vadd.f32 %v7547, %v7688
        %v7707 = vadd.f32 %v7548, %v7690
        %v7708 = vadd.f32 %v7549, %v7693
        %v7709 = vmax.f32 %v7696, 0.0
        %v7710 = vmax.f32 %v7697, 0.0
        %v7711 = vmax.f32 %v7698, 0.0
        %v7712 = vmax.f32 %v7699, 0.0
        %v7713 = vmax.f32 %v7700, 0.0
        %v7714 = vmax.f32 %v7701, 0.0
        %v7715 = vmax.f32 %v7702, 0.0
        %v7716 = vmax.f32 %v7703, 0.0
        %v7717 = vmax.f32 %v7704, 0.0
        %v7718 = vmax.f32 %v7705, 0.0
        %v7719 = vmax.f32 %v7706, 0.0
        %v7720 = vmax.f32 %v7707, 0.0
        %v7721 = vmax.f32 %v7708, 0.0
        %7722 = vst.msk [vmem:[#allocation6] sm:$0xff] %vm447, %v7709
        %7723 = vst.msk [vmem:[#allocation6 + $0x8] sm:$0xff] %vm447, %v7710
        %7724 = vst.msk [vmem:[#allocation6 + $0x10] sm:$0xff] %vm447, %v7711
        %7725 = vst.msk [vmem:[#allocation6 + $0x18] sm:$0xff] %vm447, %v7712
        %7726 = vst.msk [vmem:[#allocation6 + $0x20] sm:$0xff] %vm447, %v7713
        %7727 = vst.msk [vmem:[#allocation6 + $0x28] sm:$0xff] %vm447, %v7714
        %7728 = vst.msk [vmem:[#allocation6 + $0x30] sm:$0xff] %vm447, %v7715
        %7729 = vst.msk [vmem:[#allocation6 + $0x38] sm:$0xff] %vm447, %v7716
        %7730 = vst.msk [vmem:[#allocation6 + $0x40] sm:$0xff] %vm447, %v7717
        %7731 = vst.msk [vmem:[#allocation6 + $0x48] sm:$0xff] %vm447, %v7718
        %7732 = vst.msk [vmem:[#allocation6 + $0x50] sm:$0xff] %vm447, %v7719
        %7733 = vst.msk [vmem:[#allocation6 + $0x58] sm:$0xff] %vm447, %v7720
        %7734 = vst.msk [vmem:[#allocation6 + $0x60] sm:$0xf] %vm1297, %v7721
        %7735 = vst.msk [vmem:[#allocation7] sm:$0xf] %vm1297, 0
        %7736 = vst.msk [vmem:[#allocation7 + $0x4] sm:$0xf] %vm1297, 0
        %7737 = vst.msk [vmem:[#allocation7 + $0x8] sm:$0xf] %vm1297, 0
        %7738 = vst.msk [vmem:[#allocation7 + $0xc] sm:$0xf] %vm1297, 0
        %7739 = vst.msk [vmem:[#allocation7 + $0x10] sm:$0xf] %vm1297, 0
        %7740 = vst.msk [vmem:[#allocation7 + $0x14] sm:$0xf] %vm1297, 0
        %7741 = vst.msk [vmem:[#allocation7 + $0x18] sm:$0x3] %vm1344, 0
        %s7742 = scalar_lea.vmem [#allocation6], 11
        %v7743 = vld [vmem:[%s7742] ss:$2 sm:$0xf]
        %s7744 = scalar_lea.vmem [#allocation6], 12
        %v7745 = vld [vmem:[%s7744] ss:$2 sm:$0xf]
        %v7746 = vadd.f32 %v7743, %v7745
        %s7747 = scalar_lea.vmem [#allocation6], 21
        %v7748 = vld [vmem:[%s7747] ss:$2 sm:$0xf]
        %v7749 = vadd.f32 %v7746, %v7748
        %s7750 = scalar_lea.vmem [#allocation6], 22
        %v7751 = vld [vmem:[%s7750] ss:$2 sm:$0xf]
        %v7752 = vadd.f32 %v7749, %v7751
        %v7753 = vmul.f32 %v7752, 0.25
        %v7754 = vpack.c.bf16 %v7753, %v7753
        %v7756 = vshll.u32 %v7754, 16
        %v7758 = vrot.slane %v7756, 5
        %v7759 = vshrl.u32 %v7754, 16
        %v7761 = vrot.slane %v7759, 4
        %v7762 = vor.u32 %v7761, %v7758
        %v7763 = vrot.slane %v7762, 4
        %vm7766 = vcmask 125955
        %vm7767 = vmand %vm7766, %vm6016
        %v7768 = vld [vmem:[#allocation7 + $0x4] sm:$0x8]
        %v7769 = vsel %vm7767, %v7758, %v7768
        %7770 = vst [vmem:[#allocation7 + $0x4] sm:$0x8] %v7769
        %vm7771 = vcmask 123904
        %vm7772 = vmand %vm7771, %vm5952
        %v7773 = vld [vmem:[#allocation7 + $0x8] sm:$0x3]
        %v7774 = vsel %vm7772, %v7763, %v7773
        %7775 = vst [vmem:[#allocation7 + $0x8] sm:$0x3] %v7774
        %s7776 = scalar_lea.vmem [#allocation6], 31
        %v7777 = vld [vmem:[%s7776] ss:$2 sm:$0xf]
        %s7778 = scalar_lea.vmem [#allocation6], 32
        %v7779 = vld [vmem:[%s7778] ss:$2 sm:$0xf]
        %v7780 = vadd.f32 %v7777, %v7779
        %s7781 = scalar_lea.vmem [#allocation6], 41
        %v7782 = vld [vmem:[%s7781] ss:$2 sm:$0xf]
        %v7783 = vadd.f32 %v7780, %v7782
        %s7784 = scalar_lea.vmem [#allocation6], 42
        %v7785 = vld [vmem:[%s7784] ss:$2 sm:$0xf]
        %v7786 = vadd.f32 %v7783, %v7785
        %v7787 = vmul.f32 %v7786, 0.25
        %v7788 = vpack.c.bf16 %v7787, %v7787
        %v7790 = vshrl.u32 %v7788, 16
        %v7792 = vrot.slane %v7790, 5
        %v7793 = vshll.u32 %v7788, 16
        %v7795 = vrot.slane %v7793, 6
        %v7796 = vor.u32 %v7792, %v7795
        %v7797 = vrot.slane %v7792, 4
        %vm7800 = vcmask 125954
        %vm7801 = vmand %vm7800, %vm5981
        %v7802 = vld [vmem:[#allocation7 + $0x8] sm:$0xc]
        %v7803 = vsel %vm7801, %v7796, %v7802
        %7804 = vst [vmem:[#allocation7 + $0x8] sm:$0xc] %v7803
        %vm7805 = vcmask 122880
        %vm7806 = vmand %vm7805, %vm6055
        %v7807 = vld [vmem:[#allocation7 + $0xc] sm:$0x1]
        %v7808 = vsel %vm7806, %v7797, %v7807
        %7809 = vst [vmem:[#allocation7 + $0xc] sm:$0x1] %v7808
        %s7810 = scalar_lea.vmem [#allocation6], 51
        %v7811 = vld [vmem:[%s7810] ss:$2 sm:$0xf]
        %s7812 = scalar_lea.vmem [#allocation6], 52
        %v7813 = vld [vmem:[%s7812] ss:$2 sm:$0xf]
        %v7814 = vadd.f32 %v7811, %v7813
        %s7815 = scalar_lea.vmem [#allocation6], 61
        %v7816 = vld [vmem:[%s7815] ss:$2 sm:$0xf]
        %v7817 = vadd.f32 %v7814, %v7816
        %s7818 = scalar_lea.vmem [#allocation6], 62
        %v7819 = vld [vmem:[%s7818] ss:$2 sm:$0xf]
        %v7820 = vadd.f32 %v7817, %v7819
        %v7821 = vmul.f32 %v7820, 0.25
        %v7822 = vpack.c.bf16 %v7821, %v7821
        %v7824 = vshrl.u32 %v7822, 16
        %v7826 = vrot.slane %v7824, 6
        %v7827 = vshll.u32 %v7822, 16
        %v7829 = vrot.slane %v7827, 7
        %v7830 = vor.u32 %v7826, %v7829
        %vm7832 = vcmask 125953
        %vm7833 = vsmask.f32 3334
        %vm7834 = vmand %vm7832, %vm7833
        %v7835 = vld [vmem:[#allocation7 + $0xc] sm:$0xe]
        %v7836 = vsel %vm7834, %v7830, %v7835
        %7837 = vst [vmem:[#allocation7 + $0xc] sm:$0xe] %v7836
        %s7838 = scalar_lea.vmem [#allocation6], 71
        %v7839 = vld [vmem:[%s7838] ss:$2 sm:$0xf]
        %s7840 = scalar_lea.vmem [#allocation6], 72
        %v7841 = vld [vmem:[%s7840] ss:$2 sm:$0xf]
        %v7842 = vadd.f32 %v7839, %v7841
        %s7843 = scalar_lea.vmem [#allocation6], 81
        %v7844 = vld [vmem:[%s7843] ss:$2 sm:$0xf]
        %v7845 = vadd.f32 %v7842, %v7844
        %s7846 = scalar_lea.vmem [#allocation6], 82
        %v7847 = vld [vmem:[%s7846] ss:$2 sm:$0xf]
        %v7848 = vadd.f32 %v7845, %v7847
        %v7849 = vmul.f32 %v7848, 0.25
        %v7850 = vpack.c.bf16 %v7849, %v7849
        %v7852 = vshrl.u32 %v7850, 16
        %v7854 = vrot.slane %v7852, 7
        %v7855 = vshll.u32 %v7850, 16
        %v7857 = vor.u32 %v7854, %v7855
        %vm7859 = vcmask 124928
        %vm7860 = vsmask.f32 2306
        %vm7861 = vmand %vm7859, %vm7860
        %v7862 = vld [vmem:[#allocation7 + $0x10] sm:$0x7]
        %v7863 = vsel %vm7861, %v7857, %v7862
        %7864 = vst [vmem:[#allocation7 + $0x10] sm:$0x7] %v7863
        %v7865 = vld [vmem:[#allocation7] sm:$0xf]
        %v7866 = vld [vmem:[#allocation7 + $0x4] sm:$0xf]
        %v7867 = vld [vmem:[#allocation7 + $0x8] sm:$0xf]
        %v7868 = vld [vmem:[#allocation7 + $0xc] sm:$0xf]
        %v7869 = vld [vmem:[#allocation7 + $0x10] sm:$0x7]
        %v7870 = vld [vmem:[%s4] sm:$0xf]
        %v7871 = vld [vmem:[%s4 + $0x4] sm:$0xf]
        %v7872 = vld [vmem:[#allocation7] sm:$0xe]
        %s7873 = scalar_lea.vmem %s4, 8
        %v7874 = vld [vmem:[%s7873] sm:$0xf]
        %v7875 = vld [vmem:[%s7873 + $0x4] sm:$0xf]
        %v7881 = vunpack.c.l.b16 %v7872
        %v7882 = vunpack.c.l.b16 %v7866
        %v7883 = vunpack.c.l.b16 %v7867
        %v7884 = vunpack.c.l.b16 %v7868
        %v7885 = vunpack.c.l.b16 %v7869
        %v7886 = vpack.c.b16 %v7882, %v7881
        %v7887 = vpack.c.b16 %v7884, %v7883
        %v7888 = vpack.c.b16 %v7885, %v7885
        %v7889 = vrot.slane %v7886, 1
        %v7890 = vrot.slane %v7887, 1
        %v7891 = vsel %vm3102, %v7889, %v7890
        %v7892 = vrot.slane %v7888, 1
        %v7893 = vsel %vm3102, %v7890, %v7892
        %v7896 = vunpack.c.l.b16 %v7874
        %v7897 = vunpack.c.l.b16 %v7875
        %v7898 = vpack.c.b16 %v7897, %v7896
        %v7901 = vsel %vm447, %v7891, 0
        %v7904 = vsel %vm447, %v7893, 0
        %v7907 = vsel %vm447, %v7892, 0
        %7909 = vmatpush.bf16.msra.mxu0 0
        %7910 = vmatpush.bf16.msra.mxu0 0
        %7911 = vmatpush.bf16.msra.mxu0 0
        %7912 = vmatpush.bf16.msra.mxu0 0
        %7913 = vmatpush.bf16.msra.mxu0 0
        %7914 = vmatpush.bf16.msra.mxu0 0
        %7915 = vmatpush.bf16.msra.mxu0 0
        %7916 = vmatpush.bf16.msra.mxu0 %v7898
        %7917 = vmatmul.bf16.gmra.mxu0 %v7901
        %v7918 = vpop.f32.mrf.mxu0
        %v7919 = vadd.f32 0.0, %v7918
        %v7920 = vpop.f32.mrf.mxu0
        %v7921 = vadd.f32 0.0, %v7920
        %7922 = vmatmul.bf16.gmra.mxu0 %v7904
        %v7923 = vpop.f32.mrf.mxu0
        %v7924 = vadd.f32 0.0, %v7923
        %v7925 = vpop.f32.mrf.mxu0
        %v7926 = vadd.f32 0.0, %v7925
        %7927 = vmatmul.bf16.gmra.mxu0 %v7907
        %v7928 = vpop.f32.mrf.mxu0
        %v7929 = vadd.f32 0.0, %v7928
        %v7930 = vpop.f32.mrf.mxu0
        %7931 = vdwg.mxu0
        %v7933 = vunpack.c.l.b16 %v7865
        %v7934 = vpack.c.b16 %v7882, %v7933
        %v7936 = vshrl.u32 %v7934, 16
        %v7938 = vshll.u32 %v7934, 16
        %v7940 = vrot.slane %v7938, 1
        %v7941 = vor.u32 %v7936, %v7940
        %v7943 = vshll.u32 %v7887, 16
        %v7945 = vrot.slane %v7943, 1
        %v7946 = vsel %vm2705, %v7941, %v7945
        %v7947 = vshrl.u32 %v7887, 16
        %v7949 = vor.u32 %v7947, %v7945
        %v7951 = vshll.u32 %v7888, 16
        %v7953 = vrot.slane %v7951, 1
        %v7954 = vsel %vm2705, %v7949, %v7953
        %v7955 = vshrl.u32 %v7888, 16
        %v7957 = vor.u32 %v7955, %v7953
        %v7960 = vunpack.c.l.b16 %v7870
        %v7961 = vunpack.c.l.b16 %v7871
        %v7962 = vpack.c.b16 %v7961, %v7960
        %v7965 = vsel %vm447, %v7946, 0
        %v7968 = vsel %vm447, %v7954, 0
        %v7971 = vsel %vm447, %v7957, 0
        %7973 = vmatpush.bf16.msra.mxu0 0
        %7974 = vmatpush.bf16.msra.mxu0 0
        %7975 = vmatpush.bf16.msra.mxu0 0
        %7976 = vmatpush.bf16.msra.mxu0 0
        %7977 = vmatpush.bf16.msra.mxu0 0
        %7978 = vmatpush.bf16.msra.mxu0 0
        %7979 = vmatpush.bf16.msra.mxu0 0
        %7980 = vmatpush.bf16.msra.mxu0 %v7962
        %7981 = vmatmul.bf16.gmra.mxu0 %v7965
        %v7982 = vpop.f32.mrf.mxu0
        %v7983 = vadd.f32 %v7919, %v7982
        %v7984 = vpop.f32.mrf.mxu0
        %v7985 = vadd.f32 %v7921, %v7984
        %7986 = vmatmul.bf16.gmra.mxu0 %v7968
        %v7987 = vpop.f32.mrf.mxu0
        %v7988 = vadd.f32 %v7924, %v7987
        %v7989 = vpop.f32.mrf.mxu0
        %v7990 = vadd.f32 %v7926, %v7989
        %7991 = vmatmul.bf16.gmra.mxu0 %v7971
        %v7992 = vpop.f32.mrf.mxu0
        %v7993 = vadd.f32 %v7929, %v7992
        %v7994 = vpop.f32.mrf.mxu0
        %7995 = vdwg.mxu0
        %v7996 = vld [vmem:[#allocation7 + $0x10] sm:$0xf]
        %s7997 = scalar_lea.vmem %s4, 16
        %v7998 = vld [vmem:[%s7997] sm:$0xf]
        %v7999 = vld [vmem:[%s7997 + $0x4] sm:$0xf]
        %v8001 = vunpack.c.l.b16 %v7996
        %v8002 = vpack.c.b16 %v8001, %v8001
        %v8004 = vshrl.u32 %v7886, 16
        %v8006 = vrot.slane %v8004, 1
        %v8007 = vshll.u32 %v7886, 16
        %v8009 = vrot.slane %v8007, 2
        %v8010 = vor.u32 %v8006, %v8009
        %v8011 = vrot.slane %v7947, 1
        %v8012 = vrot.slane %v7943, 2
        %v8013 = vor.u32 %v8011, %v8012
        %v8014 = vsel %vm3222, %v8010, %v8013
        %v8016 = vshrl.u32 %v8002, 16
        %v8018 = vrot.slane %v8016, 1
        %v8019 = vshll.u32 %v8002, 16
        %v8021 = vrot.slane %v8019, 2
        %v8022 = vor.u32 %v8018, %v8021
        %v8023 = vsel %vm3222, %v8013, %v8022
        %v8026 = vunpack.c.l.b16 %v7998
        %v8027 = vunpack.c.l.b16 %v7999
        %v8028 = vpack.c.b16 %v8027, %v8026
        %v8031 = vsel %vm447, %v8014, 0
        %v8034 = vsel %vm447, %v8023, 0
        %v8037 = vsel %vm447, %v8022, 0
        %8039 = vmatpush.bf16.msra.mxu0 0
        %8040 = vmatpush.bf16.msra.mxu0 0
        %8041 = vmatpush.bf16.msra.mxu0 0
        %8042 = vmatpush.bf16.msra.mxu0 0
        %8043 = vmatpush.bf16.msra.mxu0 0
        %8044 = vmatpush.bf16.msra.mxu0 0
        %8045 = vmatpush.bf16.msra.mxu0 0
        %8046 = vmatpush.bf16.msra.mxu0 %v8028
        %8047 = vmatmul.bf16.gmra.mxu0 %v8031
        %v8048 = vpop.f32.mrf.mxu0
        %v8049 = vadd.f32 0.0, %v8048
        %v8050 = vpop.f32.mrf.mxu0
        %v8051 = vadd.f32 0.0, %v8050
        %8052 = vmatmul.bf16.gmra.mxu0 %v8034
        %v8053 = vpop.f32.mrf.mxu0
        %v8054 = vadd.f32 0.0, %v8053
        %v8055 = vpop.f32.mrf.mxu0
        %v8056 = vadd.f32 0.0, %v8055
        %8057 = vmatmul.bf16.gmra.mxu0 %v8037
        %v8058 = vpop.f32.mrf.mxu0
        %v8059 = vadd.f32 0.0, %v8058
        %v8060 = vpop.f32.mrf.mxu0
        %8061 = vdwg.mxu0
        %v8062 = vadd.f32 %v7983, %v8049
        %v8063 = vadd.f32 %v7985, %v8051
        %v8064 = vadd.f32 %v7988, %v8054
        %v8065 = vadd.f32 %v7990, %v8056
        %v8066 = vadd.f32 %v7993, %v8059
        %v8067 = vld [vmem:[#allocation7] sm:$0x8]
        %v8068 = vld [vmem:[#allocation7 + $0x4] sm:$0xf]
        %v8069 = vld [vmem:[#allocation7 + $0x8] sm:$0xf]
        %v8070 = vld [vmem:[#allocation7 + $0xc] sm:$0xf]
        %v8071 = vld [vmem:[#allocation7 + $0x10] sm:$0xf]
        %v8072 = vld [vmem:[#allocation7 + $0x14] sm:$0x3]
        %s8073 = scalar_lea.vmem %s4, 24
        %v8074 = vld [vmem:[%s8073] sm:$0xf]
        %v8075 = vld [vmem:[%s8073 + $0x4] sm:$0xf]
        %v8082 = vunpack.c.l.b16 %v8067
        %v8083 = vunpack.c.l.b16 %v8068
        %v8084 = vunpack.c.l.b16 %v8069
        %v8085 = vunpack.c.l.b16 %v8070
        %v8086 = vunpack.c.l.b16 %v8071
        %v8087 = vunpack.c.l.b16 %v8072
        %v8088 = vpack.c.b16 %v8083, %v8082
        %v8089 = vpack.c.b16 %v8085, %v8084
        %v8090 = vpack.c.b16 %v8087, %v8086
        %v8092 = vshrl.u32 %v8088, 16
        %v8094 = vrot.slane %v8092, 3
        %v8095 = vshll.u32 %v8088, 16
        %v8097 = vrot.slane %v8095, 4
        %v8098 = vor.u32 %v8094, %v8097
        %v8100 = vshrl.u32 %v8089, 16
        %v8102 = vrot.slane %v8100, 3
        %v8103 = vshll.u32 %v8089, 16
        %v8105 = vrot.slane %v8103, 4
        %v8106 = vor.u32 %v8102, %v8105
        %v8107 = vsel %vm2157, %v8098, %v8106
        %v8109 = vshrl.u32 %v8090, 16
        %v8111 = vrot.slane %v8109, 3
        %v8112 = vshll.u32 %v8090, 16
        %v8114 = vrot.slane %v8112, 4
        %v8115 = vor.u32 %v8111, %v8114
        %v8116 = vsel %vm2157, %v8106, %v8115
        %v8119 = vunpack.c.l.b16 %v8074
        %v8120 = vunpack.c.l.b16 %v8075
        %v8121 = vpack.c.b16 %v8120, %v8119
        %v8124 = vsel %vm447, %v8107, 0
        %v8127 = vsel %vm447, %v8116, 0
        %v8130 = vsel %vm447, %v8115, 0
        %8132 = vmatpush.bf16.msra.mxu0 0
        %8133 = vmatpush.bf16.msra.mxu0 0
        %8134 = vmatpush.bf16.msra.mxu0 0
        %8135 = vmatpush.bf16.msra.mxu0 0
        %8136 = vmatpush.bf16.msra.mxu0 0
        %8137 = vmatpush.bf16.msra.mxu0 0
        %8138 = vmatpush.bf16.msra.mxu0 0
        %8139 = vmatpush.bf16.msra.mxu0 %v8121
        %8140 = vmatmul.bf16.gmra.mxu0 %v8124
        %v8141 = vpop.f32.mrf.mxu0
        %v8142 = vadd.f32 0.0, %v8141
        %v8143 = vpop.f32.mrf.mxu0
        %v8144 = vadd.f32 0.0, %v8143
        %8145 = vmatmul.bf16.gmra.mxu0 %v8127
        %v8146 = vpop.f32.mrf.mxu0
        %v8147 = vadd.f32 0.0, %v8146
        %v8148 = vpop.f32.mrf.mxu0
        %v8149 = vadd.f32 0.0, %v8148
        %8150 = vmatmul.bf16.gmra.mxu0 %v8130
        %v8151 = vpop.f32.mrf.mxu0
        %v8152 = vadd.f32 0.0, %v8151
        %v8153 = vpop.f32.mrf.mxu0
        %8154 = vdwg.mxu0
        %v8155 = vadd.f32 %v8062, %v8142
        %v8156 = vadd.f32 %v8063, %v8144
        %v8157 = vadd.f32 %v8064, %v8147
        %v8158 = vadd.f32 %v8065, %v8149
        %v8159 = vadd.f32 %v8066, %v8152
        %s8160 = scalar_lea.vmem %s4, 32
        %v8161 = vld [vmem:[%s8160] sm:$0xf]
        %v8162 = vld [vmem:[%s8160 + $0x4] sm:$0xf]
        %v8163 = vpack.c.b16 %v8084, %v8083
        %v8164 = vpack.c.b16 %v8086, %v8085
        %v8165 = vpack.c.b16 %v8087, %v8087
        %v8168 = vunpack.c.l.b16 %v8161
        %v8169 = vunpack.c.l.b16 %v8162
        %v8170 = vpack.c.b16 %v8169, %v8168
        %v8173 = vsel %vm447, %v8163, 0
        %v8176 = vsel %vm447, %v8164, 0
        %v8179 = vsel %vm447, %v8165, 0
        %8181 = vmatpush.bf16.msra.mxu0 0
        %8182 = vmatpush.bf16.msra.mxu0 0
        %8183 = vmatpush.bf16.msra.mxu0 0
        %8184 = vmatpush.bf16.msra.mxu0 0
        %8185 = vmatpush.bf16.msra.mxu0 0
        %8186 = vmatpush.bf16.msra.mxu0 0
        %8187 = vmatpush.bf16.msra.mxu0 0
        %8188 = vmatpush.bf16.msra.mxu0 %v8170
        %8189 = vmatmul.bf16.gmra.mxu0 %v8173
        %v8190 = vpop.f32.mrf.mxu0
        %v8191 = vadd.f32 0.0, %v8190
        %v8192 = vpop.f32.mrf.mxu0
        %v8193 = vadd.f32 0.0, %v8192
        %8194 = vmatmul.bf16.gmra.mxu0 %v8176
        %v8195 = vpop.f32.mrf.mxu0
        %v8196 = vadd.f32 0.0, %v8195
        %v8197 = vpop.f32.mrf.mxu0
        %v8198 = vadd.f32 0.0, %v8197
        %8199 = vmatmul.bf16.gmra.mxu0 %v8179
        %v8200 = vpop.f32.mrf.mxu0
        %v8201 = vadd.f32 0.0, %v8200
        %v8202 = vpop.f32.mrf.mxu0
        %8203 = vdwg.mxu0
        %v8204 = vadd.f32 %v8155, %v8191
        %v8205 = vadd.f32 %v8156, %v8193
        %v8206 = vadd.f32 %v8157, %v8196
        %v8207 = vadd.f32 %v8158, %v8198
        %v8208 = vadd.f32 %v8159, %v8201
        %v8209 = vld [vmem:[#allocation7 + $0x14] sm:$0x7]
        %s8210 = scalar_lea.vmem %s4, 40
        %v8211 = vld [vmem:[%s8210] sm:$0xf]
        %v8212 = vld [vmem:[%s8210 + $0x4] sm:$0xf]
        %v8214 = vunpack.c.l.b16 %v8209
        %v8215 = vpack.c.b16 %v8214, %v8214
        %v8216 = vshrl.u32 %v8163, 16
        %v8218 = vshll.u32 %v8163, 16
        %v8220 = vrot.slane %v8218, 1
        %v8221 = vor.u32 %v8216, %v8220
        %v8222 = vshll.u32 %v8164, 16
        %v8224 = vrot.slane %v8222, 1
        %v8225 = vsel %vm2705, %v8221, %v8224
        %v8226 = vshrl.u32 %v8164, 16
        %v8228 = vor.u32 %v8226, %v8224
        %v8230 = vshll.u32 %v8215, 16
        %v8232 = vrot.slane %v8230, 1
        %v8233 = vsel %vm2705, %v8228, %v8232
        %v8234 = vshrl.u32 %v8215, 16
        %v8236 = vor.u32 %v8234, %v8232
        %v8239 = vunpack.c.l.b16 %v8211
        %v8240 = vunpack.c.l.b16 %v8212
        %v8241 = vpack.c.b16 %v8240, %v8239
        %v8244 = vsel %vm447, %v8225, 0
        %v8247 = vsel %vm447, %v8233, 0
        %v8250 = vsel %vm447, %v8236, 0
        %8252 = vmatpush.bf16.msra.mxu0 0
        %8253 = vmatpush.bf16.msra.mxu0 0
        %8254 = vmatpush.bf16.msra.mxu0 0
        %8255 = vmatpush.bf16.msra.mxu0 0
        %8256 = vmatpush.bf16.msra.mxu0 0
        %8257 = vmatpush.bf16.msra.mxu0 0
        %8258 = vmatpush.bf16.msra.mxu0 0
        %8259 = vmatpush.bf16.msra.mxu0 %v8241
        %8260 = vmatmul.bf16.gmra.mxu0 %v8244
        %v8261 = vpop.f32.mrf.mxu0
        %v8262 = vadd.f32 0.0, %v8261
        %v8263 = vpop.f32.mrf.mxu0
        %v8264 = vadd.f32 0.0, %v8263
        %8265 = vmatmul.bf16.gmra.mxu0 %v8247
        %v8266 = vpop.f32.mrf.mxu0
        %v8267 = vadd.f32 0.0, %v8266
        %v8268 = vpop.f32.mrf.mxu0
        %v8269 = vadd.f32 0.0, %v8268
        %8270 = vmatmul.bf16.gmra.mxu0 %v8250
        %v8271 = vpop.f32.mrf.mxu0
        %v8272 = vadd.f32 0.0, %v8271
        %v8273 = vpop.f32.mrf.mxu0
        %8274 = vdwg.mxu0
        %v8275 = vadd.f32 %v8204, %v8262
        %v8276 = vadd.f32 %v8205, %v8264
        %v8277 = vadd.f32 %v8206, %v8267
        %v8278 = vadd.f32 %v8207, %v8269
        %v8279 = vadd.f32 %v8208, %v8272
        %v8280 = vld [vmem:[#allocation7 + $0x4] sm:$0xc]
        %v8281 = vld [vmem:[#allocation7 + $0x8] sm:$0xf]
        %v8282 = vld [vmem:[#allocation7 + $0xc] sm:$0xf]
        %v8283 = vld [vmem:[#allocation7 + $0x10] sm:$0xf]
        %v8284 = vld [vmem:[#allocation7 + $0x14] sm:$0xf]
        %v8285 = vld [vmem:[#allocation7 + $0x18] sm:$0x1]
        %s8286 = scalar_lea.vmem %s4, 48
        %v8287 = vld [vmem:[%s8286] sm:$0xf]
        %v8288 = vld [vmem:[%s8286 + $0x4] sm:$0xf]
        %v8295 = vunpack.c.l.b16 %v8280
        %v8296 = vunpack.c.l.b16 %v8281
        %v8297 = vunpack.c.l.b16 %v8282
        %v8298 = vunpack.c.l.b16 %v8283
        %v8299 = vunpack.c.l.b16 %v8284
        %v8300 = vunpack.c.l.b16 %v8285
        %v8301 = vpack.c.b16 %v8296, %v8295
        %v8302 = vpack.c.b16 %v8298, %v8297
        %v8303 = vpack.c.b16 %v8300, %v8299
        %v8305 = vshrl.u32 %v8301, 16
        %v8307 = vrot.slane %v8305, 2
        %v8308 = vshll.u32 %v8301, 16
        %v8310 = vrot.slane %v8308, 3
        %v8311 = vor.u32 %v8307, %v8310
        %v8313 = vshrl.u32 %v8302, 16
        %v8315 = vrot.slane %v8313, 2
        %v8316 = vshll.u32 %v8302, 16
        %v8318 = vrot.slane %v8316, 3
        %v8319 = vor.u32 %v8315, %v8318
        %v8320 = vsel %vm1990, %v8311, %v8319
        %v8322 = vshrl.u32 %v8303, 16
        %v8324 = vrot.slane %v8322, 2
        %v8325 = vshll.u32 %v8303, 16
        %v8327 = vrot.slane %v8325, 3
        %v8328 = vor.u32 %v8324, %v8327
        %v8329 = vsel %vm1990, %v8319, %v8328
        %v8332 = vunpack.c.l.b16 %v8287
        %v8333 = vunpack.c.l.b16 %v8288
        %v8334 = vpack.c.b16 %v8333, %v8332
        %v8337 = vsel %vm447, %v8320, 0
        %v8340 = vsel %vm447, %v8329, 0
        %v8343 = vsel %vm447, %v8328, 0
        %8345 = vmatpush.bf16.msra.mxu0 0
        %8346 = vmatpush.bf16.msra.mxu0 0
        %8347 = vmatpush.bf16.msra.mxu0 0
        %8348 = vmatpush.bf16.msra.mxu0 0
        %8349 = vmatpush.bf16.msra.mxu0 0
        %8350 = vmatpush.bf16.msra.mxu0 0
        %8351 = vmatpush.bf16.msra.mxu0 0
        %8352 = vmatpush.bf16.msra.mxu0 %v8334
        %8353 = vmatmul.bf16.gmra.mxu0 %v8337
        %v8354 = vpop.f32.mrf.mxu0
        %v8355 = vadd.f32 0.0, %v8354
        %v8356 = vpop.f32.mrf.mxu0
        %v8357 = vadd.f32 0.0, %v8356
        %8358 = vmatmul.bf16.gmra.mxu0 %v8340
        %v8359 = vpop.f32.mrf.mxu0
        %v8360 = vadd.f32 0.0, %v8359
        %v8361 = vpop.f32.mrf.mxu0
        %v8362 = vadd.f32 0.0, %v8361
        %8363 = vmatmul.bf16.gmra.mxu0 %v8343
        %v8364 = vpop.f32.mrf.mxu0
        %v8365 = vadd.f32 0.0, %v8364
        %v8366 = vpop.f32.mrf.mxu0
        %8367 = vdwg.mxu0
        %v8368 = vadd.f32 %v8275, %v8355
        %v8369 = vadd.f32 %v8276, %v8357
        %v8370 = vadd.f32 %v8277, %v8360
        %v8371 = vadd.f32 %v8278, %v8362
        %v8372 = vadd.f32 %v8279, %v8365
        %v8373 = vld [vmem:[#allocation7 + $0x4] sm:$0x8]
        %s8374 = scalar_lea.vmem %s4, 56
        %v8375 = vld [vmem:[%s8374] sm:$0xf]
        %v8376 = vld [vmem:[%s8374 + $0x4] sm:$0xf]
        %v8378 = vunpack.c.l.b16 %v8373
        %v8379 = vpack.c.b16 %v8296, %v8378
        %v8380 = vrot.slane %v8379, 3
        %v8381 = vrot.slane %v8302, 3
        %v8382 = vsel %vm1890, %v8380, %v8381
        %v8383 = vrot.slane %v8303, 3
        %v8384 = vsel %vm1890, %v8381, %v8383
        %v8387 = vunpack.c.l.b16 %v8375
        %v8388 = vunpack.c.l.b16 %v8376
        %v8389 = vpack.c.b16 %v8388, %v8387
        %v8392 = vsel %vm447, %v8382, 0
        %v8395 = vsel %vm447, %v8384, 0
        %v8398 = vsel %vm447, %v8383, 0
        %8400 = vmatpush.bf16.msra.mxu0 0
        %8401 = vmatpush.bf16.msra.mxu0 0
        %8402 = vmatpush.bf16.msra.mxu0 0
        %8403 = vmatpush.bf16.msra.mxu0 0
        %8404 = vmatpush.bf16.msra.mxu0 0
        %8405 = vmatpush.bf16.msra.mxu0 0
        %8406 = vmatpush.bf16.msra.mxu0 0
        %8407 = vmatpush.bf16.msra.mxu0 %v8389
        %8408 = vmatmul.bf16.gmra.mxu0 %v8392
        %v8409 = vpop.f32.mrf.mxu0
        %v8410 = vadd.f32 0.0, %v8409
        %v8411 = vpop.f32.mrf.mxu0
        %v8412 = vadd.f32 0.0, %v8411
        %8413 = vmatmul.bf16.gmra.mxu0 %v8395
        %v8414 = vpop.f32.mrf.mxu0
        %v8415 = vadd.f32 0.0, %v8414
        %v8416 = vpop.f32.mrf.mxu0
        %v8417 = vadd.f32 0.0, %v8416
        %8418 = vmatmul.bf16.gmra.mxu0 %v8398
        %v8419 = vpop.f32.mrf.mxu0
        %v8420 = vadd.f32 0.0, %v8419
        %v8421 = vpop.f32.mrf.mxu0
        %8422 = vdwg.mxu0
        %v8423 = vadd.f32 %v8368, %v8410
        %v8424 = vadd.f32 %v8369, %v8412
        %v8425 = vadd.f32 %v8370, %v8415
        %v8426 = vadd.f32 %v8371, %v8417
        %v8427 = vadd.f32 %v8372, %v8420
        %v8428 = vld [vmem:[#allocation7 + $0x18] sm:$0x3]
        %s8429 = scalar_lea.vmem %s4, 64
        %v8430 = vld [vmem:[%s8429] sm:$0xf]
        %v8431 = vld [vmem:[%s8429 + $0x4] sm:$0xf]
        %v8433 = vunpack.c.l.b16 %v8428
        %v8434 = vpack.c.b16 %v8433, %v8299
        %v8436 = vshrl.u32 %v8379, 16
        %v8438 = vrot.slane %v8436, 3
        %v8439 = vshll.u32 %v8379, 16
        %v8441 = vrot.slane %v8439, 4
        %v8442 = vor.u32 %v8438, %v8441
        %v8443 = vrot.slane %v8313, 3
        %v8444 = vrot.slane %v8316, 4
        %v8445 = vor.u32 %v8443, %v8444
        %v8446 = vsel %vm2157, %v8442, %v8445
        %v8448 = vshrl.u32 %v8434, 16
        %v8450 = vrot.slane %v8448, 3
        %v8451 = vshll.u32 %v8434, 16
        %v8453 = vrot.slane %v8451, 4
        %v8454 = vor.u32 %v8450, %v8453
        %v8455 = vsel %vm2157, %v8445, %v8454
        %v8458 = vunpack.c.l.b16 %v8430
        %v8459 = vunpack.c.l.b16 %v8431
        %v8460 = vpack.c.b16 %v8459, %v8458
        %v8463 = vsel %vm447, %v8446, 0
        %v8466 = vsel %vm447, %v8455, 0
        %v8469 = vsel %vm447, %v8454, 0
        %8471 = vmatpush.bf16.msra.mxu0 0
        %8472 = vmatpush.bf16.msra.mxu0 0
        %8473 = vmatpush.bf16.msra.mxu0 0
        %8474 = vmatpush.bf16.msra.mxu0 0
        %8475 = vmatpush.bf16.msra.mxu0 0
        %8476 = vmatpush.bf16.msra.mxu0 0
        %8477 = vmatpush.bf16.msra.mxu0 0
        %8478 = vmatpush.bf16.msra.mxu0 %v8460
        %8479 = vmatmul.bf16.gmra.mxu0 %v8463
        %v8480 = vpop.f32.mrf.mxu0
        %v8481 = vadd.f32 0.0, %v8480
        %v8482 = vpop.f32.mrf.mxu0
        %v8483 = vadd.f32 0.0, %v8482
        %8484 = vmatmul.bf16.gmra.mxu0 %v8466
        %v8485 = vpop.f32.mrf.mxu0
        %v8486 = vadd.f32 0.0, %v8485
        %v8487 = vpop.f32.mrf.mxu0
        %v8488 = vadd.f32 0.0, %v8487
        %8489 = vmatmul.bf16.gmra.mxu0 %v8469
        %v8490 = vpop.f32.mrf.mxu0
        %v8491 = vadd.f32 0.0, %v8490
        %v8492 = vpop.f32.mrf.mxu0
        %8493 = vdwg.mxu0
        %v8494 = vadd.f32 %v8423, %v8481
        %v8495 = vadd.f32 %v8424, %v8483
        %v8496 = vadd.f32 %v8425, %v8486
        %v8497 = vadd.f32 %v8426, %v8488
        %v8498 = vadd.f32 %v8427, %v8491
        %v8499 = vmax.f32 %v8494, 0.0
        %v8500 = vmax.f32 %v8495, 0.0
        %v8501 = vmax.f32 %v8496, 0.0
        %v8502 = vmax.f32 %v8497, 0.0
        %v8503 = vmax.f32 %v8498, 0.0
        %vm8504 = vcmask 97280
        %8505 = vst.msk [vmem:[#allocation8] sm:$0xff] %vm8504, %v8499
        %8506 = vst.msk [vmem:[#allocation8 + $0x8] sm:$0xff] %vm8504, %v8500
        %8507 = vst.msk [vmem:[#allocation8 + $0x10] sm:$0xff] %vm8504, %v8501
        %8508 = vst.msk [vmem:[#allocation8 + $0x18] sm:$0xff] %vm8504, %v8502
        %vm8509 = vcmask 93184
        %8510 = vst.msk [vmem:[#allocation8 + $0x20] sm:$0xf] %vm8509, %v8503
        %v8511 = vld [vmem:[#allocation8 + $0x7] sm:$0x1]
        %v8512 = vpack.c.bf16 %v8511, %v8511
        %v8513 = vld [vmem:[%s5] sm:$0xf]
        %v8514 = vld [vmem:[%s5 + $0x4] sm:$0x3]
        %v8515 = vld [vmem:[#allocation8 + $0x8] sm:$0x1]
        %v8516 = vpack.c.bf16 %v8515, %v8515
        %s8517 = scalar_lea.vmem %s5, 8
        %v8518 = vld [vmem:[%s8517] sm:$0xf]
        %v8519 = vld [vmem:[%s8517 + $0x4] sm:$0x3]
        %v8522 = vunpack.c.l.b16 %v8518
        %v8523 = vunpack.c.l.b16 %v8519
        %v8524 = vpack.c.b16 %v8523, %v8522
        %v8526 = vsel %vm8504, %v8516, 0
        %v8529 = vsel %vm376, %v8524, 0
        %8531 = vmatpush.bf16.msra.mxu0 0
        %8532 = vmatpush.bf16.msra.mxu0 0
        %8533 = vmatpush.bf16.msra.mxu0 0
        %8534 = vmatpush.bf16.msra.mxu0 0
        %8535 = vmatpush.bf16.msra.mxu0 0
        %8536 = vmatpush.bf16.msra.mxu0 0
        %8537 = vmatpush.bf16.msra.mxu0 0
        %8538 = vmatpush.bf16.msra.mxu0 %v8529
        %8539 = vmatmul.bf16.gmra.mxu0 %v8526
        %v8540 = vpop.f32.mrf.mxu0
        %v8541 = vadd.f32 0.0, %v8540
        %v8542 = vpop.f32.mrf.mxu0
        %8543 = vdwg.mxu0
        %v8546 = vunpack.c.l.b16 %v8513
        %v8547 = vunpack.c.l.b16 %v8514
        %v8548 = vpack.c.b16 %v8547, %v8546
        %v8550 = vsel %vm8504, %v8512, 0
        %v8553 = vsel %vm376, %v8548, 0
        %8555 = vmatpush.bf16.msra.mxu0 0
        %8556 = vmatpush.bf16.msra.mxu0 0
        %8557 = vmatpush.bf16.msra.mxu0 0
        %8558 = vmatpush.bf16.msra.mxu0 0
        %8559 = vmatpush.bf16.msra.mxu0 0
        %8560 = vmatpush.bf16.msra.mxu0 0
        %8561 = vmatpush.bf16.msra.mxu0 0
        %8562 = vmatpush.bf16.msra.mxu0 %v8553
        %8563 = vmatmul.bf16.gmra.mxu0 %v8550
        %v8564 = vpop.f32.mrf.mxu0
        %v8565 = vadd.f32 %v8541, %v8564
        %v8566 = vpop.f32.mrf.mxu0
        %8567 = vdwg.mxu0
        %v8568 = vld [vmem:[#allocation8 + $0x9] sm:$0x1]
        %v8569 = vpack.c.bf16 %v8568, %v8568
        %s8570 = scalar_lea.vmem %s5, 16
        %v8571 = vld [vmem:[%s8570] sm:$0xf]
        %v8572 = vld [vmem:[%s8570 + $0x4] sm:$0x3]
        %v8575 = vunpack.c.l.b16 %v8571
        %v8576 = vunpack.c.l.b16 %v8572
        %v8577 = vpack.c.b16 %v8576, %v8575
        %v8579 = vsel %vm8504, %v8569, 0
        %v8582 = vsel %vm376, %v8577, 0
        %8584 = vmatpush.bf16.msra.mxu0 0
        %8585 = vmatpush.bf16.msra.mxu0 0
        %8586 = vmatpush.bf16.msra.mxu0 0
        %8587 = vmatpush.bf16.msra.mxu0 0
        %8588 = vmatpush.bf16.msra.mxu0 0
        %8589 = vmatpush.bf16.msra.mxu0 0
        %8590 = vmatpush.bf16.msra.mxu0 0
        %8591 = vmatpush.bf16.msra.mxu0 %v8582
        %8592 = vmatmul.bf16.gmra.mxu0 %v8579
        %v8593 = vpop.f32.mrf.mxu0
        %v8594 = vadd.f32 0.0, %v8593
        %v8595 = vpop.f32.mrf.mxu0
        %8596 = vdwg.mxu0
        %v8597 = vadd.f32 %v8565, %v8594
        %v8598 = vld [vmem:[#allocation8 + $0xa] sm:$0x1]
        %v8599 = vpack.c.bf16 %v8598, %v8598
        %s8600 = scalar_lea.vmem %s5, 24
        %v8601 = vld [vmem:[%s8600] sm:$0xf]
        %v8602 = vld [vmem:[%s8600 + $0x4] sm:$0x3]
        %v8605 = vunpack.c.l.b16 %v8601
        %v8606 = vunpack.c.l.b16 %v8602
        %v8607 = vpack.c.b16 %v8606, %v8605
        %v8609 = vsel %vm8504, %v8599, 0
        %v8612 = vsel %vm376, %v8607, 0
        %8614 = vmatpush.bf16.msra.mxu0 0
        %8615 = vmatpush.bf16.msra.mxu0 0
        %8616 = vmatpush.bf16.msra.mxu0 0
        %8617 = vmatpush.bf16.msra.mxu0 0
        %8618 = vmatpush.bf16.msra.mxu0 0
        %8619 = vmatpush.bf16.msra.mxu0 0
        %8620 = vmatpush.bf16.msra.mxu0 0
        %8621 = vmatpush.bf16.msra.mxu0 %v8612
        %8622 = vmatmul.bf16.gmra.mxu0 %v8609
        %v8623 = vpop.f32.mrf.mxu0
        %v8624 = vadd.f32 0.0, %v8623
        %v8625 = vpop.f32.mrf.mxu0
        %8626 = vdwg.mxu0
        %v8627 = vadd.f32 %v8597, %v8624
        %v8628 = vld [vmem:[#allocation8 + $0xd] sm:$0x1]
        %v8629 = vpack.c.bf16 %v8628, %v8628
        %s8630 = scalar_lea.vmem %s5, 32
        %v8631 = vld [vmem:[%s8630] sm:$0xf]
        %v8632 = vld [vmem:[%s8630 + $0x4] sm:$0x3]
        %v8635 = vunpack.c.l.b16 %v8631
        %v8636 = vunpack.c.l.b16 %v8632
        %v8637 = vpack.c.b16 %v8636, %v8635
        %v8639 = vsel %vm8504, %v8629, 0
        %v8642 = vsel %vm376, %v8637, 0
        %8644 = vmatpush.bf16.msra.mxu0 0
        %8645 = vmatpush.bf16.msra.mxu0 0
        %8646 = vmatpush.bf16.msra.mxu0 0
        %8647 = vmatpush.bf16.msra.mxu0 0
        %8648 = vmatpush.bf16.msra.mxu0 0
        %8649 = vmatpush.bf16.msra.mxu0 0
        %8650 = vmatpush.bf16.msra.mxu0 0
        %8651 = vmatpush.bf16.msra.mxu0 %v8642
        %8652 = vmatmul.bf16.gmra.mxu0 %v8639
        %v8653 = vpop.f32.mrf.mxu0
        %v8654 = vadd.f32 0.0, %v8653
        %v8655 = vpop.f32.mrf.mxu0
        %8656 = vdwg.mxu0
        %v8657 = vadd.f32 %v8627, %v8654
        %v8658 = vld [vmem:[#allocation8 + $0xe] sm:$0x1]
        %v8659 = vpack.c.bf16 %v8658, %v8658
        %s8660 = scalar_lea.vmem %s5, 40
        %v8661 = vld [vmem:[%s8660] sm:$0xf]
        %v8662 = vld [vmem:[%s8660 + $0x4] sm:$0x3]
        %v8665 = vunpack.c.l.b16 %v8661
        %v8666 = vunpack.c.l.b16 %v8662
        %v8667 = vpack.c.b16 %v8666, %v8665
        %v8669 = vsel %vm8504, %v8659, 0
        %v8672 = vsel %vm376, %v8667, 0
        %8674 = vmatpush.bf16.msra.mxu0 0
        %8675 = vmatpush.bf16.msra.mxu0 0
        %8676 = vmatpush.bf16.msra.mxu0 0
        %8677 = vmatpush.bf16.msra.mxu0 0
        %8678 = vmatpush.bf16.msra.mxu0 0
        %8679 = vmatpush.bf16.msra.mxu0 0
        %8680 = vmatpush.bf16.msra.mxu0 0
        %8681 = vmatpush.bf16.msra.mxu0 %v8672
        %8682 = vmatmul.bf16.gmra.mxu0 %v8669
        %v8683 = vpop.f32.mrf.mxu0
        %v8684 = vadd.f32 0.0, %v8683
        %v8685 = vpop.f32.mrf.mxu0
        %8686 = vdwg.mxu0
        %v8687 = vadd.f32 %v8657, %v8684
        %v8688 = vld [vmem:[#allocation8 + $0xf] sm:$0x1]
        %v8689 = vpack.c.bf16 %v8688, %v8688
        %s8690 = scalar_lea.vmem %s5, 48
        %v8691 = vld [vmem:[%s8690] sm:$0xf]
        %v8692 = vld [vmem:[%s8690 + $0x4] sm:$0x3]
        %v8695 = vunpack.c.l.b16 %v8691
        %v8696 = vunpack.c.l.b16 %v8692
        %v8697 = vpack.c.b16 %v8696, %v8695
        %v8699 = vsel %vm8504, %v8689, 0
        %v8702 = vsel %vm376, %v8697, 0
        %8704 = vmatpush.bf16.msra.mxu0 0
        %8705 = vmatpush.bf16.msra.mxu0 0
        %8706 = vmatpush.bf16.msra.mxu0 0
        %8707 = vmatpush.bf16.msra.mxu0 0
        %8708 = vmatpush.bf16.msra.mxu0 0
        %8709 = vmatpush.bf16.msra.mxu0 0
        %8710 = vmatpush.bf16.msra.mxu0 0
        %8711 = vmatpush.bf16.msra.mxu0 %v8702
        %8712 = vmatmul.bf16.gmra.mxu0 %v8699
        %v8713 = vpop.f32.mrf.mxu0
        %v8714 = vadd.f32 0.0, %v8713
        %v8715 = vpop.f32.mrf.mxu0
        %8716 = vdwg.mxu0
        %v8717 = vadd.f32 %v8687, %v8714
        %v8718 = vld [vmem:[#allocation8 + $0x10] sm:$0x1]
        %v8719 = vpack.c.bf16 %v8718, %v8718
        %s8720 = scalar_lea.vmem %s5, 56
        %v8721 = vld [vmem:[%s8720] sm:$0xf]
        %v8722 = vld [vmem:[%s8720 + $0x4] sm:$0x3]
        %v8725 = vunpack.c.l.b16 %v8721
        %v8726 = vunpack.c.l.b16 %v8722
        %v8727 = vpack.c.b16 %v8726, %v8725
        %v8729 = vsel %vm8504, %v8719, 0
        %v8732 = vsel %vm376, %v8727, 0
        %8734 = vmatpush.bf16.msra.mxu0 0
        %8735 = vmatpush.bf16.msra.mxu0 0
        %8736 = vmatpush.bf16.msra.mxu0 0
        %8737 = vmatpush.bf16.msra.mxu0 0
        %8738 = vmatpush.bf16.msra.mxu0 0
        %8739 = vmatpush.bf16.msra.mxu0 0
        %8740 = vmatpush.bf16.msra.mxu0 0
        %8741 = vmatpush.bf16.msra.mxu0 %v8732
        %8742 = vmatmul.bf16.gmra.mxu0 %v8729
        %v8743 = vpop.f32.mrf.mxu0
        %v8744 = vadd.f32 0.0, %v8743
        %v8745 = vpop.f32.mrf.mxu0
        %8746 = vdwg.mxu0
        %v8747 = vadd.f32 %v8717, %v8744
        %v8748 = vld [vmem:[#allocation8 + $0x13] sm:$0x1]
        %v8749 = vpack.c.bf16 %v8748, %v8748
        %s8750 = scalar_lea.vmem %s5, 64
        %v8751 = vld [vmem:[%s8750] sm:$0xf]
        %v8752 = vld [vmem:[%s8750 + $0x4] sm:$0x3]
        %v8755 = vunpack.c.l.b16 %v8751
        %v8756 = vunpack.c.l.b16 %v8752
        %v8757 = vpack.c.b16 %v8756, %v8755
        %v8759 = vsel %vm8504, %v8749, 0
        %v8762 = vsel %vm376, %v8757, 0
        %8764 = vmatpush.bf16.msra.mxu0 0
        %8765 = vmatpush.bf16.msra.mxu0 0
        %8766 = vmatpush.bf16.msra.mxu0 0
        %8767 = vmatpush.bf16.msra.mxu0 0
        %8768 = vmatpush.bf16.msra.mxu0 0
        %8769 = vmatpush.bf16.msra.mxu0 0
        %8770 = vmatpush.bf16.msra.mxu0 0
        %8771 = vmatpush.bf16.msra.mxu0 %v8762
        %8772 = vmatmul.bf16.gmra.mxu0 %v8759
        %v8773 = vpop.f32.mrf.mxu0
        %v8774 = vadd.f32 0.0, %v8773
        %v8775 = vpop.f32.mrf.mxu0
        %8776 = vdwg.mxu0
        %v8777 = vadd.f32 %v8747, %v8774
        %v8778 = vld [vmem:[#allocation8 + $0x14] sm:$0x1]
        %v8779 = vpack.c.bf16 %v8778, %v8778
        %s8780 = scalar_lea.vmem %s5, 72
        %v8781 = vld [vmem:[%s8780] sm:$0xf]
        %v8782 = vld [vmem:[%s8780 + $0x4] sm:$0x3]
        %v8785 = vunpack.c.l.b16 %v8781
        %v8786 = vunpack.c.l.b16 %v8782
        %v8787 = vpack.c.b16 %v8786, %v8785
        %v8789 = vsel %vm8504, %v8779, 0
        %v8792 = vsel %vm376, %v8787, 0
        %8794 = vmatpush.bf16.msra.mxu0 0
        %8795 = vmatpush.bf16.msra.mxu0 0
        %8796 = vmatpush.bf16.msra.mxu0 0
        %8797 = vmatpush.bf16.msra.mxu0 0
        %8798 = vmatpush.bf16.msra.mxu0 0
        %8799 = vmatpush.bf16.msra.mxu0 0
        %8800 = vmatpush.bf16.msra.mxu0 0
        %8801 = vmatpush.bf16.msra.mxu0 %v8792
        %8802 = vmatmul.bf16.gmra.mxu0 %v8789
        %v8803 = vpop.f32.mrf.mxu0
        %v8804 = vadd.f32 0.0, %v8803
        %v8805 = vpop.f32.mrf.mxu0
        %8806 = vdwg.mxu0
        %v8807 = vadd.f32 %v8777, %v8804
        %v8808 = vld [vmem:[#allocation8 + $0x15] sm:$0x1]
        %v8809 = vpack.c.bf16 %v8808, %v8808
        %s8810 = scalar_lea.vmem %s5, 80
        %v8811 = vld [vmem:[%s8810] sm:$0xf]
        %v8812 = vld [vmem:[%s8810 + $0x4] sm:$0x3]
        %v8815 = vunpack.c.l.b16 %v8811
        %v8816 = vunpack.c.l.b16 %v8812
        %v8817 = vpack.c.b16 %v8816, %v8815
        %v8819 = vsel %vm8504, %v8809, 0
        %v8822 = vsel %vm376, %v8817, 0
        %8824 = vmatpush.bf16.msra.mxu0 0
        %8825 = vmatpush.bf16.msra.mxu0 0
        %8826 = vmatpush.bf16.msra.mxu0 0
        %8827 = vmatpush.bf16.msra.mxu0 0
        %8828 = vmatpush.bf16.msra.mxu0 0
        %8829 = vmatpush.bf16.msra.mxu0 0
        %8830 = vmatpush.bf16.msra.mxu0 0
        %8831 = vmatpush.bf16.msra.mxu0 %v8822
        %8832 = vmatmul.bf16.gmra.mxu0 %v8819
        %v8833 = vpop.f32.mrf.mxu0
        %v8834 = vadd.f32 0.0, %v8833
        %v8835 = vpop.f32.mrf.mxu0
        %8836 = vdwg.mxu0
        %v8837 = vadd.f32 %v8807, %v8834
        %v8838 = vld [vmem:[#allocation8 + $0x16] sm:$0x1]
        %v8839 = vpack.c.bf16 %v8838, %v8838
        %s8840 = scalar_lea.vmem %s5, 88
        %v8841 = vld [vmem:[%s8840] sm:$0xf]
        %v8842 = vld [vmem:[%s8840 + $0x4] sm:$0x3]
        %v8845 = vunpack.c.l.b16 %v8841
        %v8846 = vunpack.c.l.b16 %v8842
        %v8847 = vpack.c.b16 %v8846, %v8845
        %v8849 = vsel %vm8504, %v8839, 0
        %v8852 = vsel %vm376, %v8847, 0
        %8854 = vmatpush.bf16.msra.mxu0 0
        %8855 = vmatpush.bf16.msra.mxu0 0
        %8856 = vmatpush.bf16.msra.mxu0 0
        %8857 = vmatpush.bf16.msra.mxu0 0
        %8858 = vmatpush.bf16.msra.mxu0 0
        %8859 = vmatpush.bf16.msra.mxu0 0
        %8860 = vmatpush.bf16.msra.mxu0 0
        %8861 = vmatpush.bf16.msra.mxu0 %v8852
        %8862 = vmatmul.bf16.gmra.mxu0 %v8849
        %v8863 = vpop.f32.mrf.mxu0
        %v8864 = vadd.f32 0.0, %v8863
        %v8865 = vpop.f32.mrf.mxu0
        %8866 = vdwg.mxu0
        %v8867 = vadd.f32 %v8837, %v8864
        %v8868 = vld [vmem:[#allocation8 + $0x19] sm:$0x1]
        %v8869 = vpack.c.bf16 %v8868, %v8868
        %s8870 = scalar_lea.vmem %s5, 96
        %v8871 = vld [vmem:[%s8870] sm:$0xf]
        %v8872 = vld [vmem:[%s8870 + $0x4] sm:$0x3]
        %v8875 = vunpack.c.l.b16 %v8871
        %v8876 = vunpack.c.l.b16 %v8872
        %v8877 = vpack.c.b16 %v8876, %v8875
        %v8879 = vsel %vm8504, %v8869, 0
        %v8882 = vsel %vm376, %v8877, 0
        %8884 = vmatpush.bf16.msra.mxu0 0
        %8885 = vmatpush.bf16.msra.mxu0 0
        %8886 = vmatpush.bf16.msra.mxu0 0
        %8887 = vmatpush.bf16.msra.mxu0 0
        %8888 = vmatpush.bf16.msra.mxu0 0
        %8889 = vmatpush.bf16.msra.mxu0 0
        %8890 = vmatpush.bf16.msra.mxu0 0
        %8891 = vmatpush.bf16.msra.mxu0 %v8882
        %8892 = vmatmul.bf16.gmra.mxu0 %v8879
        %v8893 = vpop.f32.mrf.mxu0
        %v8894 = vadd.f32 0.0, %v8893
        %v8895 = vpop.f32.mrf.mxu0
        %8896 = vdwg.mxu0
        %v8897 = vadd.f32 %v8867, %v8894
        %v8898 = vld [vmem:[#allocation8 + $0x1a] sm:$0x1]
        %v8899 = vpack.c.bf16 %v8898, %v8898
        %s8900 = scalar_lea.vmem %s5, 104
        %v8901 = vld [vmem:[%s8900] sm:$0xf]
        %v8902 = vld [vmem:[%s8900 + $0x4] sm:$0x3]
        %v8905 = vunpack.c.l.b16 %v8901
        %v8906 = vunpack.c.l.b16 %v8902
        %v8907 = vpack.c.b16 %v8906, %v8905
        %v8909 = vsel %vm8504, %v8899, 0
        %v8912 = vsel %vm376, %v8907, 0
        %8914 = vmatpush.bf16.msra.mxu0 0
        %8915 = vmatpush.bf16.msra.mxu0 0
        %8916 = vmatpush.bf16.msra.mxu0 0
        %8917 = vmatpush.bf16.msra.mxu0 0
        %8918 = vmatpush.bf16.msra.mxu0 0
        %8919 = vmatpush.bf16.msra.mxu0 0
        %8920 = vmatpush.bf16.msra.mxu0 0
        %8921 = vmatpush.bf16.msra.mxu0 %v8912
        %8922 = vmatmul.bf16.gmra.mxu0 %v8909
        %v8923 = vpop.f32.mrf.mxu0
        %v8924 = vadd.f32 0.0, %v8923
        %v8925 = vpop.f32.mrf.mxu0
        %8926 = vdwg.mxu0
        %v8927 = vadd.f32 %v8897, %v8924
        %v8928 = vld [vmem:[#allocation8 + $0x1b] sm:$0x1]
        %v8929 = vpack.c.bf16 %v8928, %v8928
        %s8930 = scalar_lea.vmem %s5, 112
        %v8931 = vld [vmem:[%s8930] sm:$0xf]
        %v8932 = vld [vmem:[%s8930 + $0x4] sm:$0x3]
        %v8935 = vunpack.c.l.b16 %v8931
        %v8936 = vunpack.c.l.b16 %v8932
        %v8937 = vpack.c.b16 %v8936, %v8935
        %v8939 = vsel %vm8504, %v8929, 0
        %v8942 = vsel %vm376, %v8937, 0
        %8944 = vmatpush.bf16.msra.mxu0 0
        %8945 = vmatpush.bf16.msra.mxu0 0
        %8946 = vmatpush.bf16.msra.mxu0 0
        %8947 = vmatpush.bf16.msra.mxu0 0
        %8948 = vmatpush.bf16.msra.mxu0 0
        %8949 = vmatpush.bf16.msra.mxu0 0
        %8950 = vmatpush.bf16.msra.mxu0 0
        %8951 = vmatpush.bf16.msra.mxu0 %v8942
        %8952 = vmatmul.bf16.gmra.mxu0 %v8939
        %v8953 = vpop.f32.mrf.mxu0
        %v8954 = vadd.f32 0.0, %v8953
        %v8955 = vpop.f32.mrf.mxu0
        %8956 = vdwg.mxu0
        %v8957 = vadd.f32 %v8927, %v8954
        %v8958 = vld [vmem:[#allocation8 + $0x1c] sm:$0x1]
        %v8959 = vpack.c.bf16 %v8958, %v8958
        %s8960 = scalar_lea.vmem %s5, 120
        %v8961 = vld [vmem:[%s8960] sm:$0xf]
        %v8962 = vld [vmem:[%s8960 + $0x4] sm:$0x3]
        %v8965 = vunpack.c.l.b16 %v8961
        %v8966 = vunpack.c.l.b16 %v8962
        %v8967 = vpack.c.b16 %v8966, %v8965
        %v8969 = vsel %vm8504, %v8959, 0
        %v8972 = vsel %vm376, %v8967, 0
        %8974 = vmatpush.bf16.msra.mxu0 0
        %8975 = vmatpush.bf16.msra.mxu0 0
        %8976 = vmatpush.bf16.msra.mxu0 0
        %8977 = vmatpush.bf16.msra.mxu0 0
        %8978 = vmatpush.bf16.msra.mxu0 0
        %8979 = vmatpush.bf16.msra.mxu0 0
        %8980 = vmatpush.bf16.msra.mxu0 0
        %8981 = vmatpush.bf16.msra.mxu0 %v8972
        %8982 = vmatmul.bf16.gmra.mxu0 %v8969
        %v8983 = vpop.f32.mrf.mxu0
        %v8984 = vadd.f32 0.0, %v8983
        %v8985 = vpop.f32.mrf.mxu0
        %8986 = vdwg.mxu0
        %v8987 = vadd.f32 %v8957, %v8984
        %v8988 = vld [vmem:[%s6] sm:$0x1]
        %v8989 = vadd.f32 %v8987, %v8988
        %vm8990 = vcmask 73728
        %8991 = vst.msk [vmem:[%s271] sm:$0x1] %vm8990, %v8989
        %s8992 = sand.u32 %s181, 1
        %s8993 = scalar_lea.sflag [#allocation10], %s8992
        %s8994 = sand.u32 %s181, 1
        %s8995 = scalar_lea.vmem [#allocation9], %s8994
        // Predicated region
        $region49: #{forward.1} parent=47 // pred_check
          %p8996 = pneg %p191
        $region50: #{forward.1} parent=47 // pred_check_branch
          %8998 = sbr.rel (%p8996) target = $region52
        $region51: #{forward.1} parent=47 // pred_region
          %9000 = vsyncadd %s8993, 0
          %s9001 = scalar_lea.hbm %s7, %s21
          %s9003 = sshll.u32 %s8995, 4
          %s9004 = int_to_ptr.vmem [resolvable:$true] %s9003
          %s9005 = sshll.u32 %s9001, 4
          %s9006 = int_to_ptr.hbm [resolvable:$true] %s9005
          %9008 = dma.vmem_to_hbm [thread:$0]  %s9004, 16, %s9006, %s8993
        $region52: #{forward.1} parent=47 // pred_fallthru
          _
      $region48: #{forward.1} parent=5 // pred_fallthru
        _
      %p9009 = scmp.le.s32.totalorder 2, %s16
      // Predicated region
      $region53: #{forward.1} parent=5 // pred_check
        %p9010 = pneg %p9009
      $region54: #{forward.1} parent=5 // pred_check_branch
        %9012 = sbr.rel (%p9010) target = $region56
      $region55: #{forward.1} parent=5 // pred_region
        %s9013 = ssub.s32 %s16, 2
        // Predicated region
        $region57: #{forward.1} parent=55 // pred_check
          %p9014 = pneg %p197
        $region58: #{forward.1} parent=55 // pred_check_branch
          %9016 = sbr.rel (%p9014) target = $region60
        $region59: #{forward.1} parent=55 // pred_region
          %s9017 = sand.u32 %s182, 1
          %s9018 = scalar_lea.sflag [#allocation10], %s9017
          %s9019 = sand.u32 %s182, 1
          %s9020 = scalar_lea.vmem [#allocation9], %s9019
          %9022 = dma.done %s9018, 16
        $region60: #{forward.1} parent=55 // pred_fallthru
          _
      $region56: #{forward.1} parent=5 // pred_fallthru
        _
    $region6: #{forward.1} parent=1 // loop_footer
      %s20 = sadd.s32 1, %s16
    $region7: #{forward.1} parent=1 // loop_footer_branch
      %15 = sbr.rel target = $region3
    $region8: #{forward.1} parent=1 // loop_exit
      _
    %9023 = vsyncpa [#allocation10], 1
    %s9024 = scalar_lea.sflag [#allocation10], 1
    %9025 = vsyncpa %s9024, 1

</llo_original>
